<compile_context>
chip_gen: v7x
topology: tpu7x:2x2x1
jax: 0.10.0
libtpu: 0.0.40
codegen_flags: <defaults>
</compile_context>

<pallas_src>
import jax
import jax.numpy as jnp
from jax.experimental import pallas as pl
from jax.experimental.pallas import tpu as pltpu

BN_EPS = 1e-5
COUNT_EPS = 1e-6


def _round_up(x, m):
    return ((x + m - 1) // m) * m


# fixed widths of the MultiBranchGameEncoder / RatingPredictor
T1, T2, S_DIM, I_DIM, B_DIM, DE, PE = 128, 64, 32, 32, 64, 32, 32
SIB = S_DIM + I_DIM + B_DIM            # 128 (summary|info|binary pass-through block)
ENC1_OUT = T1 + SIB                    # 256 (layer-1 branch outputs t1|s|i|b)
FUSED_IN = T2 + SIB + DE + PE          # 256 (fusion-head input width)
F_HID = 2 * FUSED_IN                   # 512
LATENT = 256                           # game encoder output dim
USER_DIM = 256
MLP_IN = LATENT + USER_DIM             # 512
M1, M2, M3 = 1024, 512, 256

# layer-1 mega-matmul output lanes: [t1|s|i|b | des_sum | pub_sum | des_cnt | pub_cnt | pad]
DSUM0 = ENC1_OUT                       # 256
PSUM0 = DSUM0 + DE                     # 288
DCNT = PSUM0 + PE                      # 320
PCNT = DCNT + 1                        # 321
L1_OUT = _round_up(PCNT + 1, 128)      # 384

# fusion-input scratch lane layout (fW1 rows are pre-permuted to match): [s|i|b | t2 | d | p]
FI_SIB, FI_T2, FI_D, FI_P = 0, SIB, SIB + T2, SIB + T2 + DE


def _bias_layout():
    segs = (("b1", ENC1_OUT), ("tb2", T2), ("fb1", F_HID), ("fb2", LATENT),
            ("mb1", M1), ("mb2", M2), ("mb3", M3), ("mb4", 1), ("w4", M3))
    off, o = {}, 0
    for name, w in segs:
        off[name] = (o, w)
        o += _round_up(w, 128)         # 128-aligned lane offsets -> free static slices
    return off, o


BIAS_OFF, BIAS_PAD = _bias_layout()    # BIAS_PAD = 3328

WEIGHT_ORDER = ("Wbd1", "tW2", "fW1", "fW2", "mW1g", "mW1u", "mW2", "mW3", "bias_pack")


# --------------------------------------------------------------------------- kernel
def rating_kernel(x_ref, u_ref,
                  Wbd1, tW2, fW1, fW2, mW1g, mW1u, mW2, mW3, bias_ref,
                  out_ref, fuse_in):
    f32, bf16 = jnp.float32, jnp.bfloat16

    def mm(a, w_ref):
        return jnp.dot(a.astype(bf16), w_ref[...], preferred_element_type=f32)

    def bseg(name):
        o, w = BIAS_OFF[name]
        return bias_ref[:, o:o + w]                       # (1, w) f32, broadcasts over rows

    # ---- layer 1: block-diag branch linears + pooled-emb sums/counts in ONE matmul ----
    z = mm(x_ref[...], Wbd1)                              # [TB, 384] f32
    a1 = jnp.maximum((z[:, :ENC1_OUT] + bseg("b1")).astype(bf16), 0.0)   # [TB,256] t1|s|i|b

    d = z[:, DSUM0:DSUM0 + DE] * pl.reciprocal(z[:, DCNT:DCNT + 1] + COUNT_EPS, approx=True)
    p = z[:, PSUM0:PSUM0 + PE] * pl.reciprocal(z[:, PCNT:PCNT + 1] + COUNT_EPS, approx=True)

    # ---- text branch layer 2 only (s/i/b pass straight through from a1) ---------------
    t2 = jnp.maximum((mm(a1[:, :T1], tW2) + bseg("tb2")).astype(bf16), 0.0)   # [TB, 64]

    # ---- assemble fusion input in bf16 VMEM scratch (static masked lane stores) -------
    fuse_in[:, FI_SIB:FI_SIB + SIB] = a1[:, T1:]
    fuse_in[:, FI_T2:FI_T2 + T2] = t2
    fuse_in[:, FI_D:FI_D + DE] = d.astype(bf16)
    fuse_in[:, FI_P:FI_P + PE] = p.astype(bf16)

    # ---- fusion head: single K=256 matmul --------------------------------------------
    h = jnp.maximum((mm(fuse_in[...], fW1) + bseg("fb1")).astype(bf16), 0.0)  # [TB, 512]
    game_emb = mm(h, fW2) + bseg("fb2")                                       # [TB, 256] f32

    # ---- rating MLP (concat-free first layer; BN folded; dropout = identity) ----------
    h1 = jnp.maximum((mm(game_emb, mW1g) + mm(u_ref[...], mW1u) + bseg("mb1")).astype(bf16), 0.0)
    h2 = jnp.maximum((mm(h1, mW2) + bseg("mb2")).astype(bf16), 0.0)
    h3 = jnp.maximum((mm(h2, mW3) + bseg("mb3")).astype(bf16), 0.0)

    # ---- final 256->1: VPU multiply + lane reduce (no N=1 MXU push); global bias folded
    r = jnp.sum(h3.astype(f32) * bseg("w4"), axis=-1, keepdims=True) + bseg("mb4")
    out_ref[...] = r


# --------------------------------------------------------------------------- wrapper
def rating_predictor(features, user_ids, game_ids, fused, *, block_batch=512):
    batch = features["text"].shape[0]

    # one lane-dense per-row feature slab (des/pub share the layer-1 input stream)
    x_cat = jnp.concatenate(
        [features["text"], features["summary"], features["info"],
         features["binary"], features["designers"], features["publishers"]], axis=1)
    in_pad = fused["Wbd1"].shape[0]
    x_cat = jnp.pad(x_cat, ((0, 0), (0, in_pad - x_cat.shape[1])))

    # embedding-row gathers at the XLA level; per-game bias is added OUTSIDE the kernel
    uemb = jnp.take(fused["user_table"], user_ids, axis=0)              # [B, 256] bf16
    gbias = jnp.take(fused["game_bias_table"], game_ids, axis=0)[:, 0]  # [B]      f32

    # batch tile: multiples of 128; keep >= 2 grid steps when possible (v7x megacore)
    bp0 = _round_up(batch, 128)
    tb = max(128, (min(block_batch, bp0) // 128) * 128)
    if bp0 // tb <= 1 and bp0 >= 256:
        tb = max(128, ((bp0 // 2) // 128) * 128)
    bp = _round_up(batch, tb)

    def pad_b(x):
        return jnp.pad(x, ((0, bp - batch), (0, 0))).astype(jnp.bfloat16)

    x_cat = pad_b(x_cat)
    uemb = pad_b(uemb)

    def feat_spec(d):
        return pl.BlockSpec((tb, d), lambda i: (i, 0))

    def w_spec(w):
        return pl.BlockSpec(w.shape, lambda i: (0, 0))     # grid-resident weights

    weights = [fused[k] for k in WEIGHT_ORDER]
    in_specs = [feat_spec(in_pad), feat_spec(USER_DIM)] + [w_spec(w) for w in weights]

    out = pl.pallas_call(
        rating_kernel,
        out_shape=jax.ShapeDtypeStruct((bp, 1), jnp.float32),
        grid=(bp // tb,),
        in_specs=in_specs,
        out_specs=pl.BlockSpec((tb, 1), lambda i: (i, 0)),
        scratch_shapes=[pltpu.VMEM((tb, FUSED_IN), jnp.bfloat16)],
        compiler_params=pltpu.CompilerParams(
            dimension_semantics=("parallel",),
            vmem_limit_bytes=32 * 1024 * 1024),
    )(x_cat, uemb, *weights)

    return out[:batch, 0] + gbias


# --------------------------------------------------------------------------- params
def _linear(key, din, dout, scale=0.05):
    kw, kb = jax.random.split(key)
    return (scale * jax.random.normal(kw, (din, dout), jnp.float32),
            scale * jax.random.normal(kb, (dout,), jnp.float32))


def _bn(key, dim):
    k1, k2, k3, k4 = jax.random.split(key, 4)
    return {"gamma": jax.random.uniform(k1, (dim,), jnp.float32, 0.5, 1.5),
            "beta": 0.1 * jax.random.normal(k2, (dim,), jnp.float32),
            "mean": 0.1 * jax.random.normal(k3, (dim,), jnp.float32),
            "var": jax.random.uniform(k4, (dim,), jnp.float32, 0.5, 1.5)}


def make_raw_params(key, dims, num_users, num_games):
    ks = iter(jax.random.split(key, 40))
    nk = lambda: next(ks)
    p = {}
    # encoder branches (Linear -> BN -> ReLU -> Dropout)
    p["tW1"], p["tb1"] = _linear(nk(), dims["text"], T1);        p["bn_t1"] = _bn(nk(), T1)
    p["tW2"], p["tb2"] = _linear(nk(), T1, T2);                  p["bn_t2"] = _bn(nk(), T2)
    p["sW1"], p["sb1"] = _linear(nk(), dims["summary"], S_DIM);  p["bn_s"] = _bn(nk(), S_DIM)
    p["iW1"], p["ib1"] = _linear(nk(), dims["info"], I_DIM);     p["bn_i"] = _bn(nk(), I_DIM)
    p["bW1"], p["bb1"] = _linear(nk(), dims["binary"], B_DIM);   p["bn_b"] = _bn(nk(), B_DIM)
    p["des_emb"] = jax.random.normal(nk(), (dims["designers"], DE), jnp.float32)
    p["pub_emb"] = jax.random.normal(nk(), (dims["publishers"], PE), jnp.float32)
    # fusion head
    p["fW1"], p["fb1"] = _linear(nk(), FUSED_IN, F_HID);         p["bn_f1"] = _bn(nk(), F_HID)
    p["fW2"], p["fb2"] = _linear(nk(), F_HID, LATENT)
    # RatingPredictor
    p["user_table"] = 0.1 * jax.random.normal(nk(), (num_users, USER_DIM), jnp.float32)
    p["game_bias_table"] = 0.05 * jax.random.normal(nk(), (num_games, 1), jnp.float32)
    p["global_bias"] = jnp.full((1,), 0.1, jnp.float32)
    p["mW1"], p["mb1"] = _linear(nk(), MLP_IN, M1);              p["bn_m1"] = _bn(nk(), M1)
    p["mW2"], p["mb2"] = _linear(nk(), M1, M2);                  p["bn_m2"] = _bn(nk(), M2)
    p["mW3"], p["mb3"] = _linear(nk(), M2, M3);                  p["bn_m3"] = _bn(nk(), M3)
    p["mW4"], p["mb4"] = _linear(nk(), M3, 1)
    return p


def fuse_params(raw, compute_dtype=jnp.bfloat16):
    f32 = jnp.float32

    def fold(W, b, bn):  # fold eval-mode BatchNorm1d into the preceding Linear
        s = bn["gamma"] / jnp.sqrt(bn["var"] + BN_EPS)
        return W * s[None, :], (b - bn["mean"]) * s + bn["beta"]

    tW1, tb1 = fold(raw["tW1"], raw["tb1"], raw["bn_t1"])
    tW2, tb2 = fold(raw["tW2"], raw["tb2"], raw["bn_t2"])
    sW1, sb1 = fold(raw["sW1"], raw["sb1"], raw["bn_s"])
    iW1, ib1 = fold(raw["iW1"], raw["ib1"], raw["bn_i"])
    bW1, bb1 = fold(raw["bW1"], raw["bb1"], raw["bn_b"])
    fW1, fb1 = fold(raw["fW1"], raw["fb1"], raw["bn_f1"])
    mW1, mb1 = fold(raw["mW1"], raw["mb1"], raw["bn_m1"])
    mW2, mb2 = fold(raw["mW2"], raw["mb2"], raw["bn_m2"])
    mW3, mb3 = fold(raw["mW3"], raw["mb3"], raw["bn_m3"])

    dt, ds = raw["tW1"].shape[0], raw["sW1"].shape[0]
    di, db = raw["iW1"].shape[0], raw["bW1"].shape[0]
    dd, dp = raw["des_emb"].shape[0], raw["pub_emb"].shape[0]
    in_pad = _round_up(dt + ds + di + db + dd + dp, 128)

    # layer-1 mega-matmul: block-diagonal branch weights + pooled sum / count columns
    Wbd1 = jnp.zeros((in_pad, L1_OUT), f32)
    o = 0
    Wbd1 = Wbd1.at[o:o + dt, 0:T1].set(tW1); o += dt
    Wbd1 = Wbd1.at[o:o + ds, T1:T1 + S_DIM].set(sW1); o += ds
    Wbd1 = Wbd1.at[o:o + di, T1 + S_DIM:T1 + S_DIM + I_DIM].set(iW1); o += di
    Wbd1 = Wbd1.at[o:o + db, T1 + S_DIM + I_DIM:ENC1_OUT].set(bW1); o += db
    Wbd1 = Wbd1.at[o:o + dd, DSUM0:DSUM0 + DE].set(raw["des_emb"])
    Wbd1 = Wbd1.at[o:o + dd, DCNT].set(1.0); o += dd
    Wbd1 = Wbd1.at[o:o + dp, PSUM0:PSUM0 + PE].set(raw["pub_emb"])
    Wbd1 = Wbd1.at[o:o + dp, PCNT].set(1.0)
    b1 = jnp.concatenate([tb1, sb1, ib1, bb1])

    # fusion layer-1: permute rows to match the in-kernel scratch layout [s|i|b | t2 | d | p]
    fW1_perm = jnp.concatenate([fW1[T2:T2 + SIB], fW1[:T2], fW1[T2 + SIB:]], axis=0)

    # rating-MLP layer-1 split: game-embedding rows vs user-embedding rows (K=256 each)
    mW1g, mW1u = mW1[:LATENT], mW1[LATENT:]

    # one f32 bias/vector pack (128-aligned lane slots); global bias folded into mb4;
    # the final [256,1] weight is stored as a row for the in-kernel VPU reduce.
    segs = {"b1": b1, "tb2": tb2, "fb1": fb1, "fb2": raw["fb2"],
            "mb1": mb1, "mb2": mb2, "mb3": mb3,
            "mb4": raw["mb4"] + raw["global_bias"],
            "w4": raw["mW4"][:, 0]}
    bias_pack = jnp.zeros((1, BIAS_PAD), f32)
    for name, v in segs.items():
        off, w = BIAS_OFF[name]
        bias_pack = bias_pack.at[0, off:off + w].set(v.astype(f32))

    fused = {"Wbd1": Wbd1, "tW2": tW2, "fW1": fW1_perm, "fW2": raw["fW2"],
             "mW1g": mW1g, "mW1u": mW1u, "mW2": mW2, "mW3": mW3,
             "bias_pack": bias_pack}
    for k in ("Wbd1", "tW2", "fW1", "fW2", "mW1g", "mW1u", "mW2", "mW3"):
        fused[k] = fused[k].astype(compute_dtype)
    fused["user_table"] = raw["user_table"].astype(compute_dtype)
    fused["game_bias_table"] = raw["game_bias_table"].astype(f32)
    return fused


# --------------------------------------------------------------------------- reference
def reference(features, user_ids, game_ids, raw):
    hi = jax.lax.Precision.HIGHEST

    def bn(x, s):
        return s["gamma"] * (x - s["mean"]) / jnp.sqrt(s["var"] + BN_EPS) + s["beta"]

    def lbr(x, W, b, s):
        return jnp.maximum(bn(jnp.dot(x, W, precision=hi) + b, s), 0.0)

    def pooled(x, E):
        return jnp.dot(x, E, precision=hi) / (jnp.sum(x, axis=1, keepdims=True) + COUNT_EPS)

    t = lbr(features["text"], raw["tW1"], raw["tb1"], raw["bn_t1"])
    t = lbr(t, raw["tW2"], raw["tb2"], raw["bn_t2"])
    s_ = lbr(features["summary"], raw["sW1"], raw["sb1"], raw["bn_s"])
    i_ = lbr(features["info"], raw["iW1"], raw["ib1"], raw["bn_i"])
    b_ = lbr(features["binary"], raw["bW1"], raw["bb1"], raw["bn_b"])
    d = pooled(features["designers"], raw["des_emb"])
    p = pooled(features["publishers"], raw["pub_emb"])
    fused_in = jnp.concatenate([t, s_, i_, b_, d, p], axis=1)
    h = lbr(fused_in, raw["fW1"], raw["fb1"], raw["bn_f1"])
    game_emb = jnp.dot(h, raw["fW2"], precision=hi) + raw["fb2"]

    uemb = jnp.take(raw["user_table"], user_ids, axis=0)
    gbias = jnp.take(raw["game_bias_table"], game_ids, axis=0)[:, 0]
    x = jnp.concatenate([game_emb, uemb], axis=1)
    x = lbr(x, raw["mW1"], raw["mb1"], raw["bn_m1"])
    x = lbr(x, raw["mW2"], raw["mb2"], raw["bn_m2"])
    x = lbr(x, raw["mW3"], raw["mb3"], raw["bn_m3"])
    r = jnp.dot(x, raw["mW4"], precision=hi)[:, 0] + raw["mb4"][0]
    return r + gbias + raw["global_bias"][0]


# --------------------------------------------------------------------------- main
if __name__ == "__main__":
    key = jax.random.PRNGKey(0)
    dims = {"text": 48, "summary": 16, "info": 16, "binary": 24,
            "designers": 12, "publishers": 10}
    num_users, num_games, batch = 40, 30, 64

    kp, kf, ku, kg = jax.random.split(key, 4)
    raw = make_raw_params(kp, dims, num_users, num_games)
    fused = fuse_params(raw)

    fk = jax.random.split(kf, 6)
    features = {
        "text": jax.random.normal(fk[0], (batch, dims["text"]), jnp.float32),
        "summary": jax.random.normal(fk[1], (batch, dims["summary"]), jnp.float32),
        "info": jax.random.normal(fk[2], (batch, dims["info"]), jnp.float32),
        "binary": jax.random.bernoulli(fk[3], 0.5, (batch, dims["binary"])).astype(jnp.float32),
        "designers": jax.random.bernoulli(fk[4], 0.3, (batch, dims["designers"])).astype(jnp.float32),
        "publishers": jax.random.bernoulli(fk[5], 0.3, (batch, dims["publishers"])).astype(jnp.float32),
    }
    user_ids = jax.random.randint(ku, (batch,), 0, num_users)
    game_ids = jax.random.randint(kg, (batch,), 0, num_games)

    out = rating_predictor(features, user_ids, game_ids, fused)
    out = jax.block_until_ready(out)
    ref = reference(features, user_ids, game_ids, raw)

    assert out.shape == (batch,)
    assert jnp.allclose(out, ref, rtol=3e-2, atol=3e-2), float(jnp.max(jnp.abs(out - ref)))
    print("KERNEL_OK")
</pallas_src>

<mosaic_0001>
module attributes {stable_mosaic.version = 11 : i64} {
  func.func @rating_kernel(%arg0: i32, %arg1: memref<128x128xbf16, #tpu.memory_space<vmem>>, %arg2: memref<128x256xbf16, #tpu.memory_space<vmem>>, %arg3: memref<128x384xbf16, #tpu.memory_space<vmem>>, %arg4: memref<128x64xbf16, #tpu.memory_space<vmem>>, %arg5: memref<256x512xbf16, #tpu.memory_space<vmem>>, %arg6: memref<512x256xbf16, #tpu.memory_space<vmem>>, %arg7: memref<256x1024xbf16, #tpu.memory_space<vmem>>, %arg8: memref<256x1024xbf16, #tpu.memory_space<vmem>>, %arg9: memref<1024x512xbf16, #tpu.memory_space<vmem>>, %arg10: memref<512x256xbf16, #tpu.memory_space<vmem>>, %arg11: memref<1x3328xf32, #tpu.memory_space<vmem>>, %arg12: memref<128x1xf32, #tpu.memory_space<vmem>>, %arg13: memref<128x256xbf16, #tpu.memory_space<vmem>>) attributes {dimension_semantics = [#tpu.dimension_semantics<parallel>], iteration_bounds = array<i64: 1>, scalar_prefetch = 0 : i64, scratch_operands = 1 : i64, tpu.core_type = #tpu.core_type<tc>, window_params = [{transform_indices = @transform_0, window_bounds = array<i64: 128, 128>}, {transform_indices = @transform_1, window_bounds = array<i64: 128, 256>}, {pipeline_mode = #tpu.pipeline_mode<synchronous>, transform_indices = @transform_2, window_bounds = array<i64: 128, 384>}, {pipeline_mode = #tpu.pipeline_mode<synchronous>, transform_indices = @transform_3, window_bounds = array<i64: 128, 64>}, {pipeline_mode = #tpu.pipeline_mode<synchronous>, transform_indices = @transform_4, window_bounds = array<i64: 256, 512>}, {pipeline_mode = #tpu.pipeline_mode<synchronous>, transform_indices = @transform_5, window_bounds = array<i64: 512, 256>}, {pipeline_mode = #tpu.pipeline_mode<synchronous>, transform_indices = @transform_6, window_bounds = array<i64: 256, 1024>}, {pipeline_mode = #tpu.pipeline_mode<synchronous>, transform_indices = @transform_7, window_bounds = array<i64: 256, 1024>}, {pipeline_mode = #tpu.pipeline_mode<synchronous>, transform_indices = @transform_8, window_bounds = array<i64: 1024, 512>}, {pipeline_mode = #tpu.pipeline_mode<synchronous>, transform_indices = @transform_9, window_bounds = array<i64: 512, 256>}, {pipeline_mode = #tpu.pipeline_mode<synchronous>, transform_indices = @transform_10, window_bounds = array<i64: 1, 3328>}, {transform_indices = @transform_11, window_bounds = array<i64: 128, 1>}]} {
    %c0 = arith.constant 0 : index
    %c0_0 = arith.constant 0 : index
    %0 = vector.load %arg1[%c0, %c0_0] : memref<128x128xbf16, #tpu.memory_space<vmem>>, vector<128x128xbf16>
    %c0_1 = arith.constant 0 : index
    %c0_2 = arith.constant 0 : index
    %1 = vector.load %arg3[%c0_1, %c0_2] : memref<128x384xbf16, #tpu.memory_space<vmem>>, vector<128x384xbf16>
    %cst = arith.constant dense<0.000000e+00> : vector<128x384xf32>
    %2 = tpu.matmul %0, %1, %cst {dimension_numbers = #tpu.dot_dimension_numbers<[1], [0], [0], [1], [0, 0, 1, 1], [], []>} : vector<128x128xbf16>, vector<128x384xbf16>, vector<128x384xf32> -> vector<128x384xf32>
    %3 = vector.extract_strided_slice %2 {offsets = [0, 0], sizes = [128, 256], strides = [1, 1]} : vector<128x384xf32> to vector<128x256xf32>
    %c0_3 = arith.constant 0 : index
    %c0_4 = arith.constant 0 : index
    %4 = vector.load %arg11[%c0_3, %c0_4] : memref<1x3328xf32, #tpu.memory_space<vmem>>, vector<1x256xf32>
    %5 = vector.broadcast %4 : vector<1x256xf32> to vector<128x256xf32>
    %6 = arith.addf %3, %5 : vector<128x256xf32>
    %7 = arith.truncf %6 : vector<128x256xf32> to vector<128x256xbf16>
    %cst_5 = arith.constant 0.000000e+00 : bf16
    %8 = vector.broadcast %cst_5 : bf16 to vector<128x256xbf16>
    %9 = arith.maximumf %7, %8 : vector<128x256xbf16>
    %10 = vector.extract_strided_slice %2 {offsets = [0, 256], sizes = [128, 32], strides = [1, 1]} : vector<128x384xf32> to vector<128x32xf32>
    %11 = vector.extract_strided_slice %2 {offsets = [0, 320], sizes = [128, 1], strides = [1, 1]} : vector<128x384xf32> to vector<128x1xf32>
    %cst_6 = arith.constant 9.99999997E-7 : f32
    %12 = vector.broadcast %cst_6 : f32 to vector<128x1xf32>
    %13 = arith.addf %11, %12 : vector<128x1xf32>
    %14 = tpu.reciprocal %13 {approx = true} : vector<128x1xf32> -> vector<128x1xf32>
    %15 = vector.broadcast %14 : vector<128x1xf32> to vector<128x32xf32>
    %16 = arith.mulf %10, %15 : vector<128x32xf32>
    %17 = vector.extract_strided_slice %2 {offsets = [0, 288], sizes = [128, 32], strides = [1, 1]} : vector<128x384xf32> to vector<128x32xf32>
    %18 = vector.extract_strided_slice %2 {offsets = [0, 321], sizes = [128, 1], strides = [1, 1]} : vector<128x384xf32> to vector<128x1xf32>
    %cst_7 = arith.constant 9.99999997E-7 : f32
    %19 = vector.broadcast %cst_7 : f32 to vector<128x1xf32>
    %20 = arith.addf %18, %19 : vector<128x1xf32>
    %21 = tpu.reciprocal %20 {approx = true} : vector<128x1xf32> -> vector<128x1xf32>
    %22 = vector.broadcast %21 : vector<128x1xf32> to vector<128x32xf32>
    %23 = arith.mulf %17, %22 : vector<128x32xf32>
    %24 = vector.extract_strided_slice %9 {offsets = [0, 0], sizes = [128, 128], strides = [1, 1]} : vector<128x256xbf16> to vector<128x128xbf16>
    %c0_8 = arith.constant 0 : index
    %c0_9 = arith.constant 0 : index
    %25 = vector.load %arg4[%c0_8, %c0_9] : memref<128x64xbf16, #tpu.memory_space<vmem>>, vector<128x64xbf16>
    %cst_10 = arith.constant dense<0.000000e+00> : vector<128x64xf32>
    %26 = tpu.matmul %24, %25, %cst_10 {dimension_numbers = #tpu.dot_dimension_numbers<[1], [0], [0], [1], [0, 0, 1, 1], [], []>} : vector<128x128xbf16>, vector<128x64xbf16>, vector<128x64xf32> -> vector<128x64xf32>
    %c0_11 = arith.constant 0 : index
    %c256 = arith.constant 256 : index
    %27 = vector.load %arg11[%c0_11, %c256] : memref<1x3328xf32, #tpu.memory_space<vmem>>, vector<1x64xf32>
    %28 = vector.broadcast %27 : vector<1x64xf32> to vector<128x64xf32>
    %29 = arith.addf %26, %28 : vector<128x64xf32>
    %30 = arith.truncf %29 : vector<128x64xf32> to vector<128x64xbf16>
    %cst_12 = arith.constant 0.000000e+00 : bf16
    %31 = vector.broadcast %cst_12 : bf16 to vector<128x64xbf16>
    %32 = arith.maximumf %30, %31 : vector<128x64xbf16>
    %33 = vector.extract_strided_slice %9 {offsets = [0, 128], sizes = [128, 128], strides = [1, 1]} : vector<128x256xbf16> to vector<128x128xbf16>
    %c0_13 = arith.constant 0 : index
    %c0_14 = arith.constant 0 : index
    %34 = vector.load %arg13[%c0_13, %c0_14] : memref<128x256xbf16, #tpu.memory_space<vmem>>, vector<128x128xbf16>
    tpu.vector_store %arg13[%c0_13, %c0_14], %33 {strides = array<i32>} : memref<128x256xbf16, #tpu.memory_space<vmem>>, vector<128x128xbf16>,
    %c0_15 = arith.constant 0 : index
    %c128 = arith.constant 128 : index
    %35 = vector.load %arg13[%c0_15, %c128] : memref<128x256xbf16, #tpu.memory_space<vmem>>, vector<128x64xbf16>
    tpu.vector_store %arg13[%c0_15, %c128], %32 {strides = array<i32>} : memref<128x256xbf16, #tpu.memory_space<vmem>>, vector<128x64xbf16>,
    %36 = arith.truncf %16 : vector<128x32xf32> to vector<128x32xbf16>
    %c0_16 = arith.constant 0 : index
    %c192 = arith.constant 192 : index
    %37 = vector.load %arg13[%c0_16, %c192] : memref<128x256xbf16, #tpu.memory_space<vmem>>, vector<128x32xbf16>
    tpu.vector_store %arg13[%c0_16, %c192], %36 {strides = array<i32>} : memref<128x256xbf16, #tpu.memory_space<vmem>>, vector<128x32xbf16>,
    %38 = arith.truncf %23 : vector<128x32xf32> to vector<128x32xbf16>
    %c0_17 = arith.constant 0 : index
    %c224 = arith.constant 224 : index
    %39 = vector.load %arg13[%c0_17, %c224] : memref<128x256xbf16, #tpu.memory_space<vmem>>, vector<128x32xbf16>
    tpu.vector_store %arg13[%c0_17, %c224], %38 {strides = array<i32>} : memref<128x256xbf16, #tpu.memory_space<vmem>>, vector<128x32xbf16>,
    %c0_18 = arith.constant 0 : index
    %c0_19 = arith.constant 0 : index
    %40 = vector.load %arg13[%c0_18, %c0_19] : memref<128x256xbf16, #tpu.memory_space<vmem>>, vector<128x256xbf16>
    %c0_20 = arith.constant 0 : index
    %c0_21 = arith.constant 0 : index
    %41 = vector.load %arg5[%c0_20, %c0_21] : memref<256x512xbf16, #tpu.memory_space<vmem>>, vector<256x512xbf16>
    %cst_22 = arith.constant dense<0.000000e+00> : vector<128x512xf32>
    %42 = tpu.matmul %40, %41, %cst_22 {dimension_numbers = #tpu.dot_dimension_numbers<[1], [0], [0], [1], [0, 0, 1, 1], [], []>} : vector<128x256xbf16>, vector<256x512xbf16>, vector<128x512xf32> -> vector<128x512xf32>
    %c0_23 = arith.constant 0 : index
    %c384 = arith.constant 384 : index
    %43 = vector.load %arg11[%c0_23, %c384] : memref<1x3328xf32, #tpu.memory_space<vmem>>, vector<1x512xf32>
    %44 = vector.broadcast %43 : vector<1x512xf32> to vector<128x512xf32>
    %45 = arith.addf %42, %44 : vector<128x512xf32>
    %46 = arith.truncf %45 : vector<128x512xf32> to vector<128x512xbf16>
    %cst_24 = arith.constant 0.000000e+00 : bf16
    %47 = vector.broadcast %cst_24 : bf16 to vector<128x512xbf16>
    %48 = arith.maximumf %46, %47 : vector<128x512xbf16>
    %c0_25 = arith.constant 0 : index
    %c0_26 = arith.constant 0 : index
    %49 = vector.load %arg6[%c0_25, %c0_26] : memref<512x256xbf16, #tpu.memory_space<vmem>>, vector<512x256xbf16>
    %cst_27 = arith.constant dense<0.000000e+00> : vector<128x256xf32>
    %50 = tpu.matmul %48, %49, %cst_27 {dimension_numbers = #tpu.dot_dimension_numbers<[1], [0], [0], [1], [0, 0, 1, 1], [], []>} : vector<128x512xbf16>, vector<512x256xbf16>, vector<128x256xf32> -> vector<128x256xf32>
    %c0_28 = arith.constant 0 : index
    %c896 = arith.constant 896 : index
    %51 = vector.load %arg11[%c0_28, %c896] : memref<1x3328xf32, #tpu.memory_space<vmem>>, vector<1x256xf32>
    %52 = vector.broadcast %51 : vector<1x256xf32> to vector<128x256xf32>
    %53 = arith.addf %50, %52 : vector<128x256xf32>
    %54 = arith.truncf %53 : vector<128x256xf32> to vector<128x256xbf16>
    %c0_29 = arith.constant 0 : index
    %c0_30 = arith.constant 0 : index
    %55 = vector.load %arg7[%c0_29, %c0_30] : memref<256x1024xbf16, #tpu.memory_space<vmem>>, vector<256x1024xbf16>
    %cst_31 = arith.constant dense<0.000000e+00> : vector<128x1024xf32>
    %56 = tpu.matmul %54, %55, %cst_31 {dimension_numbers = #tpu.dot_dimension_numbers<[1], [0], [0], [1], [0, 0, 1, 1], [], []>} : vector<128x256xbf16>, vector<256x1024xbf16>, vector<128x1024xf32> -> vector<128x1024xf32>
    %c0_32 = arith.constant 0 : index
    %c0_33 = arith.constant 0 : index
    %57 = vector.load %arg2[%c0_32, %c0_33] : memref<128x256xbf16, #tpu.memory_space<vmem>>, vector<128x256xbf16>
    %c0_34 = arith.constant 0 : index
    %c0_35 = arith.constant 0 : index
    %58 = vector.load %arg8[%c0_34, %c0_35] : memref<256x1024xbf16, #tpu.memory_space<vmem>>, vector<256x1024xbf16>
    %cst_36 = arith.constant dense<0.000000e+00> : vector<128x1024xf32>
    %59 = tpu.matmul %57, %58, %cst_36 {dimension_numbers = #tpu.dot_dimension_numbers<[1], [0], [0], [1], [0, 0, 1, 1], [], []>} : vector<128x256xbf16>, vector<256x1024xbf16>, vector<128x1024xf32> -> vector<128x1024xf32>
    %60 = arith.addf %56, %59 : vector<128x1024xf32>
    %c0_37 = arith.constant 0 : index
    %c1152 = arith.constant 1152 : index
    %61 = vector.load %arg11[%c0_37, %c1152] : memref<1x3328xf32, #tpu.memory_space<vmem>>, vector<1x1024xf32>
    %62 = vector.broadcast %61 : vector<1x1024xf32> to vector<128x1024xf32>
    %63 = arith.addf %60, %62 : vector<128x1024xf32>
    %64 = arith.truncf %63 : vector<128x1024xf32> to vector<128x1024xbf16>
    %cst_38 = arith.constant 0.000000e+00 : bf16
    %65 = vector.broadcast %cst_38 : bf16 to vector<128x1024xbf16>
    %66 = arith.maximumf %64, %65 : vector<128x1024xbf16>
    %c0_39 = arith.constant 0 : index
    %c0_40 = arith.constant 0 : index
    %67 = vector.load %arg9[%c0_39, %c0_40] : memref<1024x512xbf16, #tpu.memory_space<vmem>>, vector<1024x512xbf16>
    %cst_41 = arith.constant dense<0.000000e+00> : vector<128x512xf32>
    %68 = tpu.matmul %66, %67, %cst_41 {dimension_numbers = #tpu.dot_dimension_numbers<[1], [0], [0], [1], [0, 0, 1, 1], [], []>} : vector<128x1024xbf16>, vector<1024x512xbf16>, vector<128x512xf32> -> vector<128x512xf32>
    %c0_42 = arith.constant 0 : index
    %c2176 = arith.constant 2176 : index
    %69 = vector.load %arg11[%c0_42, %c2176] : memref<1x3328xf32, #tpu.memory_space<vmem>>, vector<1x512xf32>
    %70 = vector.broadcast %69 : vector<1x512xf32> to vector<128x512xf32>
    %71 = arith.addf %68, %70 : vector<128x512xf32>
    %72 = arith.truncf %71 : vector<128x512xf32> to vector<128x512xbf16>
    %cst_43 = arith.constant 0.000000e+00 : bf16
    %73 = vector.broadcast %cst_43 : bf16 to vector<128x512xbf16>
    %74 = arith.maximumf %72, %73 : vector<128x512xbf16>
    %c0_44 = arith.constant 0 : index
    %c0_45 = arith.constant 0 : index
    %75 = vector.load %arg10[%c0_44, %c0_45] : memref<512x256xbf16, #tpu.memory_space<vmem>>, vector<512x256xbf16>
    %cst_46 = arith.constant dense<0.000000e+00> : vector<128x256xf32>
    %76 = tpu.matmul %74, %75, %cst_46 {dimension_numbers = #tpu.dot_dimension_numbers<[1], [0], [0], [1], [0, 0, 1, 1], [], []>} : vector<128x512xbf16>, vector<512x256xbf16>, vector<128x256xf32> -> vector<128x256xf32>
    %c0_47 = arith.constant 0 : index
    %c2688 = arith.constant 2688 : index
    %77 = vector.load %arg11[%c0_47, %c2688] : memref<1x3328xf32, #tpu.memory_space<vmem>>, vector<1x256xf32>
    %78 = vector.broadcast %77 : vector<1x256xf32> to vector<128x256xf32>
    %79 = arith.addf %76, %78 : vector<128x256xf32>
    %80 = arith.truncf %79 : vector<128x256xf32> to vector<128x256xbf16>
    %cst_48 = arith.constant 0.000000e+00 : bf16
    %81 = vector.broadcast %cst_48 : bf16 to vector<128x256xbf16>
    %82 = arith.maximumf %80, %81 : vector<128x256xbf16>
    %83 = arith.extf %82 : vector<128x256xbf16> to vector<128x256xf32>
    %c0_49 = arith.constant 0 : index
    %c3072 = arith.constant 3072 : index
    %84 = vector.load %arg11[%c0_49, %c3072] : memref<1x3328xf32, #tpu.memory_space<vmem>>, vector<1x256xf32>
    %85 = vector.broadcast %84 : vector<1x256xf32> to vector<128x256xf32>
    %86 = arith.mulf %83, %85 : vector<128x256xf32>
    %cst_50 = arith.constant dense<0.000000e+00> : vector<128xf32>
    %87 = vector.multi_reduction <add>, %86, %cst_50 [1] : vector<128x256xf32> to vector<128xf32>
    %88 = vector.shape_cast %87 : vector<128xf32> to vector<128x1xf32>
    %c0_51 = arith.constant 0 : index
    %c2944 = arith.constant 2944 : index
    %89 = vector.load %arg11[%c0_51, %c2944] : memref<1x3328xf32, #tpu.memory_space<vmem>>, vector<1x1xf32>
    %90 = vector.broadcast %89 : vector<1x1xf32> to vector<128x1xf32>
    %91 = arith.addf %88, %90 : vector<128x1xf32>
    %c0_52 = arith.constant 0 : index
    %c0_53 = arith.constant 0 : index
    %92 = vector.load %arg12[%c0_52, %c0_53] : memref<128x1xf32, #tpu.memory_space<vmem>>, vector<128x1xf32>
    tpu.vector_store %arg12[%c0_52, %c0_53], %91 {strides = array<i32>} : memref<128x1xf32, #tpu.memory_space<vmem>>, vector<128x1xf32>,
    return
  }
  func.func @transform_0(%arg0: i32) -> (i32, i32) {
    %c0_i32 = arith.constant 0 : i32
    %c0_i32_0 = arith.constant 0 : i32
    return %arg0, %c0_i32 : i32, i32
  }
  func.func @transform_1(%arg0: i32) -> (i32, i32) {
    %c0_i32 = arith.constant 0 : i32
    %c0_i32_0 = arith.constant 0 : i32
    return %arg0, %c0_i32 : i32, i32
  }
  func.func @transform_2(%arg0: i32) -> (i32, i32) {
    %c0_i32 = arith.constant 0 : i32
    %c0_i32_0 = arith.constant 0 : i32
    %c0_i32_1 = arith.constant 0 : i32
    return %c0_i32, %c0_i32_0 : i32, i32
  }
  func.func @transform_3(%arg0: i32) -> (i32, i32) {
    %c0_i32 = arith.constant 0 : i32
    %c0_i32_0 = arith.constant 0 : i32
    %c0_i32_1 = arith.constant 0 : i32
    return %c0_i32, %c0_i32_0 : i32, i32
  }
  func.func @transform_4(%arg0: i32) -> (i32, i32) {
    %c0_i32 = arith.constant 0 : i32
    %c0_i32_0 = arith.constant 0 : i32
    %c0_i32_1 = arith.constant 0 : i32
    return %c0_i32, %c0_i32_0 : i32, i32
  }
  func.func @transform_5(%arg0: i32) -> (i32, i32) {
    %c0_i32 = arith.constant 0 : i32
    %c0_i32_0 = arith.constant 0 : i32
    %c0_i32_1 = arith.constant 0 : i32
    return %c0_i32, %c0_i32_0 : i32, i32
  }
  func.func @transform_6(%arg0: i32) -> (i32, i32) {
    %c0_i32 = arith.constant 0 : i32
    %c0_i32_0 = arith.constant 0 : i32
    %c0_i32_1 = arith.constant 0 : i32
    return %c0_i32, %c0_i32_0 : i32, i32
  }
  func.func @transform_7(%arg0: i32) -> (i32, i32) {
    %c0_i32 = arith.constant 0 : i32
    %c0_i32_0 = arith.constant 0 : i32
    %c0_i32_1 = arith.constant 0 : i32
    return %c0_i32, %c0_i32_0 : i32, i32
  }
  func.func @transform_8(%arg0: i32) -> (i32, i32) {
    %c0_i32 = arith.constant 0 : i32
    %c0_i32_0 = arith.constant 0 : i32
    %c0_i32_1 = arith.constant 0 : i32
    return %c0_i32, %c0_i32_0 : i32, i32
  }
  func.func @transform_9(%arg0: i32) -> (i32, i32) {
    %c0_i32 = arith.constant 0 : i32
    %c0_i32_0 = arith.constant 0 : i32
    %c0_i32_1 = arith.constant 0 : i32
    return %c0_i32, %c0_i32_0 : i32, i32
  }
  func.func @transform_10(%arg0: i32) -> (i32, i32) {
    %c0_i32 = arith.constant 0 : i32
    %c0_i32_0 = arith.constant 0 : i32
    %c0_i32_1 = arith.constant 0 : i32
    return %c0_i32, %c0_i32_0 : i32, i32
  }
  func.func @transform_11(%arg0: i32) -> (i32, i32) {
    %c0_i32 = arith.constant 0 : i32
    %c0_i32_0 = arith.constant 0 : i32
    return %arg0, %c0_i32 : i32, i32
  }
}

</mosaic_0001>

<llo_original>
// kernel: tpu_custom_call.1
$region0: #{tpu_custom_call.1}
  #allocation0 [shape = 'u32[]', space=smem, size = 0x4, offset = 0x4, fixed_abs, tag = 'smem constant byte address 0x4 - core index']
  #allocation1 [shape = 'u32[144,128]{1,0:T(1,128)}', space=vmem, size = 0x12000, scoped, tag = 'internal scratch']
  #allocation2 [shape = 'bf16[128,256]{1,0:T(16,128)(2,1)}', space=vmem, size = 0x10000, scoped, tag = 'scratch operand']
  %s0 = inlined_call_operand.vmem [shape: bf16[128,128], index: 0, kind: input, shape index: {}]
  %s1 = inlined_call_operand.hbm [shape: bf16[128,256], index: 1, kind: input, shape index: {}]
  %s2 = inlined_call_operand.hbm [shape: bf16[128,384], index: 2, kind: input, shape index: {}]
  %s3 = inlined_call_operand.vmem [shape: bf16[128,64], index: 3, kind: input, shape index: {}]
  %s4 = inlined_call_operand.hbm [shape: bf16[256,512], index: 4, kind: input, shape index: {}]
  %s5 = inlined_call_operand.hbm [shape: bf16[512,256], index: 5, kind: input, shape index: {}]
  %s6 = inlined_call_operand.hbm [shape: bf16[256,1024], index: 6, kind: input, shape index: {}]
  %s7 = inlined_call_operand.hbm [shape: bf16[256,1024], index: 7, kind: input, shape index: {}]
  %s8 = inlined_call_operand.hbm [shape: bf16[1024,512], index: 8, kind: input, shape index: {}]
  %s9 = inlined_call_operand.hbm [shape: bf16[512,256], index: 9, kind: input, shape index: {}]
  %s10 = inlined_call_operand.vmem [shape: f32[1,3328], index: 10, kind: input, shape index: {}]
  %s11 = inlined_call_operand.vmem [shape: f32[128,1], index: 11, kind: output, shape index: {}]
  %s12 = sld [smem:[#allocation0]]
  $region86: #{tpu_custom_call.1} parent=0
    _
  %s14 = ssub.s32 1, %s12
  %s15 = scalar_select 0, %s14, %s12
  $region1: #{tpu_custom_call.1} parent=0
    #allocation3 [shape = 'u8[65536]{0}', space=vmem, size = 0x10000, scoped, tag = 'input window, operand 1, single buffered']
    #allocation4 [shape = 's32[1]{0}', space=sflag, size = 0x4, scoped, tag = 'scoped memory for tpu_custom_call.1']
    #allocation5 [shape = 'u8[98304]{0}', space=vmem, size = 0x18000, scoped, tag = 'input window, operand 2, single buffered']
    #allocation6 [shape = 's32[1]{0}', space=sflag, size = 0x4, scoped, tag = 'scoped memory for tpu_custom_call.1']
    #allocation7 [shape = 'u8[262144]{0}', space=vmem, size = 0x40000, scoped, tag = 'input window, operand 4, single buffered']
    #allocation8 [shape = 'u8[262144]{0}', space=vmem, size = 0x40000, scoped, tag = 'input window, operand 5, single buffered']
    #allocation9 [shape = 's32[1]{0}', space=sflag, size = 0x4, scoped, tag = 'scoped memory for tpu_custom_call.1']
    #allocation10 [shape = 'u8[524288]{0}', space=vmem, size = 0x80000, scoped, tag = 'input window, operand 6, single buffered']
    #allocation11 [shape = 'u8[524288]{0}', space=vmem, size = 0x80000, scoped, tag = 'input window, operand 7, single buffered']
    #allocation12 [shape = 's32[1]{0}', space=sflag, size = 0x4, scoped, tag = 'scoped memory for tpu_custom_call.1']
    #allocation13 [shape = 'u8[1048576]{0}', space=vmem, size = 0x100000, scoped, tag = 'input window, operand 8, single buffered']
    #allocation14 [shape = 'u8[262144]{0}', space=vmem, size = 0x40000, scoped, tag = 'input window, operand 9, single buffered']
    #allocation15 [shape = 's32[1]{0}', space=sflag, size = 0x4, scoped, tag = 'scoped memory for tpu_custom_call.1']
    %16 = vsyncpa [#allocation4], 0
    %17 = vsyncpa [#allocation6], 0
    %18 = vsyncpa [#allocation9], 0
    %19 = vsyncpa [#allocation12], 0
    %20 = vsyncpa [#allocation15], 0
    // Predicated region
    $region2: #{tpu_custom_call.1} parent=1 // pred_check
      _
    $region3: #{tpu_custom_call.1} parent=1 // pred_check_branch
      %22 = sbr.rel (0) target = $region5
    $region4: #{tpu_custom_call.1} parent=1 // pred_region
      _
    $region5: #{tpu_custom_call.1} parent=1 // pred_fallthru
      _
    // Predicated region
    $region6: #{tpu_custom_call.1} parent=1 // pred_check
      _
    $region7: #{tpu_custom_call.1} parent=1 // pred_check_branch
      %24 = sbr.rel (0) target = $region9
    $region8: #{tpu_custom_call.1} parent=1 // pred_region
      %s26 = ssub.s32 2048, 2048
      %27 = vsyncadd [#allocation4], %s26
      %s28 = sshll.u32 [#allocation3], 4
      %s29 = int_to_ptr.vmem [resolvable:$true] %s28
      %34 = dma.hbm_to_vmem [thread:$0]  %s1, 2048, %s29, [#allocation4], 128, 128, 8
    $region9: #{tpu_custom_call.1} parent=1 // pred_fallthru
      _
    // Predicated region
    $region10: #{tpu_custom_call.1} parent=1 // pred_check
      _
    $region11: #{tpu_custom_call.1} parent=1 // pred_check_branch
      %36 = sbr.rel (0) target = $region13
    $region12: #{tpu_custom_call.1} parent=1 // pred_region
      %s38 = ssub.s32 3072, 3072
      %39 = vsyncadd [#allocation6], %s38
      %s40 = sshll.u32 [#allocation5], 4
      %s41 = int_to_ptr.vmem [resolvable:$true] %s40
      %46 = dma.hbm_to_vmem [thread:$0]  %s2, 3072, %s41, [#allocation6], 192, 192, 12
    $region13: #{tpu_custom_call.1} parent=1 // pred_fallthru
      _
    // Predicated region
    $region14: #{tpu_custom_call.1} parent=1 // pred_check
      _
    $region15: #{tpu_custom_call.1} parent=1 // pred_check_branch
      %48 = sbr.rel (0) target = $region17
    $region16: #{tpu_custom_call.1} parent=1 // pred_region
      _
    $region17: #{tpu_custom_call.1} parent=1 // pred_fallthru
      _
    // Predicated region
    $region18: #{tpu_custom_call.1} parent=1 // pred_check
      _
    $region19: #{tpu_custom_call.1} parent=1 // pred_check_branch
      %50 = sbr.rel (0) target = $region21
    $region20: #{tpu_custom_call.1} parent=1 // pred_region
      %s52 = ssub.s32 8192, 8192
      %53 = vsyncadd [#allocation6], %s52
      %s54 = sshll.u32 [#allocation7], 4
      %s55 = int_to_ptr.vmem [resolvable:$true] %s54
      %60 = dma.hbm_to_vmem [thread:$0]  %s4, 8192, %s55, [#allocation6], 256, 256, 16
    $region21: #{tpu_custom_call.1} parent=1 // pred_fallthru
      _
    // Predicated region
    $region22: #{tpu_custom_call.1} parent=1 // pred_check
      _
    $region23: #{tpu_custom_call.1} parent=1 // pred_check_branch
      %62 = sbr.rel (0) target = $region25
    $region24: #{tpu_custom_call.1} parent=1 // pred_region
      %s64 = ssub.s32 8192, 8192
      %65 = vsyncadd [#allocation9], %s64
      %s66 = sshll.u32 [#allocation8], 4
      %s67 = int_to_ptr.vmem [resolvable:$true] %s66
      %72 = dma.hbm_to_vmem [thread:$0]  %s5, 8192, %s67, [#allocation9], 128, 128, 8
    $region25: #{tpu_custom_call.1} parent=1 // pred_fallthru
      _
    // Predicated region
    $region26: #{tpu_custom_call.1} parent=1 // pred_check
      _
    $region27: #{tpu_custom_call.1} parent=1 // pred_check_branch
      %74 = sbr.rel (0) target = $region29
    $region28: #{tpu_custom_call.1} parent=1 // pred_region
      %s76 = ssub.s32 16384, 16384
      %77 = vsyncadd [#allocation9], %s76
      %s78 = sshll.u32 [#allocation10], 4
      %s79 = int_to_ptr.vmem [resolvable:$true] %s78
      %84 = dma.hbm_to_vmem [thread:$0]  %s6, 16384, %s79, [#allocation9], 512, 512, 32
    $region29: #{tpu_custom_call.1} parent=1 // pred_fallthru
      _
    // Predicated region
    $region30: #{tpu_custom_call.1} parent=1 // pred_check
      _
    $region31: #{tpu_custom_call.1} parent=1 // pred_check_branch
      %86 = sbr.rel (0) target = $region33
    $region32: #{tpu_custom_call.1} parent=1 // pred_region
      %s88 = ssub.s32 16384, 16384
      %89 = vsyncadd [#allocation12], %s88
      %s90 = sshll.u32 [#allocation11], 4
      %s91 = int_to_ptr.vmem [resolvable:$true] %s90
      %96 = dma.hbm_to_vmem [thread:$0]  %s7, 16384, %s91, [#allocation12], 512, 512, 32
    $region33: #{tpu_custom_call.1} parent=1 // pred_fallthru
      _
    // Predicated region
    $region34: #{tpu_custom_call.1} parent=1 // pred_check
      _
    $region35: #{tpu_custom_call.1} parent=1 // pred_check_branch
      %98 = sbr.rel (0) target = $region37
    $region36: #{tpu_custom_call.1} parent=1 // pred_region
      %s100 = ssub.s32 32768, 32768
      %101 = vsyncadd [#allocation12], %s100
      %s102 = sshll.u32 [#allocation13], 4
      %s103 = int_to_ptr.vmem [resolvable:$true] %s102
      %108 = dma.hbm_to_vmem [thread:$0]  %s8, 32768, %s103, [#allocation12], 256, 256, 16
    $region37: #{tpu_custom_call.1} parent=1 // pred_fallthru
      _
    // Predicated region
    $region38: #{tpu_custom_call.1} parent=1 // pred_check
      _
    $region39: #{tpu_custom_call.1} parent=1 // pred_check_branch
      %110 = sbr.rel (0) target = $region41
    $region40: #{tpu_custom_call.1} parent=1 // pred_region
      %s112 = ssub.s32 8192, 8192
      %113 = vsyncadd [#allocation15], %s112
      %s114 = sshll.u32 [#allocation14], 4
      %s115 = int_to_ptr.vmem [resolvable:$true] %s114
      %120 = dma.hbm_to_vmem [thread:$0]  %s9, 8192, %s115, [#allocation15], 128, 128, 8
    $region41: #{tpu_custom_call.1} parent=1 // pred_fallthru
      _
    // Predicated region
    $region42: #{tpu_custom_call.1} parent=1 // pred_check
      _
    $region43: #{tpu_custom_call.1} parent=1 // pred_check_branch
      %122 = sbr.rel (0) target = $region45
    $region44: #{tpu_custom_call.1} parent=1 // pred_region
      _
    $region45: #{tpu_custom_call.1} parent=1 // pred_fallthru
      _
    // Predicated region
    $region46: #{tpu_custom_call.1} parent=1 // pred_check
      _
    $region47: #{tpu_custom_call.1} parent=1 // pred_check_branch
      %124 = sbr.rel (0) target = $region49
    $region48: #{tpu_custom_call.1} parent=1 // pred_region
      %125 = dma.done [#allocation4], 2048
    $region49: #{tpu_custom_call.1} parent=1 // pred_fallthru
      _
    // Predicated region
    $region50: #{tpu_custom_call.1} parent=1 // pred_check
      _
    $region51: #{tpu_custom_call.1} parent=1 // pred_check_branch
      %127 = sbr.rel (0) target = $region53
    $region52: #{tpu_custom_call.1} parent=1 // pred_region
      %128 = dma.done [#allocation6], 3072
    $region53: #{tpu_custom_call.1} parent=1 // pred_fallthru
      _
    // Predicated region
    $region54: #{tpu_custom_call.1} parent=1 // pred_check
      _
    $region55: #{tpu_custom_call.1} parent=1 // pred_check_branch
      %130 = sbr.rel (0) target = $region57
    $region56: #{tpu_custom_call.1} parent=1 // pred_region
      %131 = dma.done [#allocation6], 8192
    $region57: #{tpu_custom_call.1} parent=1 // pred_fallthru
      _
    // Predicated region
    $region58: #{tpu_custom_call.1} parent=1 // pred_check
      _
    $region59: #{tpu_custom_call.1} parent=1 // pred_check_branch
      %133 = sbr.rel (0) target = $region61
    $region60: #{tpu_custom_call.1} parent=1 // pred_region
      %134 = dma.done [#allocation9], 8192
    $region61: #{tpu_custom_call.1} parent=1 // pred_fallthru
      _
    // Predicated region
    $region62: #{tpu_custom_call.1} parent=1 // pred_check
      _
    $region63: #{tpu_custom_call.1} parent=1 // pred_check_branch
      %136 = sbr.rel (0) target = $region65
    $region64: #{tpu_custom_call.1} parent=1 // pred_region
      %137 = dma.done [#allocation9], 16384
    $region65: #{tpu_custom_call.1} parent=1 // pred_fallthru
      _
    // Predicated region
    $region66: #{tpu_custom_call.1} parent=1 // pred_check
      _
    $region67: #{tpu_custom_call.1} parent=1 // pred_check_branch
      %139 = sbr.rel (0) target = $region69
    $region68: #{tpu_custom_call.1} parent=1 // pred_region
      %140 = dma.done [#allocation12], 16384
    $region69: #{tpu_custom_call.1} parent=1 // pred_fallthru
      _
    // Predicated region
    $region70: #{tpu_custom_call.1} parent=1 // pred_check
      _
    $region71: #{tpu_custom_call.1} parent=1 // pred_check_branch
      %142 = sbr.rel (0) target = $region73
    $region72: #{tpu_custom_call.1} parent=1 // pred_region
      %143 = dma.done [#allocation12], 32768
    $region73: #{tpu_custom_call.1} parent=1 // pred_fallthru
      _
    // Predicated region
    $region74: #{tpu_custom_call.1} parent=1 // pred_check
      _
    $region75: #{tpu_custom_call.1} parent=1 // pred_check_branch
      %145 = sbr.rel (0) target = $region77
    $region76: #{tpu_custom_call.1} parent=1 // pred_region
      %146 = dma.done [#allocation15], 8192
    $region77: #{tpu_custom_call.1} parent=1 // pred_fallthru
      _
    %v148 = vld [vmem:[%s0] sm:$0xf]
    %v149 = vld [vmem:[%s0 + $0x4] sm:$0xf]
    %v150 = vld [vmem:[%s0 + $0x8] sm:$0xf]
    %v151 = vld [vmem:[%s0 + $0xc] sm:$0xf]
    %v152 = vld [vmem:[%s0 + $0x10] sm:$0xf]
    %v153 = vld [vmem:[%s0 + $0x14] sm:$0xf]
    %v154 = vld [vmem:[%s0 + $0x18] sm:$0xf]
    %v155 = vld [vmem:[%s0 + $0x1c] sm:$0xf]
    %v156 = vld [vmem:[%s0 + $0x20] sm:$0xf]
    %v157 = vld [vmem:[%s0 + $0x24] sm:$0xf]
    %v158 = vld [vmem:[%s0 + $0x28] sm:$0xf]
    %v159 = vld [vmem:[%s0 + $0x2c] sm:$0xf]
    %v160 = vld [vmem:[%s0 + $0x30] sm:$0xf]
    %v161 = vld [vmem:[%s0 + $0x34] sm:$0xf]
    %v162 = vld [vmem:[%s0 + $0x38] sm:$0xf]
    %v163 = vld [vmem:[%s0 + $0x3c] sm:$0xf]
    %v164 = vld [vmem:[#allocation5] sm:$0xff]
    %v165 = vld [vmem:[#allocation5 + $0x8] sm:$0xf]
    %v166 = vld [vmem:[#allocation5 + $0xc] sm:$0xff]
    %v167 = vld [vmem:[#allocation5 + $0x14] sm:$0xf]
    %v168 = vld [vmem:[#allocation5 + $0x18] sm:$0xff]
    %v169 = vld [vmem:[#allocation5 + $0x20] sm:$0xf]
    %v170 = vld [vmem:[#allocation5 + $0x24] sm:$0xff]
    %v171 = vld [vmem:[#allocation5 + $0x2c] sm:$0xf]
    %v172 = vld [vmem:[#allocation5 + $0x30] sm:$0xff]
    %v173 = vld [vmem:[#allocation5 + $0x38] sm:$0xf]
    %v174 = vld [vmem:[#allocation5 + $0x3c] sm:$0xff]
    %v175 = vld [vmem:[#allocation5 + $0x44] sm:$0xf]
    %v176 = vld [vmem:[#allocation5 + $0x48] sm:$0xff]
    %v177 = vld [vmem:[#allocation5 + $0x50] sm:$0xf]
    %v178 = vld [vmem:[#allocation5 + $0x54] sm:$0xff]
    %v179 = vld [vmem:[#allocation5 + $0x5c] sm:$0xf]
    %v180 = vld [vmem:[#allocation5 + $0x60] sm:$0xff]
    %v181 = vld [vmem:[#allocation5 + $0x68] sm:$0xf]
    %v182 = vld [vmem:[#allocation5 + $0x6c] sm:$0xff]
    %v183 = vld [vmem:[#allocation5 + $0x74] sm:$0xf]
    %v184 = vld [vmem:[#allocation5 + $0x78] sm:$0xff]
    %v185 = vld [vmem:[#allocation5 + $0x80] sm:$0xf]
    %v186 = vld [vmem:[#allocation5 + $0x84] sm:$0xff]
    %v187 = vld [vmem:[#allocation5 + $0x8c] sm:$0xf]
    %v188 = vld [vmem:[#allocation5 + $0x90] sm:$0xff]
    %v189 = vld [vmem:[#allocation5 + $0x98] sm:$0xf]
    %v190 = vld [vmem:[#allocation5 + $0x9c] sm:$0xff]
    %v191 = vld [vmem:[#allocation5 + $0xa4] sm:$0xf]
    %v192 = vld [vmem:[#allocation5 + $0xa8] sm:$0xff]
    %v193 = vld [vmem:[#allocation5 + $0xb0] sm:$0xf]
    %v194 = vld [vmem:[#allocation5 + $0xb4] sm:$0xff]
    %v195 = vld [vmem:[#allocation5 + $0xbc] sm:$0xf]
    %v212 = vunpack.c.l.b16 %v148
    %v213 = vunpack.c.l.b16 %v149
    %v214 = vunpack.c.l.b16 %v150
    %v215 = vunpack.c.l.b16 %v151
    %v216 = vunpack.c.l.b16 %v152
    %v217 = vunpack.c.l.b16 %v153
    %v218 = vunpack.c.l.b16 %v154
    %v219 = vunpack.c.l.b16 %v155
    %v220 = vunpack.c.l.b16 %v156
    %v221 = vunpack.c.l.b16 %v157
    %v222 = vunpack.c.l.b16 %v158
    %v223 = vunpack.c.l.b16 %v159
    %v224 = vunpack.c.l.b16 %v160
    %v225 = vunpack.c.l.b16 %v161
    %v226 = vunpack.c.l.b16 %v162
    %v227 = vunpack.c.l.b16 %v163
    %v228 = vpack.c.b16 %v213, %v212
    %v229 = vpack.c.b16 %v215, %v214
    %v230 = vpack.c.b16 %v217, %v216
    %v231 = vpack.c.b16 %v219, %v218
    %v232 = vpack.c.b16 %v221, %v220
    %v233 = vpack.c.b16 %v223, %v222
    %v234 = vpack.c.b16 %v225, %v224
    %v235 = vpack.c.b16 %v227, %v226
    %v276 = vunpack.c.l.b16 %v164
    %v277 = vunpack.c.h.b16 %v164
    %v278 = vunpack.c.l.b16 %v165
    %v279 = vunpack.c.l.b16 %v166
    %v280 = vunpack.c.h.b16 %v166
    %v281 = vunpack.c.l.b16 %v167
    %v282 = vunpack.c.l.b16 %v168
    %v283 = vunpack.c.h.b16 %v168
    %v284 = vunpack.c.l.b16 %v169
    %v285 = vunpack.c.l.b16 %v170
    %v286 = vunpack.c.h.b16 %v170
    %v287 = vunpack.c.l.b16 %v171
    %v288 = vunpack.c.l.b16 %v172
    %v289 = vunpack.c.h.b16 %v172
    %v290 = vunpack.c.l.b16 %v173
    %v291 = vunpack.c.l.b16 %v174
    %v292 = vunpack.c.h.b16 %v174
    %v293 = vunpack.c.l.b16 %v175
    %v294 = vunpack.c.l.b16 %v176
    %v295 = vunpack.c.h.b16 %v176
    %v296 = vunpack.c.l.b16 %v177
    %v297 = vunpack.c.l.b16 %v178
    %v298 = vunpack.c.h.b16 %v178
    %v299 = vunpack.c.l.b16 %v179
    %v300 = vunpack.c.l.b16 %v180
    %v301 = vunpack.c.h.b16 %v180
    %v302 = vunpack.c.l.b16 %v181
    %v303 = vunpack.c.l.b16 %v182
    %v304 = vunpack.c.h.b16 %v182
    %v305 = vunpack.c.l.b16 %v183
    %v306 = vunpack.c.l.b16 %v184
    %v307 = vunpack.c.h.b16 %v184
    %v308 = vunpack.c.l.b16 %v185
    %v309 = vunpack.c.l.b16 %v186
    %v310 = vunpack.c.h.b16 %v186
    %v311 = vunpack.c.l.b16 %v187
    %v312 = vunpack.c.l.b16 %v188
    %v313 = vunpack.c.h.b16 %v188
    %v314 = vunpack.c.l.b16 %v189
    %v315 = vunpack.c.l.b16 %v190
    %v316 = vunpack.c.h.b16 %v190
    %v317 = vunpack.c.l.b16 %v191
    %v318 = vunpack.c.l.b16 %v192
    %v319 = vunpack.c.h.b16 %v192
    %v320 = vunpack.c.l.b16 %v193
    %v321 = vunpack.c.l.b16 %v194
    %v322 = vunpack.c.h.b16 %v194
    %v323 = vunpack.c.l.b16 %v195
    %v324 = vpack.c.b16 %v279, %v276
    %v325 = vpack.c.b16 %v280, %v277
    %v326 = vpack.c.b16 %v281, %v278
    %v327 = vpack.c.b16 %v285, %v282
    %v328 = vpack.c.b16 %v286, %v283
    %v329 = vpack.c.b16 %v287, %v284
    %v330 = vpack.c.b16 %v291, %v288
    %v331 = vpack.c.b16 %v292, %v289
    %v332 = vpack.c.b16 %v293, %v290
    %v333 = vpack.c.b16 %v297, %v294
    %v334 = vpack.c.b16 %v298, %v295
    %v335 = vpack.c.b16 %v299, %v296
    %v336 = vpack.c.b16 %v303, %v300
    %v337 = vpack.c.b16 %v304, %v301
    %v338 = vpack.c.b16 %v305, %v302
    %v339 = vpack.c.b16 %v309, %v306
    %v340 = vpack.c.b16 %v310, %v307
    %v341 = vpack.c.b16 %v311, %v308
    %v342 = vpack.c.b16 %v315, %v312
    %v343 = vpack.c.b16 %v316, %v313
    %v344 = vpack.c.b16 %v317, %v314
    %v345 = vpack.c.b16 %v321, %v318
    %v346 = vpack.c.b16 %v322, %v319
    %v347 = vpack.c.b16 %v323, %v320
    %372 = vmatprep.subr.bf16.mxu0 %v325
    %373 = vmatpush1.bf16.msra.mxu0 %v324
    %374 = vmatprep.subr.bf16.mxu0 %v328
    %375 = vmatpush1.bf16.msra.mxu0 %v327
    %376 = vmatprep.subr.bf16.mxu0 %v331
    %377 = vmatpush1.bf16.msra.mxu0 %v330
    %378 = vmatprep.subr.bf16.mxu0 %v334
    %379 = vmatpush1.bf16.msra.mxu0 %v333
    %380 = vmatprep.subr.bf16.mxu0 %v337
    %381 = vmatpush1.bf16.msra.mxu0 %v336
    %382 = vmatprep.subr.bf16.mxu0 %v340
    %383 = vmatpush1.bf16.msra.mxu0 %v339
    %384 = vmatprep.subr.bf16.mxu0 %v343
    %385 = vmatpush1.bf16.msra.mxu0 %v342
    %386 = vmatprep.subr.bf16.mxu0 %v346
    %387 = vmatpush1.bf16.msra.mxu0 %v345
    %388 = vmatprep.subr.bf16.mxu0 0
    %389 = vmatpush1.bf16.msra.mxu0 0
    %390 = vmatprep.subr.bf16.mxu0 0
    %391 = vmatpush1.bf16.msra.mxu0 0
    %392 = vmatprep.subr.bf16.mxu0 0
    %393 = vmatpush1.bf16.msra.mxu0 0
    %394 = vmatprep.subr.bf16.mxu0 0
    %395 = vmatpush1.bf16.msra.mxu0 0
    %396 = vmatprep.subr.bf16.mxu0 0
    %397 = vmatpush1.bf16.msra.mxu0 0
    %398 = vmatprep.subr.bf16.mxu0 0
    %399 = vmatpush1.bf16.msra.mxu0 0
    %400 = vmatprep.subr.bf16.mxu0 0
    %401 = vmatpush1.bf16.msra.mxu0 0
    %402 = vmatprep.subr.bf16.mxu0 0
    %403 = vmatpush1.bf16.msra.mxu0 0
    %404 = vmatprep.mubr.bf16.mxu0 0
    %405 = vmatmul.mubr.bf16.gmra.mrb[0].mxu0 %v228
    %v406 = vpop.f32.mrb[0].mxu0
    %v407 = vadd.f32 0.0, %v406
    %v408 = vpop.f32.mrb[0].mxu0
    %v409 = vadd.f32 0.0, %v408
    %v410 = vpop.f32.mrb[0].mxu0
    %v411 = vadd.f32 0.0, %v410
    %v412 = vpop.f32.mrb[0].mxu0
    %v413 = vadd.f32 0.0, %v412
    %414 = vmatprep.mubr.bf16.mxu0 0
    %415 = vmatmul.mubr.bf16.gmra.mrb[0].mxu0 %v229
    %v416 = vpop.f32.mrb[0].mxu0
    %v417 = vadd.f32 0.0, %v416
    %v418 = vpop.f32.mrb[0].mxu0
    %v419 = vadd.f32 0.0, %v418
    %v420 = vpop.f32.mrb[0].mxu0
    %v421 = vadd.f32 0.0, %v420
    %v422 = vpop.f32.mrb[0].mxu0
    %v423 = vadd.f32 0.0, %v422
    %424 = vmatprep.mubr.bf16.mxu0 0
    %425 = vmatmul.mubr.bf16.gmra.mrb[0].mxu0 %v230
    %v426 = vpop.f32.mrb[0].mxu0
    %v427 = vadd.f32 0.0, %v426
    %v428 = vpop.f32.mrb[0].mxu0
    %v429 = vadd.f32 0.0, %v428
    %v430 = vpop.f32.mrb[0].mxu0
    %v431 = vadd.f32 0.0, %v430
    %v432 = vpop.f32.mrb[0].mxu0
    %v433 = vadd.f32 0.0, %v432
    %434 = vmatprep.mubr.bf16.mxu0 0
    %435 = vmatmul.mubr.bf16.gmra.mrb[0].mxu0 %v231
    %v436 = vpop.f32.mrb[0].mxu0
    %v437 = vadd.f32 0.0, %v436
    %v438 = vpop.f32.mrb[0].mxu0
    %v439 = vadd.f32 0.0, %v438
    %v440 = vpop.f32.mrb[0].mxu0
    %v441 = vadd.f32 0.0, %v440
    %v442 = vpop.f32.mrb[0].mxu0
    %v443 = vadd.f32 0.0, %v442
    %444 = vmatprep.mubr.bf16.mxu0 0
    %445 = vmatmul.mubr.bf16.gmra.mrb[0].mxu0 %v232
    %v446 = vpop.f32.mrb[0].mxu0
    %v447 = vadd.f32 0.0, %v446
    %v448 = vpop.f32.mrb[0].mxu0
    %v449 = vadd.f32 0.0, %v448
    %v450 = vpop.f32.mrb[0].mxu0
    %v451 = vadd.f32 0.0, %v450
    %v452 = vpop.f32.mrb[0].mxu0
    %v453 = vadd.f32 0.0, %v452
    %454 = vmatprep.mubr.bf16.mxu0 0
    %455 = vmatmul.mubr.bf16.gmra.mrb[0].mxu0 %v233
    %v456 = vpop.f32.mrb[0].mxu0
    %v457 = vadd.f32 0.0, %v456
    %v458 = vpop.f32.mrb[0].mxu0
    %v459 = vadd.f32 0.0, %v458
    %v460 = vpop.f32.mrb[0].mxu0
    %v461 = vadd.f32 0.0, %v460
    %v462 = vpop.f32.mrb[0].mxu0
    %v463 = vadd.f32 0.0, %v462
    %464 = vmatprep.mubr.bf16.mxu0 0
    %465 = vmatmul.mubr.bf16.gmra.mrb[0].mxu0 %v234
    %v466 = vpop.f32.mrb[0].mxu0
    %v467 = vadd.f32 0.0, %v466
    %v468 = vpop.f32.mrb[0].mxu0
    %v469 = vadd.f32 0.0, %v468
    %v470 = vpop.f32.mrb[0].mxu0
    %v471 = vadd.f32 0.0, %v470
    %v472 = vpop.f32.mrb[0].mxu0
    %v473 = vadd.f32 0.0, %v472
    %474 = vmatprep.mubr.bf16.mxu0 0
    %475 = vmatmul.mubr.bf16.gmra.mrb[0].mxu0 %v235
    %v476 = vpop.f32.mrb[0].mxu0
    %v477 = vadd.f32 0.0, %v476
    %v478 = vpop.f32.mrb[0].mxu0
    %v479 = vadd.f32 0.0, %v478
    %v480 = vpop.f32.mrb[0].mxu0
    %v481 = vadd.f32 0.0, %v480
    %v482 = vpop.f32.mrb[0].mxu0
    %v483 = vadd.f32 0.0, %v482
    %484 = vdwg.mxu0
    %485 = vmatprep.subr.bf16.mxu0 0
    %486 = vmatpush1.bf16.msra.mxu0 %v326
    %487 = vmatprep.subr.bf16.mxu0 0
    %488 = vmatpush1.bf16.msra.mxu0 %v329
    %489 = vmatprep.subr.bf16.mxu0 0
    %490 = vmatpush1.bf16.msra.mxu0 %v332
    %491 = vmatprep.subr.bf16.mxu0 0
    %492 = vmatpush1.bf16.msra.mxu0 %v335
    %493 = vmatprep.subr.bf16.mxu0 0
    %494 = vmatpush1.bf16.msra.mxu0 %v338
    %495 = vmatprep.subr.bf16.mxu0 0
    %496 = vmatpush1.bf16.msra.mxu0 %v341
    %497 = vmatprep.subr.bf16.mxu0 0
    %498 = vmatpush1.bf16.msra.mxu0 %v344
    %499 = vmatprep.subr.bf16.mxu0 0
    %500 = vmatpush1.bf16.msra.mxu0 %v347
    %501 = vmatprep.subr.bf16.mxu0 0
    %502 = vmatpush1.bf16.msra.mxu0 0
    %503 = vmatprep.subr.bf16.mxu0 0
    %504 = vmatpush1.bf16.msra.mxu0 0
    %505 = vmatprep.subr.bf16.mxu0 0
    %506 = vmatpush1.bf16.msra.mxu0 0
    %507 = vmatprep.subr.bf16.mxu0 0
    %508 = vmatpush1.bf16.msra.mxu0 0
    %509 = vmatprep.subr.bf16.mxu0 0
    %510 = vmatpush1.bf16.msra.mxu0 0
    %511 = vmatprep.subr.bf16.mxu0 0
    %512 = vmatpush1.bf16.msra.mxu0 0
    %513 = vmatprep.subr.bf16.mxu0 0
    %514 = vmatpush1.bf16.msra.mxu0 0
    %515 = vmatprep.subr.bf16.mxu0 0
    %516 = vmatpush1.bf16.msra.mxu0 0
    %517 = vmatprep.mubr.bf16.mxu0 0
    %518 = vmatmul.mubr.bf16.gmra.mrb[0].mxu0 %v228
    %v519 = vpop.f32.mrb[0].mxu0
    %v520 = vadd.f32 0.0, %v519
    %v521 = vpop.f32.mrb[0].mxu0
    %v522 = vpop.f32.mrb[0].mxu0
    %v523 = vadd.f32 0.0, %v522
    %v524 = vpop.f32.mrb[0].mxu0
    %525 = vmatprep.mubr.bf16.mxu0 0
    %526 = vmatmul.mubr.bf16.gmra.mrb[0].mxu0 %v229
    %v527 = vpop.f32.mrb[0].mxu0
    %v528 = vadd.f32 0.0, %v527
    %v529 = vpop.f32.mrb[0].mxu0
    %v530 = vpop.f32.mrb[0].mxu0
    %v531 = vadd.f32 0.0, %v530
    %v532 = vpop.f32.mrb[0].mxu0
    %533 = vmatprep.mubr.bf16.mxu0 0
    %534 = vmatmul.mubr.bf16.gmra.mrb[0].mxu0 %v230
    %v535 = vpop.f32.mrb[0].mxu0
    %v536 = vadd.f32 0.0, %v535
    %v537 = vpop.f32.mrb[0].mxu0
    %v538 = vpop.f32.mrb[0].mxu0
    %v539 = vadd.f32 0.0, %v538
    %v540 = vpop.f32.mrb[0].mxu0
    %541 = vmatprep.mubr.bf16.mxu0 0
    %542 = vmatmul.mubr.bf16.gmra.mrb[0].mxu0 %v231
    %v543 = vpop.f32.mrb[0].mxu0
    %v544 = vadd.f32 0.0, %v543
    %v545 = vpop.f32.mrb[0].mxu0
    %v546 = vpop.f32.mrb[0].mxu0
    %v547 = vadd.f32 0.0, %v546
    %v548 = vpop.f32.mrb[0].mxu0
    %549 = vmatprep.mubr.bf16.mxu0 0
    %550 = vmatmul.mubr.bf16.gmra.mrb[0].mxu0 %v232
    %v551 = vpop.f32.mrb[0].mxu0
    %v552 = vadd.f32 0.0, %v551
    %v553 = vpop.f32.mrb[0].mxu0
    %v554 = vpop.f32.mrb[0].mxu0
    %v555 = vadd.f32 0.0, %v554
    %v556 = vpop.f32.mrb[0].mxu0
    %557 = vmatprep.mubr.bf16.mxu0 0
    %558 = vmatmul.mubr.bf16.gmra.mrb[0].mxu0 %v233
    %v559 = vpop.f32.mrb[0].mxu0
    %v560 = vadd.f32 0.0, %v559
    %v561 = vpop.f32.mrb[0].mxu0
    %v562 = vpop.f32.mrb[0].mxu0
    %v563 = vadd.f32 0.0, %v562
    %v564 = vpop.f32.mrb[0].mxu0
    %565 = vmatprep.mubr.bf16.mxu0 0
    %566 = vmatmul.mubr.bf16.gmra.mrb[0].mxu0 %v234
    %v567 = vpop.f32.mrb[0].mxu0
    %v568 = vadd.f32 0.0, %v567
    %v569 = vpop.f32.mrb[0].mxu0
    %v570 = vpop.f32.mrb[0].mxu0
    %v571 = vadd.f32 0.0, %v570
    %v572 = vpop.f32.mrb[0].mxu0
    %573 = vmatprep.mubr.bf16.mxu0 0
    %574 = vmatmul.mubr.bf16.gmra.mrb[0].mxu0 %v235
    %v575 = vpop.f32.mrb[0].mxu0
    %v576 = vadd.f32 0.0, %v575
    %v577 = vpop.f32.mrb[0].mxu0
    %v578 = vpop.f32.mrb[0].mxu0
    %v579 = vadd.f32 0.0, %v578
    %v580 = vpop.f32.mrb[0].mxu0
    %581 = vdwg.mxu0
    %v582 = vld [vmem:[%s10] sm:$0x3]
    %v584 = vlaneseq
    %v585 = vshrl.u32 %v584, 7
    %v586 = vsub.s32 0, %v585
    %v587 = vrot.slane %v582, %v586
    %v588 = vlaneseq
    %v589 = vshrl.u32 %v588, 7
    %v590 = vsub.s32 1, %v589
    %v591 = vrot.slane %v582, %v590
    %v594 = vadd.f32 %v407, %v587
    %v595 = vadd.f32 %v409, %v591
    %v596 = vadd.f32 %v411, %v587
    %v597 = vadd.f32 %v413, %v591
    %v598 = vadd.f32 %v417, %v587
    %v599 = vadd.f32 %v419, %v591
    %v600 = vadd.f32 %v421, %v587
    %v601 = vadd.f32 %v423, %v591
    %v602 = vadd.f32 %v427, %v587
    %v603 = vadd.f32 %v429, %v591
    %v604 = vadd.f32 %v431, %v587
    %v605 = vadd.f32 %v433, %v591
    %v606 = vadd.f32 %v437, %v587
    %v607 = vadd.f32 %v439, %v591
    %v608 = vadd.f32 %v441, %v587
    %v609 = vadd.f32 %v443, %v591
    %v610 = vadd.f32 %v447, %v587
    %v611 = vadd.f32 %v449, %v591
    %v612 = vadd.f32 %v451, %v587
    %v613 = vadd.f32 %v453, %v591
    %v614 = vadd.f32 %v457, %v587
    %v615 = vadd.f32 %v459, %v591
    %v616 = vadd.f32 %v461, %v587
    %v617 = vadd.f32 %v463, %v591
    %v618 = vadd.f32 %v467, %v587
    %v619 = vadd.f32 %v469, %v591
    %v620 = vadd.f32 %v471, %v587
    %v621 = vadd.f32 %v473, %v591
    %v622 = vadd.f32 %v477, %v587
    %v623 = vadd.f32 %v479, %v591
    %v624 = vadd.f32 %v481, %v587
    %v625 = vadd.f32 %v483, %v591
    %v626 = vpack.c.bf16 %v596, %v594
    %v627 = vpack.c.bf16 %v597, %v595
    %v628 = vpack.c.bf16 %v600, %v598
    %v629 = vpack.c.bf16 %v601, %v599
    %v630 = vpack.c.bf16 %v604, %v602
    %v631 = vpack.c.bf16 %v605, %v603
    %v632 = vpack.c.bf16 %v608, %v606
    %v633 = vpack.c.bf16 %v609, %v607
    %v634 = vpack.c.bf16 %v612, %v610
    %v635 = vpack.c.bf16 %v613, %v611
    %v636 = vpack.c.bf16 %v616, %v614
    %v637 = vpack.c.bf16 %v617, %v615
    %v638 = vpack.c.bf16 %v620, %v618
    %v639 = vpack.c.bf16 %v621, %v619
    %v640 = vpack.c.bf16 %v624, %v622
    %v641 = vpack.c.bf16 %v625, %v623
    %v642 = vmax.bf16 %v626, 0
    %v643 = vmax.bf16 %v627, 0
    %v644 = vmax.bf16 %v628, 0
    %v645 = vmax.bf16 %v629, 0
    %v646 = vmax.bf16 %v630, 0
    %v647 = vmax.bf16 %v631, 0
    %v648 = vmax.bf16 %v632, 0
    %v649 = vmax.bf16 %v633, 0
    %v650 = vmax.bf16 %v634, 0
    %v651 = vmax.bf16 %v635, 0
    %v652 = vmax.bf16 %v636, 0
    %v653 = vmax.bf16 %v637, 0
    %v654 = vmax.bf16 %v638, 0
    %v655 = vmax.bf16 %v639, 0
    %v656 = vmax.bf16 %v640, 0
    %v657 = vmax.bf16 %v641, 0
    %v658 = vadd.f32 %v520, 1e-06
    %v659 = vadd.f32 %v523, 1e-06
    %v660 = vadd.f32 %v528, 1e-06
    %v661 = vadd.f32 %v531, 1e-06
    %v662 = vadd.f32 %v536, 1e-06
    %v663 = vadd.f32 %v539, 1e-06
    %v664 = vadd.f32 %v544, 1e-06
    %v665 = vadd.f32 %v547, 1e-06
    %v666 = vadd.f32 %v552, 1e-06
    %v667 = vadd.f32 %v555, 1e-06
    %v668 = vadd.f32 %v560, 1e-06
    %v669 = vadd.f32 %v563, 1e-06
    %v670 = vadd.f32 %v568, 1e-06
    %v671 = vadd.f32 %v571, 1e-06
    %v672 = vadd.f32 %v576, 1e-06
    %v673 = vadd.f32 %v579, 1e-06
    %v674 = vrcp.pop %v658
    %v675 = vrcp.pop %v659
    %v676 = vrcp.pop %v660
    %v677 = vrcp.pop %v661
    %v678 = vrcp.pop %v662
    %v679 = vrcp.pop %v663
    %v680 = vrcp.pop %v664
    %v681 = vrcp.pop %v665
    %v682 = vrcp.pop %v666
    %v683 = vrcp.pop %v667
    %v684 = vrcp.pop %v668
    %v685 = vrcp.pop %v669
    %v686 = vrcp.pop %v670
    %v687 = vrcp.pop %v671
    %v688 = vrcp.pop %v672
    %v689 = vrcp.pop %v673
    %691 = vset.pattern.permute.xlu0 64
    %692 = vperm.xlu0 %691, %v674
    %v693 = vpop.permute.xlu0 %692
    %696 = vset.pattern.permute.xlu0 64
    %697 = vperm.xlu0 %696, %v675
    %v698 = vpop.permute.xlu0 %697
    %701 = vset.pattern.permute.xlu0 64
    %702 = vperm.xlu0 %701, %v676
    %v703 = vpop.permute.xlu0 %702
    %706 = vset.pattern.permute.xlu0 64
    %707 = vperm.xlu0 %706, %v677
    %v708 = vpop.permute.xlu0 %707
    %711 = vset.pattern.permute.xlu0 64
    %712 = vperm.xlu0 %711, %v678
    %v713 = vpop.permute.xlu0 %712
    %716 = vset.pattern.permute.xlu0 64
    %717 = vperm.xlu0 %716, %v679
    %v718 = vpop.permute.xlu0 %717
    %721 = vset.pattern.permute.xlu0 64
    %722 = vperm.xlu0 %721, %v680
    %v723 = vpop.permute.xlu0 %722
    %726 = vset.pattern.permute.xlu0 64
    %727 = vperm.xlu0 %726, %v681
    %v728 = vpop.permute.xlu0 %727
    %731 = vset.pattern.permute.xlu0 64
    %732 = vperm.xlu0 %731, %v682
    %v733 = vpop.permute.xlu0 %732
    %736 = vset.pattern.permute.xlu0 64
    %737 = vperm.xlu0 %736, %v683
    %v738 = vpop.permute.xlu0 %737
    %741 = vset.pattern.permute.xlu0 64
    %742 = vperm.xlu0 %741, %v684
    %v743 = vpop.permute.xlu0 %742
    %746 = vset.pattern.permute.xlu0 64
    %747 = vperm.xlu0 %746, %v685
    %v748 = vpop.permute.xlu0 %747
    %751 = vset.pattern.permute.xlu0 64
    %752 = vperm.xlu0 %751, %v686
    %v753 = vpop.permute.xlu0 %752
    %756 = vset.pattern.permute.xlu0 64
    %757 = vperm.xlu0 %756, %v687
    %v758 = vpop.permute.xlu0 %757
    %761 = vset.pattern.permute.xlu0 64
    %762 = vperm.xlu0 %761, %v688
    %v763 = vpop.permute.xlu0 %762
    %766 = vset.pattern.permute.xlu0 64
    %767 = vperm.xlu0 %766, %v689
    %v768 = vpop.permute.xlu0 %767
    %v770 = vmul.f32 %v520, %v693
    %v771 = vmul.f32 %v523, %v698
    %v772 = vmul.f32 %v528, %v703
    %v773 = vmul.f32 %v531, %v708
    %v774 = vmul.f32 %v536, %v713
    %v775 = vmul.f32 %v539, %v718
    %v776 = vmul.f32 %v544, %v723
    %v777 = vmul.f32 %v547, %v728
    %v778 = vmul.f32 %v552, %v733
    %v779 = vmul.f32 %v555, %v738
    %v780 = vmul.f32 %v560, %v743
    %v781 = vmul.f32 %v563, %v748
    %v782 = vmul.f32 %v568, %v753
    %v783 = vmul.f32 %v571, %v758
    %v784 = vmul.f32 %v576, %v763
    %v785 = vmul.f32 %v579, %v768
    %786 = vset.pattern.permute.xlu0 65
    %787 = vperm.xlu0 %786, %v674
    %v788 = vpop.permute.xlu0 %787
    %790 = vset.pattern.permute.xlu0 65
    %791 = vperm.xlu0 %790, %v675
    %v792 = vpop.permute.xlu0 %791
    %794 = vset.pattern.permute.xlu0 65
    %795 = vperm.xlu0 %794, %v676
    %v796 = vpop.permute.xlu0 %795
    %798 = vset.pattern.permute.xlu0 65
    %799 = vperm.xlu0 %798, %v677
    %v800 = vpop.permute.xlu0 %799
    %802 = vset.pattern.permute.xlu0 65
    %803 = vperm.xlu0 %802, %v678
    %v804 = vpop.permute.xlu0 %803
    %806 = vset.pattern.permute.xlu0 65
    %807 = vperm.xlu0 %806, %v679
    %v808 = vpop.permute.xlu0 %807
    %810 = vset.pattern.permute.xlu0 65
    %811 = vperm.xlu0 %810, %v680
    %v812 = vpop.permute.xlu0 %811
    %814 = vset.pattern.permute.xlu0 65
    %815 = vperm.xlu0 %814, %v681
    %v816 = vpop.permute.xlu0 %815
    %818 = vset.pattern.permute.xlu0 65
    %819 = vperm.xlu0 %818, %v682
    %v820 = vpop.permute.xlu0 %819
    %822 = vset.pattern.permute.xlu0 65
    %823 = vperm.xlu0 %822, %v683
    %v824 = vpop.permute.xlu0 %823
    %826 = vset.pattern.permute.xlu0 65
    %827 = vperm.xlu0 %826, %v684
    %v828 = vpop.permute.xlu0 %827
    %830 = vset.pattern.permute.xlu0 65
    %831 = vperm.xlu0 %830, %v685
    %v832 = vpop.permute.xlu0 %831
    %834 = vset.pattern.permute.xlu0 65
    %835 = vperm.xlu0 %834, %v686
    %v836 = vpop.permute.xlu0 %835
    %838 = vset.pattern.permute.xlu0 65
    %839 = vperm.xlu0 %838, %v687
    %v840 = vpop.permute.xlu0 %839
    %842 = vset.pattern.permute.xlu0 65
    %843 = vperm.xlu0 %842, %v688
    %v844 = vpop.permute.xlu0 %843
    %846 = vset.pattern.permute.xlu0 65
    %847 = vperm.xlu0 %846, %v689
    %v848 = vpop.permute.xlu0 %847
    %v850 = vmul.f32 %v520, %v788
    %v851 = vmul.f32 %v523, %v792
    %v852 = vmul.f32 %v528, %v796
    %v853 = vmul.f32 %v531, %v800
    %v854 = vmul.f32 %v536, %v804
    %v855 = vmul.f32 %v539, %v808
    %v856 = vmul.f32 %v544, %v812
    %v857 = vmul.f32 %v547, %v816
    %v858 = vmul.f32 %v552, %v820
    %v859 = vmul.f32 %v555, %v824
    %v860 = vmul.f32 %v560, %v828
    %v861 = vmul.f32 %v563, %v832
    %v862 = vmul.f32 %v568, %v836
    %v863 = vmul.f32 %v571, %v840
    %v864 = vmul.f32 %v576, %v844
    %v865 = vmul.f32 %v579, %v848
    %v866 = vld [vmem:[%s3] sm:$0xf]
    %v867 = vld [vmem:[%s3 + $0x4] sm:$0xf]
    %v868 = vld [vmem:[%s3 + $0x8] sm:$0xf]
    %v869 = vld [vmem:[%s3 + $0xc] sm:$0xf]
    %v870 = vld [vmem:[%s3 + $0x10] sm:$0xf]
    %v871 = vld [vmem:[%s3 + $0x14] sm:$0xf]
    %v872 = vld [vmem:[%s3 + $0x18] sm:$0xf]
    %v873 = vld [vmem:[%s3 + $0x1c] sm:$0xf]
    %v874 = vld [vmem:[%s3 + $0x20] sm:$0xf]
    %v875 = vld [vmem:[%s3 + $0x24] sm:$0xf]
    %v876 = vld [vmem:[%s3 + $0x28] sm:$0xf]
    %v877 = vld [vmem:[%s3 + $0x2c] sm:$0xf]
    %v878 = vld [vmem:[%s3 + $0x30] sm:$0xf]
    %v879 = vld [vmem:[%s3 + $0x34] sm:$0xf]
    %v880 = vld [vmem:[%s3 + $0x38] sm:$0xf]
    %v881 = vld [vmem:[%s3 + $0x3c] sm:$0xf]
    %v882 = vld [vmem:[%s10 + $0x2] sm:$0x1]
    %v884 = vlaneseq
    %v885 = vshrl.u32 %v884, 7
    %v886 = vsub.s32 0, %v885
    %v887 = vrot.slane %v882, %v886
    %v905 = vunpack.c.l.b16 %v866
    %v906 = vunpack.c.l.b16 %v867
    %v907 = vunpack.c.l.b16 %v868
    %v908 = vunpack.c.l.b16 %v869
    %v909 = vunpack.c.l.b16 %v870
    %v910 = vunpack.c.l.b16 %v871
    %v911 = vunpack.c.l.b16 %v872
    %v912 = vunpack.c.l.b16 %v873
    %v913 = vunpack.c.l.b16 %v874
    %v914 = vunpack.c.l.b16 %v875
    %v915 = vunpack.c.l.b16 %v876
    %v916 = vunpack.c.l.b16 %v877
    %v917 = vunpack.c.l.b16 %v878
    %v918 = vunpack.c.l.b16 %v879
    %v919 = vunpack.c.l.b16 %v880
    %v920 = vunpack.c.l.b16 %v881
    %v921 = vpack.c.b16 %v906, %v905
    %v922 = vpack.c.b16 %v908, %v907
    %v923 = vpack.c.b16 %v910, %v909
    %v924 = vpack.c.b16 %v912, %v911
    %v925 = vpack.c.b16 %v914, %v913
    %v926 = vpack.c.b16 %v916, %v915
    %v927 = vpack.c.b16 %v918, %v917
    %v928 = vpack.c.b16 %v920, %v919
    %937 = vmatprep.subr.bf16.mxu0 0
    %938 = vmatpush1.bf16.msra.mxu0 %v921
    %939 = vmatprep.subr.bf16.mxu0 0
    %940 = vmatpush1.bf16.msra.mxu0 %v922
    %941 = vmatprep.subr.bf16.mxu0 0
    %942 = vmatpush1.bf16.msra.mxu0 %v923
    %943 = vmatprep.subr.bf16.mxu0 0
    %944 = vmatpush1.bf16.msra.mxu0 %v924
    %945 = vmatprep.subr.bf16.mxu0 0
    %946 = vmatpush1.bf16.msra.mxu0 %v925
    %947 = vmatprep.subr.bf16.mxu0 0
    %948 = vmatpush1.bf16.msra.mxu0 %v926
    %949 = vmatprep.subr.bf16.mxu0 0
    %950 = vmatpush1.bf16.msra.mxu0 %v927
    %951 = vmatprep.subr.bf16.mxu0 0
    %952 = vmatpush1.bf16.msra.mxu0 %v928
    %953 = vmatprep.subr.bf16.mxu0 0
    %954 = vmatpush1.bf16.msra.mxu0 0
    %955 = vmatprep.subr.bf16.mxu0 0
    %956 = vmatpush1.bf16.msra.mxu0 0
    %957 = vmatprep.subr.bf16.mxu0 0
    %958 = vmatpush1.bf16.msra.mxu0 0
    %959 = vmatprep.subr.bf16.mxu0 0
    %960 = vmatpush1.bf16.msra.mxu0 0
    %961 = vmatprep.subr.bf16.mxu0 0
    %962 = vmatpush1.bf16.msra.mxu0 0
    %963 = vmatprep.subr.bf16.mxu0 0
    %964 = vmatpush1.bf16.msra.mxu0 0
    %965 = vmatprep.subr.bf16.mxu0 0
    %966 = vmatpush1.bf16.msra.mxu0 0
    %967 = vmatprep.subr.bf16.mxu0 0
    %968 = vmatpush1.bf16.msra.mxu0 0
    %969 = vmatprep.mubr.bf16.mxu0 0
    %970 = vmatmul.mubr.bf16.gmra.mrb[0].mxu0 %v642
    %v971 = vpop.f32.mrb[0].mxu0
    %v972 = vadd.f32 %v887, %v971
    %v973 = vpop.f32.mrb[0].mxu0
    %v974 = vpop.f32.mrb[0].mxu0
    %v975 = vadd.f32 %v887, %v974
    %v976 = vpop.f32.mrb[0].mxu0
    %977 = vmatprep.mubr.bf16.mxu0 0
    %978 = vmatmul.mubr.bf16.gmra.mrb[0].mxu0 %v644
    %v979 = vpop.f32.mrb[0].mxu0
    %v980 = vadd.f32 %v887, %v979
    %v981 = vpop.f32.mrb[0].mxu0
    %v982 = vpop.f32.mrb[0].mxu0
    %v983 = vadd.f32 %v887, %v982
    %v984 = vpop.f32.mrb[0].mxu0
    %985 = vmatprep.mubr.bf16.mxu0 0
    %986 = vmatmul.mubr.bf16.gmra.mrb[0].mxu0 %v646
    %v987 = vpop.f32.mrb[0].mxu0
    %v988 = vadd.f32 %v887, %v987
    %v989 = vpop.f32.mrb[0].mxu0
    %v990 = vpop.f32.mrb[0].mxu0
    %v991 = vadd.f32 %v887, %v990
    %v992 = vpop.f32.mrb[0].mxu0
    %993 = vmatprep.mubr.bf16.mxu0 0
    %994 = vmatmul.mubr.bf16.gmra.mrb[0].mxu0 %v648
    %v995 = vpop.f32.mrb[0].mxu0
    %v996 = vadd.f32 %v887, %v995
    %v997 = vpop.f32.mrb[0].mxu0
    %v998 = vpop.f32.mrb[0].mxu0
    %v999 = vadd.f32 %v887, %v998
    %v1000 = vpop.f32.mrb[0].mxu0
    %1001 = vmatprep.mubr.bf16.mxu0 0
    %1002 = vmatmul.mubr.bf16.gmra.mrb[0].mxu0 %v650
    %v1003 = vpop.f32.mrb[0].mxu0
    %v1004 = vadd.f32 %v887, %v1003
    %v1005 = vpop.f32.mrb[0].mxu0
    %v1006 = vpop.f32.mrb[0].mxu0
    %v1007 = vadd.f32 %v887, %v1006
    %v1008 = vpop.f32.mrb[0].mxu0
    %1009 = vmatprep.mubr.bf16.mxu0 0
    %1010 = vmatmul.mubr.bf16.gmra.mrb[0].mxu0 %v652
    %v1011 = vpop.f32.mrb[0].mxu0
    %v1012 = vadd.f32 %v887, %v1011
    %v1013 = vpop.f32.mrb[0].mxu0
    %v1014 = vpop.f32.mrb[0].mxu0
    %v1015 = vadd.f32 %v887, %v1014
    %v1016 = vpop.f32.mrb[0].mxu0
    %1017 = vmatprep.mubr.bf16.mxu0 0
    %1018 = vmatmul.mubr.bf16.gmra.mrb[0].mxu0 %v654
    %v1019 = vpop.f32.mrb[0].mxu0
    %v1020 = vadd.f32 %v887, %v1019
    %v1021 = vpop.f32.mrb[0].mxu0
    %v1022 = vpop.f32.mrb[0].mxu0
    %v1023 = vadd.f32 %v887, %v1022
    %v1024 = vpop.f32.mrb[0].mxu0
    %1025 = vmatprep.mubr.bf16.mxu0 0
    %1026 = vmatmul.mubr.bf16.gmra.mrb[0].mxu0 %v656
    %v1027 = vpop.f32.mrb[0].mxu0
    %v1028 = vadd.f32 %v887, %v1027
    %v1029 = vpop.f32.mrb[0].mxu0
    %v1030 = vpop.f32.mrb[0].mxu0
    %v1031 = vadd.f32 %v887, %v1030
    %v1032 = vpop.f32.mrb[0].mxu0
    %1033 = vdwg.mxu0
    %v1034 = vpack.c.bf16 %v975, %v972
    %v1035 = vpack.c.bf16 %v983, %v980
    %v1036 = vpack.c.bf16 %v991, %v988
    %v1037 = vpack.c.bf16 %v999, %v996
    %v1038 = vpack.c.bf16 %v1007, %v1004
    %v1039 = vpack.c.bf16 %v1015, %v1012
    %v1040 = vpack.c.bf16 %v1023, %v1020
    %v1041 = vpack.c.bf16 %v1031, %v1028
    %v1042 = vmax.bf16 %v1034, 0
    %v1043 = vmax.bf16 %v1035, 0
    %v1044 = vmax.bf16 %v1036, 0
    %v1045 = vmax.bf16 %v1037, 0
    %v1046 = vmax.bf16 %v1038, 0
    %v1047 = vmax.bf16 %v1039, 0
    %v1048 = vmax.bf16 %v1040, 0
    %v1049 = vmax.bf16 %v1041, 0
    %1050 = vst [vmem:[#allocation2] sm:$0xff] %v643
    %1051 = vst [vmem:[#allocation2 + $0x10] sm:$0xff] %v645
    %1052 = vst [vmem:[#allocation2 + $0x20] sm:$0xff] %v647
    %1053 = vst [vmem:[#allocation2 + $0x30] sm:$0xff] %v649
    %1054 = vst [vmem:[#allocation2 + $0x40] sm:$0xff] %v651
    %1055 = vst [vmem:[#allocation2 + $0x50] sm:$0xff] %v653
    %1056 = vst [vmem:[#allocation2 + $0x60] sm:$0xff] %v655
    %1057 = vst [vmem:[#allocation2 + $0x70] sm:$0xff] %v657
    %vm1058 = vcmask 523264
    %1059 = vst.msk [vmem:[#allocation2 + $0x8] sm:$0xff] %vm1058, %v1042
    %1060 = vst.msk [vmem:[#allocation2 + $0x18] sm:$0xff] %vm1058, %v1043
    %1061 = vst.msk [vmem:[#allocation2 + $0x28] sm:$0xff] %vm1058, %v1044
    %1062 = vst.msk [vmem:[#allocation2 + $0x38] sm:$0xff] %vm1058, %v1045
    %1063 = vst.msk [vmem:[#allocation2 + $0x48] sm:$0xff] %vm1058, %v1046
    %1064 = vst.msk [vmem:[#allocation2 + $0x58] sm:$0xff] %vm1058, %v1047
    %1065 = vst.msk [vmem:[#allocation2 + $0x68] sm:$0xff] %vm1058, %v1048
    %1066 = vst.msk [vmem:[#allocation2 + $0x78] sm:$0xff] %vm1058, %v1049
    %v1067 = vpack.c.bf16 %v771, %v770
    %v1068 = vpack.c.bf16 %v773, %v772
    %v1069 = vpack.c.bf16 %v775, %v774
    %v1070 = vpack.c.bf16 %v777, %v776
    %v1071 = vpack.c.bf16 %v779, %v778
    %v1072 = vpack.c.bf16 %v781, %v780
    %v1073 = vpack.c.bf16 %v783, %v782
    %v1074 = vpack.c.bf16 %v785, %v784
    %1083 = vrot.lane.b32.xlu0 %v1067, 64
    %v1084 = vpop.permute.xlu0 %1083
    %1085 = vrot.lane.b32.xlu0 %v1068, 64
    %v1086 = vpop.permute.xlu0 %1085
    %1087 = vrot.lane.b32.xlu0 %v1069, 64
    %v1088 = vpop.permute.xlu0 %1087
    %1089 = vrot.lane.b32.xlu0 %v1070, 64
    %v1090 = vpop.permute.xlu0 %1089
    %1091 = vrot.lane.b32.xlu0 %v1071, 64
    %v1092 = vpop.permute.xlu0 %1091
    %1093 = vrot.lane.b32.xlu0 %v1072, 64
    %v1094 = vpop.permute.xlu0 %1093
    %1095 = vrot.lane.b32.xlu0 %v1073, 64
    %v1096 = vpop.permute.xlu0 %1095
    %1097 = vrot.lane.b32.xlu0 %v1074, 64
    %v1098 = vpop.permute.xlu0 %1097
    %vm1107 = vcmask 785920
    %1108 = vst.msk [vmem:[#allocation2 + $0x8] sm:$0xff] %vm1107, %v1084
    %1109 = vst.msk [vmem:[#allocation2 + $0x18] sm:$0xff] %vm1107, %v1086
    %1110 = vst.msk [vmem:[#allocation2 + $0x28] sm:$0xff] %vm1107, %v1088
    %1111 = vst.msk [vmem:[#allocation2 + $0x38] sm:$0xff] %vm1107, %v1090
    %1112 = vst.msk [vmem:[#allocation2 + $0x48] sm:$0xff] %vm1107, %v1092
    %1113 = vst.msk [vmem:[#allocation2 + $0x58] sm:$0xff] %vm1107, %v1094
    %1114 = vst.msk [vmem:[#allocation2 + $0x68] sm:$0xff] %vm1107, %v1096
    %1115 = vst.msk [vmem:[#allocation2 + $0x78] sm:$0xff] %vm1107, %v1098
    %v1116 = vpack.c.bf16 %v851, %v850
    %v1117 = vpack.c.bf16 %v853, %v852
    %v1118 = vpack.c.bf16 %v855, %v854
    %v1119 = vpack.c.bf16 %v857, %v856
    %v1120 = vpack.c.bf16 %v859, %v858
    %v1121 = vpack.c.bf16 %v861, %v860
    %v1122 = vpack.c.bf16 %v863, %v862
    %v1123 = vpack.c.bf16 %v865, %v864
    %1132 = vrot.lane.b32.xlu0 %v1116, 64
    %v1133 = vpop.permute.xlu0 %1132
    %1134 = vrot.lane.b32.xlu0 %v1117, 64
    %v1135 = vpop.permute.xlu0 %1134
    %1136 = vrot.lane.b32.xlu0 %v1118, 64
    %v1137 = vpop.permute.xlu0 %1136
    %1138 = vrot.lane.b32.xlu0 %v1119, 64
    %v1139 = vpop.permute.xlu0 %1138
    %1140 = vrot.lane.b32.xlu0 %v1120, 64
    %v1141 = vpop.permute.xlu0 %1140
    %1142 = vrot.lane.b32.xlu0 %v1121, 64
    %v1143 = vpop.permute.xlu0 %1142
    %1144 = vrot.lane.b32.xlu0 %v1122, 64
    %v1145 = vpop.permute.xlu0 %1144
    %1146 = vrot.lane.b32.xlu0 %v1123, 64
    %v1147 = vpop.permute.xlu0 %1146
    %vm1156 = vcmask 1048320
    %1157 = vst.msk [vmem:[#allocation2 + $0x8] sm:$0xff] %vm1156, %v1133
    %1158 = vst.msk [vmem:[#allocation2 + $0x18] sm:$0xff] %vm1156, %v1135
    %1159 = vst.msk [vmem:[#allocation2 + $0x28] sm:$0xff] %vm1156, %v1137
    %1160 = vst.msk [vmem:[#allocation2 + $0x38] sm:$0xff] %vm1156, %v1139
    %1161 = vst.msk [vmem:[#allocation2 + $0x48] sm:$0xff] %vm1156, %v1141
    %1162 = vst.msk [vmem:[#allocation2 + $0x58] sm:$0xff] %vm1156, %v1143
    %1163 = vst.msk [vmem:[#allocation2 + $0x68] sm:$0xff] %vm1156, %v1145
    %1164 = vst.msk [vmem:[#allocation2 + $0x78] sm:$0xff] %vm1156, %v1147
    %v1165 = vld [vmem:[#allocation2] sm:$0xff]
    %v1166 = vld [vmem:[#allocation2 + $0x8] sm:$0xff]
    %v1167 = vld [vmem:[#allocation2 + $0x10] sm:$0xff]
    %v1168 = vld [vmem:[#allocation2 + $0x18] sm:$0xff]
    %v1169 = vld [vmem:[#allocation2 + $0x20] sm:$0xff]
    %v1170 = vld [vmem:[#allocation2 + $0x28] sm:$0xff]
    %v1171 = vld [vmem:[#allocation2 + $0x30] sm:$0xff]
    %v1172 = vld [vmem:[#allocation2 + $0x38] sm:$0xff]
    %v1173 = vld [vmem:[#allocation2 + $0x40] sm:$0xff]
    %v1174 = vld [vmem:[#allocation2 + $0x48] sm:$0xff]
    %v1175 = vld [vmem:[#allocation2 + $0x50] sm:$0xff]
    %v1176 = vld [vmem:[#allocation2 + $0x58] sm:$0xff]
    %v1177 = vld [vmem:[#allocation2 + $0x60] sm:$0xff]
    %v1178 = vld [vmem:[#allocation2 + $0x68] sm:$0xff]
    %v1179 = vld [vmem:[#allocation2 + $0x70] sm:$0xff]
    %v1180 = vld [vmem:[#allocation2 + $0x78] sm:$0xff]
    %v1181 = vld [vmem:[#allocation7] sm:$0xff]
    %v1182 = vld [vmem:[#allocation7 + $0x8] sm:$0xff]
    %v1183 = vld [vmem:[#allocation7 + $0x10] sm:$0xff]
    %v1184 = vld [vmem:[#allocation7 + $0x18] sm:$0xff]
    %v1185 = vld [vmem:[#allocation7 + $0x20] sm:$0xff]
    %v1186 = vld [vmem:[#allocation7 + $0x28] sm:$0xff]
    %v1187 = vld [vmem:[#allocation7 + $0x30] sm:$0xff]
    %v1188 = vld [vmem:[#allocation7 + $0x38] sm:$0xff]
    %v1189 = vld [vmem:[#allocation7 + $0x40] sm:$0xff]
    %v1190 = vld [vmem:[#allocation7 + $0x48] sm:$0xff]
    %v1191 = vld [vmem:[#allocation7 + $0x50] sm:$0xff]
    %v1192 = vld [vmem:[#allocation7 + $0x58] sm:$0xff]
    %v1193 = vld [vmem:[#allocation7 + $0x60] sm:$0xff]
    %v1194 = vld [vmem:[#allocation7 + $0x68] sm:$0xff]
    %v1195 = vld [vmem:[#allocation7 + $0x70] sm:$0xff]
    %v1196 = vld [vmem:[#allocation7 + $0x78] sm:$0xff]
    %v1197 = vld [vmem:[#allocation7 + $0x80] sm:$0xff]
    %v1198 = vld [vmem:[#allocation7 + $0x88] sm:$0xff]
    %v1199 = vld [vmem:[#allocation7 + $0x90] sm:$0xff]
    %v1200 = vld [vmem:[#allocation7 + $0x98] sm:$0xff]
    %v1201 = vld [vmem:[#allocation7 + $0xa0] sm:$0xff]
    %v1202 = vld [vmem:[#allocation7 + $0xa8] sm:$0xff]
    %v1203 = vld [vmem:[#allocation7 + $0xb0] sm:$0xff]
    %v1204 = vld [vmem:[#allocation7 + $0xb8] sm:$0xff]
    %v1205 = vld [vmem:[#allocation7 + $0xc0] sm:$0xff]
    %v1206 = vld [vmem:[#allocation7 + $0xc8] sm:$0xff]
    %v1207 = vld [vmem:[#allocation7 + $0xd0] sm:$0xff]
    %v1208 = vld [vmem:[#allocation7 + $0xd8] sm:$0xff]
    %v1209 = vld [vmem:[#allocation7 + $0xe0] sm:$0xff]
    %v1210 = vld [vmem:[#allocation7 + $0xe8] sm:$0xff]
    %v1211 = vld [vmem:[#allocation7 + $0xf0] sm:$0xff]
    %v1212 = vld [vmem:[#allocation7 + $0xf8] sm:$0xff]
    %v1213 = vld [vmem:[#allocation7 + $0x100] sm:$0xff]
    %v1214 = vld [vmem:[#allocation7 + $0x108] sm:$0xff]
    %v1215 = vld [vmem:[#allocation7 + $0x110] sm:$0xff]
    %v1216 = vld [vmem:[#allocation7 + $0x118] sm:$0xff]
    %v1217 = vld [vmem:[#allocation7 + $0x120] sm:$0xff]
    %v1218 = vld [vmem:[#allocation7 + $0x128] sm:$0xff]
    %v1219 = vld [vmem:[#allocation7 + $0x130] sm:$0xff]
    %v1220 = vld [vmem:[#allocation7 + $0x138] sm:$0xff]
    %v1221 = vld [vmem:[#allocation7 + $0x140] sm:$0xff]
    %v1222 = vld [vmem:[#allocation7 + $0x148] sm:$0xff]
    %v1223 = vld [vmem:[#allocation7 + $0x150] sm:$0xff]
    %v1224 = vld [vmem:[#allocation7 + $0x158] sm:$0xff]
    %v1225 = vld [vmem:[#allocation7 + $0x160] sm:$0xff]
    %v1226 = vld [vmem:[#allocation7 + $0x168] sm:$0xff]
    %v1227 = vld [vmem:[#allocation7 + $0x170] sm:$0xff]
    %v1228 = vld [vmem:[#allocation7 + $0x178] sm:$0xff]
    %v1229 = vld [vmem:[#allocation7 + $0x180] sm:$0xff]
    %v1230 = vld [vmem:[#allocation7 + $0x188] sm:$0xff]
    %v1231 = vld [vmem:[#allocation7 + $0x190] sm:$0xff]
    %v1232 = vld [vmem:[#allocation7 + $0x198] sm:$0xff]
    %v1233 = vld [vmem:[#allocation7 + $0x1a0] sm:$0xff]
    %v1234 = vld [vmem:[#allocation7 + $0x1a8] sm:$0xff]
    %v1235 = vld [vmem:[#allocation7 + $0x1b0] sm:$0xff]
    %v1236 = vld [vmem:[#allocation7 + $0x1b8] sm:$0xff]
    %v1237 = vld [vmem:[#allocation7 + $0x1c0] sm:$0xff]
    %v1238 = vld [vmem:[#allocation7 + $0x1c8] sm:$0xff]
    %v1239 = vld [vmem:[#allocation7 + $0x1d0] sm:$0xff]
    %v1240 = vld [vmem:[#allocation7 + $0x1d8] sm:$0xff]
    %v1241 = vld [vmem:[#allocation7 + $0x1e0] sm:$0xff]
    %v1242 = vld [vmem:[#allocation7 + $0x1e8] sm:$0xff]
    %v1243 = vld [vmem:[#allocation7 + $0x1f0] sm:$0xff]
    %v1244 = vld [vmem:[#allocation7 + $0x1f8] sm:$0xff]
    %v1245 = vld [vmem:[%s10 + $0x3] sm:$0xf]
    %v1247 = vlaneseq
    %v1248 = vshrl.u32 %v1247, 7
    %v1249 = vsub.s32 0, %v1248
    %v1250 = vrot.slane %v1245, %v1249
    %v1251 = vlaneseq
    %v1252 = vshrl.u32 %v1251, 7
    %v1253 = vsub.s32 1, %v1252
    %v1254 = vrot.slane %v1245, %v1253
    %v1255 = vlaneseq
    %v1256 = vshrl.u32 %v1255, 7
    %v1257 = vsub.s32 2, %v1256
    %v1258 = vrot.slane %v1245, %v1257
    %v1259 = vlaneseq
    %v1260 = vshrl.u32 %v1259, 7
    %v1261 = vsub.s32 3, %v1260
    %v1262 = vrot.slane %v1245, %v1261
    %v1331 = vunpack.c.l.b16 %v1181
    %v1332 = vunpack.c.h.b16 %v1181
    %v1333 = vunpack.c.l.b16 %v1182
    %v1334 = vunpack.c.h.b16 %v1182
    %v1335 = vunpack.c.l.b16 %v1183
    %v1336 = vunpack.c.h.b16 %v1183
    %v1337 = vunpack.c.l.b16 %v1184
    %v1338 = vunpack.c.h.b16 %v1184
    %v1339 = vunpack.c.l.b16 %v1185
    %v1340 = vunpack.c.h.b16 %v1185
    %v1341 = vunpack.c.l.b16 %v1186
    %v1342 = vunpack.c.h.b16 %v1186
    %v1343 = vunpack.c.l.b16 %v1187
    %v1344 = vunpack.c.h.b16 %v1187
    %v1345 = vunpack.c.l.b16 %v1188
    %v1346 = vunpack.c.h.b16 %v1188
    %v1347 = vunpack.c.l.b16 %v1189
    %v1348 = vunpack.c.h.b16 %v1189
    %v1349 = vunpack.c.l.b16 %v1190
    %v1350 = vunpack.c.h.b16 %v1190
    %v1351 = vunpack.c.l.b16 %v1191
    %v1352 = vunpack.c.h.b16 %v1191
    %v1353 = vunpack.c.l.b16 %v1192
    %v1354 = vunpack.c.h.b16 %v1192
    %v1355 = vunpack.c.l.b16 %v1193
    %v1356 = vunpack.c.h.b16 %v1193
    %v1357 = vunpack.c.l.b16 %v1194
    %v1358 = vunpack.c.h.b16 %v1194
    %v1359 = vunpack.c.l.b16 %v1195
    %v1360 = vunpack.c.h.b16 %v1195
    %v1361 = vunpack.c.l.b16 %v1196
    %v1362 = vunpack.c.h.b16 %v1196
    %v1363 = vunpack.c.l.b16 %v1197
    %v1364 = vunpack.c.h.b16 %v1197
    %v1365 = vunpack.c.l.b16 %v1198
    %v1366 = vunpack.c.h.b16 %v1198
    %v1367 = vunpack.c.l.b16 %v1199
    %v1368 = vunpack.c.h.b16 %v1199
    %v1369 = vunpack.c.l.b16 %v1200
    %v1370 = vunpack.c.h.b16 %v1200
    %v1371 = vunpack.c.l.b16 %v1201
    %v1372 = vunpack.c.h.b16 %v1201
    %v1373 = vunpack.c.l.b16 %v1202
    %v1374 = vunpack.c.h.b16 %v1202
    %v1375 = vunpack.c.l.b16 %v1203
    %v1376 = vunpack.c.h.b16 %v1203
    %v1377 = vunpack.c.l.b16 %v1204
    %v1378 = vunpack.c.h.b16 %v1204
    %v1379 = vunpack.c.l.b16 %v1205
    %v1380 = vunpack.c.h.b16 %v1205
    %v1381 = vunpack.c.l.b16 %v1206
    %v1382 = vunpack.c.h.b16 %v1206
    %v1383 = vunpack.c.l.b16 %v1207
    %v1384 = vunpack.c.h.b16 %v1207
    %v1385 = vunpack.c.l.b16 %v1208
    %v1386 = vunpack.c.h.b16 %v1208
    %v1387 = vunpack.c.l.b16 %v1209
    %v1388 = vunpack.c.h.b16 %v1209
    %v1389 = vunpack.c.l.b16 %v1210
    %v1390 = vunpack.c.h.b16 %v1210
    %v1391 = vunpack.c.l.b16 %v1211
    %v1392 = vunpack.c.h.b16 %v1211
    %v1393 = vunpack.c.l.b16 %v1212
    %v1394 = vunpack.c.h.b16 %v1212
    %v1395 = vunpack.c.l.b16 %v1213
    %v1396 = vunpack.c.h.b16 %v1213
    %v1397 = vunpack.c.l.b16 %v1214
    %v1398 = vunpack.c.h.b16 %v1214
    %v1399 = vunpack.c.l.b16 %v1215
    %v1400 = vunpack.c.h.b16 %v1215
    %v1401 = vunpack.c.l.b16 %v1216
    %v1402 = vunpack.c.h.b16 %v1216
    %v1403 = vunpack.c.l.b16 %v1217
    %v1404 = vunpack.c.h.b16 %v1217
    %v1405 = vunpack.c.l.b16 %v1218
    %v1406 = vunpack.c.h.b16 %v1218
    %v1407 = vunpack.c.l.b16 %v1219
    %v1408 = vunpack.c.h.b16 %v1219
    %v1409 = vunpack.c.l.b16 %v1220
    %v1410 = vunpack.c.h.b16 %v1220
    %v1411 = vunpack.c.l.b16 %v1221
    %v1412 = vunpack.c.h.b16 %v1221
    %v1413 = vunpack.c.l.b16 %v1222
    %v1414 = vunpack.c.h.b16 %v1222
    %v1415 = vunpack.c.l.b16 %v1223
    %v1416 = vunpack.c.h.b16 %v1223
    %v1417 = vunpack.c.l.b16 %v1224
    %v1418 = vunpack.c.h.b16 %v1224
    %v1419 = vunpack.c.l.b16 %v1225
    %v1420 = vunpack.c.h.b16 %v1225
    %v1421 = vunpack.c.l.b16 %v1226
    %v1422 = vunpack.c.h.b16 %v1226
    %v1423 = vunpack.c.l.b16 %v1227
    %v1424 = vunpack.c.h.b16 %v1227
    %v1425 = vunpack.c.l.b16 %v1228
    %v1426 = vunpack.c.h.b16 %v1228
    %v1427 = vunpack.c.l.b16 %v1229
    %v1428 = vunpack.c.h.b16 %v1229
    %v1429 = vunpack.c.l.b16 %v1230
    %v1430 = vunpack.c.h.b16 %v1230
    %v1431 = vunpack.c.l.b16 %v1231
    %v1432 = vunpack.c.h.b16 %v1231
    %v1433 = vunpack.c.l.b16 %v1232
    %v1434 = vunpack.c.h.b16 %v1232
    %v1435 = vunpack.c.l.b16 %v1233
    %v1436 = vunpack.c.h.b16 %v1233
    %v1437 = vunpack.c.l.b16 %v1234
    %v1438 = vunpack.c.h.b16 %v1234
    %v1439 = vunpack.c.l.b16 %v1235
    %v1440 = vunpack.c.h.b16 %v1235
    %v1441 = vunpack.c.l.b16 %v1236
    %v1442 = vunpack.c.h.b16 %v1236
    %v1443 = vunpack.c.l.b16 %v1237
    %v1444 = vunpack.c.h.b16 %v1237
    %v1445 = vunpack.c.l.b16 %v1238
    %v1446 = vunpack.c.h.b16 %v1238
    %v1447 = vunpack.c.l.b16 %v1239
    %v1448 = vunpack.c.h.b16 %v1239
    %v1449 = vunpack.c.l.b16 %v1240
    %v1450 = vunpack.c.h.b16 %v1240
    %v1451 = vunpack.c.l.b16 %v1241
    %v1452 = vunpack.c.h.b16 %v1241
    %v1453 = vunpack.c.l.b16 %v1242
    %v1454 = vunpack.c.h.b16 %v1242
    %v1455 = vunpack.c.l.b16 %v1243
    %v1456 = vunpack.c.h.b16 %v1243
    %v1457 = vunpack.c.l.b16 %v1244
    %v1458 = vunpack.c.h.b16 %v1244
    %v1459 = vpack.c.b16 %v1335, %v1331
    %v1460 = vpack.c.b16 %v1336, %v1332
    %v1461 = vpack.c.b16 %v1337, %v1333
    %v1462 = vpack.c.b16 %v1338, %v1334
    %v1463 = vpack.c.b16 %v1343, %v1339
    %v1464 = vpack.c.b16 %v1344, %v1340
    %v1465 = vpack.c.b16 %v1345, %v1341
    %v1466 = vpack.c.b16 %v1346, %v1342
    %v1467 = vpack.c.b16 %v1351, %v1347
    %v1468 = vpack.c.b16 %v1352, %v1348
    %v1469 = vpack.c.b16 %v1353, %v1349
    %v1470 = vpack.c.b16 %v1354, %v1350
    %v1471 = vpack.c.b16 %v1359, %v1355
    %v1472 = vpack.c.b16 %v1360, %v1356
    %v1473 = vpack.c.b16 %v1361, %v1357
    %v1474 = vpack.c.b16 %v1362, %v1358
    %v1475 = vpack.c.b16 %v1367, %v1363
    %v1476 = vpack.c.b16 %v1368, %v1364
    %v1477 = vpack.c.b16 %v1369, %v1365
    %v1478 = vpack.c.b16 %v1370, %v1366
    %v1479 = vpack.c.b16 %v1375, %v1371
    %v1480 = vpack.c.b16 %v1376, %v1372
    %v1481 = vpack.c.b16 %v1377, %v1373
    %v1482 = vpack.c.b16 %v1378, %v1374
    %v1483 = vpack.c.b16 %v1383, %v1379
    %v1484 = vpack.c.b16 %v1384, %v1380
    %v1485 = vpack.c.b16 %v1385, %v1381
    %v1486 = vpack.c.b16 %v1386, %v1382
    %v1487 = vpack.c.b16 %v1391, %v1387
    %v1488 = vpack.c.b16 %v1392, %v1388
    %v1489 = vpack.c.b16 %v1393, %v1389
    %v1490 = vpack.c.b16 %v1394, %v1390
    %v1491 = vpack.c.b16 %v1399, %v1395
    %v1492 = vpack.c.b16 %v1400, %v1396
    %v1493 = vpack.c.b16 %v1401, %v1397
    %v1494 = vpack.c.b16 %v1402, %v1398
    %v1495 = vpack.c.b16 %v1407, %v1403
    %v1496 = vpack.c.b16 %v1408, %v1404
    %v1497 = vpack.c.b16 %v1409, %v1405
    %v1498 = vpack.c.b16 %v1410, %v1406
    %v1499 = vpack.c.b16 %v1415, %v1411
    %v1500 = vpack.c.b16 %v1416, %v1412
    %v1501 = vpack.c.b16 %v1417, %v1413
    %v1502 = vpack.c.b16 %v1418, %v1414
    %v1503 = vpack.c.b16 %v1423, %v1419
    %v1504 = vpack.c.b16 %v1424, %v1420
    %v1505 = vpack.c.b16 %v1425, %v1421
    %v1506 = vpack.c.b16 %v1426, %v1422
    %v1507 = vpack.c.b16 %v1431, %v1427
    %v1508 = vpack.c.b16 %v1432, %v1428
    %v1509 = vpack.c.b16 %v1433, %v1429
    %v1510 = vpack.c.b16 %v1434, %v1430
    %v1511 = vpack.c.b16 %v1439, %v1435
    %v1512 = vpack.c.b16 %v1440, %v1436
    %v1513 = vpack.c.b16 %v1441, %v1437
    %v1514 = vpack.c.b16 %v1442, %v1438
    %v1515 = vpack.c.b16 %v1447, %v1443
    %v1516 = vpack.c.b16 %v1448, %v1444
    %v1517 = vpack.c.b16 %v1449, %v1445
    %v1518 = vpack.c.b16 %v1450, %v1446
    %v1519 = vpack.c.b16 %v1455, %v1451
    %v1520 = vpack.c.b16 %v1456, %v1452
    %v1521 = vpack.c.b16 %v1457, %v1453
    %v1522 = vpack.c.b16 %v1458, %v1454
    %1587 = vmatprep.subr.bf16.mxu0 %v1460
    %1588 = vmatpush1.bf16.msra.mxu0 %v1459
    %1589 = vmatprep.subr.bf16.mxu0 %v1464
    %1590 = vmatpush1.bf16.msra.mxu0 %v1463
    %1591 = vmatprep.subr.bf16.mxu0 %v1468
    %1592 = vmatpush1.bf16.msra.mxu0 %v1467
    %1593 = vmatprep.subr.bf16.mxu0 %v1472
    %1594 = vmatpush1.bf16.msra.mxu0 %v1471
    %1595 = vmatprep.subr.bf16.mxu0 %v1476
    %1596 = vmatpush1.bf16.msra.mxu0 %v1475
    %1597 = vmatprep.subr.bf16.mxu0 %v1480
    %1598 = vmatpush1.bf16.msra.mxu0 %v1479
    %1599 = vmatprep.subr.bf16.mxu0 %v1484
    %1600 = vmatpush1.bf16.msra.mxu0 %v1483
    %1601 = vmatprep.subr.bf16.mxu0 %v1488
    %1602 = vmatpush1.bf16.msra.mxu0 %v1487
    %1603 = vmatprep.subr.bf16.mxu0 %v1492
    %1604 = vmatpush1.bf16.msra.mxu0 %v1491
    %1605 = vmatprep.subr.bf16.mxu0 %v1496
    %1606 = vmatpush1.bf16.msra.mxu0 %v1495
    %1607 = vmatprep.subr.bf16.mxu0 %v1500
    %1608 = vmatpush1.bf16.msra.mxu0 %v1499
    %1609 = vmatprep.subr.bf16.mxu0 %v1504
    %1610 = vmatpush1.bf16.msra.mxu0 %v1503
    %1611 = vmatprep.subr.bf16.mxu0 %v1508
    %1612 = vmatpush1.bf16.msra.mxu0 %v1507
    %1613 = vmatprep.subr.bf16.mxu0 %v1512
    %1614 = vmatpush1.bf16.msra.mxu0 %v1511
    %1615 = vmatprep.subr.bf16.mxu0 %v1516
    %1616 = vmatpush1.bf16.msra.mxu0 %v1515
    %1617 = vmatprep.subr.bf16.mxu0 %v1520
    %1618 = vmatpush1.bf16.msra.mxu0 %v1519
    %1619 = vmatprep.mubr.bf16.mxu0 %v1166
    %1620 = vmatmul.mubr.bf16.gmra.mrb[0].mxu0 %v1165
    %v1621 = vpop.f32.mrb[0].mxu0
    %v1622 = vadd.f32 %v1250, %v1621
    %v1623 = vpop.f32.mrb[0].mxu0
    %v1624 = vadd.f32 %v1254, %v1623
    %v1625 = vpop.f32.mrb[0].mxu0
    %v1626 = vadd.f32 %v1250, %v1625
    %v1627 = vpop.f32.mrb[0].mxu0
    %v1628 = vadd.f32 %v1254, %v1627
    %1629 = vmatprep.mubr.bf16.mxu0 %v1168
    %1630 = vmatmul.mubr.bf16.gmra.mrb[0].mxu0 %v1167
    %v1631 = vpop.f32.mrb[0].mxu0
    %v1632 = vadd.f32 %v1250, %v1631
    %v1633 = vpop.f32.mrb[0].mxu0
    %v1634 = vadd.f32 %v1254, %v1633
    %v1635 = vpop.f32.mrb[0].mxu0
    %v1636 = vadd.f32 %v1250, %v1635
    %v1637 = vpop.f32.mrb[0].mxu0
    %v1638 = vadd.f32 %v1254, %v1637
    %1639 = vmatprep.mubr.bf16.mxu0 %v1170
    %1640 = vmatmul.mubr.bf16.gmra.mrb[0].mxu0 %v1169
    %v1641 = vpop.f32.mrb[0].mxu0
    %v1642 = vadd.f32 %v1250, %v1641
    %v1643 = vpop.f32.mrb[0].mxu0
    %v1644 = vadd.f32 %v1254, %v1643
    %v1645 = vpop.f32.mrb[0].mxu0
    %v1646 = vadd.f32 %v1250, %v1645
    %v1647 = vpop.f32.mrb[0].mxu0
    %v1648 = vadd.f32 %v1254, %v1647
    %1649 = vmatprep.mubr.bf16.mxu0 %v1172
    %1650 = vmatmul.mubr.bf16.gmra.mrb[0].mxu0 %v1171
    %v1651 = vpop.f32.mrb[0].mxu0
    %v1652 = vadd.f32 %v1250, %v1651
    %v1653 = vpop.f32.mrb[0].mxu0
    %v1654 = vadd.f32 %v1254, %v1653
    %v1655 = vpop.f32.mrb[0].mxu0
    %v1656 = vadd.f32 %v1250, %v1655
    %v1657 = vpop.f32.mrb[0].mxu0
    %v1658 = vadd.f32 %v1254, %v1657
    %1659 = vmatprep.mubr.bf16.mxu0 %v1174
    %1660 = vmatmul.mubr.bf16.gmra.mrb[0].mxu0 %v1173
    %v1661 = vpop.f32.mrb[0].mxu0
    %v1662 = vadd.f32 %v1250, %v1661
    %v1663 = vpop.f32.mrb[0].mxu0
    %v1664 = vadd.f32 %v1254, %v1663
    %v1665 = vpop.f32.mrb[0].mxu0
    %v1666 = vadd.f32 %v1250, %v1665
    %v1667 = vpop.f32.mrb[0].mxu0
    %v1668 = vadd.f32 %v1254, %v1667
    %1669 = vmatprep.mubr.bf16.mxu0 %v1176
    %1670 = vmatmul.mubr.bf16.gmra.mrb[0].mxu0 %v1175
    %v1671 = vpop.f32.mrb[0].mxu0
    %v1672 = vadd.f32 %v1250, %v1671
    %v1673 = vpop.f32.mrb[0].mxu0
    %v1674 = vadd.f32 %v1254, %v1673
    %v1675 = vpop.f32.mrb[0].mxu0
    %v1676 = vadd.f32 %v1250, %v1675
    %v1677 = vpop.f32.mrb[0].mxu0
    %v1678 = vadd.f32 %v1254, %v1677
    %1679 = vmatprep.mubr.bf16.mxu0 %v1178
    %1680 = vmatmul.mubr.bf16.gmra.mrb[0].mxu0 %v1177
    %v1681 = vpop.f32.mrb[0].mxu0
    %v1682 = vadd.f32 %v1250, %v1681
    %v1683 = vpop.f32.mrb[0].mxu0
    %v1684 = vadd.f32 %v1254, %v1683
    %v1685 = vpop.f32.mrb[0].mxu0
    %v1686 = vadd.f32 %v1250, %v1685
    %v1687 = vpop.f32.mrb[0].mxu0
    %v1688 = vadd.f32 %v1254, %v1687
    %1689 = vmatprep.mubr.bf16.mxu0 %v1180
    %1690 = vmatmul.mubr.bf16.gmra.mrb[0].mxu0 %v1179
    %v1691 = vpop.f32.mrb[0].mxu0
    %v1692 = vadd.f32 %v1250, %v1691
    %v1693 = vpop.f32.mrb[0].mxu0
    %v1694 = vadd.f32 %v1254, %v1693
    %v1695 = vpop.f32.mrb[0].mxu0
    %v1696 = vadd.f32 %v1250, %v1695
    %v1697 = vpop.f32.mrb[0].mxu0
    %v1698 = vadd.f32 %v1254, %v1697
    %1699 = vdwg.mxu0
    %1700 = vmatprep.subr.bf16.mxu0 %v1462
    %1701 = vmatpush1.bf16.msra.mxu0 %v1461
    %1702 = vmatprep.subr.bf16.mxu0 %v1466
    %1703 = vmatpush1.bf16.msra.mxu0 %v1465
    %1704 = vmatprep.subr.bf16.mxu0 %v1470
    %1705 = vmatpush1.bf16.msra.mxu0 %v1469
    %1706 = vmatprep.subr.bf16.mxu0 %v1474
    %1707 = vmatpush1.bf16.msra.mxu0 %v1473
    %1708 = vmatprep.subr.bf16.mxu0 %v1478
    %1709 = vmatpush1.bf16.msra.mxu0 %v1477
    %1710 = vmatprep.subr.bf16.mxu0 %v1482
    %1711 = vmatpush1.bf16.msra.mxu0 %v1481
    %1712 = vmatprep.subr.bf16.mxu0 %v1486
    %1713 = vmatpush1.bf16.msra.mxu0 %v1485
    %1714 = vmatprep.subr.bf16.mxu0 %v1490
    %1715 = vmatpush1.bf16.msra.mxu0 %v1489
    %1716 = vmatprep.subr.bf16.mxu0 %v1494
    %1717 = vmatpush1.bf16.msra.mxu0 %v1493
    %1718 = vmatprep.subr.bf16.mxu0 %v1498
    %1719 = vmatpush1.bf16.msra.mxu0 %v1497
    %1720 = vmatprep.subr.bf16.mxu0 %v1502
    %1721 = vmatpush1.bf16.msra.mxu0 %v1501
    %1722 = vmatprep.subr.bf16.mxu0 %v1506
    %1723 = vmatpush1.bf16.msra.mxu0 %v1505
    %1724 = vmatprep.subr.bf16.mxu0 %v1510
    %1725 = vmatpush1.bf16.msra.mxu0 %v1509
    %1726 = vmatprep.subr.bf16.mxu0 %v1514
    %1727 = vmatpush1.bf16.msra.mxu0 %v1513
    %1728 = vmatprep.subr.bf16.mxu0 %v1518
    %1729 = vmatpush1.bf16.msra.mxu0 %v1517
    %1730 = vmatprep.subr.bf16.mxu0 %v1522
    %1731 = vmatpush1.bf16.msra.mxu0 %v1521
    %1732 = vmatprep.mubr.bf16.mxu0 %v1166
    %1733 = vmatmul.mubr.bf16.gmra.mrb[0].mxu0 %v1165
    %v1734 = vpop.f32.mrb[0].mxu0
    %v1735 = vadd.f32 %v1258, %v1734
    %v1736 = vpop.f32.mrb[0].mxu0
    %v1737 = vadd.f32 %v1262, %v1736
    %v1738 = vpop.f32.mrb[0].mxu0
    %v1739 = vadd.f32 %v1258, %v1738
    %v1740 = vpop.f32.mrb[0].mxu0
    %v1741 = vadd.f32 %v1262, %v1740
    %1742 = vmatprep.mubr.bf16.mxu0 %v1168
    %1743 = vmatmul.mubr.bf16.gmra.mrb[0].mxu0 %v1167
    %v1744 = vpop.f32.mrb[0].mxu0
    %v1745 = vadd.f32 %v1258, %v1744
    %v1746 = vpop.f32.mrb[0].mxu0
    %v1747 = vadd.f32 %v1262, %v1746
    %v1748 = vpop.f32.mrb[0].mxu0
    %v1749 = vadd.f32 %v1258, %v1748
    %v1750 = vpop.f32.mrb[0].mxu0
    %v1751 = vadd.f32 %v1262, %v1750
    %1752 = vmatprep.mubr.bf16.mxu0 %v1170
    %1753 = vmatmul.mubr.bf16.gmra.mrb[0].mxu0 %v1169
    %v1754 = vpop.f32.mrb[0].mxu0
    %v1755 = vadd.f32 %v1258, %v1754
    %v1756 = vpop.f32.mrb[0].mxu0
    %v1757 = vadd.f32 %v1262, %v1756
    %v1758 = vpop.f32.mrb[0].mxu0
    %v1759 = vadd.f32 %v1258, %v1758
    %v1760 = vpop.f32.mrb[0].mxu0
    %v1761 = vadd.f32 %v1262, %v1760
    %1762 = vmatprep.mubr.bf16.mxu0 %v1172
    %1763 = vmatmul.mubr.bf16.gmra.mrb[0].mxu0 %v1171
    %v1764 = vpop.f32.mrb[0].mxu0
    %v1765 = vadd.f32 %v1258, %v1764
    %v1766 = vpop.f32.mrb[0].mxu0
    %v1767 = vadd.f32 %v1262, %v1766
    %v1768 = vpop.f32.mrb[0].mxu0
    %v1769 = vadd.f32 %v1258, %v1768
    %v1770 = vpop.f32.mrb[0].mxu0
    %v1771 = vadd.f32 %v1262, %v1770
    %1772 = vmatprep.mubr.bf16.mxu0 %v1174
    %1773 = vmatmul.mubr.bf16.gmra.mrb[0].mxu0 %v1173
    %v1774 = vpop.f32.mrb[0].mxu0
    %v1775 = vadd.f32 %v1258, %v1774
    %v1776 = vpop.f32.mrb[0].mxu0
    %v1777 = vadd.f32 %v1262, %v1776
    %v1778 = vpop.f32.mrb[0].mxu0
    %v1779 = vadd.f32 %v1258, %v1778
    %v1780 = vpop.f32.mrb[0].mxu0
    %v1781 = vadd.f32 %v1262, %v1780
    %1782 = vmatprep.mubr.bf16.mxu0 %v1176
    %1783 = vmatmul.mubr.bf16.gmra.mrb[0].mxu0 %v1175
    %v1784 = vpop.f32.mrb[0].mxu0
    %v1785 = vadd.f32 %v1258, %v1784
    %v1786 = vpop.f32.mrb[0].mxu0
    %v1787 = vadd.f32 %v1262, %v1786
    %v1788 = vpop.f32.mrb[0].mxu0
    %v1789 = vadd.f32 %v1258, %v1788
    %v1790 = vpop.f32.mrb[0].mxu0
    %v1791 = vadd.f32 %v1262, %v1790
    %1792 = vmatprep.mubr.bf16.mxu0 %v1178
    %1793 = vmatmul.mubr.bf16.gmra.mrb[0].mxu0 %v1177
    %v1794 = vpop.f32.mrb[0].mxu0
    %v1795 = vadd.f32 %v1258, %v1794
    %v1796 = vpop.f32.mrb[0].mxu0
    %v1797 = vadd.f32 %v1262, %v1796
    %v1798 = vpop.f32.mrb[0].mxu0
    %v1799 = vadd.f32 %v1258, %v1798
    %v1800 = vpop.f32.mrb[0].mxu0
    %v1801 = vadd.f32 %v1262, %v1800
    %1802 = vmatprep.mubr.bf16.mxu0 %v1180
    %1803 = vmatmul.mubr.bf16.gmra.mrb[0].mxu0 %v1179
    %v1804 = vpop.f32.mrb[0].mxu0
    %v1805 = vadd.f32 %v1258, %v1804
    %v1806 = vpop.f32.mrb[0].mxu0
    %v1807 = vadd.f32 %v1262, %v1806
    %v1808 = vpop.f32.mrb[0].mxu0
    %v1809 = vadd.f32 %v1258, %v1808
    %v1810 = vpop.f32.mrb[0].mxu0
    %v1811 = vadd.f32 %v1262, %v1810
    %1812 = vdwg.mxu0
    %v1813 = vpack.c.bf16 %v1626, %v1622
    %v1814 = vpack.c.bf16 %v1628, %v1624
    %v1815 = vpack.c.bf16 %v1739, %v1735
    %v1816 = vpack.c.bf16 %v1741, %v1737
    %v1817 = vpack.c.bf16 %v1636, %v1632
    %v1818 = vpack.c.bf16 %v1638, %v1634
    %v1819 = vpack.c.bf16 %v1749, %v1745
    %v1820 = vpack.c.bf16 %v1751, %v1747
    %v1821 = vpack.c.bf16 %v1646, %v1642
    %v1822 = vpack.c.bf16 %v1648, %v1644
    %v1823 = vpack.c.bf16 %v1759, %v1755
    %v1824 = vpack.c.bf16 %v1761, %v1757
    %v1825 = vpack.c.bf16 %v1656, %v1652
    %v1826 = vpack.c.bf16 %v1658, %v1654
    %v1827 = vpack.c.bf16 %v1769, %v1765
    %v1828 = vpack.c.bf16 %v1771, %v1767
    %v1829 = vpack.c.bf16 %v1666, %v1662
    %v1830 = vpack.c.bf16 %v1668, %v1664
    %v1831 = vpack.c.bf16 %v1779, %v1775
    %v1832 = vpack.c.bf16 %v1781, %v1777
    %v1833 = vpack.c.bf16 %v1676, %v1672
    %v1834 = vpack.c.bf16 %v1678, %v1674
    %v1835 = vpack.c.bf16 %v1789, %v1785
    %v1836 = vpack.c.bf16 %v1791, %v1787
    %v1837 = vpack.c.bf16 %v1686, %v1682
    %v1838 = vpack.c.bf16 %v1688, %v1684
    %v1839 = vpack.c.bf16 %v1799, %v1795
    %v1840 = vpack.c.bf16 %v1801, %v1797
    %v1841 = vpack.c.bf16 %v1696, %v1692
    %v1842 = vpack.c.bf16 %v1698, %v1694
    %v1843 = vpack.c.bf16 %v1809, %v1805
    %v1844 = vpack.c.bf16 %v1811, %v1807
    %v1845 = vmax.bf16 %v1813, 0
    %v1846 = vmax.bf16 %v1814, 0
    %v1847 = vmax.bf16 %v1815, 0
    %v1848 = vmax.bf16 %v1816, 0
    %v1849 = vmax.bf16 %v1817, 0
    %v1850 = vmax.bf16 %v1818, 0
    %v1851 = vmax.bf16 %v1819, 0
    %v1852 = vmax.bf16 %v1820, 0
    %v1853 = vmax.bf16 %v1821, 0
    %v1854 = vmax.bf16 %v1822, 0
    %v1855 = vmax.bf16 %v1823, 0
    %v1856 = vmax.bf16 %v1824, 0
    %v1857 = vmax.bf16 %v1825, 0
    %v1858 = vmax.bf16 %v1826, 0
    %v1859 = vmax.bf16 %v1827, 0
    %v1860 = vmax.bf16 %v1828, 0
    %v1861 = vmax.bf16 %v1829, 0
    %v1862 = vmax.bf16 %v1830, 0
    %v1863 = vmax.bf16 %v1831, 0
    %v1864 = vmax.bf16 %v1832, 0
    %v1865 = vmax.bf16 %v1833, 0
    %v1866 = vmax.bf16 %v1834, 0
    %v1867 = vmax.bf16 %v1835, 0
    %v1868 = vmax.bf16 %v1836, 0
    %v1869 = vmax.bf16 %v1837, 0
    %v1870 = vmax.bf16 %v1838, 0
    %v1871 = vmax.bf16 %v1839, 0
    %v1872 = vmax.bf16 %v1840, 0
    %v1873 = vmax.bf16 %v1841, 0
    %v1874 = vmax.bf16 %v1842, 0
    %v1875 = vmax.bf16 %v1843, 0
    %v1876 = vmax.bf16 %v1844, 0
    %v1877 = vld [vmem:[#allocation8] sm:$0xff]
    %v1878 = vld [vmem:[#allocation8 + $0x8] sm:$0xff]
    %v1879 = vld [vmem:[#allocation8 + $0x10] sm:$0xff]
    %v1880 = vld [vmem:[#allocation8 + $0x18] sm:$0xff]
    %v1881 = vld [vmem:[#allocation8 + $0x20] sm:$0xff]
    %v1882 = vld [vmem:[#allocation8 + $0x28] sm:$0xff]
    %v1883 = vld [vmem:[#allocation8 + $0x30] sm:$0xff]
    %v1884 = vld [vmem:[#allocation8 + $0x38] sm:$0xff]
    %v1885 = vld [vmem:[#allocation8 + $0x40] sm:$0xff]
    %v1886 = vld [vmem:[#allocation8 + $0x48] sm:$0xff]
    %v1887 = vld [vmem:[#allocation8 + $0x50] sm:$0xff]
    %v1888 = vld [vmem:[#allocation8 + $0x58] sm:$0xff]
    %v1889 = vld [vmem:[#allocation8 + $0x60] sm:$0xff]
    %v1890 = vld [vmem:[#allocation8 + $0x68] sm:$0xff]
    %v1891 = vld [vmem:[#allocation8 + $0x70] sm:$0xff]
    %v1892 = vld [vmem:[#allocation8 + $0x78] sm:$0xff]
    %v1893 = vld [vmem:[#allocation8 + $0x80] sm:$0xff]
    %v1894 = vld [vmem:[#allocation8 + $0x88] sm:$0xff]
    %v1895 = vld [vmem:[#allocation8 + $0x90] sm:$0xff]
    %v1896 = vld [vmem:[#allocation8 + $0x98] sm:$0xff]
    %v1897 = vld [vmem:[#allocation8 + $0xa0] sm:$0xff]
    %v1898 = vld [vmem:[#allocation8 + $0xa8] sm:$0xff]
    %v1899 = vld [vmem:[#allocation8 + $0xb0] sm:$0xff]
    %v1900 = vld [vmem:[#allocation8 + $0xb8] sm:$0xff]
    %v1901 = vld [vmem:[#allocation8 + $0xc0] sm:$0xff]
    %v1902 = vld [vmem:[#allocation8 + $0xc8] sm:$0xff]
    %v1903 = vld [vmem:[#allocation8 + $0xd0] sm:$0xff]
    %v1904 = vld [vmem:[#allocation8 + $0xd8] sm:$0xff]
    %v1905 = vld [vmem:[#allocation8 + $0xe0] sm:$0xff]
    %v1906 = vld [vmem:[#allocation8 + $0xe8] sm:$0xff]
    %v1907 = vld [vmem:[#allocation8 + $0xf0] sm:$0xff]
    %v1908 = vld [vmem:[#allocation8 + $0xf8] sm:$0xff]
    %v1909 = vld [vmem:[#allocation8 + $0x100] sm:$0xff]
    %v1910 = vld [vmem:[#allocation8 + $0x108] sm:$0xff]
    %v1911 = vld [vmem:[#allocation8 + $0x110] sm:$0xff]
    %v1912 = vld [vmem:[#allocation8 + $0x118] sm:$0xff]
    %v1913 = vld [vmem:[#allocation8 + $0x120] sm:$0xff]
    %v1914 = vld [vmem:[#allocation8 + $0x128] sm:$0xff]
    %v1915 = vld [vmem:[#allocation8 + $0x130] sm:$0xff]
    %v1916 = vld [vmem:[#allocation8 + $0x138] sm:$0xff]
    %v1917 = vld [vmem:[#allocation8 + $0x140] sm:$0xff]
    %v1918 = vld [vmem:[#allocation8 + $0x148] sm:$0xff]
    %v1919 = vld [vmem:[#allocation8 + $0x150] sm:$0xff]
    %v1920 = vld [vmem:[#allocation8 + $0x158] sm:$0xff]
    %v1921 = vld [vmem:[#allocation8 + $0x160] sm:$0xff]
    %v1922 = vld [vmem:[#allocation8 + $0x168] sm:$0xff]
    %v1923 = vld [vmem:[#allocation8 + $0x170] sm:$0xff]
    %v1924 = vld [vmem:[#allocation8 + $0x178] sm:$0xff]
    %v1925 = vld [vmem:[#allocation8 + $0x180] sm:$0xff]
    %v1926 = vld [vmem:[#allocation8 + $0x188] sm:$0xff]
    %v1927 = vld [vmem:[#allocation8 + $0x190] sm:$0xff]
    %v1928 = vld [vmem:[#allocation8 + $0x198] sm:$0xff]
    %v1929 = vld [vmem:[#allocation8 + $0x1a0] sm:$0xff]
    %v1930 = vld [vmem:[#allocation8 + $0x1a8] sm:$0xff]
    %v1931 = vld [vmem:[#allocation8 + $0x1b0] sm:$0xff]
    %v1932 = vld [vmem:[#allocation8 + $0x1b8] sm:$0xff]
    %v1933 = vld [vmem:[#allocation8 + $0x1c0] sm:$0xff]
    %v1934 = vld [vmem:[#allocation8 + $0x1c8] sm:$0xff]
    %v1935 = vld [vmem:[#allocation8 + $0x1d0] sm:$0xff]
    %v1936 = vld [vmem:[#allocation8 + $0x1d8] sm:$0xff]
    %v1937 = vld [vmem:[#allocation8 + $0x1e0] sm:$0xff]
    %v1938 = vld [vmem:[#allocation8 + $0x1e8] sm:$0xff]
    %v1939 = vld [vmem:[#allocation8 + $0x1f0] sm:$0xff]
    %v1940 = vld [vmem:[#allocation8 + $0x1f8] sm:$0xff]
    %v1941 = vld [vmem:[%s10 + $0x7] sm:$0x3]
    %v1943 = vlaneseq
    %v1944 = vshrl.u32 %v1943, 7
    %v1945 = vsub.s32 0, %v1944
    %v1946 = vrot.slane %v1941, %v1945
    %v1947 = vlaneseq
    %v1948 = vshrl.u32 %v1947, 7
    %v1949 = vsub.s32 1, %v1948
    %v1950 = vrot.slane %v1941, %v1949
    %v2017 = vunpack.c.l.b16 %v1877
    %v2018 = vunpack.c.h.b16 %v1877
    %v2019 = vunpack.c.l.b16 %v1878
    %v2020 = vunpack.c.h.b16 %v1878
    %v2021 = vunpack.c.l.b16 %v1879
    %v2022 = vunpack.c.h.b16 %v1879
    %v2023 = vunpack.c.l.b16 %v1880
    %v2024 = vunpack.c.h.b16 %v1880
    %v2025 = vunpack.c.l.b16 %v1881
    %v2026 = vunpack.c.h.b16 %v1881
    %v2027 = vunpack.c.l.b16 %v1882
    %v2028 = vunpack.c.h.b16 %v1882
    %v2029 = vunpack.c.l.b16 %v1883
    %v2030 = vunpack.c.h.b16 %v1883
    %v2031 = vunpack.c.l.b16 %v1884
    %v2032 = vunpack.c.h.b16 %v1884
    %v2033 = vunpack.c.l.b16 %v1885
    %v2034 = vunpack.c.h.b16 %v1885
    %v2035 = vunpack.c.l.b16 %v1886
    %v2036 = vunpack.c.h.b16 %v1886
    %v2037 = vunpack.c.l.b16 %v1887
    %v2038 = vunpack.c.h.b16 %v1887
    %v2039 = vunpack.c.l.b16 %v1888
    %v2040 = vunpack.c.h.b16 %v1888
    %v2041 = vunpack.c.l.b16 %v1889
    %v2042 = vunpack.c.h.b16 %v1889
    %v2043 = vunpack.c.l.b16 %v1890
    %v2044 = vunpack.c.h.b16 %v1890
    %v2045 = vunpack.c.l.b16 %v1891
    %v2046 = vunpack.c.h.b16 %v1891
    %v2047 = vunpack.c.l.b16 %v1892
    %v2048 = vunpack.c.h.b16 %v1892
    %v2049 = vunpack.c.l.b16 %v1893
    %v2050 = vunpack.c.h.b16 %v1893
    %v2051 = vunpack.c.l.b16 %v1894
    %v2052 = vunpack.c.h.b16 %v1894
    %v2053 = vunpack.c.l.b16 %v1895
    %v2054 = vunpack.c.h.b16 %v1895
    %v2055 = vunpack.c.l.b16 %v1896
    %v2056 = vunpack.c.h.b16 %v1896
    %v2057 = vunpack.c.l.b16 %v1897
    %v2058 = vunpack.c.h.b16 %v1897
    %v2059 = vunpack.c.l.b16 %v1898
    %v2060 = vunpack.c.h.b16 %v1898
    %v2061 = vunpack.c.l.b16 %v1899
    %v2062 = vunpack.c.h.b16 %v1899
    %v2063 = vunpack.c.l.b16 %v1900
    %v2064 = vunpack.c.h.b16 %v1900
    %v2065 = vunpack.c.l.b16 %v1901
    %v2066 = vunpack.c.h.b16 %v1901
    %v2067 = vunpack.c.l.b16 %v1902
    %v2068 = vunpack.c.h.b16 %v1902
    %v2069 = vunpack.c.l.b16 %v1903
    %v2070 = vunpack.c.h.b16 %v1903
    %v2071 = vunpack.c.l.b16 %v1904
    %v2072 = vunpack.c.h.b16 %v1904
    %v2073 = vunpack.c.l.b16 %v1905
    %v2074 = vunpack.c.h.b16 %v1905
    %v2075 = vunpack.c.l.b16 %v1906
    %v2076 = vunpack.c.h.b16 %v1906
    %v2077 = vunpack.c.l.b16 %v1907
    %v2078 = vunpack.c.h.b16 %v1907
    %v2079 = vunpack.c.l.b16 %v1908
    %v2080 = vunpack.c.h.b16 %v1908
    %v2081 = vunpack.c.l.b16 %v1909
    %v2082 = vunpack.c.h.b16 %v1909
    %v2083 = vunpack.c.l.b16 %v1910
    %v2084 = vunpack.c.h.b16 %v1910
    %v2085 = vunpack.c.l.b16 %v1911
    %v2086 = vunpack.c.h.b16 %v1911
    %v2087 = vunpack.c.l.b16 %v1912
    %v2088 = vunpack.c.h.b16 %v1912
    %v2089 = vunpack.c.l.b16 %v1913
    %v2090 = vunpack.c.h.b16 %v1913
    %v2091 = vunpack.c.l.b16 %v1914
    %v2092 = vunpack.c.h.b16 %v1914
    %v2093 = vunpack.c.l.b16 %v1915
    %v2094 = vunpack.c.h.b16 %v1915
    %v2095 = vunpack.c.l.b16 %v1916
    %v2096 = vunpack.c.h.b16 %v1916
    %v2097 = vunpack.c.l.b16 %v1917
    %v2098 = vunpack.c.h.b16 %v1917
    %v2099 = vunpack.c.l.b16 %v1918
    %v2100 = vunpack.c.h.b16 %v1918
    %v2101 = vunpack.c.l.b16 %v1919
    %v2102 = vunpack.c.h.b16 %v1919
    %v2103 = vunpack.c.l.b16 %v1920
    %v2104 = vunpack.c.h.b16 %v1920
    %v2105 = vunpack.c.l.b16 %v1921
    %v2106 = vunpack.c.h.b16 %v1921
    %v2107 = vunpack.c.l.b16 %v1922
    %v2108 = vunpack.c.h.b16 %v1922
    %v2109 = vunpack.c.l.b16 %v1923
    %v2110 = vunpack.c.h.b16 %v1923
    %v2111 = vunpack.c.l.b16 %v1924
    %v2112 = vunpack.c.h.b16 %v1924
    %v2113 = vunpack.c.l.b16 %v1925
    %v2114 = vunpack.c.h.b16 %v1925
    %v2115 = vunpack.c.l.b16 %v1926
    %v2116 = vunpack.c.h.b16 %v1926
    %v2117 = vunpack.c.l.b16 %v1927
    %v2118 = vunpack.c.h.b16 %v1927
    %v2119 = vunpack.c.l.b16 %v1928
    %v2120 = vunpack.c.h.b16 %v1928
    %v2121 = vunpack.c.l.b16 %v1929
    %v2122 = vunpack.c.h.b16 %v1929
    %v2123 = vunpack.c.l.b16 %v1930
    %v2124 = vunpack.c.h.b16 %v1930
    %v2125 = vunpack.c.l.b16 %v1931
    %v2126 = vunpack.c.h.b16 %v1931
    %v2127 = vunpack.c.l.b16 %v1932
    %v2128 = vunpack.c.h.b16 %v1932
    %v2129 = vunpack.c.l.b16 %v1933
    %v2130 = vunpack.c.h.b16 %v1933
    %v2131 = vunpack.c.l.b16 %v1934
    %v2132 = vunpack.c.h.b16 %v1934
    %v2133 = vunpack.c.l.b16 %v1935
    %v2134 = vunpack.c.h.b16 %v1935
    %v2135 = vunpack.c.l.b16 %v1936
    %v2136 = vunpack.c.h.b16 %v1936
    %v2137 = vunpack.c.l.b16 %v1937
    %v2138 = vunpack.c.h.b16 %v1937
    %v2139 = vunpack.c.l.b16 %v1938
    %v2140 = vunpack.c.h.b16 %v1938
    %v2141 = vunpack.c.l.b16 %v1939
    %v2142 = vunpack.c.h.b16 %v1939
    %v2143 = vunpack.c.l.b16 %v1940
    %v2144 = vunpack.c.h.b16 %v1940
    %v2145 = vpack.c.b16 %v2019, %v2017
    %v2146 = vpack.c.b16 %v2020, %v2018
    %v2147 = vpack.c.b16 %v2023, %v2021
    %v2148 = vpack.c.b16 %v2024, %v2022
    %v2149 = vpack.c.b16 %v2027, %v2025
    %v2150 = vpack.c.b16 %v2028, %v2026
    %v2151 = vpack.c.b16 %v2031, %v2029
    %v2152 = vpack.c.b16 %v2032, %v2030
    %v2153 = vpack.c.b16 %v2035, %v2033
    %v2154 = vpack.c.b16 %v2036, %v2034
    %v2155 = vpack.c.b16 %v2039, %v2037
    %v2156 = vpack.c.b16 %v2040, %v2038
    %v2157 = vpack.c.b16 %v2043, %v2041
    %v2158 = vpack.c.b16 %v2044, %v2042
    %v2159 = vpack.c.b16 %v2047, %v2045
    %v2160 = vpack.c.b16 %v2048, %v2046
    %v2161 = vpack.c.b16 %v2051, %v2049
    %v2162 = vpack.c.b16 %v2052, %v2050
    %v2163 = vpack.c.b16 %v2055, %v2053
    %v2164 = vpack.c.b16 %v2056, %v2054
    %v2165 = vpack.c.b16 %v2059, %v2057
    %v2166 = vpack.c.b16 %v2060, %v2058
    %v2167 = vpack.c.b16 %v2063, %v2061
    %v2168 = vpack.c.b16 %v2064, %v2062
    %v2169 = vpack.c.b16 %v2067, %v2065
    %v2170 = vpack.c.b16 %v2068, %v2066
    %v2171 = vpack.c.b16 %v2071, %v2069
    %v2172 = vpack.c.b16 %v2072, %v2070
    %v2173 = vpack.c.b16 %v2075, %v2073
    %v2174 = vpack.c.b16 %v2076, %v2074
    %v2175 = vpack.c.b16 %v2079, %v2077
    %v2176 = vpack.c.b16 %v2080, %v2078
    %v2177 = vpack.c.b16 %v2083, %v2081
    %v2178 = vpack.c.b16 %v2084, %v2082
    %v2179 = vpack.c.b16 %v2087, %v2085
    %v2180 = vpack.c.b16 %v2088, %v2086
    %v2181 = vpack.c.b16 %v2091, %v2089
    %v2182 = vpack.c.b16 %v2092, %v2090
    %v2183 = vpack.c.b16 %v2095, %v2093
    %v2184 = vpack.c.b16 %v2096, %v2094
    %v2185 = vpack.c.b16 %v2099, %v2097
    %v2186 = vpack.c.b16 %v2100, %v2098
    %v2187 = vpack.c.b16 %v2103, %v2101
    %v2188 = vpack.c.b16 %v2104, %v2102
    %v2189 = vpack.c.b16 %v2107, %v2105
    %v2190 = vpack.c.b16 %v2108, %v2106
    %v2191 = vpack.c.b16 %v2111, %v2109
    %v2192 = vpack.c.b16 %v2112, %v2110
    %v2193 = vpack.c.b16 %v2115, %v2113
    %v2194 = vpack.c.b16 %v2116, %v2114
    %v2195 = vpack.c.b16 %v2119, %v2117
    %v2196 = vpack.c.b16 %v2120, %v2118
    %v2197 = vpack.c.b16 %v2123, %v2121
    %v2198 = vpack.c.b16 %v2124, %v2122
    %v2199 = vpack.c.b16 %v2127, %v2125
    %v2200 = vpack.c.b16 %v2128, %v2126
    %v2201 = vpack.c.b16 %v2131, %v2129
    %v2202 = vpack.c.b16 %v2132, %v2130
    %v2203 = vpack.c.b16 %v2135, %v2133
    %v2204 = vpack.c.b16 %v2136, %v2134
    %v2205 = vpack.c.b16 %v2139, %v2137
    %v2206 = vpack.c.b16 %v2140, %v2138
    %v2207 = vpack.c.b16 %v2143, %v2141
    %v2208 = vpack.c.b16 %v2144, %v2142
    %2273 = vmatprep.subr.bf16.mxu0 %v2146
    %2274 = vmatpush1.bf16.msra.mxu0 %v2145
    %2275 = vmatprep.subr.bf16.mxu0 %v2148
    %2276 = vmatpush1.bf16.msra.mxu0 %v2147
    %2277 = vmatprep.subr.bf16.mxu0 %v2150
    %2278 = vmatpush1.bf16.msra.mxu0 %v2149
    %2279 = vmatprep.subr.bf16.mxu0 %v2152
    %2280 = vmatpush1.bf16.msra.mxu0 %v2151
    %2281 = vmatprep.subr.bf16.mxu0 %v2154
    %2282 = vmatpush1.bf16.msra.mxu0 %v2153
    %2283 = vmatprep.subr.bf16.mxu0 %v2156
    %2284 = vmatpush1.bf16.msra.mxu0 %v2155
    %2285 = vmatprep.subr.bf16.mxu0 %v2158
    %2286 = vmatpush1.bf16.msra.mxu0 %v2157
    %2287 = vmatprep.subr.bf16.mxu0 %v2160
    %2288 = vmatpush1.bf16.msra.mxu0 %v2159
    %2289 = vmatprep.subr.bf16.mxu0 %v2162
    %2290 = vmatpush1.bf16.msra.mxu0 %v2161
    %2291 = vmatprep.subr.bf16.mxu0 %v2164
    %2292 = vmatpush1.bf16.msra.mxu0 %v2163
    %2293 = vmatprep.subr.bf16.mxu0 %v2166
    %2294 = vmatpush1.bf16.msra.mxu0 %v2165
    %2295 = vmatprep.subr.bf16.mxu0 %v2168
    %2296 = vmatpush1.bf16.msra.mxu0 %v2167
    %2297 = vmatprep.subr.bf16.mxu0 %v2170
    %2298 = vmatpush1.bf16.msra.mxu0 %v2169
    %2299 = vmatprep.subr.bf16.mxu0 %v2172
    %2300 = vmatpush1.bf16.msra.mxu0 %v2171
    %2301 = vmatprep.subr.bf16.mxu0 %v2174
    %2302 = vmatpush1.bf16.msra.mxu0 %v2173
    %2303 = vmatprep.subr.bf16.mxu0 %v2176
    %2304 = vmatpush1.bf16.msra.mxu0 %v2175
    %2305 = vmatprep.mubr.bf16.mxu0 %v1846
    %2306 = vmatmul.mubr.bf16.gmra.mrb[0].mxu0 %v1845
    %v2307 = vpop.f32.mrb[0].mxu0
    %v2308 = vadd.f32 %v1946, %v2307
    %v2309 = vpop.f32.mrb[0].mxu0
    %v2310 = vadd.f32 %v1950, %v2309
    %v2311 = vpop.f32.mrb[0].mxu0
    %v2312 = vadd.f32 %v1946, %v2311
    %v2313 = vpop.f32.mrb[0].mxu0
    %v2314 = vadd.f32 %v1950, %v2313
    %2315 = vmatprep.mubr.bf16.mxu0 %v1850
    %2316 = vmatmul.mubr.bf16.gmra.mrb[0].mxu0 %v1849
    %v2317 = vpop.f32.mrb[0].mxu0
    %v2318 = vadd.f32 %v1946, %v2317
    %v2319 = vpop.f32.mrb[0].mxu0
    %v2320 = vadd.f32 %v1950, %v2319
    %v2321 = vpop.f32.mrb[0].mxu0
    %v2322 = vadd.f32 %v1946, %v2321
    %v2323 = vpop.f32.mrb[0].mxu0
    %v2324 = vadd.f32 %v1950, %v2323
    %2325 = vmatprep.mubr.bf16.mxu0 %v1854
    %2326 = vmatmul.mubr.bf16.gmra.mrb[0].mxu0 %v1853
    %v2327 = vpop.f32.mrb[0].mxu0
    %v2328 = vadd.f32 %v1946, %v2327
    %v2329 = vpop.f32.mrb[0].mxu0
    %v2330 = vadd.f32 %v1950, %v2329
    %v2331 = vpop.f32.mrb[0].mxu0
    %v2332 = vadd.f32 %v1946, %v2331
    %v2333 = vpop.f32.mrb[0].mxu0
    %v2334 = vadd.f32 %v1950, %v2333
    %2335 = vmatprep.mubr.bf16.mxu0 %v1858
    %2336 = vmatmul.mubr.bf16.gmra.mrb[0].mxu0 %v1857
    %v2337 = vpop.f32.mrb[0].mxu0
    %v2338 = vadd.f32 %v1946, %v2337
    %v2339 = vpop.f32.mrb[0].mxu0
    %v2340 = vadd.f32 %v1950, %v2339
    %v2341 = vpop.f32.mrb[0].mxu0
    %v2342 = vadd.f32 %v1946, %v2341
    %v2343 = vpop.f32.mrb[0].mxu0
    %v2344 = vadd.f32 %v1950, %v2343
    %2345 = vmatprep.mubr.bf16.mxu0 %v1862
    %2346 = vmatmul.mubr.bf16.gmra.mrb[0].mxu0 %v1861
    %v2347 = vpop.f32.mrb[0].mxu0
    %v2348 = vadd.f32 %v1946, %v2347
    %v2349 = vpop.f32.mrb[0].mxu0
    %v2350 = vadd.f32 %v1950, %v2349
    %v2351 = vpop.f32.mrb[0].mxu0
    %v2352 = vadd.f32 %v1946, %v2351
    %v2353 = vpop.f32.mrb[0].mxu0
    %v2354 = vadd.f32 %v1950, %v2353
    %2355 = vmatprep.mubr.bf16.mxu0 %v1866
    %2356 = vmatmul.mubr.bf16.gmra.mrb[0].mxu0 %v1865
    %v2357 = vpop.f32.mrb[0].mxu0
    %v2358 = vadd.f32 %v1946, %v2357
    %v2359 = vpop.f32.mrb[0].mxu0
    %v2360 = vadd.f32 %v1950, %v2359
    %v2361 = vpop.f32.mrb[0].mxu0
    %v2362 = vadd.f32 %v1946, %v2361
    %v2363 = vpop.f32.mrb[0].mxu0
    %v2364 = vadd.f32 %v1950, %v2363
    %2365 = vmatprep.mubr.bf16.mxu0 %v1870
    %2366 = vmatmul.mubr.bf16.gmra.mrb[0].mxu0 %v1869
    %v2367 = vpop.f32.mrb[0].mxu0
    %v2368 = vadd.f32 %v1946, %v2367
    %v2369 = vpop.f32.mrb[0].mxu0
    %v2370 = vadd.f32 %v1950, %v2369
    %v2371 = vpop.f32.mrb[0].mxu0
    %v2372 = vadd.f32 %v1946, %v2371
    %v2373 = vpop.f32.mrb[0].mxu0
    %v2374 = vadd.f32 %v1950, %v2373
    %2375 = vmatprep.mubr.bf16.mxu0 %v1874
    %2376 = vmatmul.mubr.bf16.gmra.mrb[0].mxu0 %v1873
    %v2377 = vpop.f32.mrb[0].mxu0
    %v2378 = vadd.f32 %v1946, %v2377
    %v2379 = vpop.f32.mrb[0].mxu0
    %v2380 = vadd.f32 %v1950, %v2379
    %v2381 = vpop.f32.mrb[0].mxu0
    %v2382 = vadd.f32 %v1946, %v2381
    %v2383 = vpop.f32.mrb[0].mxu0
    %v2384 = vadd.f32 %v1950, %v2383
    %2385 = vdwg.mxu0
    %2386 = vmatprep.subr.bf16.mxu0 %v2178
    %2387 = vmatpush1.bf16.msra.mxu0 %v2177
    %2388 = vmatprep.subr.bf16.mxu0 %v2180
    %2389 = vmatpush1.bf16.msra.mxu0 %v2179
    %2390 = vmatprep.subr.bf16.mxu0 %v2182
    %2391 = vmatpush1.bf16.msra.mxu0 %v2181
    %2392 = vmatprep.subr.bf16.mxu0 %v2184
    %2393 = vmatpush1.bf16.msra.mxu0 %v2183
    %2394 = vmatprep.subr.bf16.mxu0 %v2186
    %2395 = vmatpush1.bf16.msra.mxu0 %v2185
    %2396 = vmatprep.subr.bf16.mxu0 %v2188
    %2397 = vmatpush1.bf16.msra.mxu0 %v2187
    %2398 = vmatprep.subr.bf16.mxu0 %v2190
    %2399 = vmatpush1.bf16.msra.mxu0 %v2189
    %2400 = vmatprep.subr.bf16.mxu0 %v2192
    %2401 = vmatpush1.bf16.msra.mxu0 %v2191
    %2402 = vmatprep.subr.bf16.mxu0 %v2194
    %2403 = vmatpush1.bf16.msra.mxu0 %v2193
    %2404 = vmatprep.subr.bf16.mxu0 %v2196
    %2405 = vmatpush1.bf16.msra.mxu0 %v2195
    %2406 = vmatprep.subr.bf16.mxu0 %v2198
    %2407 = vmatpush1.bf16.msra.mxu0 %v2197
    %2408 = vmatprep.subr.bf16.mxu0 %v2200
    %2409 = vmatpush1.bf16.msra.mxu0 %v2199
    %2410 = vmatprep.subr.bf16.mxu0 %v2202
    %2411 = vmatpush1.bf16.msra.mxu0 %v2201
    %2412 = vmatprep.subr.bf16.mxu0 %v2204
    %2413 = vmatpush1.bf16.msra.mxu0 %v2203
    %2414 = vmatprep.subr.bf16.mxu0 %v2206
    %2415 = vmatpush1.bf16.msra.mxu0 %v2205
    %2416 = vmatprep.subr.bf16.mxu0 %v2208
    %2417 = vmatpush1.bf16.msra.mxu0 %v2207
    %2418 = vmatprep.mubr.bf16.mxu0 %v1848
    %2419 = vmatmul.mubr.bf16.gmra.mrb[0].mxu0 %v1847
    %v2420 = vpop.f32.mrb[0].mxu0
    %v2421 = vadd.f32 %v2308, %v2420
    %v2422 = vpop.f32.mrb[0].mxu0
    %v2423 = vadd.f32 %v2310, %v2422
    %v2424 = vpop.f32.mrb[0].mxu0
    %v2425 = vadd.f32 %v2312, %v2424
    %v2426 = vpop.f32.mrb[0].mxu0
    %v2427 = vadd.f32 %v2314, %v2426
    %2428 = vmatprep.mubr.bf16.mxu0 %v1852
    %2429 = vmatmul.mubr.bf16.gmra.mrb[0].mxu0 %v1851
    %v2430 = vpop.f32.mrb[0].mxu0
    %v2431 = vadd.f32 %v2318, %v2430
    %v2432 = vpop.f32.mrb[0].mxu0
    %v2433 = vadd.f32 %v2320, %v2432
    %v2434 = vpop.f32.mrb[0].mxu0
    %v2435 = vadd.f32 %v2322, %v2434
    %v2436 = vpop.f32.mrb[0].mxu0
    %v2437 = vadd.f32 %v2324, %v2436
    %2438 = vmatprep.mubr.bf16.mxu0 %v1856
    %2439 = vmatmul.mubr.bf16.gmra.mrb[0].mxu0 %v1855
    %v2440 = vpop.f32.mrb[0].mxu0
    %v2441 = vadd.f32 %v2328, %v2440
    %v2442 = vpop.f32.mrb[0].mxu0
    %v2443 = vadd.f32 %v2330, %v2442
    %v2444 = vpop.f32.mrb[0].mxu0
    %v2445 = vadd.f32 %v2332, %v2444
    %v2446 = vpop.f32.mrb[0].mxu0
    %v2447 = vadd.f32 %v2334, %v2446
    %2448 = vmatprep.mubr.bf16.mxu0 %v1860
    %2449 = vmatmul.mubr.bf16.gmra.mrb[0].mxu0 %v1859
    %v2450 = vpop.f32.mrb[0].mxu0
    %v2451 = vadd.f32 %v2338, %v2450
    %v2452 = vpop.f32.mrb[0].mxu0
    %v2453 = vadd.f32 %v2340, %v2452
    %v2454 = vpop.f32.mrb[0].mxu0
    %v2455 = vadd.f32 %v2342, %v2454
    %v2456 = vpop.f32.mrb[0].mxu0
    %v2457 = vadd.f32 %v2344, %v2456
    %2458 = vmatprep.mubr.bf16.mxu0 %v1864
    %2459 = vmatmul.mubr.bf16.gmra.mrb[0].mxu0 %v1863
    %v2460 = vpop.f32.mrb[0].mxu0
    %v2461 = vadd.f32 %v2348, %v2460
    %v2462 = vpop.f32.mrb[0].mxu0
    %v2463 = vadd.f32 %v2350, %v2462
    %v2464 = vpop.f32.mrb[0].mxu0
    %v2465 = vadd.f32 %v2352, %v2464
    %v2466 = vpop.f32.mrb[0].mxu0
    %v2467 = vadd.f32 %v2354, %v2466
    %2468 = vmatprep.mubr.bf16.mxu0 %v1868
    %2469 = vmatmul.mubr.bf16.gmra.mrb[0].mxu0 %v1867
    %v2470 = vpop.f32.mrb[0].mxu0
    %v2471 = vadd.f32 %v2358, %v2470
    %v2472 = vpop.f32.mrb[0].mxu0
    %v2473 = vadd.f32 %v2360, %v2472
    %v2474 = vpop.f32.mrb[0].mxu0
    %v2475 = vadd.f32 %v2362, %v2474
    %v2476 = vpop.f32.mrb[0].mxu0
    %v2477 = vadd.f32 %v2364, %v2476
    %2478 = vmatprep.mubr.bf16.mxu0 %v1872
    %2479 = vmatmul.mubr.bf16.gmra.mrb[0].mxu0 %v1871
    %v2480 = vpop.f32.mrb[0].mxu0
    %v2481 = vadd.f32 %v2368, %v2480
    %v2482 = vpop.f32.mrb[0].mxu0
    %v2483 = vadd.f32 %v2370, %v2482
    %v2484 = vpop.f32.mrb[0].mxu0
    %v2485 = vadd.f32 %v2372, %v2484
    %v2486 = vpop.f32.mrb[0].mxu0
    %v2487 = vadd.f32 %v2374, %v2486
    %2488 = vmatprep.mubr.bf16.mxu0 %v1876
    %2489 = vmatmul.mubr.bf16.gmra.mrb[0].mxu0 %v1875
    %v2490 = vpop.f32.mrb[0].mxu0
    %v2491 = vadd.f32 %v2378, %v2490
    %v2492 = vpop.f32.mrb[0].mxu0
    %v2493 = vadd.f32 %v2380, %v2492
    %v2494 = vpop.f32.mrb[0].mxu0
    %v2495 = vadd.f32 %v2382, %v2494
    %v2496 = vpop.f32.mrb[0].mxu0
    %v2497 = vadd.f32 %v2384, %v2496
    %2498 = vdwg.mxu0
    %v2499 = vpack.c.bf16 %v2425, %v2421
    %v2500 = vpack.c.bf16 %v2427, %v2423
    %v2501 = vpack.c.bf16 %v2435, %v2431
    %v2502 = vpack.c.bf16 %v2437, %v2433
    %v2503 = vpack.c.bf16 %v2445, %v2441
    %v2504 = vpack.c.bf16 %v2447, %v2443
    %v2505 = vpack.c.bf16 %v2455, %v2451
    %v2506 = vpack.c.bf16 %v2457, %v2453
    %v2507 = vpack.c.bf16 %v2465, %v2461
    %v2508 = vpack.c.bf16 %v2467, %v2463
    %v2509 = vpack.c.bf16 %v2475, %v2471
    %v2510 = vpack.c.bf16 %v2477, %v2473
    %v2511 = vpack.c.bf16 %v2485, %v2481
    %v2512 = vpack.c.bf16 %v2487, %v2483
    %v2513 = vpack.c.bf16 %v2495, %v2491
    %v2514 = vpack.c.bf16 %v2497, %v2493
    %v2515 = vld [vmem:[#allocation10] sm:$0xff]
    %v2516 = vld [vmem:[#allocation10 + $0x8] sm:$0xff]
    %v2517 = vld [vmem:[#allocation10 + $0x10] sm:$0xff]
    %v2518 = vld [vmem:[#allocation10 + $0x18] sm:$0xff]
    %v2519 = vld [vmem:[#allocation10 + $0x20] sm:$0xff]
    %v2520 = vld [vmem:[#allocation10 + $0x28] sm:$0xff]
    %v2521 = vld [vmem:[#allocation10 + $0x30] sm:$0xff]
    %v2522 = vld [vmem:[#allocation10 + $0x38] sm:$0xff]
    %v2523 = vld [vmem:[#allocation10 + $0x40] sm:$0xff]
    %v2524 = vld [vmem:[#allocation10 + $0x48] sm:$0xff]
    %v2525 = vld [vmem:[#allocation10 + $0x50] sm:$0xff]
    %v2526 = vld [vmem:[#allocation10 + $0x58] sm:$0xff]
    %v2527 = vld [vmem:[#allocation10 + $0x60] sm:$0xff]
    %v2528 = vld [vmem:[#allocation10 + $0x68] sm:$0xff]
    %v2529 = vld [vmem:[#allocation10 + $0x70] sm:$0xff]
    %v2530 = vld [vmem:[#allocation10 + $0x78] sm:$0xff]
    %v2531 = vld [vmem:[#allocation10 + $0x80] sm:$0xff]
    %v2532 = vld [vmem:[#allocation10 + $0x88] sm:$0xff]
    %v2533 = vld [vmem:[#allocation10 + $0x90] sm:$0xff]
    %v2534 = vld [vmem:[#allocation10 + $0x98] sm:$0xff]
    %v2535 = vld [vmem:[#allocation10 + $0xa0] sm:$0xff]
    %v2536 = vld [vmem:[#allocation10 + $0xa8] sm:$0xff]
    %v2537 = vld [vmem:[#allocation10 + $0xb0] sm:$0xff]
    %v2538 = vld [vmem:[#allocation10 + $0xb8] sm:$0xff]
    %v2539 = vld [vmem:[#allocation10 + $0xc0] sm:$0xff]
    %v2540 = vld [vmem:[#allocation10 + $0xc8] sm:$0xff]
    %v2541 = vld [vmem:[#allocation10 + $0xd0] sm:$0xff]
    %v2542 = vld [vmem:[#allocation10 + $0xd8] sm:$0xff]
    %v2543 = vld [vmem:[#allocation10 + $0xe0] sm:$0xff]
    %v2544 = vld [vmem:[#allocation10 + $0xe8] sm:$0xff]
    %v2545 = vld [vmem:[#allocation10 + $0xf0] sm:$0xff]
    %v2546 = vld [vmem:[#allocation10 + $0xf8] sm:$0xff]
    %v2547 = vld [vmem:[#allocation10 + $0x100] sm:$0xff]
    %v2548 = vld [vmem:[#allocation10 + $0x108] sm:$0xff]
    %v2549 = vld [vmem:[#allocation10 + $0x110] sm:$0xff]
    %v2550 = vld [vmem:[#allocation10 + $0x118] sm:$0xff]
    %v2551 = vld [vmem:[#allocation10 + $0x120] sm:$0xff]
    %v2552 = vld [vmem:[#allocation10 + $0x128] sm:$0xff]
    %v2553 = vld [vmem:[#allocation10 + $0x130] sm:$0xff]
    %v2554 = vld [vmem:[#allocation10 + $0x138] sm:$0xff]
    %v2555 = vld [vmem:[#allocation10 + $0x140] sm:$0xff]
    %v2556 = vld [vmem:[#allocation10 + $0x148] sm:$0xff]
    %v2557 = vld [vmem:[#allocation10 + $0x150] sm:$0xff]
    %v2558 = vld [vmem:[#allocation10 + $0x158] sm:$0xff]
    %v2559 = vld [vmem:[#allocation10 + $0x160] sm:$0xff]
    %v2560 = vld [vmem:[#allocation10 + $0x168] sm:$0xff]
    %v2561 = vld [vmem:[#allocation10 + $0x170] sm:$0xff]
    %v2562 = vld [vmem:[#allocation10 + $0x178] sm:$0xff]
    %v2563 = vld [vmem:[#allocation10 + $0x180] sm:$0xff]
    %v2564 = vld [vmem:[#allocation10 + $0x188] sm:$0xff]
    %v2565 = vld [vmem:[#allocation10 + $0x190] sm:$0xff]
    %v2566 = vld [vmem:[#allocation10 + $0x198] sm:$0xff]
    %v2567 = vld [vmem:[#allocation10 + $0x1a0] sm:$0xff]
    %v2568 = vld [vmem:[#allocation10 + $0x1a8] sm:$0xff]
    %v2569 = vld [vmem:[#allocation10 + $0x1b0] sm:$0xff]
    %v2570 = vld [vmem:[#allocation10 + $0x1b8] sm:$0xff]
    %v2571 = vld [vmem:[#allocation10 + $0x1c0] sm:$0xff]
    %v2572 = vld [vmem:[#allocation10 + $0x1c8] sm:$0xff]
    %v2573 = vld [vmem:[#allocation10 + $0x1d0] sm:$0xff]
    %v2574 = vld [vmem:[#allocation10 + $0x1d8] sm:$0xff]
    %v2575 = vld [vmem:[#allocation10 + $0x1e0] sm:$0xff]
    %v2576 = vld [vmem:[#allocation10 + $0x1e8] sm:$0xff]
    %v2577 = vld [vmem:[#allocation10 + $0x1f0] sm:$0xff]
    %v2578 = vld [vmem:[#allocation10 + $0x1f8] sm:$0xff]
    %v2579 = vld [vmem:[#allocation10 + $0x200] sm:$0xff]
    %v2580 = vld [vmem:[#allocation10 + $0x208] sm:$0xff]
    %v2581 = vld [vmem:[#allocation10 + $0x210] sm:$0xff]
    %v2582 = vld [vmem:[#allocation10 + $0x218] sm:$0xff]
    %v2583 = vld [vmem:[#allocation10 + $0x220] sm:$0xff]
    %v2584 = vld [vmem:[#allocation10 + $0x228] sm:$0xff]
    %v2585 = vld [vmem:[#allocation10 + $0x230] sm:$0xff]
    %v2586 = vld [vmem:[#allocation10 + $0x238] sm:$0xff]
    %v2587 = vld [vmem:[#allocation10 + $0x240] sm:$0xff]
    %v2588 = vld [vmem:[#allocation10 + $0x248] sm:$0xff]
    %v2589 = vld [vmem:[#allocation10 + $0x250] sm:$0xff]
    %v2590 = vld [vmem:[#allocation10 + $0x258] sm:$0xff]
    %v2591 = vld [vmem:[#allocation10 + $0x260] sm:$0xff]
    %v2592 = vld [vmem:[#allocation10 + $0x268] sm:$0xff]
    %v2593 = vld [vmem:[#allocation10 + $0x270] sm:$0xff]
    %v2594 = vld [vmem:[#allocation10 + $0x278] sm:$0xff]
    %v2595 = vld [vmem:[#allocation10 + $0x280] sm:$0xff]
    %v2596 = vld [vmem:[#allocation10 + $0x288] sm:$0xff]
    %v2597 = vld [vmem:[#allocation10 + $0x290] sm:$0xff]
    %v2598 = vld [vmem:[#allocation10 + $0x298] sm:$0xff]
    %v2599 = vld [vmem:[#allocation10 + $0x2a0] sm:$0xff]
    %v2600 = vld [vmem:[#allocation10 + $0x2a8] sm:$0xff]
    %v2601 = vld [vmem:[#allocation10 + $0x2b0] sm:$0xff]
    %v2602 = vld [vmem:[#allocation10 + $0x2b8] sm:$0xff]
    %v2603 = vld [vmem:[#allocation10 + $0x2c0] sm:$0xff]
    %v2604 = vld [vmem:[#allocation10 + $0x2c8] sm:$0xff]
    %v2605 = vld [vmem:[#allocation10 + $0x2d0] sm:$0xff]
    %v2606 = vld [vmem:[#allocation10 + $0x2d8] sm:$0xff]
    %v2607 = vld [vmem:[#allocation10 + $0x2e0] sm:$0xff]
    %v2608 = vld [vmem:[#allocation10 + $0x2e8] sm:$0xff]
    %v2609 = vld [vmem:[#allocation10 + $0x2f0] sm:$0xff]
    %v2610 = vld [vmem:[#allocation10 + $0x2f8] sm:$0xff]
    %v2611 = vld [vmem:[#allocation10 + $0x300] sm:$0xff]
    %v2612 = vld [vmem:[#allocation10 + $0x308] sm:$0xff]
    %v2613 = vld [vmem:[#allocation10 + $0x310] sm:$0xff]
    %v2614 = vld [vmem:[#allocation10 + $0x318] sm:$0xff]
    %v2615 = vld [vmem:[#allocation10 + $0x320] sm:$0xff]
    %v2616 = vld [vmem:[#allocation10 + $0x328] sm:$0xff]
    %v2617 = vld [vmem:[#allocation10 + $0x330] sm:$0xff]
    %v2618 = vld [vmem:[#allocation10 + $0x338] sm:$0xff]
    %v2619 = vld [vmem:[#allocation10 + $0x340] sm:$0xff]
    %v2620 = vld [vmem:[#allocation10 + $0x348] sm:$0xff]
    %v2621 = vld [vmem:[#allocation10 + $0x350] sm:$0xff]
    %v2622 = vld [vmem:[#allocation10 + $0x358] sm:$0xff]
    %v2623 = vld [vmem:[#allocation10 + $0x360] sm:$0xff]
    %v2624 = vld [vmem:[#allocation10 + $0x368] sm:$0xff]
    %v2625 = vld [vmem:[#allocation10 + $0x370] sm:$0xff]
    %v2626 = vld [vmem:[#allocation10 + $0x378] sm:$0xff]
    %v2627 = vld [vmem:[#allocation10 + $0x380] sm:$0xff]
    %v2628 = vld [vmem:[#allocation10 + $0x388] sm:$0xff]
    %v2629 = vld [vmem:[#allocation10 + $0x390] sm:$0xff]
    %v2630 = vld [vmem:[#allocation10 + $0x398] sm:$0xff]
    %v2631 = vld [vmem:[#allocation10 + $0x3a0] sm:$0xff]
    %v2632 = vld [vmem:[#allocation10 + $0x3a8] sm:$0xff]
    %v2633 = vld [vmem:[#allocation10 + $0x3b0] sm:$0xff]
    %v2634 = vld [vmem:[#allocation10 + $0x3b8] sm:$0xff]
    %v2635 = vld [vmem:[#allocation10 + $0x3c0] sm:$0xff]
    %v2636 = vld [vmem:[#allocation10 + $0x3c8] sm:$0xff]
    %v2637 = vld [vmem:[#allocation10 + $0x3d0] sm:$0xff]
    %v2638 = vld [vmem:[#allocation10 + $0x3d8] sm:$0xff]
    %v2639 = vld [vmem:[#allocation10 + $0x3e0] sm:$0xff]
    %v2640 = vld [vmem:[#allocation10 + $0x3e8] sm:$0xff]
    %v2641 = vld [vmem:[#allocation10 + $0x3f0] sm:$0xff]
    %v2642 = vld [vmem:[#allocation10 + $0x3f8] sm:$0xff]
    %v2643 = vld [vmem:[#allocation3] sm:$0xff]
    %v2644 = vld [vmem:[#allocation3 + $0x8] sm:$0xff]
    %v2645 = vld [vmem:[#allocation3 + $0x10] sm:$0xff]
    %v2646 = vld [vmem:[#allocation3 + $0x18] sm:$0xff]
    %v2647 = vld [vmem:[#allocation3 + $0x20] sm:$0xff]
    %v2648 = vld [vmem:[#allocation3 + $0x28] sm:$0xff]
    %v2649 = vld [vmem:[#allocation3 + $0x30] sm:$0xff]
    %v2650 = vld [vmem:[#allocation3 + $0x38] sm:$0xff]
    %v2651 = vld [vmem:[#allocation3 + $0x40] sm:$0xff]
    %v2652 = vld [vmem:[#allocation3 + $0x48] sm:$0xff]
    %v2653 = vld [vmem:[#allocation3 + $0x50] sm:$0xff]
    %v2654 = vld [vmem:[#allocation3 + $0x58] sm:$0xff]
    %v2655 = vld [vmem:[#allocation3 + $0x60] sm:$0xff]
    %v2656 = vld [vmem:[#allocation3 + $0x68] sm:$0xff]
    %v2657 = vld [vmem:[#allocation3 + $0x70] sm:$0xff]
    %v2658 = vld [vmem:[#allocation3 + $0x78] sm:$0xff]
    %v2659 = vld [vmem:[#allocation11] sm:$0xff]
    %v2660 = vld [vmem:[#allocation11 + $0x8] sm:$0xff]
    %v2661 = vld [vmem:[#allocation11 + $0x10] sm:$0xff]
    %v2662 = vld [vmem:[#allocation11 + $0x18] sm:$0xff]
    %v2663 = vld [vmem:[#allocation11 + $0x20] sm:$0xff]
    %v2664 = vld [vmem:[#allocation11 + $0x28] sm:$0xff]
    %v2665 = vld [vmem:[#allocation11 + $0x30] sm:$0xff]
    %v2666 = vld [vmem:[#allocation11 + $0x38] sm:$0xff]
    %v2667 = vld [vmem:[#allocation11 + $0x40] sm:$0xff]
    %v2668 = vld [vmem:[#allocation11 + $0x48] sm:$0xff]
    %v2669 = vld [vmem:[#allocation11 + $0x50] sm:$0xff]
    %v2670 = vld [vmem:[#allocation11 + $0x58] sm:$0xff]
    %v2671 = vld [vmem:[#allocation11 + $0x60] sm:$0xff]
    %v2672 = vld [vmem:[#allocation11 + $0x68] sm:$0xff]
    %v2673 = vld [vmem:[#allocation11 + $0x70] sm:$0xff]
    %v2674 = vld [vmem:[#allocation11 + $0x78] sm:$0xff]
    %v2675 = vld [vmem:[#allocation11 + $0x80] sm:$0xff]
    %v2676 = vld [vmem:[#allocation11 + $0x88] sm:$0xff]
    %v2677 = vld [vmem:[#allocation11 + $0x90] sm:$0xff]
    %v2678 = vld [vmem:[#allocation11 + $0x98] sm:$0xff]
    %v2679 = vld [vmem:[#allocation11 + $0xa0] sm:$0xff]
    %v2680 = vld [vmem:[#allocation11 + $0xa8] sm:$0xff]
    %v2681 = vld [vmem:[#allocation11 + $0xb0] sm:$0xff]
    %v2682 = vld [vmem:[#allocation11 + $0xb8] sm:$0xff]
    %v2683 = vld [vmem:[#allocation11 + $0xc0] sm:$0xff]
    %v2684 = vld [vmem:[#allocation11 + $0xc8] sm:$0xff]
    %v2685 = vld [vmem:[#allocation11 + $0xd0] sm:$0xff]
    %v2686 = vld [vmem:[#allocation11 + $0xd8] sm:$0xff]
    %v2687 = vld [vmem:[#allocation11 + $0xe0] sm:$0xff]
    %v2688 = vld [vmem:[#allocation11 + $0xe8] sm:$0xff]
    %v2689 = vld [vmem:[#allocation11 + $0xf0] sm:$0xff]
    %v2690 = vld [vmem:[#allocation11 + $0xf8] sm:$0xff]
    %v2691 = vld [vmem:[#allocation11 + $0x100] sm:$0xff]
    %v2692 = vld [vmem:[#allocation11 + $0x108] sm:$0xff]
    %v2693 = vld [vmem:[#allocation11 + $0x110] sm:$0xff]
    %v2694 = vld [vmem:[#allocation11 + $0x118] sm:$0xff]
    %v2695 = vld [vmem:[#allocation11 + $0x120] sm:$0xff]
    %v2696 = vld [vmem:[#allocation11 + $0x128] sm:$0xff]
    %v2697 = vld [vmem:[#allocation11 + $0x130] sm:$0xff]
    %v2698 = vld [vmem:[#allocation11 + $0x138] sm:$0xff]
    %v2699 = vld [vmem:[#allocation11 + $0x140] sm:$0xff]
    %v2700 = vld [vmem:[#allocation11 + $0x148] sm:$0xff]
    %v2701 = vld [vmem:[#allocation11 + $0x150] sm:$0xff]
    %v2702 = vld [vmem:[#allocation11 + $0x158] sm:$0xff]
    %v2703 = vld [vmem:[#allocation11 + $0x160] sm:$0xff]
    %v2704 = vld [vmem:[#allocation11 + $0x168] sm:$0xff]
    %v2705 = vld [vmem:[#allocation11 + $0x170] sm:$0xff]
    %v2706 = vld [vmem:[#allocation11 + $0x178] sm:$0xff]
    %v2707 = vld [vmem:[#allocation11 + $0x180] sm:$0xff]
    %v2708 = vld [vmem:[#allocation11 + $0x188] sm:$0xff]
    %v2709 = vld [vmem:[#allocation11 + $0x190] sm:$0xff]
    %v2710 = vld [vmem:[#allocation11 + $0x198] sm:$0xff]
    %v2711 = vld [vmem:[#allocation11 + $0x1a0] sm:$0xff]
    %v2712 = vld [vmem:[#allocation11 + $0x1a8] sm:$0xff]
    %v2713 = vld [vmem:[#allocation11 + $0x1b0] sm:$0xff]
    %v2714 = vld [vmem:[#allocation11 + $0x1b8] sm:$0xff]
    %v2715 = vld [vmem:[#allocation11 + $0x1c0] sm:$0xff]
    %v2716 = vld [vmem:[#allocation11 + $0x1c8] sm:$0xff]
    %v2717 = vld [vmem:[#allocation11 + $0x1d0] sm:$0xff]
    %v2718 = vld [vmem:[#allocation11 + $0x1d8] sm:$0xff]
    %v2719 = vld [vmem:[#allocation11 + $0x1e0] sm:$0xff]
    %v2720 = vld [vmem:[#allocation11 + $0x1e8] sm:$0xff]
    %v2721 = vld [vmem:[#allocation11 + $0x1f0] sm:$0xff]
    %v2722 = vld [vmem:[#allocation11 + $0x1f8] sm:$0xff]
    %v2723 = vld [vmem:[#allocation11 + $0x200] sm:$0xff]
    %v2724 = vld [vmem:[#allocation11 + $0x208] sm:$0xff]
    %v2725 = vld [vmem:[#allocation11 + $0x210] sm:$0xff]
    %v2726 = vld [vmem:[#allocation11 + $0x218] sm:$0xff]
    %v2727 = vld [vmem:[#allocation11 + $0x220] sm:$0xff]
    %v2728 = vld [vmem:[#allocation11 + $0x228] sm:$0xff]
    %v2729 = vld [vmem:[#allocation11 + $0x230] sm:$0xff]
    %v2730 = vld [vmem:[#allocation11 + $0x238] sm:$0xff]
    %v2731 = vld [vmem:[#allocation11 + $0x240] sm:$0xff]
    %v2732 = vld [vmem:[#allocation11 + $0x248] sm:$0xff]
    %v2733 = vld [vmem:[#allocation11 + $0x250] sm:$0xff]
    %v2734 = vld [vmem:[#allocation11 + $0x258] sm:$0xff]
    %v2735 = vld [vmem:[#allocation11 + $0x260] sm:$0xff]
    %v2736 = vld [vmem:[#allocation11 + $0x268] sm:$0xff]
    %v2737 = vld [vmem:[#allocation11 + $0x270] sm:$0xff]
    %v2738 = vld [vmem:[#allocation11 + $0x278] sm:$0xff]
    %v2739 = vld [vmem:[#allocation11 + $0x280] sm:$0xff]
    %v2740 = vld [vmem:[#allocation11 + $0x288] sm:$0xff]
    %v2741 = vld [vmem:[#allocation11 + $0x290] sm:$0xff]
    %v2742 = vld [vmem:[#allocation11 + $0x298] sm:$0xff]
    %v2743 = vld [vmem:[#allocation11 + $0x2a0] sm:$0xff]
    %v2744 = vld [vmem:[#allocation11 + $0x2a8] sm:$0xff]
    %v2745 = vld [vmem:[#allocation11 + $0x2b0] sm:$0xff]
    %v2746 = vld [vmem:[#allocation11 + $0x2b8] sm:$0xff]
    %v2747 = vld [vmem:[#allocation11 + $0x2c0] sm:$0xff]
    %v2748 = vld [vmem:[#allocation11 + $0x2c8] sm:$0xff]
    %v2749 = vld [vmem:[#allocation11 + $0x2d0] sm:$0xff]
    %v2750 = vld [vmem:[#allocation11 + $0x2d8] sm:$0xff]
    %v2751 = vld [vmem:[#allocation11 + $0x2e0] sm:$0xff]
    %v2752 = vld [vmem:[#allocation11 + $0x2e8] sm:$0xff]
    %v2753 = vld [vmem:[#allocation11 + $0x2f0] sm:$0xff]
    %v2754 = vld [vmem:[#allocation11 + $0x2f8] sm:$0xff]
    %v2755 = vld [vmem:[#allocation11 + $0x300] sm:$0xff]
    %v2756 = vld [vmem:[#allocation11 + $0x308] sm:$0xff]
    %v2757 = vld [vmem:[#allocation11 + $0x310] sm:$0xff]
    %v2758 = vld [vmem:[#allocation11 + $0x318] sm:$0xff]
    %v2759 = vld [vmem:[#allocation11 + $0x320] sm:$0xff]
    %v2760 = vld [vmem:[#allocation11 + $0x328] sm:$0xff]
    %v2761 = vld [vmem:[#allocation11 + $0x330] sm:$0xff]
    %v2762 = vld [vmem:[#allocation11 + $0x338] sm:$0xff]
    %v2763 = vld [vmem:[#allocation11 + $0x340] sm:$0xff]
    %v2764 = vld [vmem:[#allocation11 + $0x348] sm:$0xff]
    %v2765 = vld [vmem:[#allocation11 + $0x350] sm:$0xff]
    %v2766 = vld [vmem:[#allocation11 + $0x358] sm:$0xff]
    %v2767 = vld [vmem:[#allocation11 + $0x360] sm:$0xff]
    %v2768 = vld [vmem:[#allocation11 + $0x368] sm:$0xff]
    %v2769 = vld [vmem:[#allocation11 + $0x370] sm:$0xff]
    %v2770 = vld [vmem:[#allocation11 + $0x378] sm:$0xff]
    %v2771 = vld [vmem:[#allocation11 + $0x380] sm:$0xff]
    %v2772 = vld [vmem:[#allocation11 + $0x388] sm:$0xff]
    %v2773 = vld [vmem:[#allocation11 + $0x390] sm:$0xff]
    %v2774 = vld [vmem:[#allocation11 + $0x398] sm:$0xff]
    %v2775 = vld [vmem:[#allocation11 + $0x3a0] sm:$0xff]
    %v2776 = vld [vmem:[#allocation11 + $0x3a8] sm:$0xff]
    %v2777 = vld [vmem:[#allocation11 + $0x3b0] sm:$0xff]
    %v2778 = vld [vmem:[#allocation11 + $0x3b8] sm:$0xff]
    %v2779 = vld [vmem:[#allocation11 + $0x3c0] sm:$0xff]
    %v2780 = vld [vmem:[#allocation11 + $0x3c8] sm:$0xff]
    %v2781 = vld [vmem:[#allocation11 + $0x3d0] sm:$0xff]
    %v2782 = vld [vmem:[#allocation11 + $0x3d8] sm:$0xff]
    %v2783 = vld [vmem:[#allocation11 + $0x3e0] sm:$0xff]
    %v2784 = vld [vmem:[#allocation11 + $0x3e8] sm:$0xff]
    %v2785 = vld [vmem:[#allocation11 + $0x3f0] sm:$0xff]
    %v2786 = vld [vmem:[#allocation11 + $0x3f8] sm:$0xff]
    %v2803 = vunpack.c.l.b16 %v2643
    %v2804 = vunpack.c.h.b16 %v2643
    %v2805 = vunpack.c.l.b16 %v2644
    %v2806 = vunpack.c.h.b16 %v2644
    %v2807 = vunpack.c.l.b16 %v2645
    %v2808 = vunpack.c.h.b16 %v2645
    %v2809 = vunpack.c.l.b16 %v2646
    %v2810 = vunpack.c.h.b16 %v2646
    %v2811 = vunpack.c.l.b16 %v2647
    %v2812 = vunpack.c.h.b16 %v2647
    %v2813 = vunpack.c.l.b16 %v2648
    %v2814 = vunpack.c.h.b16 %v2648
    %v2815 = vunpack.c.l.b16 %v2649
    %v2816 = vunpack.c.h.b16 %v2649
    %v2817 = vunpack.c.l.b16 %v2650
    %v2818 = vunpack.c.h.b16 %v2650
    %v2819 = vunpack.c.l.b16 %v2651
    %v2820 = vunpack.c.h.b16 %v2651
    %v2821 = vunpack.c.l.b16 %v2652
    %v2822 = vunpack.c.h.b16 %v2652
    %v2823 = vunpack.c.l.b16 %v2653
    %v2824 = vunpack.c.h.b16 %v2653
    %v2825 = vunpack.c.l.b16 %v2654
    %v2826 = vunpack.c.h.b16 %v2654
    %v2827 = vunpack.c.l.b16 %v2655
    %v2828 = vunpack.c.h.b16 %v2655
    %v2829 = vunpack.c.l.b16 %v2656
    %v2830 = vunpack.c.h.b16 %v2656
    %v2831 = vunpack.c.l.b16 %v2657
    %v2832 = vunpack.c.h.b16 %v2657
    %v2833 = vunpack.c.l.b16 %v2658
    %v2834 = vunpack.c.h.b16 %v2658
    %v2835 = vpack.c.b16 %v2805, %v2803
    %v2836 = vpack.c.b16 %v2806, %v2804
    %v2837 = vpack.c.b16 %v2809, %v2807
    %v2838 = vpack.c.b16 %v2810, %v2808
    %v2839 = vpack.c.b16 %v2813, %v2811
    %v2840 = vpack.c.b16 %v2814, %v2812
    %v2841 = vpack.c.b16 %v2817, %v2815
    %v2842 = vpack.c.b16 %v2818, %v2816
    %v2843 = vpack.c.b16 %v2821, %v2819
    %v2844 = vpack.c.b16 %v2822, %v2820
    %v2845 = vpack.c.b16 %v2825, %v2823
    %v2846 = vpack.c.b16 %v2826, %v2824
    %v2847 = vpack.c.b16 %v2829, %v2827
    %v2848 = vpack.c.b16 %v2830, %v2828
    %v2849 = vpack.c.b16 %v2833, %v2831
    %v2850 = vpack.c.b16 %v2834, %v2832
    %v2995 = vunpack.c.l.b16 %v2659
    %v2996 = vunpack.c.h.b16 %v2659
    %v2997 = vunpack.c.l.b16 %v2660
    %v2998 = vunpack.c.h.b16 %v2660
    %v2999 = vunpack.c.l.b16 %v2661
    %v3000 = vunpack.c.h.b16 %v2661
    %v3001 = vunpack.c.l.b16 %v2662
    %v3002 = vunpack.c.h.b16 %v2662
    %v3003 = vunpack.c.l.b16 %v2663
    %v3004 = vunpack.c.h.b16 %v2663
    %v3005 = vunpack.c.l.b16 %v2664
    %v3006 = vunpack.c.h.b16 %v2664
    %v3007 = vunpack.c.l.b16 %v2665
    %v3008 = vunpack.c.h.b16 %v2665
    %v3009 = vunpack.c.l.b16 %v2666
    %v3010 = vunpack.c.h.b16 %v2666
    %v3011 = vunpack.c.l.b16 %v2667
    %v3012 = vunpack.c.h.b16 %v2667
    %v3013 = vunpack.c.l.b16 %v2668
    %v3014 = vunpack.c.h.b16 %v2668
    %v3015 = vunpack.c.l.b16 %v2669
    %v3016 = vunpack.c.h.b16 %v2669
    %v3017 = vunpack.c.l.b16 %v2670
    %v3018 = vunpack.c.h.b16 %v2670
    %v3019 = vunpack.c.l.b16 %v2671
    %v3020 = vunpack.c.h.b16 %v2671
    %v3021 = vunpack.c.l.b16 %v2672
    %v3022 = vunpack.c.h.b16 %v2672
    %v3023 = vunpack.c.l.b16 %v2673
    %v3024 = vunpack.c.h.b16 %v2673
    %v3025 = vunpack.c.l.b16 %v2674
    %v3026 = vunpack.c.h.b16 %v2674
    %v3027 = vunpack.c.l.b16 %v2675
    %v3028 = vunpack.c.h.b16 %v2675
    %v3029 = vunpack.c.l.b16 %v2676
    %v3030 = vunpack.c.h.b16 %v2676
    %v3031 = vunpack.c.l.b16 %v2677
    %v3032 = vunpack.c.h.b16 %v2677
    %v3033 = vunpack.c.l.b16 %v2678
    %v3034 = vunpack.c.h.b16 %v2678
    %v3035 = vunpack.c.l.b16 %v2679
    %v3036 = vunpack.c.h.b16 %v2679
    %v3037 = vunpack.c.l.b16 %v2680
    %v3038 = vunpack.c.h.b16 %v2680
    %v3039 = vunpack.c.l.b16 %v2681
    %v3040 = vunpack.c.h.b16 %v2681
    %v3041 = vunpack.c.l.b16 %v2682
    %v3042 = vunpack.c.h.b16 %v2682
    %v3043 = vunpack.c.l.b16 %v2683
    %v3044 = vunpack.c.h.b16 %v2683
    %v3045 = vunpack.c.l.b16 %v2684
    %v3046 = vunpack.c.h.b16 %v2684
    %v3047 = vunpack.c.l.b16 %v2685
    %v3048 = vunpack.c.h.b16 %v2685
    %v3049 = vunpack.c.l.b16 %v2686
    %v3050 = vunpack.c.h.b16 %v2686
    %v3051 = vunpack.c.l.b16 %v2687
    %v3052 = vunpack.c.h.b16 %v2687
    %v3053 = vunpack.c.l.b16 %v2688
    %v3054 = vunpack.c.h.b16 %v2688
    %v3055 = vunpack.c.l.b16 %v2689
    %v3056 = vunpack.c.h.b16 %v2689
    %v3057 = vunpack.c.l.b16 %v2690
    %v3058 = vunpack.c.h.b16 %v2690
    %v3059 = vunpack.c.l.b16 %v2691
    %v3060 = vunpack.c.h.b16 %v2691
    %v3061 = vunpack.c.l.b16 %v2692
    %v3062 = vunpack.c.h.b16 %v2692
    %v3063 = vunpack.c.l.b16 %v2693
    %v3064 = vunpack.c.h.b16 %v2693
    %v3065 = vunpack.c.l.b16 %v2694
    %v3066 = vunpack.c.h.b16 %v2694
    %v3067 = vunpack.c.l.b16 %v2695
    %v3068 = vunpack.c.h.b16 %v2695
    %v3069 = vunpack.c.l.b16 %v2696
    %v3070 = vunpack.c.h.b16 %v2696
    %v3071 = vunpack.c.l.b16 %v2697
    %v3072 = vunpack.c.h.b16 %v2697
    %v3073 = vunpack.c.l.b16 %v2698
    %v3074 = vunpack.c.h.b16 %v2698
    %v3075 = vunpack.c.l.b16 %v2699
    %v3076 = vunpack.c.h.b16 %v2699
    %v3077 = vunpack.c.l.b16 %v2700
    %v3078 = vunpack.c.h.b16 %v2700
    %v3079 = vunpack.c.l.b16 %v2701
    %v3080 = vunpack.c.h.b16 %v2701
    %v3081 = vunpack.c.l.b16 %v2702
    %v3082 = vunpack.c.h.b16 %v2702
    %v3083 = vunpack.c.l.b16 %v2703
    %v3084 = vunpack.c.h.b16 %v2703
    %v3085 = vunpack.c.l.b16 %v2704
    %v3086 = vunpack.c.h.b16 %v2704
    %v3087 = vunpack.c.l.b16 %v2705
    %v3088 = vunpack.c.h.b16 %v2705
    %v3089 = vunpack.c.l.b16 %v2706
    %v3090 = vunpack.c.h.b16 %v2706
    %v3091 = vunpack.c.l.b16 %v2707
    %v3092 = vunpack.c.h.b16 %v2707
    %v3093 = vunpack.c.l.b16 %v2708
    %v3094 = vunpack.c.h.b16 %v2708
    %v3095 = vunpack.c.l.b16 %v2709
    %v3096 = vunpack.c.h.b16 %v2709
    %v3097 = vunpack.c.l.b16 %v2710
    %v3098 = vunpack.c.h.b16 %v2710
    %v3099 = vunpack.c.l.b16 %v2711
    %v3100 = vunpack.c.h.b16 %v2711
    %v3101 = vunpack.c.l.b16 %v2712
    %v3102 = vunpack.c.h.b16 %v2712
    %v3103 = vunpack.c.l.b16 %v2713
    %v3104 = vunpack.c.h.b16 %v2713
    %v3105 = vunpack.c.l.b16 %v2714
    %v3106 = vunpack.c.h.b16 %v2714
    %v3107 = vunpack.c.l.b16 %v2715
    %v3108 = vunpack.c.h.b16 %v2715
    %v3109 = vunpack.c.l.b16 %v2716
    %v3110 = vunpack.c.h.b16 %v2716
    %v3111 = vunpack.c.l.b16 %v2717
    %v3112 = vunpack.c.h.b16 %v2717
    %v3113 = vunpack.c.l.b16 %v2718
    %v3114 = vunpack.c.h.b16 %v2718
    %v3115 = vunpack.c.l.b16 %v2719
    %v3116 = vunpack.c.h.b16 %v2719
    %v3117 = vunpack.c.l.b16 %v2720
    %v3118 = vunpack.c.h.b16 %v2720
    %v3119 = vunpack.c.l.b16 %v2721
    %v3120 = vunpack.c.h.b16 %v2721
    %v3121 = vunpack.c.l.b16 %v2722
    %v3122 = vunpack.c.h.b16 %v2722
    %v3123 = vunpack.c.l.b16 %v2723
    %v3124 = vunpack.c.h.b16 %v2723
    %v3125 = vunpack.c.l.b16 %v2724
    %v3126 = vunpack.c.h.b16 %v2724
    %v3127 = vunpack.c.l.b16 %v2725
    %v3128 = vunpack.c.h.b16 %v2725
    %v3129 = vunpack.c.l.b16 %v2726
    %v3130 = vunpack.c.h.b16 %v2726
    %v3131 = vunpack.c.l.b16 %v2727
    %v3132 = vunpack.c.h.b16 %v2727
    %v3133 = vunpack.c.l.b16 %v2728
    %v3134 = vunpack.c.h.b16 %v2728
    %v3135 = vunpack.c.l.b16 %v2729
    %v3136 = vunpack.c.h.b16 %v2729
    %v3137 = vunpack.c.l.b16 %v2730
    %v3138 = vunpack.c.h.b16 %v2730
    %v3139 = vunpack.c.l.b16 %v2731
    %v3140 = vunpack.c.h.b16 %v2731
    %v3141 = vunpack.c.l.b16 %v2732
    %v3142 = vunpack.c.h.b16 %v2732
    %v3143 = vunpack.c.l.b16 %v2733
    %v3144 = vunpack.c.h.b16 %v2733
    %v3145 = vunpack.c.l.b16 %v2734
    %v3146 = vunpack.c.h.b16 %v2734
    %v3147 = vunpack.c.l.b16 %v2735
    %v3148 = vunpack.c.h.b16 %v2735
    %v3149 = vunpack.c.l.b16 %v2736
    %v3150 = vunpack.c.h.b16 %v2736
    %v3151 = vunpack.c.l.b16 %v2737
    %v3152 = vunpack.c.h.b16 %v2737
    %v3153 = vunpack.c.l.b16 %v2738
    %v3154 = vunpack.c.h.b16 %v2738
    %v3155 = vunpack.c.l.b16 %v2739
    %v3156 = vunpack.c.h.b16 %v2739
    %v3157 = vunpack.c.l.b16 %v2740
    %v3158 = vunpack.c.h.b16 %v2740
    %v3159 = vunpack.c.l.b16 %v2741
    %v3160 = vunpack.c.h.b16 %v2741
    %v3161 = vunpack.c.l.b16 %v2742
    %v3162 = vunpack.c.h.b16 %v2742
    %v3163 = vunpack.c.l.b16 %v2743
    %v3164 = vunpack.c.h.b16 %v2743
    %v3165 = vunpack.c.l.b16 %v2744
    %v3166 = vunpack.c.h.b16 %v2744
    %v3167 = vunpack.c.l.b16 %v2745
    %v3168 = vunpack.c.h.b16 %v2745
    %v3169 = vunpack.c.l.b16 %v2746
    %v3170 = vunpack.c.h.b16 %v2746
    %v3171 = vunpack.c.l.b16 %v2747
    %v3172 = vunpack.c.h.b16 %v2747
    %v3173 = vunpack.c.l.b16 %v2748
    %v3174 = vunpack.c.h.b16 %v2748
    %v3175 = vunpack.c.l.b16 %v2749
    %v3176 = vunpack.c.h.b16 %v2749
    %v3177 = vunpack.c.l.b16 %v2750
    %v3178 = vunpack.c.h.b16 %v2750
    %v3179 = vunpack.c.l.b16 %v2751
    %v3180 = vunpack.c.h.b16 %v2751
    %v3181 = vunpack.c.l.b16 %v2752
    %v3182 = vunpack.c.h.b16 %v2752
    %v3183 = vunpack.c.l.b16 %v2753
    %v3184 = vunpack.c.h.b16 %v2753
    %v3185 = vunpack.c.l.b16 %v2754
    %v3186 = vunpack.c.h.b16 %v2754
    %v3187 = vunpack.c.l.b16 %v2755
    %v3188 = vunpack.c.h.b16 %v2755
    %v3189 = vunpack.c.l.b16 %v2756
    %v3190 = vunpack.c.h.b16 %v2756
    %v3191 = vunpack.c.l.b16 %v2757
    %v3192 = vunpack.c.h.b16 %v2757
    %v3193 = vunpack.c.l.b16 %v2758
    %v3194 = vunpack.c.h.b16 %v2758
    %v3195 = vunpack.c.l.b16 %v2759
    %v3196 = vunpack.c.h.b16 %v2759
    %v3197 = vunpack.c.l.b16 %v2760
    %v3198 = vunpack.c.h.b16 %v2760
    %v3199 = vunpack.c.l.b16 %v2761
    %v3200 = vunpack.c.h.b16 %v2761
    %v3201 = vunpack.c.l.b16 %v2762
    %v3202 = vunpack.c.h.b16 %v2762
    %v3203 = vunpack.c.l.b16 %v2763
    %v3204 = vunpack.c.h.b16 %v2763
    %v3205 = vunpack.c.l.b16 %v2764
    %v3206 = vunpack.c.h.b16 %v2764
    %v3207 = vunpack.c.l.b16 %v2765
    %v3208 = vunpack.c.h.b16 %v2765
    %v3209 = vunpack.c.l.b16 %v2766
    %v3210 = vunpack.c.h.b16 %v2766
    %v3211 = vunpack.c.l.b16 %v2767
    %v3212 = vunpack.c.h.b16 %v2767
    %v3213 = vunpack.c.l.b16 %v2768
    %v3214 = vunpack.c.h.b16 %v2768
    %v3215 = vunpack.c.l.b16 %v2769
    %v3216 = vunpack.c.h.b16 %v2769
    %v3217 = vunpack.c.l.b16 %v2770
    %v3218 = vunpack.c.h.b16 %v2770
    %v3219 = vunpack.c.l.b16 %v2771
    %v3220 = vunpack.c.h.b16 %v2771
    %v3221 = vunpack.c.l.b16 %v2772
    %v3222 = vunpack.c.h.b16 %v2772
    %v3223 = vunpack.c.l.b16 %v2773
    %v3224 = vunpack.c.h.b16 %v2773
    %v3225 = vunpack.c.l.b16 %v2774
    %v3226 = vunpack.c.h.b16 %v2774
    %v3227 = vunpack.c.l.b16 %v2775
    %v3228 = vunpack.c.h.b16 %v2775
    %v3229 = vunpack.c.l.b16 %v2776
    %v3230 = vunpack.c.h.b16 %v2776
    %v3231 = vunpack.c.l.b16 %v2777
    %v3232 = vunpack.c.h.b16 %v2777
    %v3233 = vunpack.c.l.b16 %v2778
    %v3234 = vunpack.c.h.b16 %v2778
    %v3235 = vunpack.c.l.b16 %v2779
    %v3236 = vunpack.c.h.b16 %v2779
    %v3237 = vunpack.c.l.b16 %v2780
    %v3238 = vunpack.c.h.b16 %v2780
    %v3239 = vunpack.c.l.b16 %v2781
    %v3240 = vunpack.c.h.b16 %v2781
    %v3241 = vunpack.c.l.b16 %v2782
    %v3242 = vunpack.c.h.b16 %v2782
    %v3243 = vunpack.c.l.b16 %v2783
    %v3244 = vunpack.c.h.b16 %v2783
    %v3245 = vunpack.c.l.b16 %v2784
    %v3246 = vunpack.c.h.b16 %v2784
    %v3247 = vunpack.c.l.b16 %v2785
    %v3248 = vunpack.c.h.b16 %v2785
    %v3249 = vunpack.c.l.b16 %v2786
    %v3250 = vunpack.c.h.b16 %v2786
    %v3251 = vpack.c.b16 %v3003, %v2995
    %v3252 = vpack.c.b16 %v3004, %v2996
    %v3253 = vpack.c.b16 %v3005, %v2997
    %v3254 = vpack.c.b16 %v3006, %v2998
    %v3255 = vpack.c.b16 %v3007, %v2999
    %v3256 = vpack.c.b16 %v3008, %v3000
    %v3257 = vpack.c.b16 %v3009, %v3001
    %v3258 = vpack.c.b16 %v3010, %v3002
    %v3259 = vpack.c.b16 %v3019, %v3011
    %v3260 = vpack.c.b16 %v3020, %v3012
    %v3261 = vpack.c.b16 %v3021, %v3013
    %v3262 = vpack.c.b16 %v3022, %v3014
    %v3263 = vpack.c.b16 %v3023, %v3015
    %v3264 = vpack.c.b16 %v3024, %v3016
    %v3265 = vpack.c.b16 %v3025, %v3017
    %v3266 = vpack.c.b16 %v3026, %v3018
    %v3267 = vpack.c.b16 %v3035, %v3027
    %v3268 = vpack.c.b16 %v3036, %v3028
    %v3269 = vpack.c.b16 %v3037, %v3029
    %v3270 = vpack.c.b16 %v3038, %v3030
    %v3271 = vpack.c.b16 %v3039, %v3031
    %v3272 = vpack.c.b16 %v3040, %v3032
    %v3273 = vpack.c.b16 %v3041, %v3033
    %v3274 = vpack.c.b16 %v3042, %v3034
    %v3275 = vpack.c.b16 %v3051, %v3043
    %v3276 = vpack.c.b16 %v3052, %v3044
    %v3277 = vpack.c.b16 %v3053, %v3045
    %v3278 = vpack.c.b16 %v3054, %v3046
    %v3279 = vpack.c.b16 %v3055, %v3047
    %v3280 = vpack.c.b16 %v3056, %v3048
    %v3281 = vpack.c.b16 %v3057, %v3049
    %v3282 = vpack.c.b16 %v3058, %v3050
    %v3283 = vpack.c.b16 %v3067, %v3059
    %v3284 = vpack.c.b16 %v3068, %v3060
    %v3285 = vpack.c.b16 %v3069, %v3061
    %v3286 = vpack.c.b16 %v3070, %v3062
    %v3287 = vpack.c.b16 %v3071, %v3063
    %v3288 = vpack.c.b16 %v3072, %v3064
    %v3289 = vpack.c.b16 %v3073, %v3065
    %v3290 = vpack.c.b16 %v3074, %v3066
    %v3291 = vpack.c.b16 %v3083, %v3075
    %v3292 = vpack.c.b16 %v3084, %v3076
    %v3293 = vpack.c.b16 %v3085, %v3077
    %v3294 = vpack.c.b16 %v3086, %v3078
    %v3295 = vpack.c.b16 %v3087, %v3079
    %v3296 = vpack.c.b16 %v3088, %v3080
    %v3297 = vpack.c.b16 %v3089, %v3081
    %v3298 = vpack.c.b16 %v3090, %v3082
    %v3299 = vpack.c.b16 %v3099, %v3091
    %v3300 = vpack.c.b16 %v3100, %v3092
    %v3301 = vpack.c.b16 %v3101, %v3093
    %v3302 = vpack.c.b16 %v3102, %v3094
    %v3303 = vpack.c.b16 %v3103, %v3095
    %v3304 = vpack.c.b16 %v3104, %v3096
    %v3305 = vpack.c.b16 %v3105, %v3097
    %v3306 = vpack.c.b16 %v3106, %v3098
    %v3307 = vpack.c.b16 %v3115, %v3107
    %v3308 = vpack.c.b16 %v3116, %v3108
    %v3309 = vpack.c.b16 %v3117, %v3109
    %v3310 = vpack.c.b16 %v3118, %v3110
    %v3311 = vpack.c.b16 %v3119, %v3111
    %v3312 = vpack.c.b16 %v3120, %v3112
    %v3313 = vpack.c.b16 %v3121, %v3113
    %v3314 = vpack.c.b16 %v3122, %v3114
    %v3315 = vpack.c.b16 %v3131, %v3123
    %v3316 = vpack.c.b16 %v3132, %v3124
    %v3317 = vpack.c.b16 %v3133, %v3125
    %v3318 = vpack.c.b16 %v3134, %v3126
    %v3319 = vpack.c.b16 %v3135, %v3127
    %v3320 = vpack.c.b16 %v3136, %v3128
    %v3321 = vpack.c.b16 %v3137, %v3129
    %v3322 = vpack.c.b16 %v3138, %v3130
    %v3323 = vpack.c.b16 %v3147, %v3139
    %v3324 = vpack.c.b16 %v3148, %v3140
    %v3325 = vpack.c.b16 %v3149, %v3141
    %v3326 = vpack.c.b16 %v3150, %v3142
    %v3327 = vpack.c.b16 %v3151, %v3143
    %v3328 = vpack.c.b16 %v3152, %v3144
    %v3329 = vpack.c.b16 %v3153, %v3145
    %v3330 = vpack.c.b16 %v3154, %v3146
    %v3331 = vpack.c.b16 %v3163, %v3155
    %v3332 = vpack.c.b16 %v3164, %v3156
    %v3333 = vpack.c.b16 %v3165, %v3157
    %v3334 = vpack.c.b16 %v3166, %v3158
    %v3335 = vpack.c.b16 %v3167, %v3159
    %v3336 = vpack.c.b16 %v3168, %v3160
    %v3337 = vpack.c.b16 %v3169, %v3161
    %v3338 = vpack.c.b16 %v3170, %v3162
    %v3339 = vpack.c.b16 %v3179, %v3171
    %v3340 = vpack.c.b16 %v3180, %v3172
    %v3341 = vpack.c.b16 %v3181, %v3173
    %v3342 = vpack.c.b16 %v3182, %v3174
    %v3343 = vpack.c.b16 %v3183, %v3175
    %v3344 = vpack.c.b16 %v3184, %v3176
    %v3345 = vpack.c.b16 %v3185, %v3177
    %v3346 = vpack.c.b16 %v3186, %v3178
    %v3347 = vpack.c.b16 %v3195, %v3187
    %v3348 = vpack.c.b16 %v3196, %v3188
    %v3349 = vpack.c.b16 %v3197, %v3189
    %v3350 = vpack.c.b16 %v3198, %v3190
    %v3351 = vpack.c.b16 %v3199, %v3191
    %v3352 = vpack.c.b16 %v3200, %v3192
    %v3353 = vpack.c.b16 %v3201, %v3193
    %v3354 = vpack.c.b16 %v3202, %v3194
    %v3355 = vpack.c.b16 %v3211, %v3203
    %v3356 = vpack.c.b16 %v3212, %v3204
    %v3357 = vpack.c.b16 %v3213, %v3205
    %v3358 = vpack.c.b16 %v3214, %v3206
    %v3359 = vpack.c.b16 %v3215, %v3207
    %v3360 = vpack.c.b16 %v3216, %v3208
    %v3361 = vpack.c.b16 %v3217, %v3209
    %v3362 = vpack.c.b16 %v3218, %v3210
    %v3363 = vpack.c.b16 %v3227, %v3219
    %v3364 = vpack.c.b16 %v3228, %v3220
    %v3365 = vpack.c.b16 %v3229, %v3221
    %v3366 = vpack.c.b16 %v3230, %v3222
    %v3367 = vpack.c.b16 %v3231, %v3223
    %v3368 = vpack.c.b16 %v3232, %v3224
    %v3369 = vpack.c.b16 %v3233, %v3225
    %v3370 = vpack.c.b16 %v3234, %v3226
    %v3371 = vpack.c.b16 %v3243, %v3235
    %v3372 = vpack.c.b16 %v3244, %v3236
    %v3373 = vpack.c.b16 %v3245, %v3237
    %v3374 = vpack.c.b16 %v3246, %v3238
    %v3375 = vpack.c.b16 %v3247, %v3239
    %v3376 = vpack.c.b16 %v3248, %v3240
    %v3377 = vpack.c.b16 %v3249, %v3241
    %v3378 = vpack.c.b16 %v3250, %v3242
    %3507 = vmatprep.subr.bf16.mxu0 %v3252
    %3508 = vmatpush1.bf16.msra.mxu0 %v3251
    %3509 = vmatprep.subr.bf16.mxu0 %v3260
    %3510 = vmatpush1.bf16.msra.mxu0 %v3259
    %3511 = vmatprep.subr.bf16.mxu0 %v3268
    %3512 = vmatpush1.bf16.msra.mxu0 %v3267
    %3513 = vmatprep.subr.bf16.mxu0 %v3276
    %3514 = vmatpush1.bf16.msra.mxu0 %v3275
    %3515 = vmatprep.subr.bf16.mxu0 %v3284
    %3516 = vmatpush1.bf16.msra.mxu0 %v3283
    %3517 = vmatprep.subr.bf16.mxu0 %v3292
    %3518 = vmatpush1.bf16.msra.mxu0 %v3291
    %3519 = vmatprep.subr.bf16.mxu0 %v3300
    %3520 = vmatpush1.bf16.msra.mxu0 %v3299
    %3521 = vmatprep.subr.bf16.mxu0 %v3308
    %3522 = vmatpush1.bf16.msra.mxu0 %v3307
    %3523 = vmatprep.subr.bf16.mxu0 %v3316
    %3524 = vmatpush1.bf16.msra.mxu0 %v3315
    %3525 = vmatprep.subr.bf16.mxu0 %v3324
    %3526 = vmatpush1.bf16.msra.mxu0 %v3323
    %3527 = vmatprep.subr.bf16.mxu0 %v3332
    %3528 = vmatpush1.bf16.msra.mxu0 %v3331
    %3529 = vmatprep.subr.bf16.mxu0 %v3340
    %3530 = vmatpush1.bf16.msra.mxu0 %v3339
    %3531 = vmatprep.subr.bf16.mxu0 %v3348
    %3532 = vmatpush1.bf16.msra.mxu0 %v3347
    %3533 = vmatprep.subr.bf16.mxu0 %v3356
    %3534 = vmatpush1.bf16.msra.mxu0 %v3355
    %3535 = vmatprep.subr.bf16.mxu0 %v3364
    %3536 = vmatpush1.bf16.msra.mxu0 %v3363
    %3537 = vmatprep.subr.bf16.mxu0 %v3372
    %3538 = vmatpush1.bf16.msra.mxu0 %v3371
    %3539 = vmatprep.mubr.bf16.mxu0 %v2836
    %3540 = vmatmul.mubr.bf16.gmra.mrb[0].mxu0 %v2835
    %v3541 = vpop.f32.mrb[0].mxu0
    %v3542 = vadd.f32 0.0, %v3541
    %v3543 = vpop.f32.mrb[0].mxu0
    %v3544 = vadd.f32 0.0, %v3543
    %v3545 = vpop.f32.mrb[0].mxu0
    %v3546 = vadd.f32 0.0, %v3545
    %v3547 = vpop.f32.mrb[0].mxu0
    %v3548 = vadd.f32 0.0, %v3547
    %3549 = vmatprep.mubr.bf16.mxu0 %v2838
    %3550 = vmatmul.mubr.bf16.gmra.mrb[0].mxu0 %v2837
    %v3551 = vpop.f32.mrb[0].mxu0
    %v3552 = vadd.f32 0.0, %v3551
    %v3553 = vpop.f32.mrb[0].mxu0
    %v3554 = vadd.f32 0.0, %v3553
    %v3555 = vpop.f32.mrb[0].mxu0
    %v3556 = vadd.f32 0.0, %v3555
    %v3557 = vpop.f32.mrb[0].mxu0
    %v3558 = vadd.f32 0.0, %v3557
    %3559 = vmatprep.mubr.bf16.mxu0 %v2840
    %3560 = vmatmul.mubr.bf16.gmra.mrb[0].mxu0 %v2839
    %v3561 = vpop.f32.mrb[0].mxu0
    %v3562 = vadd.f32 0.0, %v3561
    %v3563 = vpop.f32.mrb[0].mxu0
    %v3564 = vadd.f32 0.0, %v3563
    %v3565 = vpop.f32.mrb[0].mxu0
    %v3566 = vadd.f32 0.0, %v3565
    %v3567 = vpop.f32.mrb[0].mxu0
    %v3568 = vadd.f32 0.0, %v3567
    %3569 = vmatprep.mubr.bf16.mxu0 %v2842
    %3570 = vmatmul.mubr.bf16.gmra.mrb[0].mxu0 %v2841
    %v3571 = vpop.f32.mrb[0].mxu0
    %v3572 = vadd.f32 0.0, %v3571
    %v3573 = vpop.f32.mrb[0].mxu0
    %v3574 = vadd.f32 0.0, %v3573
    %v3575 = vpop.f32.mrb[0].mxu0
    %v3576 = vadd.f32 0.0, %v3575
    %v3577 = vpop.f32.mrb[0].mxu0
    %v3578 = vadd.f32 0.0, %v3577
    %3579 = vmatprep.mubr.bf16.mxu0 %v2844
    %3580 = vmatmul.mubr.bf16.gmra.mrb[0].mxu0 %v2843
    %v3581 = vpop.f32.mrb[0].mxu0
    %v3582 = vadd.f32 0.0, %v3581
    %v3583 = vpop.f32.mrb[0].mxu0
    %v3584 = vadd.f32 0.0, %v3583
    %v3585 = vpop.f32.mrb[0].mxu0
    %v3586 = vadd.f32 0.0, %v3585
    %v3587 = vpop.f32.mrb[0].mxu0
    %v3588 = vadd.f32 0.0, %v3587
    %3589 = vmatprep.mubr.bf16.mxu0 %v2846
    %3590 = vmatmul.mubr.bf16.gmra.mrb[0].mxu0 %v2845
    %v3591 = vpop.f32.mrb[0].mxu0
    %v3592 = vadd.f32 0.0, %v3591
    %v3593 = vpop.f32.mrb[0].mxu0
    %v3594 = vadd.f32 0.0, %v3593
    %v3595 = vpop.f32.mrb[0].mxu0
    %v3596 = vadd.f32 0.0, %v3595
    %v3597 = vpop.f32.mrb[0].mxu0
    %v3598 = vadd.f32 0.0, %v3597
    %3599 = vmatprep.mubr.bf16.mxu0 %v2848
    %3600 = vmatmul.mubr.bf16.gmra.mrb[0].mxu0 %v2847
    %v3601 = vpop.f32.mrb[0].mxu0
    %v3602 = vadd.f32 0.0, %v3601
    %v3603 = vpop.f32.mrb[0].mxu0
    %v3604 = vadd.f32 0.0, %v3603
    %v3605 = vpop.f32.mrb[0].mxu0
    %v3606 = vadd.f32 0.0, %v3605
    %v3607 = vpop.f32.mrb[0].mxu0
    %v3608 = vadd.f32 0.0, %v3607
    %3609 = vmatprep.mubr.bf16.mxu0 %v2850
    %3610 = vmatmul.mubr.bf16.gmra.mrb[0].mxu0 %v2849
    %v3611 = vpop.f32.mrb[0].mxu0
    %v3612 = vadd.f32 0.0, %v3611
    %v3613 = vpop.f32.mrb[0].mxu0
    %v3614 = vadd.f32 0.0, %v3613
    %v3615 = vpop.f32.mrb[0].mxu0
    %v3616 = vadd.f32 0.0, %v3615
    %v3617 = vpop.f32.mrb[0].mxu0
    %v3618 = vadd.f32 0.0, %v3617
    %3619 = vdwg.mxu0
    %3620 = vmatprep.subr.bf16.mxu0 %v3254
    %3621 = vmatpush1.bf16.msra.mxu0 %v3253
    %3622 = vmatprep.subr.bf16.mxu0 %v3262
    %3623 = vmatpush1.bf16.msra.mxu0 %v3261
    %3624 = vmatprep.subr.bf16.mxu0 %v3270
    %3625 = vmatpush1.bf16.msra.mxu0 %v3269
    %3626 = vmatprep.subr.bf16.mxu0 %v3278
    %3627 = vmatpush1.bf16.msra.mxu0 %v3277
    %3628 = vmatprep.subr.bf16.mxu0 %v3286
    %3629 = vmatpush1.bf16.msra.mxu0 %v3285
    %3630 = vmatprep.subr.bf16.mxu0 %v3294
    %3631 = vmatpush1.bf16.msra.mxu0 %v3293
    %3632 = vmatprep.subr.bf16.mxu0 %v3302
    %3633 = vmatpush1.bf16.msra.mxu0 %v3301
    %3634 = vmatprep.subr.bf16.mxu0 %v3310
    %3635 = vmatpush1.bf16.msra.mxu0 %v3309
    %3636 = vmatprep.subr.bf16.mxu0 %v3318
    %3637 = vmatpush1.bf16.msra.mxu0 %v3317
    %3638 = vmatprep.subr.bf16.mxu0 %v3326
    %3639 = vmatpush1.bf16.msra.mxu0 %v3325
    %3640 = vmatprep.subr.bf16.mxu0 %v3334
    %3641 = vmatpush1.bf16.msra.mxu0 %v3333
    %3642 = vmatprep.subr.bf16.mxu0 %v3342
    %3643 = vmatpush1.bf16.msra.mxu0 %v3341
    %3644 = vmatprep.subr.bf16.mxu0 %v3350
    %3645 = vmatpush1.bf16.msra.mxu0 %v3349
    %3646 = vmatprep.subr.bf16.mxu0 %v3358
    %3647 = vmatpush1.bf16.msra.mxu0 %v3357
    %3648 = vmatprep.subr.bf16.mxu0 %v3366
    %3649 = vmatpush1.bf16.msra.mxu0 %v3365
    %3650 = vmatprep.subr.bf16.mxu0 %v3374
    %3651 = vmatpush1.bf16.msra.mxu0 %v3373
    %3652 = vmatprep.mubr.bf16.mxu0 %v2836
    %3653 = vmatmul.mubr.bf16.gmra.mrb[0].mxu0 %v2835
    %v3654 = vpop.f32.mrb[0].mxu0
    %v3655 = vadd.f32 0.0, %v3654
    %v3656 = vpop.f32.mrb[0].mxu0
    %v3657 = vadd.f32 0.0, %v3656
    %v3658 = vpop.f32.mrb[0].mxu0
    %v3659 = vadd.f32 0.0, %v3658
    %v3660 = vpop.f32.mrb[0].mxu0
    %v3661 = vadd.f32 0.0, %v3660
    %3662 = vmatprep.mubr.bf16.mxu0 %v2838
    %3663 = vmatmul.mubr.bf16.gmra.mrb[0].mxu0 %v2837
    %v3664 = vpop.f32.mrb[0].mxu0
    %v3665 = vadd.f32 0.0, %v3664
    %v3666 = vpop.f32.mrb[0].mxu0
    %v3667 = vadd.f32 0.0, %v3666
    %v3668 = vpop.f32.mrb[0].mxu0
    %v3669 = vadd.f32 0.0, %v3668
    %v3670 = vpop.f32.mrb[0].mxu0
    %v3671 = vadd.f32 0.0, %v3670
    %3672 = vmatprep.mubr.bf16.mxu0 %v2840
    %3673 = vmatmul.mubr.bf16.gmra.mrb[0].mxu0 %v2839
    %v3674 = vpop.f32.mrb[0].mxu0
    %v3675 = vadd.f32 0.0, %v3674
    %v3676 = vpop.f32.mrb[0].mxu0
    %v3677 = vadd.f32 0.0, %v3676
    %v3678 = vpop.f32.mrb[0].mxu0
    %v3679 = vadd.f32 0.0, %v3678
    %v3680 = vpop.f32.mrb[0].mxu0
    %v3681 = vadd.f32 0.0, %v3680
    %3682 = vmatprep.mubr.bf16.mxu0 %v2842
    %3683 = vmatmul.mubr.bf16.gmra.mrb[0].mxu0 %v2841
    %v3684 = vpop.f32.mrb[0].mxu0
    %v3685 = vadd.f32 0.0, %v3684
    %v3686 = vpop.f32.mrb[0].mxu0
    %v3687 = vadd.f32 0.0, %v3686
    %v3688 = vpop.f32.mrb[0].mxu0
    %v3689 = vadd.f32 0.0, %v3688
    %v3690 = vpop.f32.mrb[0].mxu0
    %v3691 = vadd.f32 0.0, %v3690
    %3692 = vmatprep.mubr.bf16.mxu0 %v2844
    %3693 = vmatmul.mubr.bf16.gmra.mrb[0].mxu0 %v2843
    %v3694 = vpop.f32.mrb[0].mxu0
    %v3695 = vadd.f32 0.0, %v3694
    %v3696 = vpop.f32.mrb[0].mxu0
    %v3697 = vadd.f32 0.0, %v3696
    %v3698 = vpop.f32.mrb[0].mxu0
    %v3699 = vadd.f32 0.0, %v3698
    %v3700 = vpop.f32.mrb[0].mxu0
    %v3701 = vadd.f32 0.0, %v3700
    %3702 = vmatprep.mubr.bf16.mxu0 %v2846
    %3703 = vmatmul.mubr.bf16.gmra.mrb[0].mxu0 %v2845
    %v3704 = vpop.f32.mrb[0].mxu0
    %v3705 = vadd.f32 0.0, %v3704
    %v3706 = vpop.f32.mrb[0].mxu0
    %v3707 = vadd.f32 0.0, %v3706
    %v3708 = vpop.f32.mrb[0].mxu0
    %v3709 = vadd.f32 0.0, %v3708
    %v3710 = vpop.f32.mrb[0].mxu0
    %v3711 = vadd.f32 0.0, %v3710
    %3712 = vmatprep.mubr.bf16.mxu0 %v2848
    %3713 = vmatmul.mubr.bf16.gmra.mrb[0].mxu0 %v2847
    %v3714 = vpop.f32.mrb[0].mxu0
    %v3715 = vadd.f32 0.0, %v3714
    %v3716 = vpop.f32.mrb[0].mxu0
    %v3717 = vadd.f32 0.0, %v3716
    %v3718 = vpop.f32.mrb[0].mxu0
    %v3719 = vadd.f32 0.0, %v3718
    %v3720 = vpop.f32.mrb[0].mxu0
    %v3721 = vadd.f32 0.0, %v3720
    %3722 = vmatprep.mubr.bf16.mxu0 %v2850
    %3723 = vmatmul.mubr.bf16.gmra.mrb[0].mxu0 %v2849
    %v3724 = vpop.f32.mrb[0].mxu0
    %v3725 = vadd.f32 0.0, %v3724
    %v3726 = vpop.f32.mrb[0].mxu0
    %v3727 = vadd.f32 0.0, %v3726
    %v3728 = vpop.f32.mrb[0].mxu0
    %v3729 = vadd.f32 0.0, %v3728
    %v3730 = vpop.f32.mrb[0].mxu0
    %v3731 = vadd.f32 0.0, %v3730
    %3732 = vdwg.mxu0
    %3733 = vmatprep.subr.bf16.mxu0 %v3256
    %3734 = vmatpush1.bf16.msra.mxu0 %v3255
    %3735 = vmatprep.subr.bf16.mxu0 %v3264
    %3736 = vmatpush1.bf16.msra.mxu0 %v3263
    %3737 = vmatprep.subr.bf16.mxu0 %v3272
    %3738 = vmatpush1.bf16.msra.mxu0 %v3271
    %3739 = vmatprep.subr.bf16.mxu0 %v3280
    %3740 = vmatpush1.bf16.msra.mxu0 %v3279
    %3741 = vmatprep.subr.bf16.mxu0 %v3288
    %3742 = vmatpush1.bf16.msra.mxu0 %v3287
    %3743 = vmatprep.subr.bf16.mxu0 %v3296
    %3744 = vmatpush1.bf16.msra.mxu0 %v3295
    %3745 = vmatprep.subr.bf16.mxu0 %v3304
    %3746 = vmatpush1.bf16.msra.mxu0 %v3303
    %3747 = vmatprep.subr.bf16.mxu0 %v3312
    %3748 = vmatpush1.bf16.msra.mxu0 %v3311
    %3749 = vmatprep.subr.bf16.mxu0 %v3320
    %3750 = vmatpush1.bf16.msra.mxu0 %v3319
    %3751 = vmatprep.subr.bf16.mxu0 %v3328
    %3752 = vmatpush1.bf16.msra.mxu0 %v3327
    %3753 = vmatprep.subr.bf16.mxu0 %v3336
    %3754 = vmatpush1.bf16.msra.mxu0 %v3335
    %3755 = vmatprep.subr.bf16.mxu0 %v3344
    %3756 = vmatpush1.bf16.msra.mxu0 %v3343
    %3757 = vmatprep.subr.bf16.mxu0 %v3352
    %3758 = vmatpush1.bf16.msra.mxu0 %v3351
    %3759 = vmatprep.subr.bf16.mxu0 %v3360
    %3760 = vmatpush1.bf16.msra.mxu0 %v3359
    %3761 = vmatprep.subr.bf16.mxu0 %v3368
    %3762 = vmatpush1.bf16.msra.mxu0 %v3367
    %3763 = vmatprep.subr.bf16.mxu0 %v3376
    %3764 = vmatpush1.bf16.msra.mxu0 %v3375
    %3765 = vmatprep.mubr.bf16.mxu0 %v2836
    %3766 = vmatmul.mubr.bf16.gmra.mrb[0].mxu0 %v2835
    %v3767 = vpop.f32.mrb[0].mxu0
    %v3768 = vadd.f32 0.0, %v3767
    %v3769 = vpop.f32.mrb[0].mxu0
    %v3770 = vadd.f32 0.0, %v3769
    %v3771 = vpop.f32.mrb[0].mxu0
    %v3772 = vadd.f32 0.0, %v3771
    %v3773 = vpop.f32.mrb[0].mxu0
    %v3774 = vadd.f32 0.0, %v3773
    %3775 = vmatprep.mubr.bf16.mxu0 %v2838
    %3776 = vmatmul.mubr.bf16.gmra.mrb[0].mxu0 %v2837
    %v3777 = vpop.f32.mrb[0].mxu0
    %v3778 = vadd.f32 0.0, %v3777
    %v3779 = vpop.f32.mrb[0].mxu0
    %v3780 = vadd.f32 0.0, %v3779
    %v3781 = vpop.f32.mrb[0].mxu0
    %v3782 = vadd.f32 0.0, %v3781
    %v3783 = vpop.f32.mrb[0].mxu0
    %v3784 = vadd.f32 0.0, %v3783
    %3785 = vmatprep.mubr.bf16.mxu0 %v2840
    %3786 = vmatmul.mubr.bf16.gmra.mrb[0].mxu0 %v2839
    %v3787 = vpop.f32.mrb[0].mxu0
    %v3788 = vadd.f32 0.0, %v3787
    %v3789 = vpop.f32.mrb[0].mxu0
    %v3790 = vadd.f32 0.0, %v3789
    %v3791 = vpop.f32.mrb[0].mxu0
    %v3792 = vadd.f32 0.0, %v3791
    %v3793 = vpop.f32.mrb[0].mxu0
    %v3794 = vadd.f32 0.0, %v3793
    %3795 = vmatprep.mubr.bf16.mxu0 %v2842
    %3796 = vmatmul.mubr.bf16.gmra.mrb[0].mxu0 %v2841
    %v3797 = vpop.f32.mrb[0].mxu0
    %v3798 = vadd.f32 0.0, %v3797
    %v3799 = vpop.f32.mrb[0].mxu0
    %v3800 = vadd.f32 0.0, %v3799
    %v3801 = vpop.f32.mrb[0].mxu0
    %v3802 = vadd.f32 0.0, %v3801
    %v3803 = vpop.f32.mrb[0].mxu0
    %v3804 = vadd.f32 0.0, %v3803
    %3805 = vmatprep.mubr.bf16.mxu0 %v2844
    %3806 = vmatmul.mubr.bf16.gmra.mrb[0].mxu0 %v2843
    %v3807 = vpop.f32.mrb[0].mxu0
    %v3808 = vadd.f32 0.0, %v3807
    %v3809 = vpop.f32.mrb[0].mxu0
    %v3810 = vadd.f32 0.0, %v3809
    %v3811 = vpop.f32.mrb[0].mxu0
    %v3812 = vadd.f32 0.0, %v3811
    %v3813 = vpop.f32.mrb[0].mxu0
    %v3814 = vadd.f32 0.0, %v3813
    %3815 = vmatprep.mubr.bf16.mxu0 %v2846
    %3816 = vmatmul.mubr.bf16.gmra.mrb[0].mxu0 %v2845
    %v3817 = vpop.f32.mrb[0].mxu0
    %v3818 = vadd.f32 0.0, %v3817
    %v3819 = vpop.f32.mrb[0].mxu0
    %v3820 = vadd.f32 0.0, %v3819
    %v3821 = vpop.f32.mrb[0].mxu0
    %v3822 = vadd.f32 0.0, %v3821
    %v3823 = vpop.f32.mrb[0].mxu0
    %v3824 = vadd.f32 0.0, %v3823
    %3825 = vmatprep.mubr.bf16.mxu0 %v2848
    %3826 = vmatmul.mubr.bf16.gmra.mrb[0].mxu0 %v2847
    %v3827 = vpop.f32.mrb[0].mxu0
    %v3828 = vadd.f32 0.0, %v3827
    %v3829 = vpop.f32.mrb[0].mxu0
    %v3830 = vadd.f32 0.0, %v3829
    %v3831 = vpop.f32.mrb[0].mxu0
    %v3832 = vadd.f32 0.0, %v3831
    %v3833 = vpop.f32.mrb[0].mxu0
    %v3834 = vadd.f32 0.0, %v3833
    %3835 = vmatprep.mubr.bf16.mxu0 %v2850
    %3836 = vmatmul.mubr.bf16.gmra.mrb[0].mxu0 %v2849
    %v3837 = vpop.f32.mrb[0].mxu0
    %v3838 = vadd.f32 0.0, %v3837
    %v3839 = vpop.f32.mrb[0].mxu0
    %v3840 = vadd.f32 0.0, %v3839
    %v3841 = vpop.f32.mrb[0].mxu0
    %v3842 = vadd.f32 0.0, %v3841
    %v3843 = vpop.f32.mrb[0].mxu0
    %v3844 = vadd.f32 0.0, %v3843
    %3845 = vdwg.mxu0
    %3846 = vmatprep.subr.bf16.mxu0 %v3258
    %3847 = vmatpush1.bf16.msra.mxu0 %v3257
    %3848 = vmatprep.subr.bf16.mxu0 %v3266
    %3849 = vmatpush1.bf16.msra.mxu0 %v3265
    %3850 = vmatprep.subr.bf16.mxu0 %v3274
    %3851 = vmatpush1.bf16.msra.mxu0 %v3273
    %3852 = vmatprep.subr.bf16.mxu0 %v3282
    %3853 = vmatpush1.bf16.msra.mxu0 %v3281
    %3854 = vmatprep.subr.bf16.mxu0 %v3290
    %3855 = vmatpush1.bf16.msra.mxu0 %v3289
    %3856 = vmatprep.subr.bf16.mxu0 %v3298
    %3857 = vmatpush1.bf16.msra.mxu0 %v3297
    %3858 = vmatprep.subr.bf16.mxu0 %v3306
    %3859 = vmatpush1.bf16.msra.mxu0 %v3305
    %3860 = vmatprep.subr.bf16.mxu0 %v3314
    %3861 = vmatpush1.bf16.msra.mxu0 %v3313
    %3862 = vmatprep.subr.bf16.mxu0 %v3322
    %3863 = vmatpush1.bf16.msra.mxu0 %v3321
    %3864 = vmatprep.subr.bf16.mxu0 %v3330
    %3865 = vmatpush1.bf16.msra.mxu0 %v3329
    %3866 = vmatprep.subr.bf16.mxu0 %v3338
    %3867 = vmatpush1.bf16.msra.mxu0 %v3337
    %3868 = vmatprep.subr.bf16.mxu0 %v3346
    %3869 = vmatpush1.bf16.msra.mxu0 %v3345
    %3870 = vmatprep.subr.bf16.mxu0 %v3354
    %3871 = vmatpush1.bf16.msra.mxu0 %v3353
    %3872 = vmatprep.subr.bf16.mxu0 %v3362
    %3873 = vmatpush1.bf16.msra.mxu0 %v3361
    %3874 = vmatprep.subr.bf16.mxu0 %v3370
    %3875 = vmatpush1.bf16.msra.mxu0 %v3369
    %3876 = vmatprep.subr.bf16.mxu0 %v3378
    %3877 = vmatpush1.bf16.msra.mxu0 %v3377
    %3878 = vmatprep.mubr.bf16.mxu0 %v2836
    %3879 = vmatmul.mubr.bf16.gmra.mrb[0].mxu0 %v2835
    %v3880 = vpop.f32.mrb[0].mxu0
    %v3881 = vadd.f32 0.0, %v3880
    %v3882 = vpop.f32.mrb[0].mxu0
    %v3883 = vadd.f32 0.0, %v3882
    %v3884 = vpop.f32.mrb[0].mxu0
    %v3885 = vadd.f32 0.0, %v3884
    %v3886 = vpop.f32.mrb[0].mxu0
    %v3887 = vadd.f32 0.0, %v3886
    %3888 = vmatprep.mubr.bf16.mxu0 %v2838
    %3889 = vmatmul.mubr.bf16.gmra.mrb[0].mxu0 %v2837
    %v3890 = vpop.f32.mrb[0].mxu0
    %v3891 = vadd.f32 0.0, %v3890
    %v3892 = vpop.f32.mrb[0].mxu0
    %v3893 = vadd.f32 0.0, %v3892
    %v3894 = vpop.f32.mrb[0].mxu0
    %v3895 = vadd.f32 0.0, %v3894
    %v3896 = vpop.f32.mrb[0].mxu0
    %v3897 = vadd.f32 0.0, %v3896
    %3898 = vmatprep.mubr.bf16.mxu0 %v2840
    %3899 = vmatmul.mubr.bf16.gmra.mrb[0].mxu0 %v2839
    %v3900 = vpop.f32.mrb[0].mxu0
    %v3901 = vadd.f32 0.0, %v3900
    %v3902 = vpop.f32.mrb[0].mxu0
    %v3903 = vadd.f32 0.0, %v3902
    %v3904 = vpop.f32.mrb[0].mxu0
    %v3905 = vadd.f32 0.0, %v3904
    %v3906 = vpop.f32.mrb[0].mxu0
    %v3907 = vadd.f32 0.0, %v3906
    %3908 = vmatprep.mubr.bf16.mxu0 %v2842
    %3909 = vmatmul.mubr.bf16.gmra.mrb[0].mxu0 %v2841
    %v3910 = vpop.f32.mrb[0].mxu0
    %v3911 = vadd.f32 0.0, %v3910
    %v3912 = vpop.f32.mrb[0].mxu0
    %v3913 = vadd.f32 0.0, %v3912
    %v3914 = vpop.f32.mrb[0].mxu0
    %v3915 = vadd.f32 0.0, %v3914
    %v3916 = vpop.f32.mrb[0].mxu0
    %v3917 = vadd.f32 0.0, %v3916
    %3918 = vmatprep.mubr.bf16.mxu0 %v2844
    %3919 = vmatmul.mubr.bf16.gmra.mrb[0].mxu0 %v2843
    %v3920 = vpop.f32.mrb[0].mxu0
    %v3921 = vadd.f32 0.0, %v3920
    %v3922 = vpop.f32.mrb[0].mxu0
    %v3923 = vadd.f32 0.0, %v3922
    %v3924 = vpop.f32.mrb[0].mxu0
    %v3925 = vadd.f32 0.0, %v3924
    %v3926 = vpop.f32.mrb[0].mxu0
    %v3927 = vadd.f32 0.0, %v3926
    %3928 = vmatprep.mubr.bf16.mxu0 %v2846
    %3929 = vmatmul.mubr.bf16.gmra.mrb[0].mxu0 %v2845
    %v3930 = vpop.f32.mrb[0].mxu0
    %v3931 = vadd.f32 0.0, %v3930
    %v3932 = vpop.f32.mrb[0].mxu0
    %v3933 = vadd.f32 0.0, %v3932
    %v3934 = vpop.f32.mrb[0].mxu0
    %v3935 = vadd.f32 0.0, %v3934
    %v3936 = vpop.f32.mrb[0].mxu0
    %v3937 = vadd.f32 0.0, %v3936
    %3938 = vmatprep.mubr.bf16.mxu0 %v2848
    %3939 = vmatmul.mubr.bf16.gmra.mrb[0].mxu0 %v2847
    %v3940 = vpop.f32.mrb[0].mxu0
    %v3941 = vadd.f32 0.0, %v3940
    %v3942 = vpop.f32.mrb[0].mxu0
    %v3943 = vadd.f32 0.0, %v3942
    %v3944 = vpop.f32.mrb[0].mxu0
    %v3945 = vadd.f32 0.0, %v3944
    %v3946 = vpop.f32.mrb[0].mxu0
    %v3947 = vadd.f32 0.0, %v3946
    %3948 = vmatprep.mubr.bf16.mxu0 %v2850
    %3949 = vmatmul.mubr.bf16.gmra.mrb[0].mxu0 %v2849
    %v3950 = vpop.f32.mrb[0].mxu0
    %v3951 = vadd.f32 0.0, %v3950
    %v3952 = vpop.f32.mrb[0].mxu0
    %v3953 = vadd.f32 0.0, %v3952
    %v3954 = vpop.f32.mrb[0].mxu0
    %v3955 = vadd.f32 0.0, %v3954
    %v3956 = vpop.f32.mrb[0].mxu0
    %v3957 = vadd.f32 0.0, %v3956
    %3958 = vdwg.mxu0
    %v4087 = vunpack.c.l.b16 %v2515
    %v4088 = vunpack.c.h.b16 %v2515
    %v4089 = vunpack.c.l.b16 %v2516
    %v4090 = vunpack.c.h.b16 %v2516
    %v4091 = vunpack.c.l.b16 %v2517
    %v4092 = vunpack.c.h.b16 %v2517
    %v4093 = vunpack.c.l.b16 %v2518
    %v4094 = vunpack.c.h.b16 %v2518
    %v4095 = vunpack.c.l.b16 %v2519
    %v4096 = vunpack.c.h.b16 %v2519
    %v4097 = vunpack.c.l.b16 %v2520
    %v4098 = vunpack.c.h.b16 %v2520
    %v4099 = vunpack.c.l.b16 %v2521
    %v4100 = vunpack.c.h.b16 %v2521
    %v4101 = vunpack.c.l.b16 %v2522
    %v4102 = vunpack.c.h.b16 %v2522
    %v4103 = vunpack.c.l.b16 %v2523
    %v4104 = vunpack.c.h.b16 %v2523
    %v4105 = vunpack.c.l.b16 %v2524
    %v4106 = vunpack.c.h.b16 %v2524
    %v4107 = vunpack.c.l.b16 %v2525
    %v4108 = vunpack.c.h.b16 %v2525
    %v4109 = vunpack.c.l.b16 %v2526
    %v4110 = vunpack.c.h.b16 %v2526
    %v4111 = vunpack.c.l.b16 %v2527
    %v4112 = vunpack.c.h.b16 %v2527
    %v4113 = vunpack.c.l.b16 %v2528
    %v4114 = vunpack.c.h.b16 %v2528
    %v4115 = vunpack.c.l.b16 %v2529
    %v4116 = vunpack.c.h.b16 %v2529
    %v4117 = vunpack.c.l.b16 %v2530
    %v4118 = vunpack.c.h.b16 %v2530
    %v4119 = vunpack.c.l.b16 %v2531
    %v4120 = vunpack.c.h.b16 %v2531
    %v4121 = vunpack.c.l.b16 %v2532
    %v4122 = vunpack.c.h.b16 %v2532
    %v4123 = vunpack.c.l.b16 %v2533
    %v4124 = vunpack.c.h.b16 %v2533
    %v4125 = vunpack.c.l.b16 %v2534
    %v4126 = vunpack.c.h.b16 %v2534
    %v4127 = vunpack.c.l.b16 %v2535
    %v4128 = vunpack.c.h.b16 %v2535
    %v4129 = vunpack.c.l.b16 %v2536
    %v4130 = vunpack.c.h.b16 %v2536
    %v4131 = vunpack.c.l.b16 %v2537
    %v4132 = vunpack.c.h.b16 %v2537
    %v4133 = vunpack.c.l.b16 %v2538
    %v4134 = vunpack.c.h.b16 %v2538
    %v4135 = vunpack.c.l.b16 %v2539
    %v4136 = vunpack.c.h.b16 %v2539
    %v4137 = vunpack.c.l.b16 %v2540
    %v4138 = vunpack.c.h.b16 %v2540
    %v4139 = vunpack.c.l.b16 %v2541
    %v4140 = vunpack.c.h.b16 %v2541
    %v4141 = vunpack.c.l.b16 %v2542
    %v4142 = vunpack.c.h.b16 %v2542
    %v4143 = vunpack.c.l.b16 %v2543
    %v4144 = vunpack.c.h.b16 %v2543
    %v4145 = vunpack.c.l.b16 %v2544
    %v4146 = vunpack.c.h.b16 %v2544
    %v4147 = vunpack.c.l.b16 %v2545
    %v4148 = vunpack.c.h.b16 %v2545
    %v4149 = vunpack.c.l.b16 %v2546
    %v4150 = vunpack.c.h.b16 %v2546
    %v4151 = vunpack.c.l.b16 %v2547
    %v4152 = vunpack.c.h.b16 %v2547
    %v4153 = vunpack.c.l.b16 %v2548
    %v4154 = vunpack.c.h.b16 %v2548
    %v4155 = vunpack.c.l.b16 %v2549
    %v4156 = vunpack.c.h.b16 %v2549
    %v4157 = vunpack.c.l.b16 %v2550
    %v4158 = vunpack.c.h.b16 %v2550
    %v4159 = vunpack.c.l.b16 %v2551
    %v4160 = vunpack.c.h.b16 %v2551
    %v4161 = vunpack.c.l.b16 %v2552
    %v4162 = vunpack.c.h.b16 %v2552
    %v4163 = vunpack.c.l.b16 %v2553
    %v4164 = vunpack.c.h.b16 %v2553
    %v4165 = vunpack.c.l.b16 %v2554
    %v4166 = vunpack.c.h.b16 %v2554
    %v4167 = vunpack.c.l.b16 %v2555
    %v4168 = vunpack.c.h.b16 %v2555
    %v4169 = vunpack.c.l.b16 %v2556
    %v4170 = vunpack.c.h.b16 %v2556
    %v4171 = vunpack.c.l.b16 %v2557
    %v4172 = vunpack.c.h.b16 %v2557
    %v4173 = vunpack.c.l.b16 %v2558
    %v4174 = vunpack.c.h.b16 %v2558
    %v4175 = vunpack.c.l.b16 %v2559
    %v4176 = vunpack.c.h.b16 %v2559
    %v4177 = vunpack.c.l.b16 %v2560
    %v4178 = vunpack.c.h.b16 %v2560
    %v4179 = vunpack.c.l.b16 %v2561
    %v4180 = vunpack.c.h.b16 %v2561
    %v4181 = vunpack.c.l.b16 %v2562
    %v4182 = vunpack.c.h.b16 %v2562
    %v4183 = vunpack.c.l.b16 %v2563
    %v4184 = vunpack.c.h.b16 %v2563
    %v4185 = vunpack.c.l.b16 %v2564
    %v4186 = vunpack.c.h.b16 %v2564
    %v4187 = vunpack.c.l.b16 %v2565
    %v4188 = vunpack.c.h.b16 %v2565
    %v4189 = vunpack.c.l.b16 %v2566
    %v4190 = vunpack.c.h.b16 %v2566
    %v4191 = vunpack.c.l.b16 %v2567
    %v4192 = vunpack.c.h.b16 %v2567
    %v4193 = vunpack.c.l.b16 %v2568
    %v4194 = vunpack.c.h.b16 %v2568
    %v4195 = vunpack.c.l.b16 %v2569
    %v4196 = vunpack.c.h.b16 %v2569
    %v4197 = vunpack.c.l.b16 %v2570
    %v4198 = vunpack.c.h.b16 %v2570
    %v4199 = vunpack.c.l.b16 %v2571
    %v4200 = vunpack.c.h.b16 %v2571
    %v4201 = vunpack.c.l.b16 %v2572
    %v4202 = vunpack.c.h.b16 %v2572
    %v4203 = vunpack.c.l.b16 %v2573
    %v4204 = vunpack.c.h.b16 %v2573
    %v4205 = vunpack.c.l.b16 %v2574
    %v4206 = vunpack.c.h.b16 %v2574
    %v4207 = vunpack.c.l.b16 %v2575
    %v4208 = vunpack.c.h.b16 %v2575
    %v4209 = vunpack.c.l.b16 %v2576
    %v4210 = vunpack.c.h.b16 %v2576
    %v4211 = vunpack.c.l.b16 %v2577
    %v4212 = vunpack.c.h.b16 %v2577
    %v4213 = vunpack.c.l.b16 %v2578
    %v4214 = vunpack.c.h.b16 %v2578
    %v4215 = vunpack.c.l.b16 %v2579
    %v4216 = vunpack.c.h.b16 %v2579
    %v4217 = vunpack.c.l.b16 %v2580
    %v4218 = vunpack.c.h.b16 %v2580
    %v4219 = vunpack.c.l.b16 %v2581
    %v4220 = vunpack.c.h.b16 %v2581
    %v4221 = vunpack.c.l.b16 %v2582
    %v4222 = vunpack.c.h.b16 %v2582
    %v4223 = vunpack.c.l.b16 %v2583
    %v4224 = vunpack.c.h.b16 %v2583
    %v4225 = vunpack.c.l.b16 %v2584
    %v4226 = vunpack.c.h.b16 %v2584
    %v4227 = vunpack.c.l.b16 %v2585
    %v4228 = vunpack.c.h.b16 %v2585
    %v4229 = vunpack.c.l.b16 %v2586
    %v4230 = vunpack.c.h.b16 %v2586
    %v4231 = vunpack.c.l.b16 %v2587
    %v4232 = vunpack.c.h.b16 %v2587
    %v4233 = vunpack.c.l.b16 %v2588
    %v4234 = vunpack.c.h.b16 %v2588
    %v4235 = vunpack.c.l.b16 %v2589
    %v4236 = vunpack.c.h.b16 %v2589
    %v4237 = vunpack.c.l.b16 %v2590
    %v4238 = vunpack.c.h.b16 %v2590
    %v4239 = vunpack.c.l.b16 %v2591
    %v4240 = vunpack.c.h.b16 %v2591
    %v4241 = vunpack.c.l.b16 %v2592
    %v4242 = vunpack.c.h.b16 %v2592
    %v4243 = vunpack.c.l.b16 %v2593
    %v4244 = vunpack.c.h.b16 %v2593
    %v4245 = vunpack.c.l.b16 %v2594
    %v4246 = vunpack.c.h.b16 %v2594
    %v4247 = vunpack.c.l.b16 %v2595
    %v4248 = vunpack.c.h.b16 %v2595
    %v4249 = vunpack.c.l.b16 %v2596
    %v4250 = vunpack.c.h.b16 %v2596
    %v4251 = vunpack.c.l.b16 %v2597
    %v4252 = vunpack.c.h.b16 %v2597
    %v4253 = vunpack.c.l.b16 %v2598
    %v4254 = vunpack.c.h.b16 %v2598
    %v4255 = vunpack.c.l.b16 %v2599
    %v4256 = vunpack.c.h.b16 %v2599
    %v4257 = vunpack.c.l.b16 %v2600
    %v4258 = vunpack.c.h.b16 %v2600
    %v4259 = vunpack.c.l.b16 %v2601
    %v4260 = vunpack.c.h.b16 %v2601
    %v4261 = vunpack.c.l.b16 %v2602
    %v4262 = vunpack.c.h.b16 %v2602
    %v4263 = vunpack.c.l.b16 %v2603
    %v4264 = vunpack.c.h.b16 %v2603
    %v4265 = vunpack.c.l.b16 %v2604
    %v4266 = vunpack.c.h.b16 %v2604
    %v4267 = vunpack.c.l.b16 %v2605
    %v4268 = vunpack.c.h.b16 %v2605
    %v4269 = vunpack.c.l.b16 %v2606
    %v4270 = vunpack.c.h.b16 %v2606
    %v4271 = vunpack.c.l.b16 %v2607
    %v4272 = vunpack.c.h.b16 %v2607
    %v4273 = vunpack.c.l.b16 %v2608
    %v4274 = vunpack.c.h.b16 %v2608
    %v4275 = vunpack.c.l.b16 %v2609
    %v4276 = vunpack.c.h.b16 %v2609
    %v4277 = vunpack.c.l.b16 %v2610
    %v4278 = vunpack.c.h.b16 %v2610
    %v4279 = vunpack.c.l.b16 %v2611
    %v4280 = vunpack.c.h.b16 %v2611
    %v4281 = vunpack.c.l.b16 %v2612
    %v4282 = vunpack.c.h.b16 %v2612
    %v4283 = vunpack.c.l.b16 %v2613
    %v4284 = vunpack.c.h.b16 %v2613
    %v4285 = vunpack.c.l.b16 %v2614
    %v4286 = vunpack.c.h.b16 %v2614
    %v4287 = vunpack.c.l.b16 %v2615
    %v4288 = vunpack.c.h.b16 %v2615
    %v4289 = vunpack.c.l.b16 %v2616
    %v4290 = vunpack.c.h.b16 %v2616
    %v4291 = vunpack.c.l.b16 %v2617
    %v4292 = vunpack.c.h.b16 %v2617
    %v4293 = vunpack.c.l.b16 %v2618
    %v4294 = vunpack.c.h.b16 %v2618
    %v4295 = vunpack.c.l.b16 %v2619
    %v4296 = vunpack.c.h.b16 %v2619
    %v4297 = vunpack.c.l.b16 %v2620
    %v4298 = vunpack.c.h.b16 %v2620
    %v4299 = vunpack.c.l.b16 %v2621
    %v4300 = vunpack.c.h.b16 %v2621
    %v4301 = vunpack.c.l.b16 %v2622
    %v4302 = vunpack.c.h.b16 %v2622
    %v4303 = vunpack.c.l.b16 %v2623
    %v4304 = vunpack.c.h.b16 %v2623
    %v4305 = vunpack.c.l.b16 %v2624
    %v4306 = vunpack.c.h.b16 %v2624
    %v4307 = vunpack.c.l.b16 %v2625
    %v4308 = vunpack.c.h.b16 %v2625
    %v4309 = vunpack.c.l.b16 %v2626
    %v4310 = vunpack.c.h.b16 %v2626
    %v4311 = vunpack.c.l.b16 %v2627
    %v4312 = vunpack.c.h.b16 %v2627
    %v4313 = vunpack.c.l.b16 %v2628
    %v4314 = vunpack.c.h.b16 %v2628
    %v4315 = vunpack.c.l.b16 %v2629
    %v4316 = vunpack.c.h.b16 %v2629
    %v4317 = vunpack.c.l.b16 %v2630
    %v4318 = vunpack.c.h.b16 %v2630
    %v4319 = vunpack.c.l.b16 %v2631
    %v4320 = vunpack.c.h.b16 %v2631
    %v4321 = vunpack.c.l.b16 %v2632
    %v4322 = vunpack.c.h.b16 %v2632
    %v4323 = vunpack.c.l.b16 %v2633
    %v4324 = vunpack.c.h.b16 %v2633
    %v4325 = vunpack.c.l.b16 %v2634
    %v4326 = vunpack.c.h.b16 %v2634
    %v4327 = vunpack.c.l.b16 %v2635
    %v4328 = vunpack.c.h.b16 %v2635
    %v4329 = vunpack.c.l.b16 %v2636
    %v4330 = vunpack.c.h.b16 %v2636
    %v4331 = vunpack.c.l.b16 %v2637
    %v4332 = vunpack.c.h.b16 %v2637
    %v4333 = vunpack.c.l.b16 %v2638
    %v4334 = vunpack.c.h.b16 %v2638
    %v4335 = vunpack.c.l.b16 %v2639
    %v4336 = vunpack.c.h.b16 %v2639
    %v4337 = vunpack.c.l.b16 %v2640
    %v4338 = vunpack.c.h.b16 %v2640
    %v4339 = vunpack.c.l.b16 %v2641
    %v4340 = vunpack.c.h.b16 %v2641
    %v4341 = vunpack.c.l.b16 %v2642
    %v4342 = vunpack.c.h.b16 %v2642
    %v4343 = vpack.c.b16 %v4095, %v4087
    %v4344 = vpack.c.b16 %v4096, %v4088
    %v4345 = vpack.c.b16 %v4097, %v4089
    %v4346 = vpack.c.b16 %v4098, %v4090
    %v4347 = vpack.c.b16 %v4099, %v4091
    %v4348 = vpack.c.b16 %v4100, %v4092
    %v4349 = vpack.c.b16 %v4101, %v4093
    %v4350 = vpack.c.b16 %v4102, %v4094
    %v4351 = vpack.c.b16 %v4111, %v4103
    %v4352 = vpack.c.b16 %v4112, %v4104
    %v4353 = vpack.c.b16 %v4113, %v4105
    %v4354 = vpack.c.b16 %v4114, %v4106
    %v4355 = vpack.c.b16 %v4115, %v4107
    %v4356 = vpack.c.b16 %v4116, %v4108
    %v4357 = vpack.c.b16 %v4117, %v4109
    %v4358 = vpack.c.b16 %v4118, %v4110
    %v4359 = vpack.c.b16 %v4127, %v4119
    %v4360 = vpack.c.b16 %v4128, %v4120
    %v4361 = vpack.c.b16 %v4129, %v4121
    %v4362 = vpack.c.b16 %v4130, %v4122
    %v4363 = vpack.c.b16 %v4131, %v4123
    %v4364 = vpack.c.b16 %v4132, %v4124
    %v4365 = vpack.c.b16 %v4133, %v4125
    %v4366 = vpack.c.b16 %v4134, %v4126
    %v4367 = vpack.c.b16 %v4143, %v4135
    %v4368 = vpack.c.b16 %v4144, %v4136
    %v4369 = vpack.c.b16 %v4145, %v4137
    %v4370 = vpack.c.b16 %v4146, %v4138
    %v4371 = vpack.c.b16 %v4147, %v4139
    %v4372 = vpack.c.b16 %v4148, %v4140
    %v4373 = vpack.c.b16 %v4149, %v4141
    %v4374 = vpack.c.b16 %v4150, %v4142
    %v4375 = vpack.c.b16 %v4159, %v4151
    %v4376 = vpack.c.b16 %v4160, %v4152
    %v4377 = vpack.c.b16 %v4161, %v4153
    %v4378 = vpack.c.b16 %v4162, %v4154
    %v4379 = vpack.c.b16 %v4163, %v4155
    %v4380 = vpack.c.b16 %v4164, %v4156
    %v4381 = vpack.c.b16 %v4165, %v4157
    %v4382 = vpack.c.b16 %v4166, %v4158
    %v4383 = vpack.c.b16 %v4175, %v4167
    %v4384 = vpack.c.b16 %v4176, %v4168
    %v4385 = vpack.c.b16 %v4177, %v4169
    %v4386 = vpack.c.b16 %v4178, %v4170
    %v4387 = vpack.c.b16 %v4179, %v4171
    %v4388 = vpack.c.b16 %v4180, %v4172
    %v4389 = vpack.c.b16 %v4181, %v4173
    %v4390 = vpack.c.b16 %v4182, %v4174
    %v4391 = vpack.c.b16 %v4191, %v4183
    %v4392 = vpack.c.b16 %v4192, %v4184
    %v4393 = vpack.c.b16 %v4193, %v4185
    %v4394 = vpack.c.b16 %v4194, %v4186
    %v4395 = vpack.c.b16 %v4195, %v4187
    %v4396 = vpack.c.b16 %v4196, %v4188
    %v4397 = vpack.c.b16 %v4197, %v4189
    %v4398 = vpack.c.b16 %v4198, %v4190
    %v4399 = vpack.c.b16 %v4207, %v4199
    %v4400 = vpack.c.b16 %v4208, %v4200
    %v4401 = vpack.c.b16 %v4209, %v4201
    %v4402 = vpack.c.b16 %v4210, %v4202
    %v4403 = vpack.c.b16 %v4211, %v4203
    %v4404 = vpack.c.b16 %v4212, %v4204
    %v4405 = vpack.c.b16 %v4213, %v4205
    %v4406 = vpack.c.b16 %v4214, %v4206
    %v4407 = vpack.c.b16 %v4223, %v4215
    %v4408 = vpack.c.b16 %v4224, %v4216
    %v4409 = vpack.c.b16 %v4225, %v4217
    %v4410 = vpack.c.b16 %v4226, %v4218
    %v4411 = vpack.c.b16 %v4227, %v4219
    %v4412 = vpack.c.b16 %v4228, %v4220
    %v4413 = vpack.c.b16 %v4229, %v4221
    %v4414 = vpack.c.b16 %v4230, %v4222
    %v4415 = vpack.c.b16 %v4239, %v4231
    %v4416 = vpack.c.b16 %v4240, %v4232
    %v4417 = vpack.c.b16 %v4241, %v4233
    %v4418 = vpack.c.b16 %v4242, %v4234
    %v4419 = vpack.c.b16 %v4243, %v4235
    %v4420 = vpack.c.b16 %v4244, %v4236
    %v4421 = vpack.c.b16 %v4245, %v4237
    %v4422 = vpack.c.b16 %v4246, %v4238
    %v4423 = vpack.c.b16 %v4255, %v4247
    %v4424 = vpack.c.b16 %v4256, %v4248
    %v4425 = vpack.c.b16 %v4257, %v4249
    %v4426 = vpack.c.b16 %v4258, %v4250
    %v4427 = vpack.c.b16 %v4259, %v4251
    %v4428 = vpack.c.b16 %v4260, %v4252
    %v4429 = vpack.c.b16 %v4261, %v4253
    %v4430 = vpack.c.b16 %v4262, %v4254
    %v4431 = vpack.c.b16 %v4271, %v4263
    %v4432 = vpack.c.b16 %v4272, %v4264
    %v4433 = vpack.c.b16 %v4273, %v4265
    %v4434 = vpack.c.b16 %v4274, %v4266
    %v4435 = vpack.c.b16 %v4275, %v4267
    %v4436 = vpack.c.b16 %v4276, %v4268
    %v4437 = vpack.c.b16 %v4277, %v4269
    %v4438 = vpack.c.b16 %v4278, %v4270
    %v4439 = vpack.c.b16 %v4287, %v4279
    %v4440 = vpack.c.b16 %v4288, %v4280
    %v4441 = vpack.c.b16 %v4289, %v4281
    %v4442 = vpack.c.b16 %v4290, %v4282
    %v4443 = vpack.c.b16 %v4291, %v4283
    %v4444 = vpack.c.b16 %v4292, %v4284
    %v4445 = vpack.c.b16 %v4293, %v4285
    %v4446 = vpack.c.b16 %v4294, %v4286
    %v4447 = vpack.c.b16 %v4303, %v4295
    %v4448 = vpack.c.b16 %v4304, %v4296
    %v4449 = vpack.c.b16 %v4305, %v4297
    %v4450 = vpack.c.b16 %v4306, %v4298
    %v4451 = vpack.c.b16 %v4307, %v4299
    %v4452 = vpack.c.b16 %v4308, %v4300
    %v4453 = vpack.c.b16 %v4309, %v4301
    %v4454 = vpack.c.b16 %v4310, %v4302
    %v4455 = vpack.c.b16 %v4319, %v4311
    %v4456 = vpack.c.b16 %v4320, %v4312
    %v4457 = vpack.c.b16 %v4321, %v4313
    %v4458 = vpack.c.b16 %v4322, %v4314
    %v4459 = vpack.c.b16 %v4323, %v4315
    %v4460 = vpack.c.b16 %v4324, %v4316
    %v4461 = vpack.c.b16 %v4325, %v4317
    %v4462 = vpack.c.b16 %v4326, %v4318
    %v4463 = vpack.c.b16 %v4335, %v4327
    %v4464 = vpack.c.b16 %v4336, %v4328
    %v4465 = vpack.c.b16 %v4337, %v4329
    %v4466 = vpack.c.b16 %v4338, %v4330
    %v4467 = vpack.c.b16 %v4339, %v4331
    %v4468 = vpack.c.b16 %v4340, %v4332
    %v4469 = vpack.c.b16 %v4341, %v4333
    %v4470 = vpack.c.b16 %v4342, %v4334
    %4599 = vmatprep.subr.bf16.mxu0 %v4344
    %4600 = vmatpush1.bf16.msra.mxu0 %v4343
    %4601 = vmatprep.subr.bf16.mxu0 %v4352
    %4602 = vmatpush1.bf16.msra.mxu0 %v4351
    %4603 = vmatprep.subr.bf16.mxu0 %v4360
    %4604 = vmatpush1.bf16.msra.mxu0 %v4359
    %4605 = vmatprep.subr.bf16.mxu0 %v4368
    %4606 = vmatpush1.bf16.msra.mxu0 %v4367
    %4607 = vmatprep.subr.bf16.mxu0 %v4376
    %4608 = vmatpush1.bf16.msra.mxu0 %v4375
    %4609 = vmatprep.subr.bf16.mxu0 %v4384
    %4610 = vmatpush1.bf16.msra.mxu0 %v4383
    %4611 = vmatprep.subr.bf16.mxu0 %v4392
    %4612 = vmatpush1.bf16.msra.mxu0 %v4391
    %4613 = vmatprep.subr.bf16.mxu0 %v4400
    %4614 = vmatpush1.bf16.msra.mxu0 %v4399
    %4615 = vmatprep.subr.bf16.mxu0 %v4408
    %4616 = vmatpush1.bf16.msra.mxu0 %v4407
    %4617 = vmatprep.subr.bf16.mxu0 %v4416
    %4618 = vmatpush1.bf16.msra.mxu0 %v4415
    %4619 = vmatprep.subr.bf16.mxu0 %v4424
    %4620 = vmatpush1.bf16.msra.mxu0 %v4423
    %4621 = vmatprep.subr.bf16.mxu0 %v4432
    %4622 = vmatpush1.bf16.msra.mxu0 %v4431
    %4623 = vmatprep.subr.bf16.mxu0 %v4440
    %4624 = vmatpush1.bf16.msra.mxu0 %v4439
    %4625 = vmatprep.subr.bf16.mxu0 %v4448
    %4626 = vmatpush1.bf16.msra.mxu0 %v4447
    %4627 = vmatprep.subr.bf16.mxu0 %v4456
    %4628 = vmatpush1.bf16.msra.mxu0 %v4455
    %4629 = vmatprep.subr.bf16.mxu0 %v4464
    %4630 = vmatpush1.bf16.msra.mxu0 %v4463
    %4631 = vmatprep.mubr.bf16.mxu0 %v2500
    %4632 = vmatmul.mubr.bf16.gmra.mrb[0].mxu0 %v2499
    %v4633 = vpop.f32.mrb[0].mxu0
    %v4634 = vadd.f32 %v3542, %v4633
    %v4635 = vpop.f32.mrb[0].mxu0
    %v4636 = vadd.f32 %v3544, %v4635
    %v4637 = vpop.f32.mrb[0].mxu0
    %v4638 = vadd.f32 %v3546, %v4637
    %v4639 = vpop.f32.mrb[0].mxu0
    %v4640 = vadd.f32 %v3548, %v4639
    %4641 = vmatprep.mubr.bf16.mxu0 %v2502
    %4642 = vmatmul.mubr.bf16.gmra.mrb[0].mxu0 %v2501
    %v4643 = vpop.f32.mrb[0].mxu0
    %v4644 = vadd.f32 %v3552, %v4643
    %v4645 = vpop.f32.mrb[0].mxu0
    %v4646 = vadd.f32 %v3554, %v4645
    %v4647 = vpop.f32.mrb[0].mxu0
    %v4648 = vadd.f32 %v3556, %v4647
    %v4649 = vpop.f32.mrb[0].mxu0
    %v4650 = vadd.f32 %v3558, %v4649
    %4651 = vmatprep.mubr.bf16.mxu0 %v2504
    %4652 = vmatmul.mubr.bf16.gmra.mrb[0].mxu0 %v2503
    %v4653 = vpop.f32.mrb[0].mxu0
    %v4654 = vadd.f32 %v3562, %v4653
    %v4655 = vpop.f32.mrb[0].mxu0
    %v4656 = vadd.f32 %v3564, %v4655
    %v4657 = vpop.f32.mrb[0].mxu0
    %v4658 = vadd.f32 %v3566, %v4657
    %v4659 = vpop.f32.mrb[0].mxu0
    %v4660 = vadd.f32 %v3568, %v4659
    %4661 = vmatprep.mubr.bf16.mxu0 %v2506
    %4662 = vmatmul.mubr.bf16.gmra.mrb[0].mxu0 %v2505
    %v4663 = vpop.f32.mrb[0].mxu0
    %v4664 = vadd.f32 %v3572, %v4663
    %v4665 = vpop.f32.mrb[0].mxu0
    %v4666 = vadd.f32 %v3574, %v4665
    %v4667 = vpop.f32.mrb[0].mxu0
    %v4668 = vadd.f32 %v3576, %v4667
    %v4669 = vpop.f32.mrb[0].mxu0
    %v4670 = vadd.f32 %v3578, %v4669
    %4671 = vmatprep.mubr.bf16.mxu0 %v2508
    %4672 = vmatmul.mubr.bf16.gmra.mrb[0].mxu0 %v2507
    %v4673 = vpop.f32.mrb[0].mxu0
    %v4674 = vadd.f32 %v3582, %v4673
    %v4675 = vpop.f32.mrb[0].mxu0
    %v4676 = vadd.f32 %v3584, %v4675
    %v4677 = vpop.f32.mrb[0].mxu0
    %v4678 = vadd.f32 %v3586, %v4677
    %v4679 = vpop.f32.mrb[0].mxu0
    %v4680 = vadd.f32 %v3588, %v4679
    %4681 = vmatprep.mubr.bf16.mxu0 %v2510
    %4682 = vmatmul.mubr.bf16.gmra.mrb[0].mxu0 %v2509
    %v4683 = vpop.f32.mrb[0].mxu0
    %v4684 = vadd.f32 %v3592, %v4683
    %v4685 = vpop.f32.mrb[0].mxu0
    %v4686 = vadd.f32 %v3594, %v4685
    %v4687 = vpop.f32.mrb[0].mxu0
    %v4688 = vadd.f32 %v3596, %v4687
    %v4689 = vpop.f32.mrb[0].mxu0
    %v4690 = vadd.f32 %v3598, %v4689
    %4691 = vmatprep.mubr.bf16.mxu0 %v2512
    %4692 = vmatmul.mubr.bf16.gmra.mrb[0].mxu0 %v2511
    %v4693 = vpop.f32.mrb[0].mxu0
    %v4694 = vadd.f32 %v3602, %v4693
    %v4695 = vpop.f32.mrb[0].mxu0
    %v4696 = vadd.f32 %v3604, %v4695
    %v4697 = vpop.f32.mrb[0].mxu0
    %v4698 = vadd.f32 %v3606, %v4697
    %v4699 = vpop.f32.mrb[0].mxu0
    %v4700 = vadd.f32 %v3608, %v4699
    %4701 = vmatprep.mubr.bf16.mxu0 %v2514
    %4702 = vmatmul.mubr.bf16.gmra.mrb[0].mxu0 %v2513
    %v4703 = vpop.f32.mrb[0].mxu0
    %v4704 = vadd.f32 %v3612, %v4703
    %v4705 = vpop.f32.mrb[0].mxu0
    %v4706 = vadd.f32 %v3614, %v4705
    %v4707 = vpop.f32.mrb[0].mxu0
    %v4708 = vadd.f32 %v3616, %v4707
    %v4709 = vpop.f32.mrb[0].mxu0
    %v4710 = vadd.f32 %v3618, %v4709
    %4711 = vdwg.mxu0
    %4712 = vmatprep.subr.bf16.mxu0 %v4346
    %4713 = vmatpush1.bf16.msra.mxu0 %v4345
    %4714 = vmatprep.subr.bf16.mxu0 %v4354
    %4715 = vmatpush1.bf16.msra.mxu0 %v4353
    %4716 = vmatprep.subr.bf16.mxu0 %v4362
    %4717 = vmatpush1.bf16.msra.mxu0 %v4361
    %4718 = vmatprep.subr.bf16.mxu0 %v4370
    %4719 = vmatpush1.bf16.msra.mxu0 %v4369
    %4720 = vmatprep.subr.bf16.mxu0 %v4378
    %4721 = vmatpush1.bf16.msra.mxu0 %v4377
    %4722 = vmatprep.subr.bf16.mxu0 %v4386
    %4723 = vmatpush1.bf16.msra.mxu0 %v4385
    %4724 = vmatprep.subr.bf16.mxu0 %v4394
    %4725 = vmatpush1.bf16.msra.mxu0 %v4393
    %4726 = vmatprep.subr.bf16.mxu0 %v4402
    %4727 = vmatpush1.bf16.msra.mxu0 %v4401
    %4728 = vmatprep.subr.bf16.mxu0 %v4410
    %4729 = vmatpush1.bf16.msra.mxu0 %v4409
    %4730 = vmatprep.subr.bf16.mxu0 %v4418
    %4731 = vmatpush1.bf16.msra.mxu0 %v4417
    %4732 = vmatprep.subr.bf16.mxu0 %v4426
    %4733 = vmatpush1.bf16.msra.mxu0 %v4425
    %4734 = vmatprep.subr.bf16.mxu0 %v4434
    %4735 = vmatpush1.bf16.msra.mxu0 %v4433
    %4736 = vmatprep.subr.bf16.mxu0 %v4442
    %4737 = vmatpush1.bf16.msra.mxu0 %v4441
    %4738 = vmatprep.subr.bf16.mxu0 %v4450
    %4739 = vmatpush1.bf16.msra.mxu0 %v4449
    %4740 = vmatprep.subr.bf16.mxu0 %v4458
    %4741 = vmatpush1.bf16.msra.mxu0 %v4457
    %4742 = vmatprep.subr.bf16.mxu0 %v4466
    %4743 = vmatpush1.bf16.msra.mxu0 %v4465
    %4744 = vmatprep.mubr.bf16.mxu0 %v2500
    %4745 = vmatmul.mubr.bf16.gmra.mrb[0].mxu0 %v2499
    %v4746 = vpop.f32.mrb[0].mxu0
    %v4747 = vadd.f32 %v3655, %v4746
    %v4748 = vpop.f32.mrb[0].mxu0
    %v4749 = vadd.f32 %v3657, %v4748
    %v4750 = vpop.f32.mrb[0].mxu0
    %v4751 = vadd.f32 %v3659, %v4750
    %v4752 = vpop.f32.mrb[0].mxu0
    %v4753 = vadd.f32 %v3661, %v4752
    %4754 = vmatprep.mubr.bf16.mxu0 %v2502
    %4755 = vmatmul.mubr.bf16.gmra.mrb[0].mxu0 %v2501
    %v4756 = vpop.f32.mrb[0].mxu0
    %v4757 = vadd.f32 %v3665, %v4756
    %v4758 = vpop.f32.mrb[0].mxu0
    %v4759 = vadd.f32 %v3667, %v4758
    %v4760 = vpop.f32.mrb[0].mxu0
    %v4761 = vadd.f32 %v3669, %v4760
    %v4762 = vpop.f32.mrb[0].mxu0
    %v4763 = vadd.f32 %v3671, %v4762
    %4764 = vmatprep.mubr.bf16.mxu0 %v2504
    %4765 = vmatmul.mubr.bf16.gmra.mrb[0].mxu0 %v2503
    %v4766 = vpop.f32.mrb[0].mxu0
    %v4767 = vadd.f32 %v3675, %v4766
    %v4768 = vpop.f32.mrb[0].mxu0
    %v4769 = vadd.f32 %v3677, %v4768
    %v4770 = vpop.f32.mrb[0].mxu0
    %v4771 = vadd.f32 %v3679, %v4770
    %v4772 = vpop.f32.mrb[0].mxu0
    %v4773 = vadd.f32 %v3681, %v4772
    %4774 = vmatprep.mubr.bf16.mxu0 %v2506
    %4775 = vmatmul.mubr.bf16.gmra.mrb[0].mxu0 %v2505
    %v4776 = vpop.f32.mrb[0].mxu0
    %v4777 = vadd.f32 %v3685, %v4776
    %v4778 = vpop.f32.mrb[0].mxu0
    %v4779 = vadd.f32 %v3687, %v4778
    %v4780 = vpop.f32.mrb[0].mxu0
    %v4781 = vadd.f32 %v3689, %v4780
    %v4782 = vpop.f32.mrb[0].mxu0
    %v4783 = vadd.f32 %v3691, %v4782
    %4784 = vmatprep.mubr.bf16.mxu0 %v2508
    %4785 = vmatmul.mubr.bf16.gmra.mrb[0].mxu0 %v2507
    %v4786 = vpop.f32.mrb[0].mxu0
    %v4787 = vadd.f32 %v3695, %v4786
    %v4788 = vpop.f32.mrb[0].mxu0
    %v4789 = vadd.f32 %v3697, %v4788
    %v4790 = vpop.f32.mrb[0].mxu0
    %v4791 = vadd.f32 %v3699, %v4790
    %v4792 = vpop.f32.mrb[0].mxu0
    %v4793 = vadd.f32 %v3701, %v4792
    %4794 = vmatprep.mubr.bf16.mxu0 %v2510
    %4795 = vmatmul.mubr.bf16.gmra.mrb[0].mxu0 %v2509
    %v4796 = vpop.f32.mrb[0].mxu0
    %v4797 = vadd.f32 %v3705, %v4796
    %v4798 = vpop.f32.mrb[0].mxu0
    %v4799 = vadd.f32 %v3707, %v4798
    %v4800 = vpop.f32.mrb[0].mxu0
    %v4801 = vadd.f32 %v3709, %v4800
    %v4802 = vpop.f32.mrb[0].mxu0
    %v4803 = vadd.f32 %v3711, %v4802
    %4804 = vmatprep.mubr.bf16.mxu0 %v2512
    %4805 = vmatmul.mubr.bf16.gmra.mrb[0].mxu0 %v2511
    %v4806 = vpop.f32.mrb[0].mxu0
    %v4807 = vadd.f32 %v3715, %v4806
    %v4808 = vpop.f32.mrb[0].mxu0
    %v4809 = vadd.f32 %v3717, %v4808
    %v4810 = vpop.f32.mrb[0].mxu0
    %v4811 = vadd.f32 %v3719, %v4810
    %v4812 = vpop.f32.mrb[0].mxu0
    %v4813 = vadd.f32 %v3721, %v4812
    %4814 = vmatprep.mubr.bf16.mxu0 %v2514
    %4815 = vmatmul.mubr.bf16.gmra.mrb[0].mxu0 %v2513
    %v4816 = vpop.f32.mrb[0].mxu0
    %v4817 = vadd.f32 %v3725, %v4816
    %v4818 = vpop.f32.mrb[0].mxu0
    %v4819 = vadd.f32 %v3727, %v4818
    %v4820 = vpop.f32.mrb[0].mxu0
    %v4821 = vadd.f32 %v3729, %v4820
    %v4822 = vpop.f32.mrb[0].mxu0
    %v4823 = vadd.f32 %v3731, %v4822
    %4824 = vdwg.mxu0
    %4825 = vmatprep.subr.bf16.mxu0 %v4348
    %4826 = vmatpush1.bf16.msra.mxu0 %v4347
    %4827 = vmatprep.subr.bf16.mxu0 %v4356
    %4828 = vmatpush1.bf16.msra.mxu0 %v4355
    %4829 = vmatprep.subr.bf16.mxu0 %v4364
    %4830 = vmatpush1.bf16.msra.mxu0 %v4363
    %4831 = vmatprep.subr.bf16.mxu0 %v4372
    %4832 = vmatpush1.bf16.msra.mxu0 %v4371
    %4833 = vmatprep.subr.bf16.mxu0 %v4380
    %4834 = vmatpush1.bf16.msra.mxu0 %v4379
    %4835 = vmatprep.subr.bf16.mxu0 %v4388
    %4836 = vmatpush1.bf16.msra.mxu0 %v4387
    %4837 = vmatprep.subr.bf16.mxu0 %v4396
    %4838 = vmatpush1.bf16.msra.mxu0 %v4395
    %4839 = vmatprep.subr.bf16.mxu0 %v4404
    %4840 = vmatpush1.bf16.msra.mxu0 %v4403
    %4841 = vmatprep.subr.bf16.mxu0 %v4412
    %4842 = vmatpush1.bf16.msra.mxu0 %v4411
    %4843 = vmatprep.subr.bf16.mxu0 %v4420
    %4844 = vmatpush1.bf16.msra.mxu0 %v4419
    %4845 = vmatprep.subr.bf16.mxu0 %v4428
    %4846 = vmatpush1.bf16.msra.mxu0 %v4427
    %4847 = vmatprep.subr.bf16.mxu0 %v4436
    %4848 = vmatpush1.bf16.msra.mxu0 %v4435
    %4849 = vmatprep.subr.bf16.mxu0 %v4444
    %4850 = vmatpush1.bf16.msra.mxu0 %v4443
    %4851 = vmatprep.subr.bf16.mxu0 %v4452
    %4852 = vmatpush1.bf16.msra.mxu0 %v4451
    %4853 = vmatprep.subr.bf16.mxu0 %v4460
    %4854 = vmatpush1.bf16.msra.mxu0 %v4459
    %4855 = vmatprep.subr.bf16.mxu0 %v4468
    %4856 = vmatpush1.bf16.msra.mxu0 %v4467
    %4857 = vmatprep.mubr.bf16.mxu0 %v2500
    %4858 = vmatmul.mubr.bf16.gmra.mrb[0].mxu0 %v2499
    %v4859 = vpop.f32.mrb[0].mxu0
    %v4860 = vadd.f32 %v3768, %v4859
    %v4861 = vpop.f32.mrb[0].mxu0
    %v4862 = vadd.f32 %v3770, %v4861
    %v4863 = vpop.f32.mrb[0].mxu0
    %v4864 = vadd.f32 %v3772, %v4863
    %v4865 = vpop.f32.mrb[0].mxu0
    %v4866 = vadd.f32 %v3774, %v4865
    %4867 = vmatprep.mubr.bf16.mxu0 %v2502
    %4868 = vmatmul.mubr.bf16.gmra.mrb[0].mxu0 %v2501
    %v4869 = vpop.f32.mrb[0].mxu0
    %v4870 = vadd.f32 %v3778, %v4869
    %v4871 = vpop.f32.mrb[0].mxu0
    %v4872 = vadd.f32 %v3780, %v4871
    %v4873 = vpop.f32.mrb[0].mxu0
    %v4874 = vadd.f32 %v3782, %v4873
    %v4875 = vpop.f32.mrb[0].mxu0
    %v4876 = vadd.f32 %v3784, %v4875
    %4877 = vmatprep.mubr.bf16.mxu0 %v2504
    %4878 = vmatmul.mubr.bf16.gmra.mrb[0].mxu0 %v2503
    %v4879 = vpop.f32.mrb[0].mxu0
    %v4880 = vadd.f32 %v3788, %v4879
    %v4881 = vpop.f32.mrb[0].mxu0
    %v4882 = vadd.f32 %v3790, %v4881
    %v4883 = vpop.f32.mrb[0].mxu0
    %v4884 = vadd.f32 %v3792, %v4883
    %v4885 = vpop.f32.mrb[0].mxu0
    %v4886 = vadd.f32 %v3794, %v4885
    %4887 = vmatprep.mubr.bf16.mxu0 %v2506
    %4888 = vmatmul.mubr.bf16.gmra.mrb[0].mxu0 %v2505
    %v4889 = vpop.f32.mrb[0].mxu0
    %v4890 = vadd.f32 %v3798, %v4889
    %v4891 = vpop.f32.mrb[0].mxu0
    %v4892 = vadd.f32 %v3800, %v4891
    %v4893 = vpop.f32.mrb[0].mxu0
    %v4894 = vadd.f32 %v3802, %v4893
    %v4895 = vpop.f32.mrb[0].mxu0
    %v4896 = vadd.f32 %v3804, %v4895
    %4897 = vmatprep.mubr.bf16.mxu0 %v2508
    %4898 = vmatmul.mubr.bf16.gmra.mrb[0].mxu0 %v2507
    %v4899 = vpop.f32.mrb[0].mxu0
    %v4900 = vadd.f32 %v3808, %v4899
    %v4901 = vpop.f32.mrb[0].mxu0
    %v4902 = vadd.f32 %v3810, %v4901
    %v4903 = vpop.f32.mrb[0].mxu0
    %v4904 = vadd.f32 %v3812, %v4903
    %v4905 = vpop.f32.mrb[0].mxu0
    %v4906 = vadd.f32 %v3814, %v4905
    %4907 = vmatprep.mubr.bf16.mxu0 %v2510
    %4908 = vmatmul.mubr.bf16.gmra.mrb[0].mxu0 %v2509
    %v4909 = vpop.f32.mrb[0].mxu0
    %v4910 = vadd.f32 %v3818, %v4909
    %v4911 = vpop.f32.mrb[0].mxu0
    %v4912 = vadd.f32 %v3820, %v4911
    %v4913 = vpop.f32.mrb[0].mxu0
    %v4914 = vadd.f32 %v3822, %v4913
    %v4915 = vpop.f32.mrb[0].mxu0
    %v4916 = vadd.f32 %v3824, %v4915
    %4917 = vmatprep.mubr.bf16.mxu0 %v2512
    %4918 = vmatmul.mubr.bf16.gmra.mrb[0].mxu0 %v2511
    %v4919 = vpop.f32.mrb[0].mxu0
    %v4920 = vadd.f32 %v3828, %v4919
    %v4921 = vpop.f32.mrb[0].mxu0
    %v4922 = vadd.f32 %v3830, %v4921
    %v4923 = vpop.f32.mrb[0].mxu0
    %v4924 = vadd.f32 %v3832, %v4923
    %v4925 = vpop.f32.mrb[0].mxu0
    %v4926 = vadd.f32 %v3834, %v4925
    %4927 = vmatprep.mubr.bf16.mxu0 %v2514
    %4928 = vmatmul.mubr.bf16.gmra.mrb[0].mxu0 %v2513
    %v4929 = vpop.f32.mrb[0].mxu0
    %v4930 = vadd.f32 %v3838, %v4929
    %v4931 = vpop.f32.mrb[0].mxu0
    %v4932 = vadd.f32 %v3840, %v4931
    %v4933 = vpop.f32.mrb[0].mxu0
    %v4934 = vadd.f32 %v3842, %v4933
    %v4935 = vpop.f32.mrb[0].mxu0
    %v4936 = vadd.f32 %v3844, %v4935
    %4937 = vdwg.mxu0
    %4938 = vmatprep.subr.bf16.mxu0 %v4350
    %4939 = vmatpush1.bf16.msra.mxu0 %v4349
    %4940 = vmatprep.subr.bf16.mxu0 %v4358
    %4941 = vmatpush1.bf16.msra.mxu0 %v4357
    %4942 = vmatprep.subr.bf16.mxu0 %v4366
    %4943 = vmatpush1.bf16.msra.mxu0 %v4365
    %4944 = vmatprep.subr.bf16.mxu0 %v4374
    %4945 = vmatpush1.bf16.msra.mxu0 %v4373
    %4946 = vmatprep.subr.bf16.mxu0 %v4382
    %4947 = vmatpush1.bf16.msra.mxu0 %v4381
    %4948 = vmatprep.subr.bf16.mxu0 %v4390
    %4949 = vmatpush1.bf16.msra.mxu0 %v4389
    %4950 = vmatprep.subr.bf16.mxu0 %v4398
    %4951 = vmatpush1.bf16.msra.mxu0 %v4397
    %4952 = vmatprep.subr.bf16.mxu0 %v4406
    %4953 = vmatpush1.bf16.msra.mxu0 %v4405
    %4954 = vmatprep.subr.bf16.mxu0 %v4414
    %4955 = vmatpush1.bf16.msra.mxu0 %v4413
    %4956 = vmatprep.subr.bf16.mxu0 %v4422
    %4957 = vmatpush1.bf16.msra.mxu0 %v4421
    %4958 = vmatprep.subr.bf16.mxu0 %v4430
    %4959 = vmatpush1.bf16.msra.mxu0 %v4429
    %4960 = vmatprep.subr.bf16.mxu0 %v4438
    %4961 = vmatpush1.bf16.msra.mxu0 %v4437
    %4962 = vmatprep.subr.bf16.mxu0 %v4446
    %4963 = vmatpush1.bf16.msra.mxu0 %v4445
    %4964 = vmatprep.subr.bf16.mxu0 %v4454
    %4965 = vmatpush1.bf16.msra.mxu0 %v4453
    %4966 = vmatprep.subr.bf16.mxu0 %v4462
    %4967 = vmatpush1.bf16.msra.mxu0 %v4461
    %4968 = vmatprep.subr.bf16.mxu0 %v4470
    %4969 = vmatpush1.bf16.msra.mxu0 %v4469
    %4970 = vmatprep.mubr.bf16.mxu0 %v2500
    %4971 = vmatmul.mubr.bf16.gmra.mrb[0].mxu0 %v2499
    %v4972 = vpop.f32.mrb[0].mxu0
    %v4973 = vadd.f32 %v3881, %v4972
    %v4974 = vpop.f32.mrb[0].mxu0
    %v4975 = vadd.f32 %v3883, %v4974
    %v4976 = vpop.f32.mrb[0].mxu0
    %v4977 = vadd.f32 %v3885, %v4976
    %v4978 = vpop.f32.mrb[0].mxu0
    %v4979 = vadd.f32 %v3887, %v4978
    %4980 = vmatprep.mubr.bf16.mxu0 %v2502
    %4981 = vmatmul.mubr.bf16.gmra.mrb[0].mxu0 %v2501
    %v4982 = vpop.f32.mrb[0].mxu0
    %v4983 = vadd.f32 %v3891, %v4982
    %v4984 = vpop.f32.mrb[0].mxu0
    %v4985 = vadd.f32 %v3893, %v4984
    %v4986 = vpop.f32.mrb[0].mxu0
    %v4987 = vadd.f32 %v3895, %v4986
    %v4988 = vpop.f32.mrb[0].mxu0
    %v4989 = vadd.f32 %v3897, %v4988
    %4990 = vmatprep.mubr.bf16.mxu0 %v2504
    %4991 = vmatmul.mubr.bf16.gmra.mrb[0].mxu0 %v2503
    %v4992 = vpop.f32.mrb[0].mxu0
    %v4993 = vadd.f32 %v3901, %v4992
    %v4994 = vpop.f32.mrb[0].mxu0
    %v4995 = vadd.f32 %v3903, %v4994
    %v4996 = vpop.f32.mrb[0].mxu0
    %v4997 = vadd.f32 %v3905, %v4996
    %v4998 = vpop.f32.mrb[0].mxu0
    %v4999 = vadd.f32 %v3907, %v4998
    %5000 = vmatprep.mubr.bf16.mxu0 %v2506
    %5001 = vmatmul.mubr.bf16.gmra.mrb[0].mxu0 %v2505
    %v5002 = vpop.f32.mrb[0].mxu0
    %v5003 = vadd.f32 %v3911, %v5002
    %v5004 = vpop.f32.mrb[0].mxu0
    %v5005 = vadd.f32 %v3913, %v5004
    %v5006 = vpop.f32.mrb[0].mxu0
    %v5007 = vadd.f32 %v3915, %v5006
    %v5008 = vpop.f32.mrb[0].mxu0
    %v5009 = vadd.f32 %v3917, %v5008
    %5010 = vmatprep.mubr.bf16.mxu0 %v2508
    %5011 = vmatmul.mubr.bf16.gmra.mrb[0].mxu0 %v2507
    %v5012 = vpop.f32.mrb[0].mxu0
    %v5013 = vadd.f32 %v3921, %v5012
    %v5014 = vpop.f32.mrb[0].mxu0
    %v5015 = vadd.f32 %v3923, %v5014
    %v5016 = vpop.f32.mrb[0].mxu0
    %v5017 = vadd.f32 %v3925, %v5016
    %v5018 = vpop.f32.mrb[0].mxu0
    %v5019 = vadd.f32 %v3927, %v5018
    %5020 = vmatprep.mubr.bf16.mxu0 %v2510
    %5021 = vmatmul.mubr.bf16.gmra.mrb[0].mxu0 %v2509
    %v5022 = vpop.f32.mrb[0].mxu0
    %v5023 = vadd.f32 %v3931, %v5022
    %v5024 = vpop.f32.mrb[0].mxu0
    %v5025 = vadd.f32 %v3933, %v5024
    %v5026 = vpop.f32.mrb[0].mxu0
    %v5027 = vadd.f32 %v3935, %v5026
    %v5028 = vpop.f32.mrb[0].mxu0
    %v5029 = vadd.f32 %v3937, %v5028
    %5030 = vmatprep.mubr.bf16.mxu0 %v2512
    %5031 = vmatmul.mubr.bf16.gmra.mrb[0].mxu0 %v2511
    %v5032 = vpop.f32.mrb[0].mxu0
    %v5033 = vadd.f32 %v3941, %v5032
    %v5034 = vpop.f32.mrb[0].mxu0
    %v5035 = vadd.f32 %v3943, %v5034
    %v5036 = vpop.f32.mrb[0].mxu0
    %v5037 = vadd.f32 %v3945, %v5036
    %v5038 = vpop.f32.mrb[0].mxu0
    %v5039 = vadd.f32 %v3947, %v5038
    %5040 = vmatprep.mubr.bf16.mxu0 %v2514
    %5041 = vmatmul.mubr.bf16.gmra.mrb[0].mxu0 %v2513
    %v5042 = vpop.f32.mrb[0].mxu0
    %v5043 = vadd.f32 %v3951, %v5042
    %v5044 = vpop.f32.mrb[0].mxu0
    %v5045 = vadd.f32 %v3953, %v5044
    %v5046 = vpop.f32.mrb[0].mxu0
    %v5047 = vadd.f32 %v3955, %v5046
    %v5048 = vpop.f32.mrb[0].mxu0
    %v5049 = vadd.f32 %v3957, %v5048
    %5050 = vdwg.mxu0
    %v5051 = vld [vmem:[%s10 + $0x9] sm:$0xff]
    %v5053 = vlaneseq
    %v5054 = vshrl.u32 %v5053, 7
    %v5055 = vsub.s32 0, %v5054
    %v5056 = vrot.slane %v5051, %v5055
    %v5057 = vlaneseq
    %v5058 = vshrl.u32 %v5057, 7
    %v5059 = vsub.s32 1, %v5058
    %v5060 = vrot.slane %v5051, %v5059
    %v5061 = vlaneseq
    %v5062 = vshrl.u32 %v5061, 7
    %v5063 = vsub.s32 2, %v5062
    %v5064 = vrot.slane %v5051, %v5063
    %v5065 = vlaneseq
    %v5066 = vshrl.u32 %v5065, 7
    %v5067 = vsub.s32 3, %v5066
    %v5068 = vrot.slane %v5051, %v5067
    %v5069 = vlaneseq
    %v5070 = vshrl.u32 %v5069, 7
    %v5071 = vsub.s32 4, %v5070
    %v5072 = vrot.slane %v5051, %v5071
    %v5073 = vlaneseq
    %v5074 = vshrl.u32 %v5073, 7
    %v5075 = vsub.s32 5, %v5074
    %v5076 = vrot.slane %v5051, %v5075
    %v5077 = vlaneseq
    %v5078 = vshrl.u32 %v5077, 7
    %v5079 = vsub.s32 6, %v5078
    %v5080 = vrot.slane %v5051, %v5079
    %v5081 = vlaneseq
    %v5082 = vshrl.u32 %v5081, 7
    %v5083 = vsub.s32 7, %v5082
    %v5084 = vrot.slane %v5051, %v5083
    %v5093 = vadd.f32 %v4634, %v5056
    %v5094 = vadd.f32 %v4636, %v5060
    %v5095 = vadd.f32 %v4747, %v5064
    %v5096 = vadd.f32 %v4749, %v5068
    %v5097 = vadd.f32 %v4860, %v5072
    %v5098 = vadd.f32 %v4862, %v5076
    %v5099 = vadd.f32 %v4973, %v5080
    %v5100 = vadd.f32 %v4975, %v5084
    %v5101 = vadd.f32 %v4638, %v5056
    %v5102 = vadd.f32 %v4640, %v5060
    %v5103 = vadd.f32 %v4751, %v5064
    %v5104 = vadd.f32 %v4753, %v5068
    %v5105 = vadd.f32 %v4864, %v5072
    %v5106 = vadd.f32 %v4866, %v5076
    %v5107 = vadd.f32 %v4977, %v5080
    %v5108 = vadd.f32 %v4979, %v5084
    %v5109 = vadd.f32 %v4644, %v5056
    %v5110 = vadd.f32 %v4646, %v5060
    %v5111 = vadd.f32 %v4757, %v5064
    %v5112 = vadd.f32 %v4759, %v5068
    %v5113 = vadd.f32 %v4870, %v5072
    %v5114 = vadd.f32 %v4872, %v5076
    %v5115 = vadd.f32 %v4983, %v5080
    %v5116 = vadd.f32 %v4985, %v5084
    %v5117 = vadd.f32 %v4648, %v5056
    %v5118 = vadd.f32 %v4650, %v5060
    %v5119 = vadd.f32 %v4761, %v5064
    %v5120 = vadd.f32 %v4763, %v5068
    %v5121 = vadd.f32 %v4874, %v5072
    %v5122 = vadd.f32 %v4876, %v5076
    %v5123 = vadd.f32 %v4987, %v5080
    %v5124 = vadd.f32 %v4989, %v5084
    %v5125 = vadd.f32 %v4654, %v5056
    %v5126 = vadd.f32 %v4656, %v5060
    %v5127 = vadd.f32 %v4767, %v5064
    %v5128 = vadd.f32 %v4769, %v5068
    %v5129 = vadd.f32 %v4880, %v5072
    %v5130 = vadd.f32 %v4882, %v5076
    %v5131 = vadd.f32 %v4993, %v5080
    %v5132 = vadd.f32 %v4995, %v5084
    %v5133 = vadd.f32 %v4658, %v5056
    %v5134 = vadd.f32 %v4660, %v5060
    %v5135 = vadd.f32 %v4771, %v5064
    %v5136 = vadd.f32 %v4773, %v5068
    %v5137 = vadd.f32 %v4884, %v5072
    %v5138 = vadd.f32 %v4886, %v5076
    %v5139 = vadd.f32 %v4997, %v5080
    %v5140 = vadd.f32 %v4999, %v5084
    %v5141 = vadd.f32 %v4664, %v5056
    %v5142 = vadd.f32 %v4666, %v5060
    %v5143 = vadd.f32 %v4777, %v5064
    %v5144 = vadd.f32 %v4779, %v5068
    %v5145 = vadd.f32 %v4890, %v5072
    %v5146 = vadd.f32 %v4892, %v5076
    %v5147 = vadd.f32 %v5003, %v5080
    %v5148 = vadd.f32 %v5005, %v5084
    %v5149 = vadd.f32 %v4668, %v5056
    %v5150 = vadd.f32 %v4670, %v5060
    %v5151 = vadd.f32 %v4781, %v5064
    %v5152 = vadd.f32 %v4783, %v5068
    %v5153 = vadd.f32 %v4894, %v5072
    %v5154 = vadd.f32 %v4896, %v5076
    %v5155 = vadd.f32 %v5007, %v5080
    %v5156 = vadd.f32 %v5009, %v5084
    %v5157 = vadd.f32 %v4674, %v5056
    %v5158 = vadd.f32 %v4676, %v5060
    %v5159 = vadd.f32 %v4787, %v5064
    %v5160 = vadd.f32 %v4789, %v5068
    %v5161 = vadd.f32 %v4900, %v5072
    %v5162 = vadd.f32 %v4902, %v5076
    %v5163 = vadd.f32 %v5013, %v5080
    %v5164 = vadd.f32 %v5015, %v5084
    %v5165 = vadd.f32 %v4678, %v5056
    %v5166 = vadd.f32 %v4680, %v5060
    %v5167 = vadd.f32 %v4791, %v5064
    %v5168 = vadd.f32 %v4793, %v5068
    %v5169 = vadd.f32 %v4904, %v5072
    %v5170 = vadd.f32 %v4906, %v5076
    %v5171 = vadd.f32 %v5017, %v5080
    %v5172 = vadd.f32 %v5019, %v5084
    %v5173 = vadd.f32 %v4684, %v5056
    %v5174 = vadd.f32 %v4686, %v5060
    %v5175 = vadd.f32 %v4797, %v5064
    %v5176 = vadd.f32 %v4799, %v5068
    %v5177 = vadd.f32 %v4910, %v5072
    %v5178 = vadd.f32 %v4912, %v5076
    %v5179 = vadd.f32 %v5023, %v5080
    %v5180 = vadd.f32 %v5025, %v5084
    %v5181 = vadd.f32 %v4688, %v5056
    %v5182 = vadd.f32 %v4690, %v5060
    %v5183 = vadd.f32 %v4801, %v5064
    %v5184 = vadd.f32 %v4803, %v5068
    %v5185 = vadd.f32 %v4914, %v5072
    %v5186 = vadd.f32 %v4916, %v5076
    %v5187 = vadd.f32 %v5027, %v5080
    %v5188 = vadd.f32 %v5029, %v5084
    %v5189 = vadd.f32 %v4694, %v5056
    %v5190 = vadd.f32 %v4696, %v5060
    %v5191 = vadd.f32 %v4807, %v5064
    %v5192 = vadd.f32 %v4809, %v5068
    %v5193 = vadd.f32 %v4920, %v5072
    %v5194 = vadd.f32 %v4922, %v5076
    %v5195 = vadd.f32 %v5033, %v5080
    %v5196 = vadd.f32 %v5035, %v5084
    %v5197 = vadd.f32 %v4698, %v5056
    %v5198 = vadd.f32 %v4700, %v5060
    %v5199 = vadd.f32 %v4811, %v5064
    %v5200 = vadd.f32 %v4813, %v5068
    %v5201 = vadd.f32 %v4924, %v5072
    %v5202 = vadd.f32 %v4926, %v5076
    %v5203 = vadd.f32 %v5037, %v5080
    %v5204 = vadd.f32 %v5039, %v5084
    %v5205 = vadd.f32 %v4704, %v5056
    %v5206 = vadd.f32 %v4706, %v5060
    %v5207 = vadd.f32 %v4817, %v5064
    %v5208 = vadd.f32 %v4819, %v5068
    %v5209 = vadd.f32 %v4930, %v5072
    %v5210 = vadd.f32 %v4932, %v5076
    %v5211 = vadd.f32 %v5043, %v5080
    %v5212 = vadd.f32 %v5045, %v5084
    %v5213 = vadd.f32 %v4708, %v5056
    %v5214 = vadd.f32 %v4710, %v5060
    %v5215 = vadd.f32 %v4821, %v5064
    %v5216 = vadd.f32 %v4823, %v5068
    %v5217 = vadd.f32 %v4934, %v5072
    %v5218 = vadd.f32 %v4936, %v5076
    %v5219 = vadd.f32 %v5047, %v5080
    %v5220 = vadd.f32 %v5049, %v5084
    %v5221 = vpack.c.bf16 %v5101, %v5093
    %v5222 = vpack.c.bf16 %v5102, %v5094
    %v5223 = vpack.c.bf16 %v5103, %v5095
    %v5224 = vpack.c.bf16 %v5104, %v5096
    %v5225 = vpack.c.bf16 %v5105, %v5097
    %v5226 = vpack.c.bf16 %v5106, %v5098
    %v5227 = vpack.c.bf16 %v5107, %v5099
    %v5228 = vpack.c.bf16 %v5108, %v5100
    %v5229 = vpack.c.bf16 %v5117, %v5109
    %v5230 = vpack.c.bf16 %v5118, %v5110
    %v5231 = vpack.c.bf16 %v5119, %v5111
    %v5232 = vpack.c.bf16 %v5120, %v5112
    %v5233 = vpack.c.bf16 %v5121, %v5113
    %v5234 = vpack.c.bf16 %v5122, %v5114
    %v5235 = vpack.c.bf16 %v5123, %v5115
    %v5236 = vpack.c.bf16 %v5124, %v5116
    %v5237 = vpack.c.bf16 %v5133, %v5125
    %v5238 = vpack.c.bf16 %v5134, %v5126
    %v5239 = vpack.c.bf16 %v5135, %v5127
    %v5240 = vpack.c.bf16 %v5136, %v5128
    %v5241 = vpack.c.bf16 %v5137, %v5129
    %v5242 = vpack.c.bf16 %v5138, %v5130
    %v5243 = vpack.c.bf16 %v5139, %v5131
    %v5244 = vpack.c.bf16 %v5140, %v5132
    %v5245 = vpack.c.bf16 %v5149, %v5141
    %v5246 = vpack.c.bf16 %v5150, %v5142
    %v5247 = vpack.c.bf16 %v5151, %v5143
    %v5248 = vpack.c.bf16 %v5152, %v5144
    %v5249 = vpack.c.bf16 %v5153, %v5145
    %v5250 = vpack.c.bf16 %v5154, %v5146
    %v5251 = vpack.c.bf16 %v5155, %v5147
    %v5252 = vpack.c.bf16 %v5156, %v5148
    %v5253 = vpack.c.bf16 %v5165, %v5157
    %v5254 = vpack.c.bf16 %v5166, %v5158
    %v5255 = vpack.c.bf16 %v5167, %v5159
    %v5256 = vpack.c.bf16 %v5168, %v5160
    %v5257 = vpack.c.bf16 %v5169, %v5161
    %v5258 = vpack.c.bf16 %v5170, %v5162
    %v5259 = vpack.c.bf16 %v5171, %v5163
    %v5260 = vpack.c.bf16 %v5172, %v5164
    %v5261 = vpack.c.bf16 %v5181, %v5173
    %v5262 = vpack.c.bf16 %v5182, %v5174
    %v5263 = vpack.c.bf16 %v5183, %v5175
    %v5264 = vpack.c.bf16 %v5184, %v5176
    %v5265 = vpack.c.bf16 %v5185, %v5177
    %v5266 = vpack.c.bf16 %v5186, %v5178
    %v5267 = vpack.c.bf16 %v5187, %v5179
    %v5268 = vpack.c.bf16 %v5188, %v5180
    %v5269 = vpack.c.bf16 %v5197, %v5189
    %v5270 = vpack.c.bf16 %v5198, %v5190
    %v5271 = vpack.c.bf16 %v5199, %v5191
    %v5272 = vpack.c.bf16 %v5200, %v5192
    %v5273 = vpack.c.bf16 %v5201, %v5193
    %v5274 = vpack.c.bf16 %v5202, %v5194
    %v5275 = vpack.c.bf16 %v5203, %v5195
    %v5276 = vpack.c.bf16 %v5204, %v5196
    %v5277 = vpack.c.bf16 %v5213, %v5205
    %v5278 = vpack.c.bf16 %v5214, %v5206
    %v5279 = vpack.c.bf16 %v5215, %v5207
    %v5280 = vpack.c.bf16 %v5216, %v5208
    %v5281 = vpack.c.bf16 %v5217, %v5209
    %v5282 = vpack.c.bf16 %v5218, %v5210
    %v5283 = vpack.c.bf16 %v5219, %v5211
    %v5284 = vpack.c.bf16 %v5220, %v5212
    %v5285 = vmax.bf16 %v5221, 0
    %v5286 = vmax.bf16 %v5222, 0
    %v5287 = vmax.bf16 %v5223, 0
    %v5288 = vmax.bf16 %v5224, 0
    %v5289 = vmax.bf16 %v5225, 0
    %v5290 = vmax.bf16 %v5226, 0
    %v5291 = vmax.bf16 %v5227, 0
    %v5292 = vmax.bf16 %v5228, 0
    %v5293 = vmax.bf16 %v5229, 0
    %v5294 = vmax.bf16 %v5230, 0
    %v5295 = vmax.bf16 %v5231, 0
    %v5296 = vmax.bf16 %v5232, 0
    %v5297 = vmax.bf16 %v5233, 0
    %v5298 = vmax.bf16 %v5234, 0
    %v5299 = vmax.bf16 %v5235, 0
    %v5300 = vmax.bf16 %v5236, 0
    %v5301 = vmax.bf16 %v5237, 0
    %v5302 = vmax.bf16 %v5238, 0
    %v5303 = vmax.bf16 %v5239, 0
    %v5304 = vmax.bf16 %v5240, 0
    %v5305 = vmax.bf16 %v5241, 0
    %v5306 = vmax.bf16 %v5242, 0
    %v5307 = vmax.bf16 %v5243, 0
    %v5308 = vmax.bf16 %v5244, 0
    %v5309 = vmax.bf16 %v5245, 0
    %v5310 = vmax.bf16 %v5246, 0
    %v5311 = vmax.bf16 %v5247, 0
    %v5312 = vmax.bf16 %v5248, 0
    %v5313 = vmax.bf16 %v5249, 0
    %v5314 = vmax.bf16 %v5250, 0
    %v5315 = vmax.bf16 %v5251, 0
    %v5316 = vmax.bf16 %v5252, 0
    %v5317 = vmax.bf16 %v5253, 0
    %v5318 = vmax.bf16 %v5254, 0
    %v5319 = vmax.bf16 %v5255, 0
    %v5320 = vmax.bf16 %v5256, 0
    %v5321 = vmax.bf16 %v5257, 0
    %v5322 = vmax.bf16 %v5258, 0
    %v5323 = vmax.bf16 %v5259, 0
    %v5324 = vmax.bf16 %v5260, 0
    %v5325 = vmax.bf16 %v5261, 0
    %v5326 = vmax.bf16 %v5262, 0
    %v5327 = vmax.bf16 %v5263, 0
    %v5328 = vmax.bf16 %v5264, 0
    %v5329 = vmax.bf16 %v5265, 0
    %v5330 = vmax.bf16 %v5266, 0
    %v5331 = vmax.bf16 %v5267, 0
    %v5332 = vmax.bf16 %v5268, 0
    %v5333 = vmax.bf16 %v5269, 0
    %v5334 = vmax.bf16 %v5270, 0
    %v5335 = vmax.bf16 %v5271, 0
    %v5336 = vmax.bf16 %v5272, 0
    %v5337 = vmax.bf16 %v5273, 0
    %v5338 = vmax.bf16 %v5274, 0
    %v5339 = vmax.bf16 %v5275, 0
    %v5340 = vmax.bf16 %v5276, 0
    %v5341 = vmax.bf16 %v5277, 0
    %v5342 = vmax.bf16 %v5278, 0
    %v5343 = vmax.bf16 %v5279, 0
    %v5344 = vmax.bf16 %v5280, 0
    %v5345 = vmax.bf16 %v5281, 0
    %v5346 = vmax.bf16 %v5282, 0
    %v5347 = vmax.bf16 %v5283, 0
    %v5348 = vmax.bf16 %v5284, 0
    %v5349 = vld [vmem:[#allocation13] sm:$0xff]
    %v5350 = vld [vmem:[#allocation13 + $0x8] sm:$0xff]
    %v5351 = vld [vmem:[#allocation13 + $0x10] sm:$0xff]
    %v5352 = vld [vmem:[#allocation13 + $0x18] sm:$0xff]
    %v5353 = vld [vmem:[#allocation13 + $0x20] sm:$0xff]
    %v5354 = vld [vmem:[#allocation13 + $0x28] sm:$0xff]
    %v5355 = vld [vmem:[#allocation13 + $0x30] sm:$0xff]
    %v5356 = vld [vmem:[#allocation13 + $0x38] sm:$0xff]
    %v5357 = vld [vmem:[#allocation13 + $0x40] sm:$0xff]
    %v5358 = vld [vmem:[#allocation13 + $0x48] sm:$0xff]
    %v5359 = vld [vmem:[#allocation13 + $0x50] sm:$0xff]
    %v5360 = vld [vmem:[#allocation13 + $0x58] sm:$0xff]
    %v5361 = vld [vmem:[#allocation13 + $0x60] sm:$0xff]
    %v5362 = vld [vmem:[#allocation13 + $0x68] sm:$0xff]
    %v5363 = vld [vmem:[#allocation13 + $0x70] sm:$0xff]
    %v5364 = vld [vmem:[#allocation13 + $0x78] sm:$0xff]
    %v5365 = vld [vmem:[#allocation13 + $0x80] sm:$0xff]
    %v5366 = vld [vmem:[#allocation13 + $0x88] sm:$0xff]
    %v5367 = vld [vmem:[#allocation13 + $0x90] sm:$0xff]
    %v5368 = vld [vmem:[#allocation13 + $0x98] sm:$0xff]
    %v5369 = vld [vmem:[#allocation13 + $0xa0] sm:$0xff]
    %v5370 = vld [vmem:[#allocation13 + $0xa8] sm:$0xff]
    %v5371 = vld [vmem:[#allocation13 + $0xb0] sm:$0xff]
    %v5372 = vld [vmem:[#allocation13 + $0xb8] sm:$0xff]
    %v5373 = vld [vmem:[#allocation13 + $0xc0] sm:$0xff]
    %v5374 = vld [vmem:[#allocation13 + $0xc8] sm:$0xff]
    %v5375 = vld [vmem:[#allocation13 + $0xd0] sm:$0xff]
    %v5376 = vld [vmem:[#allocation13 + $0xd8] sm:$0xff]
    %v5377 = vld [vmem:[#allocation13 + $0xe0] sm:$0xff]
    %v5378 = vld [vmem:[#allocation13 + $0xe8] sm:$0xff]
    %v5379 = vld [vmem:[#allocation13 + $0xf0] sm:$0xff]
    %v5380 = vld [vmem:[#allocation13 + $0xf8] sm:$0xff]
    %v5381 = vld [vmem:[#allocation13 + $0x100] sm:$0xff]
    %v5382 = vld [vmem:[#allocation13 + $0x108] sm:$0xff]
    %v5383 = vld [vmem:[#allocation13 + $0x110] sm:$0xff]
    %v5384 = vld [vmem:[#allocation13 + $0x118] sm:$0xff]
    %v5385 = vld [vmem:[#allocation13 + $0x120] sm:$0xff]
    %v5386 = vld [vmem:[#allocation13 + $0x128] sm:$0xff]
    %v5387 = vld [vmem:[#allocation13 + $0x130] sm:$0xff]
    %v5388 = vld [vmem:[#allocation13 + $0x138] sm:$0xff]
    %v5389 = vld [vmem:[#allocation13 + $0x140] sm:$0xff]
    %v5390 = vld [vmem:[#allocation13 + $0x148] sm:$0xff]
    %v5391 = vld [vmem:[#allocation13 + $0x150] sm:$0xff]
    %v5392 = vld [vmem:[#allocation13 + $0x158] sm:$0xff]
    %v5393 = vld [vmem:[#allocation13 + $0x160] sm:$0xff]
    %v5394 = vld [vmem:[#allocation13 + $0x168] sm:$0xff]
    %v5395 = vld [vmem:[#allocation13 + $0x170] sm:$0xff]
    %v5396 = vld [vmem:[#allocation13 + $0x178] sm:$0xff]
    %v5397 = vld [vmem:[#allocation13 + $0x180] sm:$0xff]
    %v5398 = vld [vmem:[#allocation13 + $0x188] sm:$0xff]
    %v5399 = vld [vmem:[#allocation13 + $0x190] sm:$0xff]
    %v5400 = vld [vmem:[#allocation13 + $0x198] sm:$0xff]
    %v5401 = vld [vmem:[#allocation13 + $0x1a0] sm:$0xff]
    %v5402 = vld [vmem:[#allocation13 + $0x1a8] sm:$0xff]
    %v5403 = vld [vmem:[#allocation13 + $0x1b0] sm:$0xff]
    %v5404 = vld [vmem:[#allocation13 + $0x1b8] sm:$0xff]
    %v5405 = vld [vmem:[#allocation13 + $0x1c0] sm:$0xff]
    %v5406 = vld [vmem:[#allocation13 + $0x1c8] sm:$0xff]
    %v5407 = vld [vmem:[#allocation13 + $0x1d0] sm:$0xff]
    %v5408 = vld [vmem:[#allocation13 + $0x1d8] sm:$0xff]
    %v5409 = vld [vmem:[#allocation13 + $0x1e0] sm:$0xff]
    %v5410 = vld [vmem:[#allocation13 + $0x1e8] sm:$0xff]
    %v5411 = vld [vmem:[#allocation13 + $0x1f0] sm:$0xff]
    %v5412 = vld [vmem:[#allocation13 + $0x1f8] sm:$0xff]
    %v5413 = vld [vmem:[#allocation13 + $0x200] sm:$0xff]
    %v5414 = vld [vmem:[#allocation13 + $0x208] sm:$0xff]
    %v5415 = vld [vmem:[#allocation13 + $0x210] sm:$0xff]
    %v5416 = vld [vmem:[#allocation13 + $0x218] sm:$0xff]
    %v5417 = vld [vmem:[#allocation13 + $0x220] sm:$0xff]
    %v5418 = vld [vmem:[#allocation13 + $0x228] sm:$0xff]
    %v5419 = vld [vmem:[#allocation13 + $0x230] sm:$0xff]
    %v5420 = vld [vmem:[#allocation13 + $0x238] sm:$0xff]
    %v5421 = vld [vmem:[#allocation13 + $0x240] sm:$0xff]
    %v5422 = vld [vmem:[#allocation13 + $0x248] sm:$0xff]
    %v5423 = vld [vmem:[#allocation13 + $0x250] sm:$0xff]
    %v5424 = vld [vmem:[#allocation13 + $0x258] sm:$0xff]
    %v5425 = vld [vmem:[#allocation13 + $0x260] sm:$0xff]
    %v5426 = vld [vmem:[#allocation13 + $0x268] sm:$0xff]
    %v5427 = vld [vmem:[#allocation13 + $0x270] sm:$0xff]
    %v5428 = vld [vmem:[#allocation13 + $0x278] sm:$0xff]
    %v5429 = vld [vmem:[#allocation13 + $0x280] sm:$0xff]
    %v5430 = vld [vmem:[#allocation13 + $0x288] sm:$0xff]
    %v5431 = vld [vmem:[#allocation13 + $0x290] sm:$0xff]
    %v5432 = vld [vmem:[#allocation13 + $0x298] sm:$0xff]
    %v5433 = vld [vmem:[#allocation13 + $0x2a0] sm:$0xff]
    %v5434 = vld [vmem:[#allocation13 + $0x2a8] sm:$0xff]
    %v5435 = vld [vmem:[#allocation13 + $0x2b0] sm:$0xff]
    %v5436 = vld [vmem:[#allocation13 + $0x2b8] sm:$0xff]
    %v5437 = vld [vmem:[#allocation13 + $0x2c0] sm:$0xff]
    %v5438 = vld [vmem:[#allocation13 + $0x2c8] sm:$0xff]
    %v5439 = vld [vmem:[#allocation13 + $0x2d0] sm:$0xff]
    %v5440 = vld [vmem:[#allocation13 + $0x2d8] sm:$0xff]
    %v5441 = vld [vmem:[#allocation13 + $0x2e0] sm:$0xff]
    %v5442 = vld [vmem:[#allocation13 + $0x2e8] sm:$0xff]
    %v5443 = vld [vmem:[#allocation13 + $0x2f0] sm:$0xff]
    %v5444 = vld [vmem:[#allocation13 + $0x2f8] sm:$0xff]
    %v5445 = vld [vmem:[#allocation13 + $0x300] sm:$0xff]
    %v5446 = vld [vmem:[#allocation13 + $0x308] sm:$0xff]
    %v5447 = vld [vmem:[#allocation13 + $0x310] sm:$0xff]
    %v5448 = vld [vmem:[#allocation13 + $0x318] sm:$0xff]
    %v5449 = vld [vmem:[#allocation13 + $0x320] sm:$0xff]
    %v5450 = vld [vmem:[#allocation13 + $0x328] sm:$0xff]
    %v5451 = vld [vmem:[#allocation13 + $0x330] sm:$0xff]
    %v5452 = vld [vmem:[#allocation13 + $0x338] sm:$0xff]
    %v5453 = vld [vmem:[#allocation13 + $0x340] sm:$0xff]
    %v5454 = vld [vmem:[#allocation13 + $0x348] sm:$0xff]
    %v5455 = vld [vmem:[#allocation13 + $0x350] sm:$0xff]
    %v5456 = vld [vmem:[#allocation13 + $0x358] sm:$0xff]
    %v5457 = vld [vmem:[#allocation13 + $0x360] sm:$0xff]
    %v5458 = vld [vmem:[#allocation13 + $0x368] sm:$0xff]
    %v5459 = vld [vmem:[#allocation13 + $0x370] sm:$0xff]
    %v5460 = vld [vmem:[#allocation13 + $0x378] sm:$0xff]
    %v5461 = vld [vmem:[#allocation13 + $0x380] sm:$0xff]
    %v5462 = vld [vmem:[#allocation13 + $0x388] sm:$0xff]
    %v5463 = vld [vmem:[#allocation13 + $0x390] sm:$0xff]
    %v5464 = vld [vmem:[#allocation13 + $0x398] sm:$0xff]
    %v5465 = vld [vmem:[#allocation13 + $0x3a0] sm:$0xff]
    %v5466 = vld [vmem:[#allocation13 + $0x3a8] sm:$0xff]
    %v5467 = vld [vmem:[#allocation13 + $0x3b0] sm:$0xff]
    %v5468 = vld [vmem:[#allocation13 + $0x3b8] sm:$0xff]
    %v5469 = vld [vmem:[#allocation13 + $0x3c0] sm:$0xff]
    %v5470 = vld [vmem:[#allocation13 + $0x3c8] sm:$0xff]
    %v5471 = vld [vmem:[#allocation13 + $0x3d0] sm:$0xff]
    %v5472 = vld [vmem:[#allocation13 + $0x3d8] sm:$0xff]
    %v5473 = vld [vmem:[#allocation13 + $0x3e0] sm:$0xff]
    %v5474 = vld [vmem:[#allocation13 + $0x3e8] sm:$0xff]
    %v5475 = vld [vmem:[#allocation13 + $0x3f0] sm:$0xff]
    %v5476 = vld [vmem:[#allocation13 + $0x3f8] sm:$0xff]
    %v5477 = vld [vmem:[#allocation13 + $0x400] sm:$0xff]
    %v5478 = vld [vmem:[#allocation13 + $0x408] sm:$0xff]
    %v5479 = vld [vmem:[#allocation13 + $0x410] sm:$0xff]
    %v5480 = vld [vmem:[#allocation13 + $0x418] sm:$0xff]
    %v5481 = vld [vmem:[#allocation13 + $0x420] sm:$0xff]
    %v5482 = vld [vmem:[#allocation13 + $0x428] sm:$0xff]
    %v5483 = vld [vmem:[#allocation13 + $0x430] sm:$0xff]
    %v5484 = vld [vmem:[#allocation13 + $0x438] sm:$0xff]
    %v5485 = vld [vmem:[#allocation13 + $0x440] sm:$0xff]
    %v5486 = vld [vmem:[#allocation13 + $0x448] sm:$0xff]
    %v5487 = vld [vmem:[#allocation13 + $0x450] sm:$0xff]
    %v5488 = vld [vmem:[#allocation13 + $0x458] sm:$0xff]
    %v5489 = vld [vmem:[#allocation13 + $0x460] sm:$0xff]
    %v5490 = vld [vmem:[#allocation13 + $0x468] sm:$0xff]
    %v5491 = vld [vmem:[#allocation13 + $0x470] sm:$0xff]
    %v5492 = vld [vmem:[#allocation13 + $0x478] sm:$0xff]
    %v5493 = vld [vmem:[#allocation13 + $0x480] sm:$0xff]
    %v5494 = vld [vmem:[#allocation13 + $0x488] sm:$0xff]
    %v5495 = vld [vmem:[#allocation13 + $0x490] sm:$0xff]
    %v5496 = vld [vmem:[#allocation13 + $0x498] sm:$0xff]
    %v5497 = vld [vmem:[#allocation13 + $0x4a0] sm:$0xff]
    %v5498 = vld [vmem:[#allocation13 + $0x4a8] sm:$0xff]
    %v5499 = vld [vmem:[#allocation13 + $0x4b0] sm:$0xff]
    %v5500 = vld [vmem:[#allocation13 + $0x4b8] sm:$0xff]
    %v5501 = vld [vmem:[#allocation13 + $0x4c0] sm:$0xff]
    %v5502 = vld [vmem:[#allocation13 + $0x4c8] sm:$0xff]
    %v5503 = vld [vmem:[#allocation13 + $0x4d0] sm:$0xff]
    %v5504 = vld [vmem:[#allocation13 + $0x4d8] sm:$0xff]
    %v5505 = vld [vmem:[#allocation13 + $0x4e0] sm:$0xff]
    %v5506 = vld [vmem:[#allocation13 + $0x4e8] sm:$0xff]
    %v5507 = vld [vmem:[#allocation13 + $0x4f0] sm:$0xff]
    %v5508 = vld [vmem:[#allocation13 + $0x4f8] sm:$0xff]
    %v5509 = vld [vmem:[#allocation13 + $0x500] sm:$0xff]
    %v5510 = vld [vmem:[#allocation13 + $0x508] sm:$0xff]
    %v5511 = vld [vmem:[#allocation13 + $0x510] sm:$0xff]
    %v5512 = vld [vmem:[#allocation13 + $0x518] sm:$0xff]
    %v5513 = vld [vmem:[#allocation13 + $0x520] sm:$0xff]
    %v5514 = vld [vmem:[#allocation13 + $0x528] sm:$0xff]
    %v5515 = vld [vmem:[#allocation13 + $0x530] sm:$0xff]
    %v5516 = vld [vmem:[#allocation13 + $0x538] sm:$0xff]
    %v5517 = vld [vmem:[#allocation13 + $0x540] sm:$0xff]
    %v5518 = vld [vmem:[#allocation13 + $0x548] sm:$0xff]
    %v5519 = vld [vmem:[#allocation13 + $0x550] sm:$0xff]
    %v5520 = vld [vmem:[#allocation13 + $0x558] sm:$0xff]
    %v5521 = vld [vmem:[#allocation13 + $0x560] sm:$0xff]
    %v5522 = vld [vmem:[#allocation13 + $0x568] sm:$0xff]
    %v5523 = vld [vmem:[#allocation13 + $0x570] sm:$0xff]
    %v5524 = vld [vmem:[#allocation13 + $0x578] sm:$0xff]
    %v5525 = vld [vmem:[#allocation13 + $0x580] sm:$0xff]
    %v5526 = vld [vmem:[#allocation13 + $0x588] sm:$0xff]
    %v5527 = vld [vmem:[#allocation13 + $0x590] sm:$0xff]
    %v5528 = vld [vmem:[#allocation13 + $0x598] sm:$0xff]
    %v5529 = vld [vmem:[#allocation13 + $0x5a0] sm:$0xff]
    %v5530 = vld [vmem:[#allocation13 + $0x5a8] sm:$0xff]
    %v5531 = vld [vmem:[#allocation13 + $0x5b0] sm:$0xff]
    %v5532 = vld [vmem:[#allocation13 + $0x5b8] sm:$0xff]
    %v5533 = vld [vmem:[#allocation13 + $0x5c0] sm:$0xff]
    %v5534 = vld [vmem:[#allocation13 + $0x5c8] sm:$0xff]
    %v5535 = vld [vmem:[#allocation13 + $0x5d0] sm:$0xff]
    %v5536 = vld [vmem:[#allocation13 + $0x5d8] sm:$0xff]
    %v5537 = vld [vmem:[#allocation13 + $0x5e0] sm:$0xff]
    %v5538 = vld [vmem:[#allocation13 + $0x5e8] sm:$0xff]
    %v5539 = vld [vmem:[#allocation13 + $0x5f0] sm:$0xff]
    %v5540 = vld [vmem:[#allocation13 + $0x5f8] sm:$0xff]
    %v5541 = vld [vmem:[#allocation13 + $0x600] sm:$0xff]
    %v5542 = vld [vmem:[#allocation13 + $0x608] sm:$0xff]
    %v5543 = vld [vmem:[#allocation13 + $0x610] sm:$0xff]
    %v5544 = vld [vmem:[#allocation13 + $0x618] sm:$0xff]
    %v5545 = vld [vmem:[#allocation13 + $0x620] sm:$0xff]
    %v5546 = vld [vmem:[#allocation13 + $0x628] sm:$0xff]
    %v5547 = vld [vmem:[#allocation13 + $0x630] sm:$0xff]
    %v5548 = vld [vmem:[#allocation13 + $0x638] sm:$0xff]
    %v5549 = vld [vmem:[#allocation13 + $0x640] sm:$0xff]
    %v5550 = vld [vmem:[#allocation13 + $0x648] sm:$0xff]
    %v5551 = vld [vmem:[#allocation13 + $0x650] sm:$0xff]
    %v5552 = vld [vmem:[#allocation13 + $0x658] sm:$0xff]
    %v5553 = vld [vmem:[#allocation13 + $0x660] sm:$0xff]
    %v5554 = vld [vmem:[#allocation13 + $0x668] sm:$0xff]
    %v5555 = vld [vmem:[#allocation13 + $0x670] sm:$0xff]
    %v5556 = vld [vmem:[#allocation13 + $0x678] sm:$0xff]
    %v5557 = vld [vmem:[#allocation13 + $0x680] sm:$0xff]
    %v5558 = vld [vmem:[#allocation13 + $0x688] sm:$0xff]
    %v5559 = vld [vmem:[#allocation13 + $0x690] sm:$0xff]
    %v5560 = vld [vmem:[#allocation13 + $0x698] sm:$0xff]
    %v5561 = vld [vmem:[#allocation13 + $0x6a0] sm:$0xff]
    %v5562 = vld [vmem:[#allocation13 + $0x6a8] sm:$0xff]
    %v5563 = vld [vmem:[#allocation13 + $0x6b0] sm:$0xff]
    %v5564 = vld [vmem:[#allocation13 + $0x6b8] sm:$0xff]
    %v5565 = vld [vmem:[#allocation13 + $0x6c0] sm:$0xff]
    %v5566 = vld [vmem:[#allocation13 + $0x6c8] sm:$0xff]
    %v5567 = vld [vmem:[#allocation13 + $0x6d0] sm:$0xff]
    %v5568 = vld [vmem:[#allocation13 + $0x6d8] sm:$0xff]
    %v5569 = vld [vmem:[#allocation13 + $0x6e0] sm:$0xff]
    %v5570 = vld [vmem:[#allocation13 + $0x6e8] sm:$0xff]
    %v5571 = vld [vmem:[#allocation13 + $0x6f0] sm:$0xff]
    %v5572 = vld [vmem:[#allocation13 + $0x6f8] sm:$0xff]
    %v5573 = vld [vmem:[#allocation13 + $0x700] sm:$0xff]
    %v5574 = vld [vmem:[#allocation13 + $0x708] sm:$0xff]
    %v5575 = vld [vmem:[#allocation13 + $0x710] sm:$0xff]
    %v5576 = vld [vmem:[#allocation13 + $0x718] sm:$0xff]
    %v5577 = vld [vmem:[#allocation13 + $0x720] sm:$0xff]
    %v5578 = vld [vmem:[#allocation13 + $0x728] sm:$0xff]
    %v5579 = vld [vmem:[#allocation13 + $0x730] sm:$0xff]
    %v5580 = vld [vmem:[#allocation13 + $0x738] sm:$0xff]
    %v5581 = vld [vmem:[#allocation13 + $0x740] sm:$0xff]
    %v5582 = vld [vmem:[#allocation13 + $0x748] sm:$0xff]
    %v5583 = vld [vmem:[#allocation13 + $0x750] sm:$0xff]
    %v5584 = vld [vmem:[#allocation13 + $0x758] sm:$0xff]
    %v5585 = vld [vmem:[#allocation13 + $0x760] sm:$0xff]
    %v5586 = vld [vmem:[#allocation13 + $0x768] sm:$0xff]
    %v5587 = vld [vmem:[#allocation13 + $0x770] sm:$0xff]
    %v5588 = vld [vmem:[#allocation13 + $0x778] sm:$0xff]
    %v5589 = vld [vmem:[#allocation13 + $0x780] sm:$0xff]
    %v5590 = vld [vmem:[#allocation13 + $0x788] sm:$0xff]
    %v5591 = vld [vmem:[#allocation13 + $0x790] sm:$0xff]
    %v5592 = vld [vmem:[#allocation13 + $0x798] sm:$0xff]
    %v5593 = vld [vmem:[#allocation13 + $0x7a0] sm:$0xff]
    %v5594 = vld [vmem:[#allocation13 + $0x7a8] sm:$0xff]
    %v5595 = vld [vmem:[#allocation13 + $0x7b0] sm:$0xff]
    %v5596 = vld [vmem:[#allocation13 + $0x7b8] sm:$0xff]
    %v5597 = vld [vmem:[#allocation13 + $0x7c0] sm:$0xff]
    %v5598 = vld [vmem:[#allocation13 + $0x7c8] sm:$0xff]
    %v5599 = vld [vmem:[#allocation13 + $0x7d0] sm:$0xff]
    %v5600 = vld [vmem:[#allocation13 + $0x7d8] sm:$0xff]
    %v5601 = vld [vmem:[#allocation13 + $0x7e0] sm:$0xff]
    %v5602 = vld [vmem:[#allocation13 + $0x7e8] sm:$0xff]
    %v5603 = vld [vmem:[#allocation13 + $0x7f0] sm:$0xff]
    %v5604 = vld [vmem:[#allocation13 + $0x7f8] sm:$0xff]
    %v5605 = vld [vmem:[%s10 + $0x11] sm:$0xf]
    %v5607 = vlaneseq
    %v5608 = vshrl.u32 %v5607, 7
    %v5609 = vsub.s32 0, %v5608
    %v5610 = vrot.slane %v5605, %v5609
    %v5611 = vlaneseq
    %v5612 = vshrl.u32 %v5611, 7
    %v5613 = vsub.s32 1, %v5612
    %v5614 = vrot.slane %v5605, %v5613
    %v5615 = vlaneseq
    %v5616 = vshrl.u32 %v5615, 7
    %v5617 = vsub.s32 2, %v5616
    %v5618 = vrot.slane %v5605, %v5617
    %v5619 = vlaneseq
    %v5620 = vshrl.u32 %v5619, 7
    %v5621 = vsub.s32 3, %v5620
    %v5622 = vrot.slane %v5605, %v5621
    %v5883 = vunpack.c.l.b16 %v5349
    %v5884 = vunpack.c.h.b16 %v5349
    %v5885 = vunpack.c.l.b16 %v5350
    %v5886 = vunpack.c.h.b16 %v5350
    %v5887 = vunpack.c.l.b16 %v5351
    %v5888 = vunpack.c.h.b16 %v5351
    %v5889 = vunpack.c.l.b16 %v5352
    %v5890 = vunpack.c.h.b16 %v5352
    %v5891 = vunpack.c.l.b16 %v5353
    %v5892 = vunpack.c.h.b16 %v5353
    %v5893 = vunpack.c.l.b16 %v5354
    %v5894 = vunpack.c.h.b16 %v5354
    %v5895 = vunpack.c.l.b16 %v5355
    %v5896 = vunpack.c.h.b16 %v5355
    %v5897 = vunpack.c.l.b16 %v5356
    %v5898 = vunpack.c.h.b16 %v5356
    %v5899 = vunpack.c.l.b16 %v5357
    %v5900 = vunpack.c.h.b16 %v5357
    %v5901 = vunpack.c.l.b16 %v5358
    %v5902 = vunpack.c.h.b16 %v5358
    %v5903 = vunpack.c.l.b16 %v5359
    %v5904 = vunpack.c.h.b16 %v5359
    %v5905 = vunpack.c.l.b16 %v5360
    %v5906 = vunpack.c.h.b16 %v5360
    %v5907 = vunpack.c.l.b16 %v5361
    %v5908 = vunpack.c.h.b16 %v5361
    %v5909 = vunpack.c.l.b16 %v5362
    %v5910 = vunpack.c.h.b16 %v5362
    %v5911 = vunpack.c.l.b16 %v5363
    %v5912 = vunpack.c.h.b16 %v5363
    %v5913 = vunpack.c.l.b16 %v5364
    %v5914 = vunpack.c.h.b16 %v5364
    %v5915 = vunpack.c.l.b16 %v5365
    %v5916 = vunpack.c.h.b16 %v5365
    %v5917 = vunpack.c.l.b16 %v5366
    %v5918 = vunpack.c.h.b16 %v5366
    %v5919 = vunpack.c.l.b16 %v5367
    %v5920 = vunpack.c.h.b16 %v5367
    %v5921 = vunpack.c.l.b16 %v5368
    %v5922 = vunpack.c.h.b16 %v5368
    %v5923 = vunpack.c.l.b16 %v5369
    %v5924 = vunpack.c.h.b16 %v5369
    %v5925 = vunpack.c.l.b16 %v5370
    %v5926 = vunpack.c.h.b16 %v5370
    %v5927 = vunpack.c.l.b16 %v5371
    %v5928 = vunpack.c.h.b16 %v5371
    %v5929 = vunpack.c.l.b16 %v5372
    %v5930 = vunpack.c.h.b16 %v5372
    %v5931 = vunpack.c.l.b16 %v5373
    %v5932 = vunpack.c.h.b16 %v5373
    %v5933 = vunpack.c.l.b16 %v5374
    %v5934 = vunpack.c.h.b16 %v5374
    %v5935 = vunpack.c.l.b16 %v5375
    %v5936 = vunpack.c.h.b16 %v5375
    %v5937 = vunpack.c.l.b16 %v5376
    %v5938 = vunpack.c.h.b16 %v5376
    %v5939 = vunpack.c.l.b16 %v5377
    %v5940 = vunpack.c.h.b16 %v5377
    %v5941 = vunpack.c.l.b16 %v5378
    %v5942 = vunpack.c.h.b16 %v5378
    %v5943 = vunpack.c.l.b16 %v5379
    %v5944 = vunpack.c.h.b16 %v5379
    %v5945 = vunpack.c.l.b16 %v5380
    %v5946 = vunpack.c.h.b16 %v5380
    %v5947 = vunpack.c.l.b16 %v5381
    %v5948 = vunpack.c.h.b16 %v5381
    %v5949 = vunpack.c.l.b16 %v5382
    %v5950 = vunpack.c.h.b16 %v5382
    %v5951 = vunpack.c.l.b16 %v5383
    %v5952 = vunpack.c.h.b16 %v5383
    %v5953 = vunpack.c.l.b16 %v5384
    %v5954 = vunpack.c.h.b16 %v5384
    %v5955 = vunpack.c.l.b16 %v5385
    %v5956 = vunpack.c.h.b16 %v5385
    %v5957 = vunpack.c.l.b16 %v5386
    %v5958 = vunpack.c.h.b16 %v5386
    %v5959 = vunpack.c.l.b16 %v5387
    %v5960 = vunpack.c.h.b16 %v5387
    %v5961 = vunpack.c.l.b16 %v5388
    %v5962 = vunpack.c.h.b16 %v5388
    %v5963 = vunpack.c.l.b16 %v5389
    %v5964 = vunpack.c.h.b16 %v5389
    %v5965 = vunpack.c.l.b16 %v5390
    %v5966 = vunpack.c.h.b16 %v5390
    %v5967 = vunpack.c.l.b16 %v5391
    %v5968 = vunpack.c.h.b16 %v5391
    %v5969 = vunpack.c.l.b16 %v5392
    %v5970 = vunpack.c.h.b16 %v5392
    %v5971 = vunpack.c.l.b16 %v5393
    %v5972 = vunpack.c.h.b16 %v5393
    %v5973 = vunpack.c.l.b16 %v5394
    %v5974 = vunpack.c.h.b16 %v5394
    %v5975 = vunpack.c.l.b16 %v5395
    %v5976 = vunpack.c.h.b16 %v5395
    %v5977 = vunpack.c.l.b16 %v5396
    %v5978 = vunpack.c.h.b16 %v5396
    %v5979 = vunpack.c.l.b16 %v5397
    %v5980 = vunpack.c.h.b16 %v5397
    %v5981 = vunpack.c.l.b16 %v5398
    %v5982 = vunpack.c.h.b16 %v5398
    %v5983 = vunpack.c.l.b16 %v5399
    %v5984 = vunpack.c.h.b16 %v5399
    %v5985 = vunpack.c.l.b16 %v5400
    %v5986 = vunpack.c.h.b16 %v5400
    %v5987 = vunpack.c.l.b16 %v5401
    %v5988 = vunpack.c.h.b16 %v5401
    %v5989 = vunpack.c.l.b16 %v5402
    %v5990 = vunpack.c.h.b16 %v5402
    %v5991 = vunpack.c.l.b16 %v5403
    %v5992 = vunpack.c.h.b16 %v5403
    %v5993 = vunpack.c.l.b16 %v5404
    %v5994 = vunpack.c.h.b16 %v5404
    %v5995 = vunpack.c.l.b16 %v5405
    %v5996 = vunpack.c.h.b16 %v5405
    %v5997 = vunpack.c.l.b16 %v5406
    %v5998 = vunpack.c.h.b16 %v5406
    %v5999 = vunpack.c.l.b16 %v5407
    %v6000 = vunpack.c.h.b16 %v5407
    %v6001 = vunpack.c.l.b16 %v5408
    %v6002 = vunpack.c.h.b16 %v5408
    %v6003 = vunpack.c.l.b16 %v5409
    %v6004 = vunpack.c.h.b16 %v5409
    %v6005 = vunpack.c.l.b16 %v5410
    %v6006 = vunpack.c.h.b16 %v5410
    %v6007 = vunpack.c.l.b16 %v5411
    %v6008 = vunpack.c.h.b16 %v5411
    %v6009 = vunpack.c.l.b16 %v5412
    %v6010 = vunpack.c.h.b16 %v5412
    %v6011 = vunpack.c.l.b16 %v5413
    %v6012 = vunpack.c.h.b16 %v5413
    %v6013 = vunpack.c.l.b16 %v5414
    %v6014 = vunpack.c.h.b16 %v5414
    %v6015 = vunpack.c.l.b16 %v5415
    %v6016 = vunpack.c.h.b16 %v5415
    %v6017 = vunpack.c.l.b16 %v5416
    %v6018 = vunpack.c.h.b16 %v5416
    %v6019 = vunpack.c.l.b16 %v5417
    %v6020 = vunpack.c.h.b16 %v5417
    %v6021 = vunpack.c.l.b16 %v5418
    %v6022 = vunpack.c.h.b16 %v5418
    %v6023 = vunpack.c.l.b16 %v5419
    %v6024 = vunpack.c.h.b16 %v5419
    %v6025 = vunpack.c.l.b16 %v5420
    %v6026 = vunpack.c.h.b16 %v5420
    %v6027 = vunpack.c.l.b16 %v5421
    %v6028 = vunpack.c.h.b16 %v5421
    %v6029 = vunpack.c.l.b16 %v5422
    %v6030 = vunpack.c.h.b16 %v5422
    %v6031 = vunpack.c.l.b16 %v5423
    %v6032 = vunpack.c.h.b16 %v5423
    %v6033 = vunpack.c.l.b16 %v5424
    %v6034 = vunpack.c.h.b16 %v5424
    %v6035 = vunpack.c.l.b16 %v5425
    %v6036 = vunpack.c.h.b16 %v5425
    %v6037 = vunpack.c.l.b16 %v5426
    %v6038 = vunpack.c.h.b16 %v5426
    %v6039 = vunpack.c.l.b16 %v5427
    %v6040 = vunpack.c.h.b16 %v5427
    %v6041 = vunpack.c.l.b16 %v5428
    %v6042 = vunpack.c.h.b16 %v5428
    %v6043 = vunpack.c.l.b16 %v5429
    %v6044 = vunpack.c.h.b16 %v5429
    %v6045 = vunpack.c.l.b16 %v5430
    %v6046 = vunpack.c.h.b16 %v5430
    %v6047 = vunpack.c.l.b16 %v5431
    %v6048 = vunpack.c.h.b16 %v5431
    %v6049 = vunpack.c.l.b16 %v5432
    %v6050 = vunpack.c.h.b16 %v5432
    %v6051 = vunpack.c.l.b16 %v5433
    %v6052 = vunpack.c.h.b16 %v5433
    %v6053 = vunpack.c.l.b16 %v5434
    %v6054 = vunpack.c.h.b16 %v5434
    %v6055 = vunpack.c.l.b16 %v5435
    %v6056 = vunpack.c.h.b16 %v5435
    %v6057 = vunpack.c.l.b16 %v5436
    %v6058 = vunpack.c.h.b16 %v5436
    %v6059 = vunpack.c.l.b16 %v5437
    %v6060 = vunpack.c.h.b16 %v5437
    %v6061 = vunpack.c.l.b16 %v5438
    %v6062 = vunpack.c.h.b16 %v5438
    %v6063 = vunpack.c.l.b16 %v5439
    %v6064 = vunpack.c.h.b16 %v5439
    %v6065 = vunpack.c.l.b16 %v5440
    %v6066 = vunpack.c.h.b16 %v5440
    %v6067 = vunpack.c.l.b16 %v5441
    %v6068 = vunpack.c.h.b16 %v5441
    %v6069 = vunpack.c.l.b16 %v5442
    %v6070 = vunpack.c.h.b16 %v5442
    %v6071 = vunpack.c.l.b16 %v5443
    %v6072 = vunpack.c.h.b16 %v5443
    %v6073 = vunpack.c.l.b16 %v5444
    %v6074 = vunpack.c.h.b16 %v5444
    %v6075 = vunpack.c.l.b16 %v5445
    %v6076 = vunpack.c.h.b16 %v5445
    %v6077 = vunpack.c.l.b16 %v5446
    %v6078 = vunpack.c.h.b16 %v5446
    %v6079 = vunpack.c.l.b16 %v5447
    %v6080 = vunpack.c.h.b16 %v5447
    %v6081 = vunpack.c.l.b16 %v5448
    %v6082 = vunpack.c.h.b16 %v5448
    %v6083 = vunpack.c.l.b16 %v5449
    %v6084 = vunpack.c.h.b16 %v5449
    %v6085 = vunpack.c.l.b16 %v5450
    %v6086 = vunpack.c.h.b16 %v5450
    %v6087 = vunpack.c.l.b16 %v5451
    %v6088 = vunpack.c.h.b16 %v5451
    %v6089 = vunpack.c.l.b16 %v5452
    %v6090 = vunpack.c.h.b16 %v5452
    %v6091 = vunpack.c.l.b16 %v5453
    %v6092 = vunpack.c.h.b16 %v5453
    %v6093 = vunpack.c.l.b16 %v5454
    %v6094 = vunpack.c.h.b16 %v5454
    %v6095 = vunpack.c.l.b16 %v5455
    %v6096 = vunpack.c.h.b16 %v5455
    %v6097 = vunpack.c.l.b16 %v5456
    %v6098 = vunpack.c.h.b16 %v5456
    %v6099 = vunpack.c.l.b16 %v5457
    %v6100 = vunpack.c.h.b16 %v5457
    %v6101 = vunpack.c.l.b16 %v5458
    %v6102 = vunpack.c.h.b16 %v5458
    %v6103 = vunpack.c.l.b16 %v5459
    %v6104 = vunpack.c.h.b16 %v5459
    %v6105 = vunpack.c.l.b16 %v5460
    %v6106 = vunpack.c.h.b16 %v5460
    %v6107 = vunpack.c.l.b16 %v5461
    %v6108 = vunpack.c.h.b16 %v5461
    %v6109 = vunpack.c.l.b16 %v5462
    %v6110 = vunpack.c.h.b16 %v5462
    %v6111 = vunpack.c.l.b16 %v5463
    %v6112 = vunpack.c.h.b16 %v5463
    %v6113 = vunpack.c.l.b16 %v5464
    %v6114 = vunpack.c.h.b16 %v5464
    %v6115 = vunpack.c.l.b16 %v5465
    %v6116 = vunpack.c.h.b16 %v5465
    %v6117 = vunpack.c.l.b16 %v5466
    %v6118 = vunpack.c.h.b16 %v5466
    %v6119 = vunpack.c.l.b16 %v5467
    %v6120 = vunpack.c.h.b16 %v5467
    %v6121 = vunpack.c.l.b16 %v5468
    %v6122 = vunpack.c.h.b16 %v5468
    %v6123 = vunpack.c.l.b16 %v5469
    %v6124 = vunpack.c.h.b16 %v5469
    %v6125 = vunpack.c.l.b16 %v5470
    %v6126 = vunpack.c.h.b16 %v5470
    %v6127 = vunpack.c.l.b16 %v5471
    %v6128 = vunpack.c.h.b16 %v5471
    %v6129 = vunpack.c.l.b16 %v5472
    %v6130 = vunpack.c.h.b16 %v5472
    %v6131 = vunpack.c.l.b16 %v5473
    %v6132 = vunpack.c.h.b16 %v5473
    %v6133 = vunpack.c.l.b16 %v5474
    %v6134 = vunpack.c.h.b16 %v5474
    %v6135 = vunpack.c.l.b16 %v5475
    %v6136 = vunpack.c.h.b16 %v5475
    %v6137 = vunpack.c.l.b16 %v5476
    %v6138 = vunpack.c.h.b16 %v5476
    %v6139 = vunpack.c.l.b16 %v5477
    %v6140 = vunpack.c.h.b16 %v5477
    %v6141 = vunpack.c.l.b16 %v5478
    %v6142 = vunpack.c.h.b16 %v5478
    %v6143 = vunpack.c.l.b16 %v5479
    %v6144 = vunpack.c.h.b16 %v5479
    %v6145 = vunpack.c.l.b16 %v5480
    %v6146 = vunpack.c.h.b16 %v5480
    %v6147 = vunpack.c.l.b16 %v5481
    %v6148 = vunpack.c.h.b16 %v5481
    %v6149 = vunpack.c.l.b16 %v5482
    %v6150 = vunpack.c.h.b16 %v5482
    %v6151 = vunpack.c.l.b16 %v5483
    %v6152 = vunpack.c.h.b16 %v5483
    %v6153 = vunpack.c.l.b16 %v5484
    %v6154 = vunpack.c.h.b16 %v5484
    %v6155 = vunpack.c.l.b16 %v5485
    %v6156 = vunpack.c.h.b16 %v5485
    %v6157 = vunpack.c.l.b16 %v5486
    %v6158 = vunpack.c.h.b16 %v5486
    %v6159 = vunpack.c.l.b16 %v5487
    %v6160 = vunpack.c.h.b16 %v5487
    %v6161 = vunpack.c.l.b16 %v5488
    %v6162 = vunpack.c.h.b16 %v5488
    %v6163 = vunpack.c.l.b16 %v5489
    %v6164 = vunpack.c.h.b16 %v5489
    %v6165 = vunpack.c.l.b16 %v5490
    %v6166 = vunpack.c.h.b16 %v5490
    %v6167 = vunpack.c.l.b16 %v5491
    %v6168 = vunpack.c.h.b16 %v5491
    %v6169 = vunpack.c.l.b16 %v5492
    %v6170 = vunpack.c.h.b16 %v5492
    %v6171 = vunpack.c.l.b16 %v5493
    %v6172 = vunpack.c.h.b16 %v5493
    %v6173 = vunpack.c.l.b16 %v5494
    %v6174 = vunpack.c.h.b16 %v5494
    %v6175 = vunpack.c.l.b16 %v5495
    %v6176 = vunpack.c.h.b16 %v5495
    %v6177 = vunpack.c.l.b16 %v5496
    %v6178 = vunpack.c.h.b16 %v5496
    %v6179 = vunpack.c.l.b16 %v5497
    %v6180 = vunpack.c.h.b16 %v5497
    %v6181 = vunpack.c.l.b16 %v5498
    %v6182 = vunpack.c.h.b16 %v5498
    %v6183 = vunpack.c.l.b16 %v5499
    %v6184 = vunpack.c.h.b16 %v5499
    %v6185 = vunpack.c.l.b16 %v5500
    %v6186 = vunpack.c.h.b16 %v5500
    %v6187 = vunpack.c.l.b16 %v5501
    %v6188 = vunpack.c.h.b16 %v5501
    %v6189 = vunpack.c.l.b16 %v5502
    %v6190 = vunpack.c.h.b16 %v5502
    %v6191 = vunpack.c.l.b16 %v5503
    %v6192 = vunpack.c.h.b16 %v5503
    %v6193 = vunpack.c.l.b16 %v5504
    %v6194 = vunpack.c.h.b16 %v5504
    %v6195 = vunpack.c.l.b16 %v5505
    %v6196 = vunpack.c.h.b16 %v5505
    %v6197 = vunpack.c.l.b16 %v5506
    %v6198 = vunpack.c.h.b16 %v5506
    %v6199 = vunpack.c.l.b16 %v5507
    %v6200 = vunpack.c.h.b16 %v5507
    %v6201 = vunpack.c.l.b16 %v5508
    %v6202 = vunpack.c.h.b16 %v5508
    %v6203 = vunpack.c.l.b16 %v5509
    %v6204 = vunpack.c.h.b16 %v5509
    %v6205 = vunpack.c.l.b16 %v5510
    %v6206 = vunpack.c.h.b16 %v5510
    %v6207 = vunpack.c.l.b16 %v5511
    %v6208 = vunpack.c.h.b16 %v5511
    %v6209 = vunpack.c.l.b16 %v5512
    %v6210 = vunpack.c.h.b16 %v5512
    %v6211 = vunpack.c.l.b16 %v5513
    %v6212 = vunpack.c.h.b16 %v5513
    %v6213 = vunpack.c.l.b16 %v5514
    %v6214 = vunpack.c.h.b16 %v5514
    %v6215 = vunpack.c.l.b16 %v5515
    %v6216 = vunpack.c.h.b16 %v5515
    %v6217 = vunpack.c.l.b16 %v5516
    %v6218 = vunpack.c.h.b16 %v5516
    %v6219 = vunpack.c.l.b16 %v5517
    %v6220 = vunpack.c.h.b16 %v5517
    %v6221 = vunpack.c.l.b16 %v5518
    %v6222 = vunpack.c.h.b16 %v5518
    %v6223 = vunpack.c.l.b16 %v5519
    %v6224 = vunpack.c.h.b16 %v5519
    %v6225 = vunpack.c.l.b16 %v5520
    %v6226 = vunpack.c.h.b16 %v5520
    %v6227 = vunpack.c.l.b16 %v5521
    %v6228 = vunpack.c.h.b16 %v5521
    %v6229 = vunpack.c.l.b16 %v5522
    %v6230 = vunpack.c.h.b16 %v5522
    %v6231 = vunpack.c.l.b16 %v5523
    %v6232 = vunpack.c.h.b16 %v5523
    %v6233 = vunpack.c.l.b16 %v5524
    %v6234 = vunpack.c.h.b16 %v5524
    %v6235 = vunpack.c.l.b16 %v5525
    %v6236 = vunpack.c.h.b16 %v5525
    %v6237 = vunpack.c.l.b16 %v5526
    %v6238 = vunpack.c.h.b16 %v5526
    %v6239 = vunpack.c.l.b16 %v5527
    %v6240 = vunpack.c.h.b16 %v5527
    %v6241 = vunpack.c.l.b16 %v5528
    %v6242 = vunpack.c.h.b16 %v5528
    %v6243 = vunpack.c.l.b16 %v5529
    %v6244 = vunpack.c.h.b16 %v5529
    %v6245 = vunpack.c.l.b16 %v5530
    %v6246 = vunpack.c.h.b16 %v5530
    %v6247 = vunpack.c.l.b16 %v5531
    %v6248 = vunpack.c.h.b16 %v5531
    %v6249 = vunpack.c.l.b16 %v5532
    %v6250 = vunpack.c.h.b16 %v5532
    %v6251 = vunpack.c.l.b16 %v5533
    %v6252 = vunpack.c.h.b16 %v5533
    %v6253 = vunpack.c.l.b16 %v5534
    %v6254 = vunpack.c.h.b16 %v5534
    %v6255 = vunpack.c.l.b16 %v5535
    %v6256 = vunpack.c.h.b16 %v5535
    %v6257 = vunpack.c.l.b16 %v5536
    %v6258 = vunpack.c.h.b16 %v5536
    %v6259 = vunpack.c.l.b16 %v5537
    %v6260 = vunpack.c.h.b16 %v5537
    %v6261 = vunpack.c.l.b16 %v5538
    %v6262 = vunpack.c.h.b16 %v5538
    %v6263 = vunpack.c.l.b16 %v5539
    %v6264 = vunpack.c.h.b16 %v5539
    %v6265 = vunpack.c.l.b16 %v5540
    %v6266 = vunpack.c.h.b16 %v5540
    %v6267 = vunpack.c.l.b16 %v5541
    %v6268 = vunpack.c.h.b16 %v5541
    %v6269 = vunpack.c.l.b16 %v5542
    %v6270 = vunpack.c.h.b16 %v5542
    %v6271 = vunpack.c.l.b16 %v5543
    %v6272 = vunpack.c.h.b16 %v5543
    %v6273 = vunpack.c.l.b16 %v5544
    %v6274 = vunpack.c.h.b16 %v5544
    %v6275 = vunpack.c.l.b16 %v5545
    %v6276 = vunpack.c.h.b16 %v5545
    %v6277 = vunpack.c.l.b16 %v5546
    %v6278 = vunpack.c.h.b16 %v5546
    %v6279 = vunpack.c.l.b16 %v5547
    %v6280 = vunpack.c.h.b16 %v5547
    %v6281 = vunpack.c.l.b16 %v5548
    %v6282 = vunpack.c.h.b16 %v5548
    %v6283 = vunpack.c.l.b16 %v5549
    %v6284 = vunpack.c.h.b16 %v5549
    %v6285 = vunpack.c.l.b16 %v5550
    %v6286 = vunpack.c.h.b16 %v5550
    %v6287 = vunpack.c.l.b16 %v5551
    %v6288 = vunpack.c.h.b16 %v5551
    %v6289 = vunpack.c.l.b16 %v5552
    %v6290 = vunpack.c.h.b16 %v5552
    %v6291 = vunpack.c.l.b16 %v5553
    %v6292 = vunpack.c.h.b16 %v5553
    %v6293 = vunpack.c.l.b16 %v5554
    %v6294 = vunpack.c.h.b16 %v5554
    %v6295 = vunpack.c.l.b16 %v5555
    %v6296 = vunpack.c.h.b16 %v5555
    %v6297 = vunpack.c.l.b16 %v5556
    %v6298 = vunpack.c.h.b16 %v5556
    %v6299 = vunpack.c.l.b16 %v5557
    %v6300 = vunpack.c.h.b16 %v5557
    %v6301 = vunpack.c.l.b16 %v5558
    %v6302 = vunpack.c.h.b16 %v5558
    %v6303 = vunpack.c.l.b16 %v5559
    %v6304 = vunpack.c.h.b16 %v5559
    %v6305 = vunpack.c.l.b16 %v5560
    %v6306 = vunpack.c.h.b16 %v5560
    %v6307 = vunpack.c.l.b16 %v5561
    %v6308 = vunpack.c.h.b16 %v5561
    %v6309 = vunpack.c.l.b16 %v5562
    %v6310 = vunpack.c.h.b16 %v5562
    %v6311 = vunpack.c.l.b16 %v5563
    %v6312 = vunpack.c.h.b16 %v5563
    %v6313 = vunpack.c.l.b16 %v5564
    %v6314 = vunpack.c.h.b16 %v5564
    %v6315 = vunpack.c.l.b16 %v5565
    %v6316 = vunpack.c.h.b16 %v5565
    %v6317 = vunpack.c.l.b16 %v5566
    %v6318 = vunpack.c.h.b16 %v5566
    %v6319 = vunpack.c.l.b16 %v5567
    %v6320 = vunpack.c.h.b16 %v5567
    %v6321 = vunpack.c.l.b16 %v5568
    %v6322 = vunpack.c.h.b16 %v5568
    %v6323 = vunpack.c.l.b16 %v5569
    %v6324 = vunpack.c.h.b16 %v5569
    %v6325 = vunpack.c.l.b16 %v5570
    %v6326 = vunpack.c.h.b16 %v5570
    %v6327 = vunpack.c.l.b16 %v5571
    %v6328 = vunpack.c.h.b16 %v5571
    %v6329 = vunpack.c.l.b16 %v5572
    %v6330 = vunpack.c.h.b16 %v5572
    %v6331 = vunpack.c.l.b16 %v5573
    %v6332 = vunpack.c.h.b16 %v5573
    %v6333 = vunpack.c.l.b16 %v5574
    %v6334 = vunpack.c.h.b16 %v5574
    %v6335 = vunpack.c.l.b16 %v5575
    %v6336 = vunpack.c.h.b16 %v5575
    %v6337 = vunpack.c.l.b16 %v5576
    %v6338 = vunpack.c.h.b16 %v5576
    %v6339 = vunpack.c.l.b16 %v5577
    %v6340 = vunpack.c.h.b16 %v5577
    %v6341 = vunpack.c.l.b16 %v5578
    %v6342 = vunpack.c.h.b16 %v5578
    %v6343 = vunpack.c.l.b16 %v5579
    %v6344 = vunpack.c.h.b16 %v5579
    %v6345 = vunpack.c.l.b16 %v5580
    %v6346 = vunpack.c.h.b16 %v5580
    %v6347 = vunpack.c.l.b16 %v5581
    %v6348 = vunpack.c.h.b16 %v5581
    %v6349 = vunpack.c.l.b16 %v5582
    %v6350 = vunpack.c.h.b16 %v5582
    %v6351 = vunpack.c.l.b16 %v5583
    %v6352 = vunpack.c.h.b16 %v5583
    %v6353 = vunpack.c.l.b16 %v5584
    %v6354 = vunpack.c.h.b16 %v5584
    %v6355 = vunpack.c.l.b16 %v5585
    %v6356 = vunpack.c.h.b16 %v5585
    %v6357 = vunpack.c.l.b16 %v5586
    %v6358 = vunpack.c.h.b16 %v5586
    %v6359 = vunpack.c.l.b16 %v5587
    %v6360 = vunpack.c.h.b16 %v5587
    %v6361 = vunpack.c.l.b16 %v5588
    %v6362 = vunpack.c.h.b16 %v5588
    %v6363 = vunpack.c.l.b16 %v5589
    %v6364 = vunpack.c.h.b16 %v5589
    %v6365 = vunpack.c.l.b16 %v5590
    %v6366 = vunpack.c.h.b16 %v5590
    %v6367 = vunpack.c.l.b16 %v5591
    %v6368 = vunpack.c.h.b16 %v5591
    %v6369 = vunpack.c.l.b16 %v5592
    %v6370 = vunpack.c.h.b16 %v5592
    %v6371 = vunpack.c.l.b16 %v5593
    %v6372 = vunpack.c.h.b16 %v5593
    %v6373 = vunpack.c.l.b16 %v5594
    %v6374 = vunpack.c.h.b16 %v5594
    %v6375 = vunpack.c.l.b16 %v5595
    %v6376 = vunpack.c.h.b16 %v5595
    %v6377 = vunpack.c.l.b16 %v5596
    %v6378 = vunpack.c.h.b16 %v5596
    %v6379 = vunpack.c.l.b16 %v5597
    %v6380 = vunpack.c.h.b16 %v5597
    %v6381 = vunpack.c.l.b16 %v5598
    %v6382 = vunpack.c.h.b16 %v5598
    %v6383 = vunpack.c.l.b16 %v5599
    %v6384 = vunpack.c.h.b16 %v5599
    %v6385 = vunpack.c.l.b16 %v5600
    %v6386 = vunpack.c.h.b16 %v5600
    %v6387 = vunpack.c.l.b16 %v5601
    %v6388 = vunpack.c.h.b16 %v5601
    %v6389 = vunpack.c.l.b16 %v5602
    %v6390 = vunpack.c.h.b16 %v5602
    %v6391 = vunpack.c.l.b16 %v5603
    %v6392 = vunpack.c.h.b16 %v5603
    %v6393 = vunpack.c.l.b16 %v5604
    %v6394 = vunpack.c.h.b16 %v5604
    %v6395 = vpack.c.b16 %v5887, %v5883
    %v6396 = vpack.c.b16 %v5888, %v5884
    %v6397 = vpack.c.b16 %v5889, %v5885
    %v6398 = vpack.c.b16 %v5890, %v5886
    %v6399 = vpack.c.b16 %v5895, %v5891
    %v6400 = vpack.c.b16 %v5896, %v5892
    %v6401 = vpack.c.b16 %v5897, %v5893
    %v6402 = vpack.c.b16 %v5898, %v5894
    %v6403 = vpack.c.b16 %v5903, %v5899
    %v6404 = vpack.c.b16 %v5904, %v5900
    %v6405 = vpack.c.b16 %v5905, %v5901
    %v6406 = vpack.c.b16 %v5906, %v5902
    %v6407 = vpack.c.b16 %v5911, %v5907
    %v6408 = vpack.c.b16 %v5912, %v5908
    %v6409 = vpack.c.b16 %v5913, %v5909
    %v6410 = vpack.c.b16 %v5914, %v5910
    %v6411 = vpack.c.b16 %v5919, %v5915
    %v6412 = vpack.c.b16 %v5920, %v5916
    %v6413 = vpack.c.b16 %v5921, %v5917
    %v6414 = vpack.c.b16 %v5922, %v5918
    %v6415 = vpack.c.b16 %v5927, %v5923
    %v6416 = vpack.c.b16 %v5928, %v5924
    %v6417 = vpack.c.b16 %v5929, %v5925
    %v6418 = vpack.c.b16 %v5930, %v5926
    %v6419 = vpack.c.b16 %v5935, %v5931
    %v6420 = vpack.c.b16 %v5936, %v5932
    %v6421 = vpack.c.b16 %v5937, %v5933
    %v6422 = vpack.c.b16 %v5938, %v5934
    %v6423 = vpack.c.b16 %v5943, %v5939
    %v6424 = vpack.c.b16 %v5944, %v5940
    %v6425 = vpack.c.b16 %v5945, %v5941
    %v6426 = vpack.c.b16 %v5946, %v5942
    %v6427 = vpack.c.b16 %v5951, %v5947
    %v6428 = vpack.c.b16 %v5952, %v5948
    %v6429 = vpack.c.b16 %v5953, %v5949
    %v6430 = vpack.c.b16 %v5954, %v5950
    %v6431 = vpack.c.b16 %v5959, %v5955
    %v6432 = vpack.c.b16 %v5960, %v5956
    %v6433 = vpack.c.b16 %v5961, %v5957
    %v6434 = vpack.c.b16 %v5962, %v5958
    %v6435 = vpack.c.b16 %v5967, %v5963
    %v6436 = vpack.c.b16 %v5968, %v5964
    %v6437 = vpack.c.b16 %v5969, %v5965
    %v6438 = vpack.c.b16 %v5970, %v5966
    %v6439 = vpack.c.b16 %v5975, %v5971
    %v6440 = vpack.c.b16 %v5976, %v5972
    %v6441 = vpack.c.b16 %v5977, %v5973
    %v6442 = vpack.c.b16 %v5978, %v5974
    %v6443 = vpack.c.b16 %v5983, %v5979
    %v6444 = vpack.c.b16 %v5984, %v5980
    %v6445 = vpack.c.b16 %v5985, %v5981
    %v6446 = vpack.c.b16 %v5986, %v5982
    %v6447 = vpack.c.b16 %v5991, %v5987
    %v6448 = vpack.c.b16 %v5992, %v5988
    %v6449 = vpack.c.b16 %v5993, %v5989
    %v6450 = vpack.c.b16 %v5994, %v5990
    %v6451 = vpack.c.b16 %v5999, %v5995
    %v6452 = vpack.c.b16 %v6000, %v5996
    %v6453 = vpack.c.b16 %v6001, %v5997
    %v6454 = vpack.c.b16 %v6002, %v5998
    %v6455 = vpack.c.b16 %v6007, %v6003
    %v6456 = vpack.c.b16 %v6008, %v6004
    %v6457 = vpack.c.b16 %v6009, %v6005
    %v6458 = vpack.c.b16 %v6010, %v6006
    %v6459 = vpack.c.b16 %v6015, %v6011
    %v6460 = vpack.c.b16 %v6016, %v6012
    %v6461 = vpack.c.b16 %v6017, %v6013
    %v6462 = vpack.c.b16 %v6018, %v6014
    %v6463 = vpack.c.b16 %v6023, %v6019
    %v6464 = vpack.c.b16 %v6024, %v6020
    %v6465 = vpack.c.b16 %v6025, %v6021
    %v6466 = vpack.c.b16 %v6026, %v6022
    %v6467 = vpack.c.b16 %v6031, %v6027
    %v6468 = vpack.c.b16 %v6032, %v6028
    %v6469 = vpack.c.b16 %v6033, %v6029
    %v6470 = vpack.c.b16 %v6034, %v6030
    %v6471 = vpack.c.b16 %v6039, %v6035
    %v6472 = vpack.c.b16 %v6040, %v6036
    %v6473 = vpack.c.b16 %v6041, %v6037
    %v6474 = vpack.c.b16 %v6042, %v6038
    %v6475 = vpack.c.b16 %v6047, %v6043
    %v6476 = vpack.c.b16 %v6048, %v6044
    %v6477 = vpack.c.b16 %v6049, %v6045
    %v6478 = vpack.c.b16 %v6050, %v6046
    %v6479 = vpack.c.b16 %v6055, %v6051
    %v6480 = vpack.c.b16 %v6056, %v6052
    %v6481 = vpack.c.b16 %v6057, %v6053
    %v6482 = vpack.c.b16 %v6058, %v6054
    %v6483 = vpack.c.b16 %v6063, %v6059
    %v6484 = vpack.c.b16 %v6064, %v6060
    %v6485 = vpack.c.b16 %v6065, %v6061
    %v6486 = vpack.c.b16 %v6066, %v6062
    %v6487 = vpack.c.b16 %v6071, %v6067
    %v6488 = vpack.c.b16 %v6072, %v6068
    %v6489 = vpack.c.b16 %v6073, %v6069
    %v6490 = vpack.c.b16 %v6074, %v6070
    %v6491 = vpack.c.b16 %v6079, %v6075
    %v6492 = vpack.c.b16 %v6080, %v6076
    %v6493 = vpack.c.b16 %v6081, %v6077
    %v6494 = vpack.c.b16 %v6082, %v6078
    %v6495 = vpack.c.b16 %v6087, %v6083
    %v6496 = vpack.c.b16 %v6088, %v6084
    %v6497 = vpack.c.b16 %v6089, %v6085
    %v6498 = vpack.c.b16 %v6090, %v6086
    %v6499 = vpack.c.b16 %v6095, %v6091
    %v6500 = vpack.c.b16 %v6096, %v6092
    %v6501 = vpack.c.b16 %v6097, %v6093
    %v6502 = vpack.c.b16 %v6098, %v6094
    %v6503 = vpack.c.b16 %v6103, %v6099
    %v6504 = vpack.c.b16 %v6104, %v6100
    %v6505 = vpack.c.b16 %v6105, %v6101
    %v6506 = vpack.c.b16 %v6106, %v6102
    %v6507 = vpack.c.b16 %v6111, %v6107
    %v6508 = vpack.c.b16 %v6112, %v6108
    %v6509 = vpack.c.b16 %v6113, %v6109
    %v6510 = vpack.c.b16 %v6114, %v6110
    %v6511 = vpack.c.b16 %v6119, %v6115
    %v6512 = vpack.c.b16 %v6120, %v6116
    %v6513 = vpack.c.b16 %v6121, %v6117
    %v6514 = vpack.c.b16 %v6122, %v6118
    %v6515 = vpack.c.b16 %v6127, %v6123
    %v6516 = vpack.c.b16 %v6128, %v6124
    %v6517 = vpack.c.b16 %v6129, %v6125
    %v6518 = vpack.c.b16 %v6130, %v6126
    %v6519 = vpack.c.b16 %v6135, %v6131
    %v6520 = vpack.c.b16 %v6136, %v6132
    %v6521 = vpack.c.b16 %v6137, %v6133
    %v6522 = vpack.c.b16 %v6138, %v6134
    %v6523 = vpack.c.b16 %v6143, %v6139
    %v6524 = vpack.c.b16 %v6144, %v6140
    %v6525 = vpack.c.b16 %v6145, %v6141
    %v6526 = vpack.c.b16 %v6146, %v6142
    %v6527 = vpack.c.b16 %v6151, %v6147
    %v6528 = vpack.c.b16 %v6152, %v6148
    %v6529 = vpack.c.b16 %v6153, %v6149
    %v6530 = vpack.c.b16 %v6154, %v6150
    %v6531 = vpack.c.b16 %v6159, %v6155
    %v6532 = vpack.c.b16 %v6160, %v6156
    %v6533 = vpack.c.b16 %v6161, %v6157
    %v6534 = vpack.c.b16 %v6162, %v6158
    %v6535 = vpack.c.b16 %v6167, %v6163
    %v6536 = vpack.c.b16 %v6168, %v6164
    %v6537 = vpack.c.b16 %v6169, %v6165
    %v6538 = vpack.c.b16 %v6170, %v6166
    %v6539 = vpack.c.b16 %v6175, %v6171
    %v6540 = vpack.c.b16 %v6176, %v6172
    %v6541 = vpack.c.b16 %v6177, %v6173
    %v6542 = vpack.c.b16 %v6178, %v6174
    %v6543 = vpack.c.b16 %v6183, %v6179
    %v6544 = vpack.c.b16 %v6184, %v6180
    %v6545 = vpack.c.b16 %v6185, %v6181
    %v6546 = vpack.c.b16 %v6186, %v6182
    %v6547 = vpack.c.b16 %v6191, %v6187
    %v6548 = vpack.c.b16 %v6192, %v6188
    %v6549 = vpack.c.b16 %v6193, %v6189
    %v6550 = vpack.c.b16 %v6194, %v6190
    %v6551 = vpack.c.b16 %v6199, %v6195
    %v6552 = vpack.c.b16 %v6200, %v6196
    %v6553 = vpack.c.b16 %v6201, %v6197
    %v6554 = vpack.c.b16 %v6202, %v6198
    %v6555 = vpack.c.b16 %v6207, %v6203
    %v6556 = vpack.c.b16 %v6208, %v6204
    %v6557 = vpack.c.b16 %v6209, %v6205
    %v6558 = vpack.c.b16 %v6210, %v6206
    %v6559 = vpack.c.b16 %v6215, %v6211
    %v6560 = vpack.c.b16 %v6216, %v6212
    %v6561 = vpack.c.b16 %v6217, %v6213
    %v6562 = vpack.c.b16 %v6218, %v6214
    %v6563 = vpack.c.b16 %v6223, %v6219
    %v6564 = vpack.c.b16 %v6224, %v6220
    %v6565 = vpack.c.b16 %v6225, %v6221
    %v6566 = vpack.c.b16 %v6226, %v6222
    %v6567 = vpack.c.b16 %v6231, %v6227
    %v6568 = vpack.c.b16 %v6232, %v6228
    %v6569 = vpack.c.b16 %v6233, %v6229
    %v6570 = vpack.c.b16 %v6234, %v6230
    %v6571 = vpack.c.b16 %v6239, %v6235
    %v6572 = vpack.c.b16 %v6240, %v6236
    %v6573 = vpack.c.b16 %v6241, %v6237
    %v6574 = vpack.c.b16 %v6242, %v6238
    %v6575 = vpack.c.b16 %v6247, %v6243
    %v6576 = vpack.c.b16 %v6248, %v6244
    %v6577 = vpack.c.b16 %v6249, %v6245
    %v6578 = vpack.c.b16 %v6250, %v6246
    %v6579 = vpack.c.b16 %v6255, %v6251
    %v6580 = vpack.c.b16 %v6256, %v6252
    %v6581 = vpack.c.b16 %v6257, %v6253
    %v6582 = vpack.c.b16 %v6258, %v6254
    %v6583 = vpack.c.b16 %v6263, %v6259
    %v6584 = vpack.c.b16 %v6264, %v6260
    %v6585 = vpack.c.b16 %v6265, %v6261
    %v6586 = vpack.c.b16 %v6266, %v6262
    %v6587 = vpack.c.b16 %v6271, %v6267
    %v6588 = vpack.c.b16 %v6272, %v6268
    %v6589 = vpack.c.b16 %v6273, %v6269
    %v6590 = vpack.c.b16 %v6274, %v6270
    %v6591 = vpack.c.b16 %v6279, %v6275
    %v6592 = vpack.c.b16 %v6280, %v6276
    %v6593 = vpack.c.b16 %v6281, %v6277
    %v6594 = vpack.c.b16 %v6282, %v6278
    %v6595 = vpack.c.b16 %v6287, %v6283
    %v6596 = vpack.c.b16 %v6288, %v6284
    %v6597 = vpack.c.b16 %v6289, %v6285
    %v6598 = vpack.c.b16 %v6290, %v6286
    %v6599 = vpack.c.b16 %v6295, %v6291
    %v6600 = vpack.c.b16 %v6296, %v6292
    %v6601 = vpack.c.b16 %v6297, %v6293
    %v6602 = vpack.c.b16 %v6298, %v6294
    %v6603 = vpack.c.b16 %v6303, %v6299
    %v6604 = vpack.c.b16 %v6304, %v6300
    %v6605 = vpack.c.b16 %v6305, %v6301
    %v6606 = vpack.c.b16 %v6306, %v6302
    %v6607 = vpack.c.b16 %v6311, %v6307
    %v6608 = vpack.c.b16 %v6312, %v6308
    %v6609 = vpack.c.b16 %v6313, %v6309
    %v6610 = vpack.c.b16 %v6314, %v6310
    %v6611 = vpack.c.b16 %v6319, %v6315
    %v6612 = vpack.c.b16 %v6320, %v6316
    %v6613 = vpack.c.b16 %v6321, %v6317
    %v6614 = vpack.c.b16 %v6322, %v6318
    %v6615 = vpack.c.b16 %v6327, %v6323
    %v6616 = vpack.c.b16 %v6328, %v6324
    %v6617 = vpack.c.b16 %v6329, %v6325
    %v6618 = vpack.c.b16 %v6330, %v6326
    %v6619 = vpack.c.b16 %v6335, %v6331
    %v6620 = vpack.c.b16 %v6336, %v6332
    %v6621 = vpack.c.b16 %v6337, %v6333
    %v6622 = vpack.c.b16 %v6338, %v6334
    %v6623 = vpack.c.b16 %v6343, %v6339
    %v6624 = vpack.c.b16 %v6344, %v6340
    %v6625 = vpack.c.b16 %v6345, %v6341
    %v6626 = vpack.c.b16 %v6346, %v6342
    %v6627 = vpack.c.b16 %v6351, %v6347
    %v6628 = vpack.c.b16 %v6352, %v6348
    %v6629 = vpack.c.b16 %v6353, %v6349
    %v6630 = vpack.c.b16 %v6354, %v6350
    %v6631 = vpack.c.b16 %v6359, %v6355
    %v6632 = vpack.c.b16 %v6360, %v6356
    %v6633 = vpack.c.b16 %v6361, %v6357
    %v6634 = vpack.c.b16 %v6362, %v6358
    %v6635 = vpack.c.b16 %v6367, %v6363
    %v6636 = vpack.c.b16 %v6368, %v6364
    %v6637 = vpack.c.b16 %v6369, %v6365
    %v6638 = vpack.c.b16 %v6370, %v6366
    %v6639 = vpack.c.b16 %v6375, %v6371
    %v6640 = vpack.c.b16 %v6376, %v6372
    %v6641 = vpack.c.b16 %v6377, %v6373
    %v6642 = vpack.c.b16 %v6378, %v6374
    %v6643 = vpack.c.b16 %v6383, %v6379
    %v6644 = vpack.c.b16 %v6384, %v6380
    %v6645 = vpack.c.b16 %v6385, %v6381
    %v6646 = vpack.c.b16 %v6386, %v6382
    %v6647 = vpack.c.b16 %v6391, %v6387
    %v6648 = vpack.c.b16 %v6392, %v6388
    %v6649 = vpack.c.b16 %v6393, %v6389
    %v6650 = vpack.c.b16 %v6394, %v6390
    %6907 = vmatprep.subr.bf16.mxu0 %v6396
    %6908 = vmatpush1.bf16.msra.mxu0 %v6395
    %6909 = vmatprep.subr.bf16.mxu0 %v6400
    %6910 = vmatpush1.bf16.msra.mxu0 %v6399
    %6911 = vmatprep.subr.bf16.mxu0 %v6404
    %6912 = vmatpush1.bf16.msra.mxu0 %v6403
    %6913 = vmatprep.subr.bf16.mxu0 %v6408
    %6914 = vmatpush1.bf16.msra.mxu0 %v6407
    %6915 = vmatprep.subr.bf16.mxu0 %v6412
    %6916 = vmatpush1.bf16.msra.mxu0 %v6411
    %6917 = vmatprep.subr.bf16.mxu0 %v6416
    %6918 = vmatpush1.bf16.msra.mxu0 %v6415
    %6919 = vmatprep.subr.bf16.mxu0 %v6420
    %6920 = vmatpush1.bf16.msra.mxu0 %v6419
    %6921 = vmatprep.subr.bf16.mxu0 %v6424
    %6922 = vmatpush1.bf16.msra.mxu0 %v6423
    %6923 = vmatprep.subr.bf16.mxu0 %v6428
    %6924 = vmatpush1.bf16.msra.mxu0 %v6427
    %6925 = vmatprep.subr.bf16.mxu0 %v6432
    %6926 = vmatpush1.bf16.msra.mxu0 %v6431
    %6927 = vmatprep.subr.bf16.mxu0 %v6436
    %6928 = vmatpush1.bf16.msra.mxu0 %v6435
    %6929 = vmatprep.subr.bf16.mxu0 %v6440
    %6930 = vmatpush1.bf16.msra.mxu0 %v6439
    %6931 = vmatprep.subr.bf16.mxu0 %v6444
    %6932 = vmatpush1.bf16.msra.mxu0 %v6443
    %6933 = vmatprep.subr.bf16.mxu0 %v6448
    %6934 = vmatpush1.bf16.msra.mxu0 %v6447
    %6935 = vmatprep.subr.bf16.mxu0 %v6452
    %6936 = vmatpush1.bf16.msra.mxu0 %v6451
    %6937 = vmatprep.subr.bf16.mxu0 %v6456
    %6938 = vmatpush1.bf16.msra.mxu0 %v6455
    %6939 = vmatprep.mubr.bf16.mxu0 %v5286
    %6940 = vmatmul.mubr.bf16.gmra.mrb[0].mxu0 %v5285
    %v6941 = vpop.f32.mrb[0].mxu0
    %v6942 = vadd.f32 %v5610, %v6941
    %v6943 = vpop.f32.mrb[0].mxu0
    %v6944 = vadd.f32 %v5614, %v6943
    %v6945 = vpop.f32.mrb[0].mxu0
    %v6946 = vadd.f32 %v5610, %v6945
    %v6947 = vpop.f32.mrb[0].mxu0
    %v6948 = vadd.f32 %v5614, %v6947
    %6949 = vmatprep.mubr.bf16.mxu0 %v5294
    %6950 = vmatmul.mubr.bf16.gmra.mrb[0].mxu0 %v5293
    %v6951 = vpop.f32.mrb[0].mxu0
    %v6952 = vadd.f32 %v5610, %v6951
    %v6953 = vpop.f32.mrb[0].mxu0
    %v6954 = vadd.f32 %v5614, %v6953
    %v6955 = vpop.f32.mrb[0].mxu0
    %v6956 = vadd.f32 %v5610, %v6955
    %v6957 = vpop.f32.mrb[0].mxu0
    %v6958 = vadd.f32 %v5614, %v6957
    %6959 = vmatprep.mubr.bf16.mxu0 %v5302
    %6960 = vmatmul.mubr.bf16.gmra.mrb[0].mxu0 %v5301
    %v6961 = vpop.f32.mrb[0].mxu0
    %v6962 = vadd.f32 %v5610, %v6961
    %v6963 = vpop.f32.mrb[0].mxu0
    %v6964 = vadd.f32 %v5614, %v6963
    %v6965 = vpop.f32.mrb[0].mxu0
    %v6966 = vadd.f32 %v5610, %v6965
    %v6967 = vpop.f32.mrb[0].mxu0
    %v6968 = vadd.f32 %v5614, %v6967
    %6969 = vmatprep.mubr.bf16.mxu0 %v5310
    %6970 = vmatmul.mubr.bf16.gmra.mrb[0].mxu0 %v5309
    %v6971 = vpop.f32.mrb[0].mxu0
    %v6972 = vadd.f32 %v5610, %v6971
    %v6973 = vpop.f32.mrb[0].mxu0
    %v6974 = vadd.f32 %v5614, %v6973
    %v6975 = vpop.f32.mrb[0].mxu0
    %v6976 = vadd.f32 %v5610, %v6975
    %v6977 = vpop.f32.mrb[0].mxu0
    %v6978 = vadd.f32 %v5614, %v6977
    %6979 = vmatprep.mubr.bf16.mxu0 %v5318
    %6980 = vmatmul.mubr.bf16.gmra.mrb[0].mxu0 %v5317
    %v6981 = vpop.f32.mrb[0].mxu0
    %v6982 = vadd.f32 %v5610, %v6981
    %v6983 = vpop.f32.mrb[0].mxu0
    %v6984 = vadd.f32 %v5614, %v6983
    %v6985 = vpop.f32.mrb[0].mxu0
    %v6986 = vadd.f32 %v5610, %v6985
    %v6987 = vpop.f32.mrb[0].mxu0
    %v6988 = vadd.f32 %v5614, %v6987
    %6989 = vmatprep.mubr.bf16.mxu0 %v5326
    %6990 = vmatmul.mubr.bf16.gmra.mrb[0].mxu0 %v5325
    %v6991 = vpop.f32.mrb[0].mxu0
    %v6992 = vadd.f32 %v5610, %v6991
    %v6993 = vpop.f32.mrb[0].mxu0
    %v6994 = vadd.f32 %v5614, %v6993
    %v6995 = vpop.f32.mrb[0].mxu0
    %v6996 = vadd.f32 %v5610, %v6995
    %v6997 = vpop.f32.mrb[0].mxu0
    %v6998 = vadd.f32 %v5614, %v6997
    %6999 = vmatprep.mubr.bf16.mxu0 %v5334
    %7000 = vmatmul.mubr.bf16.gmra.mrb[0].mxu0 %v5333
    %v7001 = vpop.f32.mrb[0].mxu0
    %v7002 = vadd.f32 %v5610, %v7001
    %v7003 = vpop.f32.mrb[0].mxu0
    %v7004 = vadd.f32 %v5614, %v7003
    %v7005 = vpop.f32.mrb[0].mxu0
    %v7006 = vadd.f32 %v5610, %v7005
    %v7007 = vpop.f32.mrb[0].mxu0
    %v7008 = vadd.f32 %v5614, %v7007
    %7009 = vmatprep.mubr.bf16.mxu0 %v5342
    %7010 = vmatmul.mubr.bf16.gmra.mrb[0].mxu0 %v5341
    %v7011 = vpop.f32.mrb[0].mxu0
    %v7012 = vadd.f32 %v5610, %v7011
    %v7013 = vpop.f32.mrb[0].mxu0
    %v7014 = vadd.f32 %v5614, %v7013
    %v7015 = vpop.f32.mrb[0].mxu0
    %v7016 = vadd.f32 %v5610, %v7015
    %v7017 = vpop.f32.mrb[0].mxu0
    %v7018 = vadd.f32 %v5614, %v7017
    %7019 = vdwg.mxu0
    %7020 = vmatprep.subr.bf16.mxu0 %v6460
    %7021 = vmatpush1.bf16.msra.mxu0 %v6459
    %7022 = vmatprep.subr.bf16.mxu0 %v6464
    %7023 = vmatpush1.bf16.msra.mxu0 %v6463
    %7024 = vmatprep.subr.bf16.mxu0 %v6468
    %7025 = vmatpush1.bf16.msra.mxu0 %v6467
    %7026 = vmatprep.subr.bf16.mxu0 %v6472
    %7027 = vmatpush1.bf16.msra.mxu0 %v6471
    %7028 = vmatprep.subr.bf16.mxu0 %v6476
    %7029 = vmatpush1.bf16.msra.mxu0 %v6475
    %7030 = vmatprep.subr.bf16.mxu0 %v6480
    %7031 = vmatpush1.bf16.msra.mxu0 %v6479
    %7032 = vmatprep.subr.bf16.mxu0 %v6484
    %7033 = vmatpush1.bf16.msra.mxu0 %v6483
    %7034 = vmatprep.subr.bf16.mxu0 %v6488
    %7035 = vmatpush1.bf16.msra.mxu0 %v6487
    %7036 = vmatprep.subr.bf16.mxu0 %v6492
    %7037 = vmatpush1.bf16.msra.mxu0 %v6491
    %7038 = vmatprep.subr.bf16.mxu0 %v6496
    %7039 = vmatpush1.bf16.msra.mxu0 %v6495
    %7040 = vmatprep.subr.bf16.mxu0 %v6500
    %7041 = vmatpush1.bf16.msra.mxu0 %v6499
    %7042 = vmatprep.subr.bf16.mxu0 %v6504
    %7043 = vmatpush1.bf16.msra.mxu0 %v6503
    %7044 = vmatprep.subr.bf16.mxu0 %v6508
    %7045 = vmatpush1.bf16.msra.mxu0 %v6507
    %7046 = vmatprep.subr.bf16.mxu0 %v6512
    %7047 = vmatpush1.bf16.msra.mxu0 %v6511
    %7048 = vmatprep.subr.bf16.mxu0 %v6516
    %7049 = vmatpush1.bf16.msra.mxu0 %v6515
    %7050 = vmatprep.subr.bf16.mxu0 %v6520
    %7051 = vmatpush1.bf16.msra.mxu0 %v6519
    %7052 = vmatprep.mubr.bf16.mxu0 %v5288
    %7053 = vmatmul.mubr.bf16.gmra.mrb[0].mxu0 %v5287
    %v7054 = vpop.f32.mrb[0].mxu0
    %v7055 = vadd.f32 %v6942, %v7054
    %v7056 = vpop.f32.mrb[0].mxu0
    %v7057 = vadd.f32 %v6944, %v7056
    %v7058 = vpop.f32.mrb[0].mxu0
    %v7059 = vadd.f32 %v6946, %v7058
    %v7060 = vpop.f32.mrb[0].mxu0
    %v7061 = vadd.f32 %v6948, %v7060
    %7062 = vmatprep.mubr.bf16.mxu0 %v5296
    %7063 = vmatmul.mubr.bf16.gmra.mrb[0].mxu0 %v5295
    %v7064 = vpop.f32.mrb[0].mxu0
    %v7065 = vadd.f32 %v6952, %v7064
    %v7066 = vpop.f32.mrb[0].mxu0
    %v7067 = vadd.f32 %v6954, %v7066
    %v7068 = vpop.f32.mrb[0].mxu0
    %v7069 = vadd.f32 %v6956, %v7068
    %v7070 = vpop.f32.mrb[0].mxu0
    %v7071 = vadd.f32 %v6958, %v7070
    %7072 = vmatprep.mubr.bf16.mxu0 %v5304
    %7073 = vmatmul.mubr.bf16.gmra.mrb[0].mxu0 %v5303
    %v7074 = vpop.f32.mrb[0].mxu0
    %v7075 = vadd.f32 %v6962, %v7074
    %v7076 = vpop.f32.mrb[0].mxu0
    %v7077 = vadd.f32 %v6964, %v7076
    %v7078 = vpop.f32.mrb[0].mxu0
    %v7079 = vadd.f32 %v6966, %v7078
    %v7080 = vpop.f32.mrb[0].mxu0
    %v7081 = vadd.f32 %v6968, %v7080
    %7082 = vmatprep.mubr.bf16.mxu0 %v5312
    %7083 = vmatmul.mubr.bf16.gmra.mrb[0].mxu0 %v5311
    %v7084 = vpop.f32.mrb[0].mxu0
    %v7085 = vadd.f32 %v6972, %v7084
    %v7086 = vpop.f32.mrb[0].mxu0
    %v7087 = vadd.f32 %v6974, %v7086
    %v7088 = vpop.f32.mrb[0].mxu0
    %v7089 = vadd.f32 %v6976, %v7088
    %v7090 = vpop.f32.mrb[0].mxu0
    %v7091 = vadd.f32 %v6978, %v7090
    %7092 = vmatprep.mubr.bf16.mxu0 %v5320
    %7093 = vmatmul.mubr.bf16.gmra.mrb[0].mxu0 %v5319
    %v7094 = vpop.f32.mrb[0].mxu0
    %v7095 = vadd.f32 %v6982, %v7094
    %v7096 = vpop.f32.mrb[0].mxu0
    %v7097 = vadd.f32 %v6984, %v7096
    %v7098 = vpop.f32.mrb[0].mxu0
    %v7099 = vadd.f32 %v6986, %v7098
    %v7100 = vpop.f32.mrb[0].mxu0
    %v7101 = vadd.f32 %v6988, %v7100
    %7102 = vmatprep.mubr.bf16.mxu0 %v5328
    %7103 = vmatmul.mubr.bf16.gmra.mrb[0].mxu0 %v5327
    %v7104 = vpop.f32.mrb[0].mxu0
    %v7105 = vadd.f32 %v6992, %v7104
    %v7106 = vpop.f32.mrb[0].mxu0
    %v7107 = vadd.f32 %v6994, %v7106
    %v7108 = vpop.f32.mrb[0].mxu0
    %v7109 = vadd.f32 %v6996, %v7108
    %v7110 = vpop.f32.mrb[0].mxu0
    %v7111 = vadd.f32 %v6998, %v7110
    %7112 = vmatprep.mubr.bf16.mxu0 %v5336
    %7113 = vmatmul.mubr.bf16.gmra.mrb[0].mxu0 %v5335
    %v7114 = vpop.f32.mrb[0].mxu0
    %v7115 = vadd.f32 %v7002, %v7114
    %v7116 = vpop.f32.mrb[0].mxu0
    %v7117 = vadd.f32 %v7004, %v7116
    %v7118 = vpop.f32.mrb[0].mxu0
    %v7119 = vadd.f32 %v7006, %v7118
    %v7120 = vpop.f32.mrb[0].mxu0
    %v7121 = vadd.f32 %v7008, %v7120
    %7122 = vmatprep.mubr.bf16.mxu0 %v5344
    %7123 = vmatmul.mubr.bf16.gmra.mrb[0].mxu0 %v5343
    %v7124 = vpop.f32.mrb[0].mxu0
    %v7125 = vadd.f32 %v7012, %v7124
    %v7126 = vpop.f32.mrb[0].mxu0
    %v7127 = vadd.f32 %v7014, %v7126
    %v7128 = vpop.f32.mrb[0].mxu0
    %v7129 = vadd.f32 %v7016, %v7128
    %v7130 = vpop.f32.mrb[0].mxu0
    %v7131 = vadd.f32 %v7018, %v7130
    %7132 = vdwg.mxu0
    %7133 = vmatprep.subr.bf16.mxu0 %v6524
    %7134 = vmatpush1.bf16.msra.mxu0 %v6523
    %7135 = vmatprep.subr.bf16.mxu0 %v6528
    %7136 = vmatpush1.bf16.msra.mxu0 %v6527
    %7137 = vmatprep.subr.bf16.mxu0 %v6532
    %7138 = vmatpush1.bf16.msra.mxu0 %v6531
    %7139 = vmatprep.subr.bf16.mxu0 %v6536
    %7140 = vmatpush1.bf16.msra.mxu0 %v6535
    %7141 = vmatprep.subr.bf16.mxu0 %v6540
    %7142 = vmatpush1.bf16.msra.mxu0 %v6539
    %7143 = vmatprep.subr.bf16.mxu0 %v6544
    %7144 = vmatpush1.bf16.msra.mxu0 %v6543
    %7145 = vmatprep.subr.bf16.mxu0 %v6548
    %7146 = vmatpush1.bf16.msra.mxu0 %v6547
    %7147 = vmatprep.subr.bf16.mxu0 %v6552
    %7148 = vmatpush1.bf16.msra.mxu0 %v6551
    %7149 = vmatprep.subr.bf16.mxu0 %v6556
    %7150 = vmatpush1.bf16.msra.mxu0 %v6555
    %7151 = vmatprep.subr.bf16.mxu0 %v6560
    %7152 = vmatpush1.bf16.msra.mxu0 %v6559
    %7153 = vmatprep.subr.bf16.mxu0 %v6564
    %7154 = vmatpush1.bf16.msra.mxu0 %v6563
    %7155 = vmatprep.subr.bf16.mxu0 %v6568
    %7156 = vmatpush1.bf16.msra.mxu0 %v6567
    %7157 = vmatprep.subr.bf16.mxu0 %v6572
    %7158 = vmatpush1.bf16.msra.mxu0 %v6571
    %7159 = vmatprep.subr.bf16.mxu0 %v6576
    %7160 = vmatpush1.bf16.msra.mxu0 %v6575
    %7161 = vmatprep.subr.bf16.mxu0 %v6580
    %7162 = vmatpush1.bf16.msra.mxu0 %v6579
    %7163 = vmatprep.subr.bf16.mxu0 %v6584
    %7164 = vmatpush1.bf16.msra.mxu0 %v6583
    %7165 = vmatprep.mubr.bf16.mxu0 %v5290
    %7166 = vmatmul.mubr.bf16.gmra.mrb[0].mxu0 %v5289
    %v7167 = vpop.f32.mrb[0].mxu0
    %v7168 = vadd.f32 %v7055, %v7167
    %v7169 = vpop.f32.mrb[0].mxu0
    %v7170 = vadd.f32 %v7057, %v7169
    %v7171 = vpop.f32.mrb[0].mxu0
    %v7172 = vadd.f32 %v7059, %v7171
    %v7173 = vpop.f32.mrb[0].mxu0
    %v7174 = vadd.f32 %v7061, %v7173
    %7175 = vmatprep.mubr.bf16.mxu0 %v5298
    %7176 = vmatmul.mubr.bf16.gmra.mrb[0].mxu0 %v5297
    %v7177 = vpop.f32.mrb[0].mxu0
    %v7178 = vadd.f32 %v7065, %v7177
    %v7179 = vpop.f32.mrb[0].mxu0
    %v7180 = vadd.f32 %v7067, %v7179
    %v7181 = vpop.f32.mrb[0].mxu0
    %v7182 = vadd.f32 %v7069, %v7181
    %v7183 = vpop.f32.mrb[0].mxu0
    %v7184 = vadd.f32 %v7071, %v7183
    %7185 = vmatprep.mubr.bf16.mxu0 %v5306
    %7186 = vmatmul.mubr.bf16.gmra.mrb[0].mxu0 %v5305
    %v7187 = vpop.f32.mrb[0].mxu0
    %v7188 = vadd.f32 %v7075, %v7187
    %v7189 = vpop.f32.mrb[0].mxu0
    %v7190 = vadd.f32 %v7077, %v7189
    %v7191 = vpop.f32.mrb[0].mxu0
    %v7192 = vadd.f32 %v7079, %v7191
    %v7193 = vpop.f32.mrb[0].mxu0
    %v7194 = vadd.f32 %v7081, %v7193
    %7195 = vmatprep.mubr.bf16.mxu0 %v5314
    %7196 = vmatmul.mubr.bf16.gmra.mrb[0].mxu0 %v5313
    %v7197 = vpop.f32.mrb[0].mxu0
    %v7198 = vadd.f32 %v7085, %v7197
    %v7199 = vpop.f32.mrb[0].mxu0
    %v7200 = vadd.f32 %v7087, %v7199
    %v7201 = vpop.f32.mrb[0].mxu0
    %v7202 = vadd.f32 %v7089, %v7201
    %v7203 = vpop.f32.mrb[0].mxu0
    %v7204 = vadd.f32 %v7091, %v7203
    %7205 = vmatprep.mubr.bf16.mxu0 %v5322
    %7206 = vmatmul.mubr.bf16.gmra.mrb[0].mxu0 %v5321
    %v7207 = vpop.f32.mrb[0].mxu0
    %v7208 = vadd.f32 %v7095, %v7207
    %v7209 = vpop.f32.mrb[0].mxu0
    %v7210 = vadd.f32 %v7097, %v7209
    %v7211 = vpop.f32.mrb[0].mxu0
    %v7212 = vadd.f32 %v7099, %v7211
    %v7213 = vpop.f32.mrb[0].mxu0
    %v7214 = vadd.f32 %v7101, %v7213
    %7215 = vmatprep.mubr.bf16.mxu0 %v5330
    %7216 = vmatmul.mubr.bf16.gmra.mrb[0].mxu0 %v5329
    %v7217 = vpop.f32.mrb[0].mxu0
    %v7218 = vadd.f32 %v7105, %v7217
    %v7219 = vpop.f32.mrb[0].mxu0
    %v7220 = vadd.f32 %v7107, %v7219
    %v7221 = vpop.f32.mrb[0].mxu0
    %v7222 = vadd.f32 %v7109, %v7221
    %v7223 = vpop.f32.mrb[0].mxu0
    %v7224 = vadd.f32 %v7111, %v7223
    %7225 = vmatprep.mubr.bf16.mxu0 %v5338
    %7226 = vmatmul.mubr.bf16.gmra.mrb[0].mxu0 %v5337
    %v7227 = vpop.f32.mrb[0].mxu0
    %v7228 = vadd.f32 %v7115, %v7227
    %v7229 = vpop.f32.mrb[0].mxu0
    %v7230 = vadd.f32 %v7117, %v7229
    %v7231 = vpop.f32.mrb[0].mxu0
    %v7232 = vadd.f32 %v7119, %v7231
    %v7233 = vpop.f32.mrb[0].mxu0
    %v7234 = vadd.f32 %v7121, %v7233
    %7235 = vmatprep.mubr.bf16.mxu0 %v5346
    %7236 = vmatmul.mubr.bf16.gmra.mrb[0].mxu0 %v5345
    %v7237 = vpop.f32.mrb[0].mxu0
    %v7238 = vadd.f32 %v7125, %v7237
    %v7239 = vpop.f32.mrb[0].mxu0
    %v7240 = vadd.f32 %v7127, %v7239
    %v7241 = vpop.f32.mrb[0].mxu0
    %v7242 = vadd.f32 %v7129, %v7241
    %v7243 = vpop.f32.mrb[0].mxu0
    %v7244 = vadd.f32 %v7131, %v7243
    %7245 = vdwg.mxu0
    %7246 = vmatprep.subr.bf16.mxu0 %v6588
    %7247 = vmatpush1.bf16.msra.mxu0 %v6587
    %7248 = vmatprep.subr.bf16.mxu0 %v6592
    %7249 = vmatpush1.bf16.msra.mxu0 %v6591
    %7250 = vmatprep.subr.bf16.mxu0 %v6596
    %7251 = vmatpush1.bf16.msra.mxu0 %v6595
    %7252 = vmatprep.subr.bf16.mxu0 %v6600
    %7253 = vmatpush1.bf16.msra.mxu0 %v6599
    %7254 = vmatprep.subr.bf16.mxu0 %v6604
    %7255 = vmatpush1.bf16.msra.mxu0 %v6603
    %7256 = vmatprep.subr.bf16.mxu0 %v6608
    %7257 = vmatpush1.bf16.msra.mxu0 %v6607
    %7258 = vmatprep.subr.bf16.mxu0 %v6612
    %7259 = vmatpush1.bf16.msra.mxu0 %v6611
    %7260 = vmatprep.subr.bf16.mxu0 %v6616
    %7261 = vmatpush1.bf16.msra.mxu0 %v6615
    %7262 = vmatprep.subr.bf16.mxu0 %v6620
    %7263 = vmatpush1.bf16.msra.mxu0 %v6619
    %7264 = vmatprep.subr.bf16.mxu0 %v6624
    %7265 = vmatpush1.bf16.msra.mxu0 %v6623
    %7266 = vmatprep.subr.bf16.mxu0 %v6628
    %7267 = vmatpush1.bf16.msra.mxu0 %v6627
    %7268 = vmatprep.subr.bf16.mxu0 %v6632
    %7269 = vmatpush1.bf16.msra.mxu0 %v6631
    %7270 = vmatprep.subr.bf16.mxu0 %v6636
    %7271 = vmatpush1.bf16.msra.mxu0 %v6635
    %7272 = vmatprep.subr.bf16.mxu0 %v6640
    %7273 = vmatpush1.bf16.msra.mxu0 %v6639
    %7274 = vmatprep.subr.bf16.mxu0 %v6644
    %7275 = vmatpush1.bf16.msra.mxu0 %v6643
    %7276 = vmatprep.subr.bf16.mxu0 %v6648
    %7277 = vmatpush1.bf16.msra.mxu0 %v6647
    %7278 = vmatprep.mubr.bf16.mxu0 %v5292
    %7279 = vmatmul.mubr.bf16.gmra.mrb[0].mxu0 %v5291
    %v7280 = vpop.f32.mrb[0].mxu0
    %v7281 = vadd.f32 %v7168, %v7280
    %v7282 = vpop.f32.mrb[0].mxu0
    %v7283 = vadd.f32 %v7170, %v7282
    %v7284 = vpop.f32.mrb[0].mxu0
    %v7285 = vadd.f32 %v7172, %v7284
    %v7286 = vpop.f32.mrb[0].mxu0
    %v7287 = vadd.f32 %v7174, %v7286
    %7288 = vmatprep.mubr.bf16.mxu0 %v5300
    %7289 = vmatmul.mubr.bf16.gmra.mrb[0].mxu0 %v5299
    %v7290 = vpop.f32.mrb[0].mxu0
    %v7291 = vadd.f32 %v7178, %v7290
    %v7292 = vpop.f32.mrb[0].mxu0
    %v7293 = vadd.f32 %v7180, %v7292
    %v7294 = vpop.f32.mrb[0].mxu0
    %v7295 = vadd.f32 %v7182, %v7294
    %v7296 = vpop.f32.mrb[0].mxu0
    %v7297 = vadd.f32 %v7184, %v7296
    %7298 = vmatprep.mubr.bf16.mxu0 %v5308
    %7299 = vmatmul.mubr.bf16.gmra.mrb[0].mxu0 %v5307
    %v7300 = vpop.f32.mrb[0].mxu0
    %v7301 = vadd.f32 %v7188, %v7300
    %v7302 = vpop.f32.mrb[0].mxu0
    %v7303 = vadd.f32 %v7190, %v7302
    %v7304 = vpop.f32.mrb[0].mxu0
    %v7305 = vadd.f32 %v7192, %v7304
    %v7306 = vpop.f32.mrb[0].mxu0
    %v7307 = vadd.f32 %v7194, %v7306
    %7308 = vmatprep.mubr.bf16.mxu0 %v5316
    %7309 = vmatmul.mubr.bf16.gmra.mrb[0].mxu0 %v5315
    %v7310 = vpop.f32.mrb[0].mxu0
    %v7311 = vadd.f32 %v7198, %v7310
    %v7312 = vpop.f32.mrb[0].mxu0
    %v7313 = vadd.f32 %v7200, %v7312
    %v7314 = vpop.f32.mrb[0].mxu0
    %v7315 = vadd.f32 %v7202, %v7314
    %v7316 = vpop.f32.mrb[0].mxu0
    %v7317 = vadd.f32 %v7204, %v7316
    %7318 = vmatprep.mubr.bf16.mxu0 %v5324
    %7319 = vmatmul.mubr.bf16.gmra.mrb[0].mxu0 %v5323
    %v7320 = vpop.f32.mrb[0].mxu0
    %v7321 = vadd.f32 %v7208, %v7320
    %v7322 = vpop.f32.mrb[0].mxu0
    %v7323 = vadd.f32 %v7210, %v7322
    %v7324 = vpop.f32.mrb[0].mxu0
    %v7325 = vadd.f32 %v7212, %v7324
    %v7326 = vpop.f32.mrb[0].mxu0
    %v7327 = vadd.f32 %v7214, %v7326
    %7328 = vmatprep.mubr.bf16.mxu0 %v5332
    %7329 = vmatmul.mubr.bf16.gmra.mrb[0].mxu0 %v5331
    %v7330 = vpop.f32.mrb[0].mxu0
    %v7331 = vadd.f32 %v7218, %v7330
    %v7332 = vpop.f32.mrb[0].mxu0
    %v7333 = vadd.f32 %v7220, %v7332
    %v7334 = vpop.f32.mrb[0].mxu0
    %v7335 = vadd.f32 %v7222, %v7334
    %v7336 = vpop.f32.mrb[0].mxu0
    %v7337 = vadd.f32 %v7224, %v7336
    %7338 = vmatprep.mubr.bf16.mxu0 %v5340
    %7339 = vmatmul.mubr.bf16.gmra.mrb[0].mxu0 %v5339
    %v7340 = vpop.f32.mrb[0].mxu0
    %v7341 = vadd.f32 %v7228, %v7340
    %v7342 = vpop.f32.mrb[0].mxu0
    %v7343 = vadd.f32 %v7230, %v7342
    %v7344 = vpop.f32.mrb[0].mxu0
    %v7345 = vadd.f32 %v7232, %v7344
    %v7346 = vpop.f32.mrb[0].mxu0
    %v7347 = vadd.f32 %v7234, %v7346
    %7348 = vmatprep.mubr.bf16.mxu0 %v5348
    %7349 = vmatmul.mubr.bf16.gmra.mrb[0].mxu0 %v5347
    %v7350 = vpop.f32.mrb[0].mxu0
    %v7351 = vadd.f32 %v7238, %v7350
    %v7352 = vpop.f32.mrb[0].mxu0
    %v7353 = vadd.f32 %v7240, %v7352
    %v7354 = vpop.f32.mrb[0].mxu0
    %v7355 = vadd.f32 %v7242, %v7354
    %v7356 = vpop.f32.mrb[0].mxu0
    %v7357 = vadd.f32 %v7244, %v7356
    %7358 = vdwg.mxu0
    %7359 = vmatprep.subr.bf16.mxu0 %v6398
    %7360 = vmatpush1.bf16.msra.mxu0 %v6397
    %7361 = vmatprep.subr.bf16.mxu0 %v6402
    %7362 = vmatpush1.bf16.msra.mxu0 %v6401
    %7363 = vmatprep.subr.bf16.mxu0 %v6406
    %7364 = vmatpush1.bf16.msra.mxu0 %v6405
    %7365 = vmatprep.subr.bf16.mxu0 %v6410
    %7366 = vmatpush1.bf16.msra.mxu0 %v6409
    %7367 = vmatprep.subr.bf16.mxu0 %v6414
    %7368 = vmatpush1.bf16.msra.mxu0 %v6413
    %7369 = vmatprep.subr.bf16.mxu0 %v6418
    %7370 = vmatpush1.bf16.msra.mxu0 %v6417
    %7371 = vmatprep.subr.bf16.mxu0 %v6422
    %7372 = vmatpush1.bf16.msra.mxu0 %v6421
    %7373 = vmatprep.subr.bf16.mxu0 %v6426
    %7374 = vmatpush1.bf16.msra.mxu0 %v6425
    %7375 = vmatprep.subr.bf16.mxu0 %v6430
    %7376 = vmatpush1.bf16.msra.mxu0 %v6429
    %7377 = vmatprep.subr.bf16.mxu0 %v6434
    %7378 = vmatpush1.bf16.msra.mxu0 %v6433
    %7379 = vmatprep.subr.bf16.mxu0 %v6438
    %7380 = vmatpush1.bf16.msra.mxu0 %v6437
    %7381 = vmatprep.subr.bf16.mxu0 %v6442
    %7382 = vmatpush1.bf16.msra.mxu0 %v6441
    %7383 = vmatprep.subr.bf16.mxu0 %v6446
    %7384 = vmatpush1.bf16.msra.mxu0 %v6445
    %7385 = vmatprep.subr.bf16.mxu0 %v6450
    %7386 = vmatpush1.bf16.msra.mxu0 %v6449
    %7387 = vmatprep.subr.bf16.mxu0 %v6454
    %7388 = vmatpush1.bf16.msra.mxu0 %v6453
    %7389 = vmatprep.subr.bf16.mxu0 %v6458
    %7390 = vmatpush1.bf16.msra.mxu0 %v6457
    %7391 = vmatprep.mubr.bf16.mxu0 %v5286
    %7392 = vmatmul.mubr.bf16.gmra.mrb[0].mxu0 %v5285
    %v7393 = vpop.f32.mrb[0].mxu0
    %v7394 = vadd.f32 %v5618, %v7393
    %v7395 = vpop.f32.mrb[0].mxu0
    %v7396 = vadd.f32 %v5622, %v7395
    %v7397 = vpop.f32.mrb[0].mxu0
    %v7398 = vadd.f32 %v5618, %v7397
    %v7399 = vpop.f32.mrb[0].mxu0
    %v7400 = vadd.f32 %v5622, %v7399
    %7401 = vmatprep.mubr.bf16.mxu0 %v5294
    %7402 = vmatmul.mubr.bf16.gmra.mrb[0].mxu0 %v5293
    %v7403 = vpop.f32.mrb[0].mxu0
    %v7404 = vadd.f32 %v5618, %v7403
    %v7405 = vpop.f32.mrb[0].mxu0
    %v7406 = vadd.f32 %v5622, %v7405
    %v7407 = vpop.f32.mrb[0].mxu0
    %v7408 = vadd.f32 %v5618, %v7407
    %v7409 = vpop.f32.mrb[0].mxu0
    %v7410 = vadd.f32 %v5622, %v7409
    %7411 = vmatprep.mubr.bf16.mxu0 %v5302
    %7412 = vmatmul.mubr.bf16.gmra.mrb[0].mxu0 %v5301
    %v7413 = vpop.f32.mrb[0].mxu0
    %v7414 = vadd.f32 %v5618, %v7413
    %v7415 = vpop.f32.mrb[0].mxu0
    %v7416 = vadd.f32 %v5622, %v7415
    %v7417 = vpop.f32.mrb[0].mxu0
    %v7418 = vadd.f32 %v5618, %v7417
    %v7419 = vpop.f32.mrb[0].mxu0
    %v7420 = vadd.f32 %v5622, %v7419
    %7421 = vmatprep.mubr.bf16.mxu0 %v5310
    %7422 = vmatmul.mubr.bf16.gmra.mrb[0].mxu0 %v5309
    %v7423 = vpop.f32.mrb[0].mxu0
    %v7424 = vadd.f32 %v5618, %v7423
    %v7425 = vpop.f32.mrb[0].mxu0
    %v7426 = vadd.f32 %v5622, %v7425
    %v7427 = vpop.f32.mrb[0].mxu0
    %v7428 = vadd.f32 %v5618, %v7427
    %v7429 = vpop.f32.mrb[0].mxu0
    %v7430 = vadd.f32 %v5622, %v7429
    %7431 = vmatprep.mubr.bf16.mxu0 %v5318
    %7432 = vmatmul.mubr.bf16.gmra.mrb[0].mxu0 %v5317
    %v7433 = vpop.f32.mrb[0].mxu0
    %v7434 = vadd.f32 %v5618, %v7433
    %v7435 = vpop.f32.mrb[0].mxu0
    %v7436 = vadd.f32 %v5622, %v7435
    %v7437 = vpop.f32.mrb[0].mxu0
    %v7438 = vadd.f32 %v5618, %v7437
    %v7439 = vpop.f32.mrb[0].mxu0
    %v7440 = vadd.f32 %v5622, %v7439
    %7441 = vmatprep.mubr.bf16.mxu0 %v5326
    %7442 = vmatmul.mubr.bf16.gmra.mrb[0].mxu0 %v5325
    %v7443 = vpop.f32.mrb[0].mxu0
    %v7444 = vadd.f32 %v5618, %v7443
    %v7445 = vpop.f32.mrb[0].mxu0
    %v7446 = vadd.f32 %v5622, %v7445
    %v7447 = vpop.f32.mrb[0].mxu0
    %v7448 = vadd.f32 %v5618, %v7447
    %v7449 = vpop.f32.mrb[0].mxu0
    %v7450 = vadd.f32 %v5622, %v7449
    %7451 = vmatprep.mubr.bf16.mxu0 %v5334
    %7452 = vmatmul.mubr.bf16.gmra.mrb[0].mxu0 %v5333
    %v7453 = vpop.f32.mrb[0].mxu0
    %v7454 = vadd.f32 %v5618, %v7453
    %v7455 = vpop.f32.mrb[0].mxu0
    %v7456 = vadd.f32 %v5622, %v7455
    %v7457 = vpop.f32.mrb[0].mxu0
    %v7458 = vadd.f32 %v5618, %v7457
    %v7459 = vpop.f32.mrb[0].mxu0
    %v7460 = vadd.f32 %v5622, %v7459
    %7461 = vmatprep.mubr.bf16.mxu0 %v5342
    %7462 = vmatmul.mubr.bf16.gmra.mrb[0].mxu0 %v5341
    %v7463 = vpop.f32.mrb[0].mxu0
    %v7464 = vadd.f32 %v5618, %v7463
    %v7465 = vpop.f32.mrb[0].mxu0
    %v7466 = vadd.f32 %v5622, %v7465
    %v7467 = vpop.f32.mrb[0].mxu0
    %v7468 = vadd.f32 %v5618, %v7467
    %v7469 = vpop.f32.mrb[0].mxu0
    %v7470 = vadd.f32 %v5622, %v7469
    %7471 = vdwg.mxu0
    %7472 = vmatprep.subr.bf16.mxu0 %v6462
    %7473 = vmatpush1.bf16.msra.mxu0 %v6461
    %7474 = vmatprep.subr.bf16.mxu0 %v6466
    %7475 = vmatpush1.bf16.msra.mxu0 %v6465
    %7476 = vmatprep.subr.bf16.mxu0 %v6470
    %7477 = vmatpush1.bf16.msra.mxu0 %v6469
    %7478 = vmatprep.subr.bf16.mxu0 %v6474
    %7479 = vmatpush1.bf16.msra.mxu0 %v6473
    %7480 = vmatprep.subr.bf16.mxu0 %v6478
    %7481 = vmatpush1.bf16.msra.mxu0 %v6477
    %7482 = vmatprep.subr.bf16.mxu0 %v6482
    %7483 = vmatpush1.bf16.msra.mxu0 %v6481
    %7484 = vmatprep.subr.bf16.mxu0 %v6486
    %7485 = vmatpush1.bf16.msra.mxu0 %v6485
    %7486 = vmatprep.subr.bf16.mxu0 %v6490
    %7487 = vmatpush1.bf16.msra.mxu0 %v6489
    %7488 = vmatprep.subr.bf16.mxu0 %v6494
    %7489 = vmatpush1.bf16.msra.mxu0 %v6493
    %7490 = vmatprep.subr.bf16.mxu0 %v6498
    %7491 = vmatpush1.bf16.msra.mxu0 %v6497
    %7492 = vmatprep.subr.bf16.mxu0 %v6502
    %7493 = vmatpush1.bf16.msra.mxu0 %v6501
    %7494 = vmatprep.subr.bf16.mxu0 %v6506
    %7495 = vmatpush1.bf16.msra.mxu0 %v6505
    %7496 = vmatprep.subr.bf16.mxu0 %v6510
    %7497 = vmatpush1.bf16.msra.mxu0 %v6509
    %7498 = vmatprep.subr.bf16.mxu0 %v6514
    %7499 = vmatpush1.bf16.msra.mxu0 %v6513
    %7500 = vmatprep.subr.bf16.mxu0 %v6518
    %7501 = vmatpush1.bf16.msra.mxu0 %v6517
    %7502 = vmatprep.subr.bf16.mxu0 %v6522
    %7503 = vmatpush1.bf16.msra.mxu0 %v6521
    %7504 = vmatprep.mubr.bf16.mxu0 %v5288
    %7505 = vmatmul.mubr.bf16.gmra.mrb[0].mxu0 %v5287
    %v7506 = vpop.f32.mrb[0].mxu0
    %v7507 = vadd.f32 %v7394, %v7506
    %v7508 = vpop.f32.mrb[0].mxu0
    %v7509 = vadd.f32 %v7396, %v7508
    %v7510 = vpop.f32.mrb[0].mxu0
    %v7511 = vadd.f32 %v7398, %v7510
    %v7512 = vpop.f32.mrb[0].mxu0
    %v7513 = vadd.f32 %v7400, %v7512
    %7514 = vmatprep.mubr.bf16.mxu0 %v5296
    %7515 = vmatmul.mubr.bf16.gmra.mrb[0].mxu0 %v5295
    %v7516 = vpop.f32.mrb[0].mxu0
    %v7517 = vadd.f32 %v7404, %v7516
    %v7518 = vpop.f32.mrb[0].mxu0
    %v7519 = vadd.f32 %v7406, %v7518
    %v7520 = vpop.f32.mrb[0].mxu0
    %v7521 = vadd.f32 %v7408, %v7520
    %v7522 = vpop.f32.mrb[0].mxu0
    %v7523 = vadd.f32 %v7410, %v7522
    %7524 = vmatprep.mubr.bf16.mxu0 %v5304
    %7525 = vmatmul.mubr.bf16.gmra.mrb[0].mxu0 %v5303
    %v7526 = vpop.f32.mrb[0].mxu0
    %v7527 = vadd.f32 %v7414, %v7526
    %v7528 = vpop.f32.mrb[0].mxu0
    %v7529 = vadd.f32 %v7416, %v7528
    %v7530 = vpop.f32.mrb[0].mxu0
    %v7531 = vadd.f32 %v7418, %v7530
    %v7532 = vpop.f32.mrb[0].mxu0
    %v7533 = vadd.f32 %v7420, %v7532
    %7534 = vmatprep.mubr.bf16.mxu0 %v5312
    %7535 = vmatmul.mubr.bf16.gmra.mrb[0].mxu0 %v5311
    %v7536 = vpop.f32.mrb[0].mxu0
    %v7537 = vadd.f32 %v7424, %v7536
    %v7538 = vpop.f32.mrb[0].mxu0
    %v7539 = vadd.f32 %v7426, %v7538
    %v7540 = vpop.f32.mrb[0].mxu0
    %v7541 = vadd.f32 %v7428, %v7540
    %v7542 = vpop.f32.mrb[0].mxu0
    %v7543 = vadd.f32 %v7430, %v7542
    %7544 = vmatprep.mubr.bf16.mxu0 %v5320
    %7545 = vmatmul.mubr.bf16.gmra.mrb[0].mxu0 %v5319
    %v7546 = vpop.f32.mrb[0].mxu0
    %v7547 = vadd.f32 %v7434, %v7546
    %v7548 = vpop.f32.mrb[0].mxu0
    %v7549 = vadd.f32 %v7436, %v7548
    %v7550 = vpop.f32.mrb[0].mxu0
    %v7551 = vadd.f32 %v7438, %v7550
    %v7552 = vpop.f32.mrb[0].mxu0
    %v7553 = vadd.f32 %v7440, %v7552
    %7554 = vmatprep.mubr.bf16.mxu0 %v5328
    %7555 = vmatmul.mubr.bf16.gmra.mrb[0].mxu0 %v5327
    %v7556 = vpop.f32.mrb[0].mxu0
    %v7557 = vadd.f32 %v7444, %v7556
    %v7558 = vpop.f32.mrb[0].mxu0
    %v7559 = vadd.f32 %v7446, %v7558
    %v7560 = vpop.f32.mrb[0].mxu0
    %v7561 = vadd.f32 %v7448, %v7560
    %v7562 = vpop.f32.mrb[0].mxu0
    %v7563 = vadd.f32 %v7450, %v7562
    %7564 = vmatprep.mubr.bf16.mxu0 %v5336
    %7565 = vmatmul.mubr.bf16.gmra.mrb[0].mxu0 %v5335
    %v7566 = vpop.f32.mrb[0].mxu0
    %v7567 = vadd.f32 %v7454, %v7566
    %v7568 = vpop.f32.mrb[0].mxu0
    %v7569 = vadd.f32 %v7456, %v7568
    %v7570 = vpop.f32.mrb[0].mxu0
    %v7571 = vadd.f32 %v7458, %v7570
    %v7572 = vpop.f32.mrb[0].mxu0
    %v7573 = vadd.f32 %v7460, %v7572
    %7574 = vmatprep.mubr.bf16.mxu0 %v5344
    %7575 = vmatmul.mubr.bf16.gmra.mrb[0].mxu0 %v5343
    %v7576 = vpop.f32.mrb[0].mxu0
    %v7577 = vadd.f32 %v7464, %v7576
    %v7578 = vpop.f32.mrb[0].mxu0
    %v7579 = vadd.f32 %v7466, %v7578
    %v7580 = vpop.f32.mrb[0].mxu0
    %v7581 = vadd.f32 %v7468, %v7580
    %v7582 = vpop.f32.mrb[0].mxu0
    %v7583 = vadd.f32 %v7470, %v7582
    %7584 = vdwg.mxu0
    %7585 = vmatprep.subr.bf16.mxu0 %v6526
    %7586 = vmatpush1.bf16.msra.mxu0 %v6525
    %7587 = vmatprep.subr.bf16.mxu0 %v6530
    %7588 = vmatpush1.bf16.msra.mxu0 %v6529
    %7589 = vmatprep.subr.bf16.mxu0 %v6534
    %7590 = vmatpush1.bf16.msra.mxu0 %v6533
    %7591 = vmatprep.subr.bf16.mxu0 %v6538
    %7592 = vmatpush1.bf16.msra.mxu0 %v6537
    %7593 = vmatprep.subr.bf16.mxu0 %v6542
    %7594 = vmatpush1.bf16.msra.mxu0 %v6541
    %7595 = vmatprep.subr.bf16.mxu0 %v6546
    %7596 = vmatpush1.bf16.msra.mxu0 %v6545
    %7597 = vmatprep.subr.bf16.mxu0 %v6550
    %7598 = vmatpush1.bf16.msra.mxu0 %v6549
    %7599 = vmatprep.subr.bf16.mxu0 %v6554
    %7600 = vmatpush1.bf16.msra.mxu0 %v6553
    %7601 = vmatprep.subr.bf16.mxu0 %v6558
    %7602 = vmatpush1.bf16.msra.mxu0 %v6557
    %7603 = vmatprep.subr.bf16.mxu0 %v6562
    %7604 = vmatpush1.bf16.msra.mxu0 %v6561
    %7605 = vmatprep.subr.bf16.mxu0 %v6566
    %7606 = vmatpush1.bf16.msra.mxu0 %v6565
    %7607 = vmatprep.subr.bf16.mxu0 %v6570
    %7608 = vmatpush1.bf16.msra.mxu0 %v6569
    %7609 = vmatprep.subr.bf16.mxu0 %v6574
    %7610 = vmatpush1.bf16.msra.mxu0 %v6573
    %7611 = vmatprep.subr.bf16.mxu0 %v6578
    %7612 = vmatpush1.bf16.msra.mxu0 %v6577
    %7613 = vmatprep.subr.bf16.mxu0 %v6582
    %7614 = vmatpush1.bf16.msra.mxu0 %v6581
    %7615 = vmatprep.subr.bf16.mxu0 %v6586
    %7616 = vmatpush1.bf16.msra.mxu0 %v6585
    %7617 = vmatprep.mubr.bf16.mxu0 %v5290
    %7618 = vmatmul.mubr.bf16.gmra.mrb[0].mxu0 %v5289
    %v7619 = vpop.f32.mrb[0].mxu0
    %v7620 = vadd.f32 %v7507, %v7619
    %v7621 = vpop.f32.mrb[0].mxu0
    %v7622 = vadd.f32 %v7509, %v7621
    %v7623 = vpop.f32.mrb[0].mxu0
    %v7624 = vadd.f32 %v7511, %v7623
    %v7625 = vpop.f32.mrb[0].mxu0
    %v7626 = vadd.f32 %v7513, %v7625
    %7627 = vmatprep.mubr.bf16.mxu0 %v5298
    %7628 = vmatmul.mubr.bf16.gmra.mrb[0].mxu0 %v5297
    %v7629 = vpop.f32.mrb[0].mxu0
    %v7630 = vadd.f32 %v7517, %v7629
    %v7631 = vpop.f32.mrb[0].mxu0
    %v7632 = vadd.f32 %v7519, %v7631
    %v7633 = vpop.f32.mrb[0].mxu0
    %v7634 = vadd.f32 %v7521, %v7633
    %v7635 = vpop.f32.mrb[0].mxu0
    %v7636 = vadd.f32 %v7523, %v7635
    %7637 = vmatprep.mubr.bf16.mxu0 %v5306
    %7638 = vmatmul.mubr.bf16.gmra.mrb[0].mxu0 %v5305
    %v7639 = vpop.f32.mrb[0].mxu0
    %v7640 = vadd.f32 %v7527, %v7639
    %v7641 = vpop.f32.mrb[0].mxu0
    %v7642 = vadd.f32 %v7529, %v7641
    %v7643 = vpop.f32.mrb[0].mxu0
    %v7644 = vadd.f32 %v7531, %v7643
    %v7645 = vpop.f32.mrb[0].mxu0
    %v7646 = vadd.f32 %v7533, %v7645
    %7647 = vmatprep.mubr.bf16.mxu0 %v5314
    %7648 = vmatmul.mubr.bf16.gmra.mrb[0].mxu0 %v5313
    %v7649 = vpop.f32.mrb[0].mxu0
    %v7650 = vadd.f32 %v7537, %v7649
    %v7651 = vpop.f32.mrb[0].mxu0
    %v7652 = vadd.f32 %v7539, %v7651
    %v7653 = vpop.f32.mrb[0].mxu0
    %v7654 = vadd.f32 %v7541, %v7653
    %v7655 = vpop.f32.mrb[0].mxu0
    %v7656 = vadd.f32 %v7543, %v7655
    %7657 = vmatprep.mubr.bf16.mxu0 %v5322
    %7658 = vmatmul.mubr.bf16.gmra.mrb[0].mxu0 %v5321
    %v7659 = vpop.f32.mrb[0].mxu0
    %v7660 = vadd.f32 %v7547, %v7659
    %v7661 = vpop.f32.mrb[0].mxu0
    %v7662 = vadd.f32 %v7549, %v7661
    %v7663 = vpop.f32.mrb[0].mxu0
    %v7664 = vadd.f32 %v7551, %v7663
    %v7665 = vpop.f32.mrb[0].mxu0
    %v7666 = vadd.f32 %v7553, %v7665
    %7667 = vmatprep.mubr.bf16.mxu0 %v5330
    %7668 = vmatmul.mubr.bf16.gmra.mrb[0].mxu0 %v5329
    %v7669 = vpop.f32.mrb[0].mxu0
    %v7670 = vadd.f32 %v7557, %v7669
    %v7671 = vpop.f32.mrb[0].mxu0
    %v7672 = vadd.f32 %v7559, %v7671
    %v7673 = vpop.f32.mrb[0].mxu0
    %v7674 = vadd.f32 %v7561, %v7673
    %v7675 = vpop.f32.mrb[0].mxu0
    %v7676 = vadd.f32 %v7563, %v7675
    %7677 = vmatprep.mubr.bf16.mxu0 %v5338
    %7678 = vmatmul.mubr.bf16.gmra.mrb[0].mxu0 %v5337
    %v7679 = vpop.f32.mrb[0].mxu0
    %v7680 = vadd.f32 %v7567, %v7679
    %v7681 = vpop.f32.mrb[0].mxu0
    %v7682 = vadd.f32 %v7569, %v7681
    %v7683 = vpop.f32.mrb[0].mxu0
    %v7684 = vadd.f32 %v7571, %v7683
    %v7685 = vpop.f32.mrb[0].mxu0
    %v7686 = vadd.f32 %v7573, %v7685
    %7687 = vmatprep.mubr.bf16.mxu0 %v5346
    %7688 = vmatmul.mubr.bf16.gmra.mrb[0].mxu0 %v5345
    %v7689 = vpop.f32.mrb[0].mxu0
    %v7690 = vadd.f32 %v7577, %v7689
    %v7691 = vpop.f32.mrb[0].mxu0
    %v7692 = vadd.f32 %v7579, %v7691
    %v7693 = vpop.f32.mrb[0].mxu0
    %v7694 = vadd.f32 %v7581, %v7693
    %v7695 = vpop.f32.mrb[0].mxu0
    %v7696 = vadd.f32 %v7583, %v7695
    %7697 = vdwg.mxu0
    %7698 = vmatprep.subr.bf16.mxu0 %v6590
    %7699 = vmatpush1.bf16.msra.mxu0 %v6589
    %7700 = vmatprep.subr.bf16.mxu0 %v6594
    %7701 = vmatpush1.bf16.msra.mxu0 %v6593
    %7702 = vmatprep.subr.bf16.mxu0 %v6598
    %7703 = vmatpush1.bf16.msra.mxu0 %v6597
    %7704 = vmatprep.subr.bf16.mxu0 %v6602
    %7705 = vmatpush1.bf16.msra.mxu0 %v6601
    %7706 = vmatprep.subr.bf16.mxu0 %v6606
    %7707 = vmatpush1.bf16.msra.mxu0 %v6605
    %7708 = vmatprep.subr.bf16.mxu0 %v6610
    %7709 = vmatpush1.bf16.msra.mxu0 %v6609
    %7710 = vmatprep.subr.bf16.mxu0 %v6614
    %7711 = vmatpush1.bf16.msra.mxu0 %v6613
    %7712 = vmatprep.subr.bf16.mxu0 %v6618
    %7713 = vmatpush1.bf16.msra.mxu0 %v6617
    %7714 = vmatprep.subr.bf16.mxu0 %v6622
    %7715 = vmatpush1.bf16.msra.mxu0 %v6621
    %7716 = vmatprep.subr.bf16.mxu0 %v6626
    %7717 = vmatpush1.bf16.msra.mxu0 %v6625
    %7718 = vmatprep.subr.bf16.mxu0 %v6630
    %7719 = vmatpush1.bf16.msra.mxu0 %v6629
    %7720 = vmatprep.subr.bf16.mxu0 %v6634
    %7721 = vmatpush1.bf16.msra.mxu0 %v6633
    %7722 = vmatprep.subr.bf16.mxu0 %v6638
    %7723 = vmatpush1.bf16.msra.mxu0 %v6637
    %7724 = vmatprep.subr.bf16.mxu0 %v6642
    %7725 = vmatpush1.bf16.msra.mxu0 %v6641
    %7726 = vmatprep.subr.bf16.mxu0 %v6646
    %7727 = vmatpush1.bf16.msra.mxu0 %v6645
    %7728 = vmatprep.subr.bf16.mxu0 %v6650
    %7729 = vmatpush1.bf16.msra.mxu0 %v6649
    %7730 = vmatprep.mubr.bf16.mxu0 %v5292
    %7731 = vmatmul.mubr.bf16.gmra.mrb[0].mxu0 %v5291
    %v7732 = vpop.f32.mrb[0].mxu0
    %v7733 = vadd.f32 %v7620, %v7732
    %v7734 = vpop.f32.mrb[0].mxu0
    %v7735 = vadd.f32 %v7622, %v7734
    %v7736 = vpop.f32.mrb[0].mxu0
    %v7737 = vadd.f32 %v7624, %v7736
    %v7738 = vpop.f32.mrb[0].mxu0
    %v7739 = vadd.f32 %v7626, %v7738
    %7740 = vmatprep.mubr.bf16.mxu0 %v5300
    %7741 = vmatmul.mubr.bf16.gmra.mrb[0].mxu0 %v5299
    %v7742 = vpop.f32.mrb[0].mxu0
    %v7743 = vadd.f32 %v7630, %v7742
    %v7744 = vpop.f32.mrb[0].mxu0
    %v7745 = vadd.f32 %v7632, %v7744
    %v7746 = vpop.f32.mrb[0].mxu0
    %v7747 = vadd.f32 %v7634, %v7746
    %v7748 = vpop.f32.mrb[0].mxu0
    %v7749 = vadd.f32 %v7636, %v7748
    %7750 = vmatprep.mubr.bf16.mxu0 %v5308
    %7751 = vmatmul.mubr.bf16.gmra.mrb[0].mxu0 %v5307
    %v7752 = vpop.f32.mrb[0].mxu0
    %v7753 = vadd.f32 %v7640, %v7752
    %v7754 = vpop.f32.mrb[0].mxu0
    %v7755 = vadd.f32 %v7642, %v7754
    %v7756 = vpop.f32.mrb[0].mxu0
    %v7757 = vadd.f32 %v7644, %v7756
    %v7758 = vpop.f32.mrb[0].mxu0
    %v7759 = vadd.f32 %v7646, %v7758
    %7760 = vmatprep.mubr.bf16.mxu0 %v5316
    %7761 = vmatmul.mubr.bf16.gmra.mrb[0].mxu0 %v5315
    %v7762 = vpop.f32.mrb[0].mxu0
    %v7763 = vadd.f32 %v7650, %v7762
    %v7764 = vpop.f32.mrb[0].mxu0
    %v7765 = vadd.f32 %v7652, %v7764
    %v7766 = vpop.f32.mrb[0].mxu0
    %v7767 = vadd.f32 %v7654, %v7766
    %v7768 = vpop.f32.mrb[0].mxu0
    %v7769 = vadd.f32 %v7656, %v7768
    %7770 = vmatprep.mubr.bf16.mxu0 %v5324
    %7771 = vmatmul.mubr.bf16.gmra.mrb[0].mxu0 %v5323
    %v7772 = vpop.f32.mrb[0].mxu0
    %v7773 = vadd.f32 %v7660, %v7772
    %v7774 = vpop.f32.mrb[0].mxu0
    %v7775 = vadd.f32 %v7662, %v7774
    %v7776 = vpop.f32.mrb[0].mxu0
    %v7777 = vadd.f32 %v7664, %v7776
    %v7778 = vpop.f32.mrb[0].mxu0
    %v7779 = vadd.f32 %v7666, %v7778
    %7780 = vmatprep.mubr.bf16.mxu0 %v5332
    %7781 = vmatmul.mubr.bf16.gmra.mrb[0].mxu0 %v5331
    %v7782 = vpop.f32.mrb[0].mxu0
    %v7783 = vadd.f32 %v7670, %v7782
    %v7784 = vpop.f32.mrb[0].mxu0
    %v7785 = vadd.f32 %v7672, %v7784
    %v7786 = vpop.f32.mrb[0].mxu0
    %v7787 = vadd.f32 %v7674, %v7786
    %v7788 = vpop.f32.mrb[0].mxu0
    %v7789 = vadd.f32 %v7676, %v7788
    %7790 = vmatprep.mubr.bf16.mxu0 %v5340
    %7791 = vmatmul.mubr.bf16.gmra.mrb[0].mxu0 %v5339
    %v7792 = vpop.f32.mrb[0].mxu0
    %v7793 = vadd.f32 %v7680, %v7792
    %v7794 = vpop.f32.mrb[0].mxu0
    %v7795 = vadd.f32 %v7682, %v7794
    %v7796 = vpop.f32.mrb[0].mxu0
    %v7797 = vadd.f32 %v7684, %v7796
    %v7798 = vpop.f32.mrb[0].mxu0
    %v7799 = vadd.f32 %v7686, %v7798
    %7800 = vmatprep.mubr.bf16.mxu0 %v5348
    %7801 = vmatmul.mubr.bf16.gmra.mrb[0].mxu0 %v5347
    %v7802 = vpop.f32.mrb[0].mxu0
    %v7803 = vadd.f32 %v7690, %v7802
    %v7804 = vpop.f32.mrb[0].mxu0
    %v7805 = vadd.f32 %v7692, %v7804
    %v7806 = vpop.f32.mrb[0].mxu0
    %v7807 = vadd.f32 %v7694, %v7806
    %v7808 = vpop.f32.mrb[0].mxu0
    %v7809 = vadd.f32 %v7696, %v7808
    %7810 = vdwg.mxu0
    %v7811 = vpack.c.bf16 %v7285, %v7281
    %v7812 = vpack.c.bf16 %v7287, %v7283
    %v7813 = vpack.c.bf16 %v7737, %v7733
    %v7814 = vpack.c.bf16 %v7739, %v7735
    %v7815 = vpack.c.bf16 %v7295, %v7291
    %v7816 = vpack.c.bf16 %v7297, %v7293
    %v7817 = vpack.c.bf16 %v7747, %v7743
    %v7818 = vpack.c.bf16 %v7749, %v7745
    %v7819 = vpack.c.bf16 %v7305, %v7301
    %v7820 = vpack.c.bf16 %v7307, %v7303
    %v7821 = vpack.c.bf16 %v7757, %v7753
    %v7822 = vpack.c.bf16 %v7759, %v7755
    %v7823 = vpack.c.bf16 %v7315, %v7311
    %v7824 = vpack.c.bf16 %v7317, %v7313
    %v7825 = vpack.c.bf16 %v7767, %v7763
    %v7826 = vpack.c.bf16 %v7769, %v7765
    %v7827 = vpack.c.bf16 %v7325, %v7321
    %v7828 = vpack.c.bf16 %v7327, %v7323
    %v7829 = vpack.c.bf16 %v7777, %v7773
    %v7830 = vpack.c.bf16 %v7779, %v7775
    %v7831 = vpack.c.bf16 %v7335, %v7331
    %v7832 = vpack.c.bf16 %v7337, %v7333
    %v7833 = vpack.c.bf16 %v7787, %v7783
    %v7834 = vpack.c.bf16 %v7789, %v7785
    %v7835 = vpack.c.bf16 %v7345, %v7341
    %v7836 = vpack.c.bf16 %v7347, %v7343
    %v7837 = vpack.c.bf16 %v7797, %v7793
    %v7838 = vpack.c.bf16 %v7799, %v7795
    %v7839 = vpack.c.bf16 %v7355, %v7351
    %v7840 = vpack.c.bf16 %v7357, %v7353
    %v7841 = vpack.c.bf16 %v7807, %v7803
    %v7842 = vpack.c.bf16 %v7809, %v7805
    %v7843 = vmax.bf16 %v7811, 0
    %v7844 = vmax.bf16 %v7812, 0
    %v7845 = vmax.bf16 %v7813, 0
    %v7846 = vmax.bf16 %v7814, 0
    %v7847 = vmax.bf16 %v7815, 0
    %v7848 = vmax.bf16 %v7816, 0
    %v7849 = vmax.bf16 %v7817, 0
    %v7850 = vmax.bf16 %v7818, 0
    %v7851 = vmax.bf16 %v7819, 0
    %v7852 = vmax.bf16 %v7820, 0
    %v7853 = vmax.bf16 %v7821, 0
    %v7854 = vmax.bf16 %v7822, 0
    %v7855 = vmax.bf16 %v7823, 0
    %v7856 = vmax.bf16 %v7824, 0
    %v7857 = vmax.bf16 %v7825, 0
    %v7858 = vmax.bf16 %v7826, 0
    %v7859 = vmax.bf16 %v7827, 0
    %v7860 = vmax.bf16 %v7828, 0
    %v7861 = vmax.bf16 %v7829, 0
    %v7862 = vmax.bf16 %v7830, 0
    %v7863 = vmax.bf16 %v7831, 0
    %v7864 = vmax.bf16 %v7832, 0
    %v7865 = vmax.bf16 %v7833, 0
    %v7866 = vmax.bf16 %v7834, 0
    %v7867 = vmax.bf16 %v7835, 0
    %v7868 = vmax.bf16 %v7836, 0
    %v7869 = vmax.bf16 %v7837, 0
    %v7870 = vmax.bf16 %v7838, 0
    %v7871 = vmax.bf16 %v7839, 0
    %v7872 = vmax.bf16 %v7840, 0
    %v7873 = vmax.bf16 %v7841, 0
    %v7874 = vmax.bf16 %v7842, 0
    %v7875 = vld [vmem:[#allocation14] sm:$0xff]
    %v7876 = vld [vmem:[#allocation14 + $0x8] sm:$0xff]
    %v7877 = vld [vmem:[#allocation14 + $0x10] sm:$0xff]
    %v7878 = vld [vmem:[#allocation14 + $0x18] sm:$0xff]
    %v7879 = vld [vmem:[#allocation14 + $0x20] sm:$0xff]
    %v7880 = vld [vmem:[#allocation14 + $0x28] sm:$0xff]
    %v7881 = vld [vmem:[#allocation14 + $0x30] sm:$0xff]
    %v7882 = vld [vmem:[#allocation14 + $0x38] sm:$0xff]
    %v7883 = vld [vmem:[#allocation14 + $0x40] sm:$0xff]
    %v7884 = vld [vmem:[#allocation14 + $0x48] sm:$0xff]
    %v7885 = vld [vmem:[#allocation14 + $0x50] sm:$0xff]
    %v7886 = vld [vmem:[#allocation14 + $0x58] sm:$0xff]
    %v7887 = vld [vmem:[#allocation14 + $0x60] sm:$0xff]
    %v7888 = vld [vmem:[#allocation14 + $0x68] sm:$0xff]
    %v7889 = vld [vmem:[#allocation14 + $0x70] sm:$0xff]
    %v7890 = vld [vmem:[#allocation14 + $0x78] sm:$0xff]
    %v7891 = vld [vmem:[#allocation14 + $0x80] sm:$0xff]
    %v7892 = vld [vmem:[#allocation14 + $0x88] sm:$0xff]
    %v7893 = vld [vmem:[#allocation14 + $0x90] sm:$0xff]
    %v7894 = vld [vmem:[#allocation14 + $0x98] sm:$0xff]
    %v7895 = vld [vmem:[#allocation14 + $0xa0] sm:$0xff]
    %v7896 = vld [vmem:[#allocation14 + $0xa8] sm:$0xff]
    %v7897 = vld [vmem:[#allocation14 + $0xb0] sm:$0xff]
    %v7898 = vld [vmem:[#allocation14 + $0xb8] sm:$0xff]
    %v7899 = vld [vmem:[#allocation14 + $0xc0] sm:$0xff]
    %v7900 = vld [vmem:[#allocation14 + $0xc8] sm:$0xff]
    %v7901 = vld [vmem:[#allocation14 + $0xd0] sm:$0xff]
    %v7902 = vld [vmem:[#allocation14 + $0xd8] sm:$0xff]
    %v7903 = vld [vmem:[#allocation14 + $0xe0] sm:$0xff]
    %v7904 = vld [vmem:[#allocation14 + $0xe8] sm:$0xff]
    %v7905 = vld [vmem:[#allocation14 + $0xf0] sm:$0xff]
    %v7906 = vld [vmem:[#allocation14 + $0xf8] sm:$0xff]
    %v7907 = vld [vmem:[#allocation14 + $0x100] sm:$0xff]
    %v7908 = vld [vmem:[#allocation14 + $0x108] sm:$0xff]
    %v7909 = vld [vmem:[#allocation14 + $0x110] sm:$0xff]
    %v7910 = vld [vmem:[#allocation14 + $0x118] sm:$0xff]
    %v7911 = vld [vmem:[#allocation14 + $0x120] sm:$0xff]
    %v7912 = vld [vmem:[#allocation14 + $0x128] sm:$0xff]
    %v7913 = vld [vmem:[#allocation14 + $0x130] sm:$0xff]
    %v7914 = vld [vmem:[#allocation14 + $0x138] sm:$0xff]
    %v7915 = vld [vmem:[#allocation14 + $0x140] sm:$0xff]
    %v7916 = vld [vmem:[#allocation14 + $0x148] sm:$0xff]
    %v7917 = vld [vmem:[#allocation14 + $0x150] sm:$0xff]
    %v7918 = vld [vmem:[#allocation14 + $0x158] sm:$0xff]
    %v7919 = vld [vmem:[#allocation14 + $0x160] sm:$0xff]
    %v7920 = vld [vmem:[#allocation14 + $0x168] sm:$0xff]
    %v7921 = vld [vmem:[#allocation14 + $0x170] sm:$0xff]
    %v7922 = vld [vmem:[#allocation14 + $0x178] sm:$0xff]
    %v7923 = vld [vmem:[#allocation14 + $0x180] sm:$0xff]
    %v7924 = vld [vmem:[#allocation14 + $0x188] sm:$0xff]
    %v7925 = vld [vmem:[#allocation14 + $0x190] sm:$0xff]
    %v7926 = vld [vmem:[#allocation14 + $0x198] sm:$0xff]
    %v7927 = vld [vmem:[#allocation14 + $0x1a0] sm:$0xff]
    %v7928 = vld [vmem:[#allocation14 + $0x1a8] sm:$0xff]
    %v7929 = vld [vmem:[#allocation14 + $0x1b0] sm:$0xff]
    %v7930 = vld [vmem:[#allocation14 + $0x1b8] sm:$0xff]
    %v7931 = vld [vmem:[#allocation14 + $0x1c0] sm:$0xff]
    %v7932 = vld [vmem:[#allocation14 + $0x1c8] sm:$0xff]
    %v7933 = vld [vmem:[#allocation14 + $0x1d0] sm:$0xff]
    %v7934 = vld [vmem:[#allocation14 + $0x1d8] sm:$0xff]
    %v7935 = vld [vmem:[#allocation14 + $0x1e0] sm:$0xff]
    %v7936 = vld [vmem:[#allocation14 + $0x1e8] sm:$0xff]
    %v7937 = vld [vmem:[#allocation14 + $0x1f0] sm:$0xff]
    %v7938 = vld [vmem:[#allocation14 + $0x1f8] sm:$0xff]
    %v7939 = vld [vmem:[%s10 + $0x15] sm:$0x3]
    %v7941 = vlaneseq
    %v7942 = vshrl.u32 %v7941, 7
    %v7943 = vsub.s32 0, %v7942
    %v7944 = vrot.slane %v7939, %v7943
    %v7945 = vlaneseq
    %v7946 = vshrl.u32 %v7945, 7
    %v7947 = vsub.s32 1, %v7946
    %v7948 = vrot.slane %v7939, %v7947
    %v8015 = vunpack.c.l.b16 %v7875
    %v8016 = vunpack.c.h.b16 %v7875
    %v8017 = vunpack.c.l.b16 %v7876
    %v8018 = vunpack.c.h.b16 %v7876
    %v8019 = vunpack.c.l.b16 %v7877
    %v8020 = vunpack.c.h.b16 %v7877
    %v8021 = vunpack.c.l.b16 %v7878
    %v8022 = vunpack.c.h.b16 %v7878
    %v8023 = vunpack.c.l.b16 %v7879
    %v8024 = vunpack.c.h.b16 %v7879
    %v8025 = vunpack.c.l.b16 %v7880
    %v8026 = vunpack.c.h.b16 %v7880
    %v8027 = vunpack.c.l.b16 %v7881
    %v8028 = vunpack.c.h.b16 %v7881
    %v8029 = vunpack.c.l.b16 %v7882
    %v8030 = vunpack.c.h.b16 %v7882
    %v8031 = vunpack.c.l.b16 %v7883
    %v8032 = vunpack.c.h.b16 %v7883
    %v8033 = vunpack.c.l.b16 %v7884
    %v8034 = vunpack.c.h.b16 %v7884
    %v8035 = vunpack.c.l.b16 %v7885
    %v8036 = vunpack.c.h.b16 %v7885
    %v8037 = vunpack.c.l.b16 %v7886
    %v8038 = vunpack.c.h.b16 %v7886
    %v8039 = vunpack.c.l.b16 %v7887
    %v8040 = vunpack.c.h.b16 %v7887
    %v8041 = vunpack.c.l.b16 %v7888
    %v8042 = vunpack.c.h.b16 %v7888
    %v8043 = vunpack.c.l.b16 %v7889
    %v8044 = vunpack.c.h.b16 %v7889
    %v8045 = vunpack.c.l.b16 %v7890
    %v8046 = vunpack.c.h.b16 %v7890
    %v8047 = vunpack.c.l.b16 %v7891
    %v8048 = vunpack.c.h.b16 %v7891
    %v8049 = vunpack.c.l.b16 %v7892
    %v8050 = vunpack.c.h.b16 %v7892
    %v8051 = vunpack.c.l.b16 %v7893
    %v8052 = vunpack.c.h.b16 %v7893
    %v8053 = vunpack.c.l.b16 %v7894
    %v8054 = vunpack.c.h.b16 %v7894
    %v8055 = vunpack.c.l.b16 %v7895
    %v8056 = vunpack.c.h.b16 %v7895
    %v8057 = vunpack.c.l.b16 %v7896
    %v8058 = vunpack.c.h.b16 %v7896
    %v8059 = vunpack.c.l.b16 %v7897
    %v8060 = vunpack.c.h.b16 %v7897
    %v8061 = vunpack.c.l.b16 %v7898
    %v8062 = vunpack.c.h.b16 %v7898
    %v8063 = vunpack.c.l.b16 %v7899
    %v8064 = vunpack.c.h.b16 %v7899
    %v8065 = vunpack.c.l.b16 %v7900
    %v8066 = vunpack.c.h.b16 %v7900
    %v8067 = vunpack.c.l.b16 %v7901
    %v8068 = vunpack.c.h.b16 %v7901
    %v8069 = vunpack.c.l.b16 %v7902
    %v8070 = vunpack.c.h.b16 %v7902
    %v8071 = vunpack.c.l.b16 %v7903
    %v8072 = vunpack.c.h.b16 %v7903
    %v8073 = vunpack.c.l.b16 %v7904
    %v8074 = vunpack.c.h.b16 %v7904
    %v8075 = vunpack.c.l.b16 %v7905
    %v8076 = vunpack.c.h.b16 %v7905
    %v8077 = vunpack.c.l.b16 %v7906
    %v8078 = vunpack.c.h.b16 %v7906
    %v8079 = vunpack.c.l.b16 %v7907
    %v8080 = vunpack.c.h.b16 %v7907
    %v8081 = vunpack.c.l.b16 %v7908
    %v8082 = vunpack.c.h.b16 %v7908
    %v8083 = vunpack.c.l.b16 %v7909
    %v8084 = vunpack.c.h.b16 %v7909
    %v8085 = vunpack.c.l.b16 %v7910
    %v8086 = vunpack.c.h.b16 %v7910
    %v8087 = vunpack.c.l.b16 %v7911
    %v8088 = vunpack.c.h.b16 %v7911
    %v8089 = vunpack.c.l.b16 %v7912
    %v8090 = vunpack.c.h.b16 %v7912
    %v8091 = vunpack.c.l.b16 %v7913
    %v8092 = vunpack.c.h.b16 %v7913
    %v8093 = vunpack.c.l.b16 %v7914
    %v8094 = vunpack.c.h.b16 %v7914
    %v8095 = vunpack.c.l.b16 %v7915
    %v8096 = vunpack.c.h.b16 %v7915
    %v8097 = vunpack.c.l.b16 %v7916
    %v8098 = vunpack.c.h.b16 %v7916
    %v8099 = vunpack.c.l.b16 %v7917
    %v8100 = vunpack.c.h.b16 %v7917
    %v8101 = vunpack.c.l.b16 %v7918
    %v8102 = vunpack.c.h.b16 %v7918
    %v8103 = vunpack.c.l.b16 %v7919
    %v8104 = vunpack.c.h.b16 %v7919
    %v8105 = vunpack.c.l.b16 %v7920
    %v8106 = vunpack.c.h.b16 %v7920
    %v8107 = vunpack.c.l.b16 %v7921
    %v8108 = vunpack.c.h.b16 %v7921
    %v8109 = vunpack.c.l.b16 %v7922
    %v8110 = vunpack.c.h.b16 %v7922
    %v8111 = vunpack.c.l.b16 %v7923
    %v8112 = vunpack.c.h.b16 %v7923
    %v8113 = vunpack.c.l.b16 %v7924
    %v8114 = vunpack.c.h.b16 %v7924
    %v8115 = vunpack.c.l.b16 %v7925
    %v8116 = vunpack.c.h.b16 %v7925
    %v8117 = vunpack.c.l.b16 %v7926
    %v8118 = vunpack.c.h.b16 %v7926
    %v8119 = vunpack.c.l.b16 %v7927
    %v8120 = vunpack.c.h.b16 %v7927
    %v8121 = vunpack.c.l.b16 %v7928
    %v8122 = vunpack.c.h.b16 %v7928
    %v8123 = vunpack.c.l.b16 %v7929
    %v8124 = vunpack.c.h.b16 %v7929
    %v8125 = vunpack.c.l.b16 %v7930
    %v8126 = vunpack.c.h.b16 %v7930
    %v8127 = vunpack.c.l.b16 %v7931
    %v8128 = vunpack.c.h.b16 %v7931
    %v8129 = vunpack.c.l.b16 %v7932
    %v8130 = vunpack.c.h.b16 %v7932
    %v8131 = vunpack.c.l.b16 %v7933
    %v8132 = vunpack.c.h.b16 %v7933
    %v8133 = vunpack.c.l.b16 %v7934
    %v8134 = vunpack.c.h.b16 %v7934
    %v8135 = vunpack.c.l.b16 %v7935
    %v8136 = vunpack.c.h.b16 %v7935
    %v8137 = vunpack.c.l.b16 %v7936
    %v8138 = vunpack.c.h.b16 %v7936
    %v8139 = vunpack.c.l.b16 %v7937
    %v8140 = vunpack.c.h.b16 %v7937
    %v8141 = vunpack.c.l.b16 %v7938
    %v8142 = vunpack.c.h.b16 %v7938
    %v8143 = vpack.c.b16 %v8017, %v8015
    %v8144 = vpack.c.b16 %v8018, %v8016
    %v8145 = vpack.c.b16 %v8021, %v8019
    %v8146 = vpack.c.b16 %v8022, %v8020
    %v8147 = vpack.c.b16 %v8025, %v8023
    %v8148 = vpack.c.b16 %v8026, %v8024
    %v8149 = vpack.c.b16 %v8029, %v8027
    %v8150 = vpack.c.b16 %v8030, %v8028
    %v8151 = vpack.c.b16 %v8033, %v8031
    %v8152 = vpack.c.b16 %v8034, %v8032
    %v8153 = vpack.c.b16 %v8037, %v8035
    %v8154 = vpack.c.b16 %v8038, %v8036
    %v8155 = vpack.c.b16 %v8041, %v8039
    %v8156 = vpack.c.b16 %v8042, %v8040
    %v8157 = vpack.c.b16 %v8045, %v8043
    %v8158 = vpack.c.b16 %v8046, %v8044
    %v8159 = vpack.c.b16 %v8049, %v8047
    %v8160 = vpack.c.b16 %v8050, %v8048
    %v8161 = vpack.c.b16 %v8053, %v8051
    %v8162 = vpack.c.b16 %v8054, %v8052
    %v8163 = vpack.c.b16 %v8057, %v8055
    %v8164 = vpack.c.b16 %v8058, %v8056
    %v8165 = vpack.c.b16 %v8061, %v8059
    %v8166 = vpack.c.b16 %v8062, %v8060
    %v8167 = vpack.c.b16 %v8065, %v8063
    %v8168 = vpack.c.b16 %v8066, %v8064
    %v8169 = vpack.c.b16 %v8069, %v8067
    %v8170 = vpack.c.b16 %v8070, %v8068
    %v8171 = vpack.c.b16 %v8073, %v8071
    %v8172 = vpack.c.b16 %v8074, %v8072
    %v8173 = vpack.c.b16 %v8077, %v8075
    %v8174 = vpack.c.b16 %v8078, %v8076
    %v8175 = vpack.c.b16 %v8081, %v8079
    %v8176 = vpack.c.b16 %v8082, %v8080
    %v8177 = vpack.c.b16 %v8085, %v8083
    %v8178 = vpack.c.b16 %v8086, %v8084
    %v8179 = vpack.c.b16 %v8089, %v8087
    %v8180 = vpack.c.b16 %v8090, %v8088
    %v8181 = vpack.c.b16 %v8093, %v8091
    %v8182 = vpack.c.b16 %v8094, %v8092
    %v8183 = vpack.c.b16 %v8097, %v8095
    %v8184 = vpack.c.b16 %v8098, %v8096
    %v8185 = vpack.c.b16 %v8101, %v8099
    %v8186 = vpack.c.b16 %v8102, %v8100
    %v8187 = vpack.c.b16 %v8105, %v8103
    %v8188 = vpack.c.b16 %v8106, %v8104
    %v8189 = vpack.c.b16 %v8109, %v8107
    %v8190 = vpack.c.b16 %v8110, %v8108
    %v8191 = vpack.c.b16 %v8113, %v8111
    %v8192 = vpack.c.b16 %v8114, %v8112
    %v8193 = vpack.c.b16 %v8117, %v8115
    %v8194 = vpack.c.b16 %v8118, %v8116
    %v8195 = vpack.c.b16 %v8121, %v8119
    %v8196 = vpack.c.b16 %v8122, %v8120
    %v8197 = vpack.c.b16 %v8125, %v8123
    %v8198 = vpack.c.b16 %v8126, %v8124
    %v8199 = vpack.c.b16 %v8129, %v8127
    %v8200 = vpack.c.b16 %v8130, %v8128
    %v8201 = vpack.c.b16 %v8133, %v8131
    %v8202 = vpack.c.b16 %v8134, %v8132
    %v8203 = vpack.c.b16 %v8137, %v8135
    %v8204 = vpack.c.b16 %v8138, %v8136
    %v8205 = vpack.c.b16 %v8141, %v8139
    %v8206 = vpack.c.b16 %v8142, %v8140
    %8271 = vmatprep.subr.bf16.mxu0 %v8144
    %8272 = vmatpush1.bf16.msra.mxu0 %v8143
    %8273 = vmatprep.subr.bf16.mxu0 %v8146
    %8274 = vmatpush1.bf16.msra.mxu0 %v8145
    %8275 = vmatprep.subr.bf16.mxu0 %v8148
    %8276 = vmatpush1.bf16.msra.mxu0 %v8147
    %8277 = vmatprep.subr.bf16.mxu0 %v8150
    %8278 = vmatpush1.bf16.msra.mxu0 %v8149
    %8279 = vmatprep.subr.bf16.mxu0 %v8152
    %8280 = vmatpush1.bf16.msra.mxu0 %v8151
    %8281 = vmatprep.subr.bf16.mxu0 %v8154
    %8282 = vmatpush1.bf16.msra.mxu0 %v8153
    %8283 = vmatprep.subr.bf16.mxu0 %v8156
    %8284 = vmatpush1.bf16.msra.mxu0 %v8155
    %8285 = vmatprep.subr.bf16.mxu0 %v8158
    %8286 = vmatpush1.bf16.msra.mxu0 %v8157
    %8287 = vmatprep.subr.bf16.mxu0 %v8160
    %8288 = vmatpush1.bf16.msra.mxu0 %v8159
    %8289 = vmatprep.subr.bf16.mxu0 %v8162
    %8290 = vmatpush1.bf16.msra.mxu0 %v8161
    %8291 = vmatprep.subr.bf16.mxu0 %v8164
    %8292 = vmatpush1.bf16.msra.mxu0 %v8163
    %8293 = vmatprep.subr.bf16.mxu0 %v8166
    %8294 = vmatpush1.bf16.msra.mxu0 %v8165
    %8295 = vmatprep.subr.bf16.mxu0 %v8168
    %8296 = vmatpush1.bf16.msra.mxu0 %v8167
    %8297 = vmatprep.subr.bf16.mxu0 %v8170
    %8298 = vmatpush1.bf16.msra.mxu0 %v8169
    %8299 = vmatprep.subr.bf16.mxu0 %v8172
    %8300 = vmatpush1.bf16.msra.mxu0 %v8171
    %8301 = vmatprep.subr.bf16.mxu0 %v8174
    %8302 = vmatpush1.bf16.msra.mxu0 %v8173
    %8303 = vmatprep.mubr.bf16.mxu0 %v7844
    %8304 = vmatmul.mubr.bf16.gmra.mrb[0].mxu0 %v7843
    %v8305 = vpop.f32.mrb[0].mxu0
    %v8306 = vadd.f32 %v7944, %v8305
    %v8307 = vpop.f32.mrb[0].mxu0
    %v8308 = vadd.f32 %v7948, %v8307
    %v8309 = vpop.f32.mrb[0].mxu0
    %v8310 = vadd.f32 %v7944, %v8309
    %v8311 = vpop.f32.mrb[0].mxu0
    %v8312 = vadd.f32 %v7948, %v8311
    %8313 = vmatprep.mubr.bf16.mxu0 %v7848
    %8314 = vmatmul.mubr.bf16.gmra.mrb[0].mxu0 %v7847
    %v8315 = vpop.f32.mrb[0].mxu0
    %v8316 = vadd.f32 %v7944, %v8315
    %v8317 = vpop.f32.mrb[0].mxu0
    %v8318 = vadd.f32 %v7948, %v8317
    %v8319 = vpop.f32.mrb[0].mxu0
    %v8320 = vadd.f32 %v7944, %v8319
    %v8321 = vpop.f32.mrb[0].mxu0
    %v8322 = vadd.f32 %v7948, %v8321
    %8323 = vmatprep.mubr.bf16.mxu0 %v7852
    %8324 = vmatmul.mubr.bf16.gmra.mrb[0].mxu0 %v7851
    %v8325 = vpop.f32.mrb[0].mxu0
    %v8326 = vadd.f32 %v7944, %v8325
    %v8327 = vpop.f32.mrb[0].mxu0
    %v8328 = vadd.f32 %v7948, %v8327
    %v8329 = vpop.f32.mrb[0].mxu0
    %v8330 = vadd.f32 %v7944, %v8329
    %v8331 = vpop.f32.mrb[0].mxu0
    %v8332 = vadd.f32 %v7948, %v8331
    %8333 = vmatprep.mubr.bf16.mxu0 %v7856
    %8334 = vmatmul.mubr.bf16.gmra.mrb[0].mxu0 %v7855
    %v8335 = vpop.f32.mrb[0].mxu0
    %v8336 = vadd.f32 %v7944, %v8335
    %v8337 = vpop.f32.mrb[0].mxu0
    %v8338 = vadd.f32 %v7948, %v8337
    %v8339 = vpop.f32.mrb[0].mxu0
    %v8340 = vadd.f32 %v7944, %v8339
    %v8341 = vpop.f32.mrb[0].mxu0
    %v8342 = vadd.f32 %v7948, %v8341
    %8343 = vmatprep.mubr.bf16.mxu0 %v7860
    %8344 = vmatmul.mubr.bf16.gmra.mrb[0].mxu0 %v7859
    %v8345 = vpop.f32.mrb[0].mxu0
    %v8346 = vadd.f32 %v7944, %v8345
    %v8347 = vpop.f32.mrb[0].mxu0
    %v8348 = vadd.f32 %v7948, %v8347
    %v8349 = vpop.f32.mrb[0].mxu0
    %v8350 = vadd.f32 %v7944, %v8349
    %v8351 = vpop.f32.mrb[0].mxu0
    %v8352 = vadd.f32 %v7948, %v8351
    %8353 = vmatprep.mubr.bf16.mxu0 %v7864
    %8354 = vmatmul.mubr.bf16.gmra.mrb[0].mxu0 %v7863
    %v8355 = vpop.f32.mrb[0].mxu0
    %v8356 = vadd.f32 %v7944, %v8355
    %v8357 = vpop.f32.mrb[0].mxu0
    %v8358 = vadd.f32 %v7948, %v8357
    %v8359 = vpop.f32.mrb[0].mxu0
    %v8360 = vadd.f32 %v7944, %v8359
    %v8361 = vpop.f32.mrb[0].mxu0
    %v8362 = vadd.f32 %v7948, %v8361
    %8363 = vmatprep.mubr.bf16.mxu0 %v7868
    %8364 = vmatmul.mubr.bf16.gmra.mrb[0].mxu0 %v7867
    %v8365 = vpop.f32.mrb[0].mxu0
    %v8366 = vadd.f32 %v7944, %v8365
    %v8367 = vpop.f32.mrb[0].mxu0
    %v8368 = vadd.f32 %v7948, %v8367
    %v8369 = vpop.f32.mrb[0].mxu0
    %v8370 = vadd.f32 %v7944, %v8369
    %v8371 = vpop.f32.mrb[0].mxu0
    %v8372 = vadd.f32 %v7948, %v8371
    %8373 = vmatprep.mubr.bf16.mxu0 %v7872
    %8374 = vmatmul.mubr.bf16.gmra.mrb[0].mxu0 %v7871
    %v8375 = vpop.f32.mrb[0].mxu0
    %v8376 = vadd.f32 %v7944, %v8375
    %v8377 = vpop.f32.mrb[0].mxu0
    %v8378 = vadd.f32 %v7948, %v8377
    %v8379 = vpop.f32.mrb[0].mxu0
    %v8380 = vadd.f32 %v7944, %v8379
    %v8381 = vpop.f32.mrb[0].mxu0
    %v8382 = vadd.f32 %v7948, %v8381
    %8383 = vdwg.mxu0
    %8384 = vmatprep.subr.bf16.mxu0 %v8176
    %8385 = vmatpush1.bf16.msra.mxu0 %v8175
    %8386 = vmatprep.subr.bf16.mxu0 %v8178
    %8387 = vmatpush1.bf16.msra.mxu0 %v8177
    %8388 = vmatprep.subr.bf16.mxu0 %v8180
    %8389 = vmatpush1.bf16.msra.mxu0 %v8179
    %8390 = vmatprep.subr.bf16.mxu0 %v8182
    %8391 = vmatpush1.bf16.msra.mxu0 %v8181
    %8392 = vmatprep.subr.bf16.mxu0 %v8184
    %8393 = vmatpush1.bf16.msra.mxu0 %v8183
    %8394 = vmatprep.subr.bf16.mxu0 %v8186
    %8395 = vmatpush1.bf16.msra.mxu0 %v8185
    %8396 = vmatprep.subr.bf16.mxu0 %v8188
    %8397 = vmatpush1.bf16.msra.mxu0 %v8187
    %8398 = vmatprep.subr.bf16.mxu0 %v8190
    %8399 = vmatpush1.bf16.msra.mxu0 %v8189
    %8400 = vmatprep.subr.bf16.mxu0 %v8192
    %8401 = vmatpush1.bf16.msra.mxu0 %v8191
    %8402 = vmatprep.subr.bf16.mxu0 %v8194
    %8403 = vmatpush1.bf16.msra.mxu0 %v8193
    %8404 = vmatprep.subr.bf16.mxu0 %v8196
    %8405 = vmatpush1.bf16.msra.mxu0 %v8195
    %8406 = vmatprep.subr.bf16.mxu0 %v8198
    %8407 = vmatpush1.bf16.msra.mxu0 %v8197
    %8408 = vmatprep.subr.bf16.mxu0 %v8200
    %8409 = vmatpush1.bf16.msra.mxu0 %v8199
    %8410 = vmatprep.subr.bf16.mxu0 %v8202
    %8411 = vmatpush1.bf16.msra.mxu0 %v8201
    %8412 = vmatprep.subr.bf16.mxu0 %v8204
    %8413 = vmatpush1.bf16.msra.mxu0 %v8203
    %8414 = vmatprep.subr.bf16.mxu0 %v8206
    %8415 = vmatpush1.bf16.msra.mxu0 %v8205
    %8416 = vmatprep.mubr.bf16.mxu0 %v7846
    %8417 = vmatmul.mubr.bf16.gmra.mrb[0].mxu0 %v7845
    %v8418 = vpop.f32.mrb[0].mxu0
    %v8419 = vadd.f32 %v8306, %v8418
    %v8420 = vpop.f32.mrb[0].mxu0
    %v8421 = vadd.f32 %v8308, %v8420
    %v8422 = vpop.f32.mrb[0].mxu0
    %v8423 = vadd.f32 %v8310, %v8422
    %v8424 = vpop.f32.mrb[0].mxu0
    %v8425 = vadd.f32 %v8312, %v8424
    %8426 = vmatprep.mubr.bf16.mxu0 %v7850
    %8427 = vmatmul.mubr.bf16.gmra.mrb[0].mxu0 %v7849
    %v8428 = vpop.f32.mrb[0].mxu0
    %v8429 = vadd.f32 %v8316, %v8428
    %v8430 = vpop.f32.mrb[0].mxu0
    %v8431 = vadd.f32 %v8318, %v8430
    %v8432 = vpop.f32.mrb[0].mxu0
    %v8433 = vadd.f32 %v8320, %v8432
    %v8434 = vpop.f32.mrb[0].mxu0
    %v8435 = vadd.f32 %v8322, %v8434
    %8436 = vmatprep.mubr.bf16.mxu0 %v7854
    %8437 = vmatmul.mubr.bf16.gmra.mrb[0].mxu0 %v7853
    %v8438 = vpop.f32.mrb[0].mxu0
    %v8439 = vadd.f32 %v8326, %v8438
    %v8440 = vpop.f32.mrb[0].mxu0
    %v8441 = vadd.f32 %v8328, %v8440
    %v8442 = vpop.f32.mrb[0].mxu0
    %v8443 = vadd.f32 %v8330, %v8442
    %v8444 = vpop.f32.mrb[0].mxu0
    %v8445 = vadd.f32 %v8332, %v8444
    %8446 = vmatprep.mubr.bf16.mxu0 %v7858
    %8447 = vmatmul.mubr.bf16.gmra.mrb[0].mxu0 %v7857
    %v8448 = vpop.f32.mrb[0].mxu0
    %v8449 = vadd.f32 %v8336, %v8448
    %v8450 = vpop.f32.mrb[0].mxu0
    %v8451 = vadd.f32 %v8338, %v8450
    %v8452 = vpop.f32.mrb[0].mxu0
    %v8453 = vadd.f32 %v8340, %v8452
    %v8454 = vpop.f32.mrb[0].mxu0
    %v8455 = vadd.f32 %v8342, %v8454
    %8456 = vmatprep.mubr.bf16.mxu0 %v7862
    %8457 = vmatmul.mubr.bf16.gmra.mrb[0].mxu0 %v7861
    %v8458 = vpop.f32.mrb[0].mxu0
    %v8459 = vadd.f32 %v8346, %v8458
    %v8460 = vpop.f32.mrb[0].mxu0
    %v8461 = vadd.f32 %v8348, %v8460
    %v8462 = vpop.f32.mrb[0].mxu0
    %v8463 = vadd.f32 %v8350, %v8462
    %v8464 = vpop.f32.mrb[0].mxu0
    %v8465 = vadd.f32 %v8352, %v8464
    %8466 = vmatprep.mubr.bf16.mxu0 %v7866
    %8467 = vmatmul.mubr.bf16.gmra.mrb[0].mxu0 %v7865
    %v8468 = vpop.f32.mrb[0].mxu0
    %v8469 = vadd.f32 %v8356, %v8468
    %v8470 = vpop.f32.mrb[0].mxu0
    %v8471 = vadd.f32 %v8358, %v8470
    %v8472 = vpop.f32.mrb[0].mxu0
    %v8473 = vadd.f32 %v8360, %v8472
    %v8474 = vpop.f32.mrb[0].mxu0
    %v8475 = vadd.f32 %v8362, %v8474
    %8476 = vmatprep.mubr.bf16.mxu0 %v7870
    %8477 = vmatmul.mubr.bf16.gmra.mrb[0].mxu0 %v7869
    %v8478 = vpop.f32.mrb[0].mxu0
    %v8479 = vadd.f32 %v8366, %v8478
    %v8480 = vpop.f32.mrb[0].mxu0
    %v8481 = vadd.f32 %v8368, %v8480
    %v8482 = vpop.f32.mrb[0].mxu0
    %v8483 = vadd.f32 %v8370, %v8482
    %v8484 = vpop.f32.mrb[0].mxu0
    %v8485 = vadd.f32 %v8372, %v8484
    %8486 = vmatprep.mubr.bf16.mxu0 %v7874
    %8487 = vmatmul.mubr.bf16.gmra.mrb[0].mxu0 %v7873
    %v8488 = vpop.f32.mrb[0].mxu0
    %v8489 = vadd.f32 %v8376, %v8488
    %v8490 = vpop.f32.mrb[0].mxu0
    %v8491 = vadd.f32 %v8378, %v8490
    %v8492 = vpop.f32.mrb[0].mxu0
    %v8493 = vadd.f32 %v8380, %v8492
    %v8494 = vpop.f32.mrb[0].mxu0
    %v8495 = vadd.f32 %v8382, %v8494
    %8496 = vdwg.mxu0
    %v8497 = vpack.c.bf16 %v8423, %v8419
    %v8498 = vpack.c.bf16 %v8425, %v8421
    %v8499 = vpack.c.bf16 %v8433, %v8429
    %v8500 = vpack.c.bf16 %v8435, %v8431
    %v8501 = vpack.c.bf16 %v8443, %v8439
    %v8502 = vpack.c.bf16 %v8445, %v8441
    %v8503 = vpack.c.bf16 %v8453, %v8449
    %v8504 = vpack.c.bf16 %v8455, %v8451
    %v8505 = vpack.c.bf16 %v8463, %v8459
    %v8506 = vpack.c.bf16 %v8465, %v8461
    %v8507 = vpack.c.bf16 %v8473, %v8469
    %v8508 = vpack.c.bf16 %v8475, %v8471
    %v8509 = vpack.c.bf16 %v8483, %v8479
    %v8510 = vpack.c.bf16 %v8485, %v8481
    %v8511 = vpack.c.bf16 %v8493, %v8489
    %v8512 = vpack.c.bf16 %v8495, %v8491
    %v8513 = vmax.bf16 %v8497, 0
    %v8514 = vmax.bf16 %v8498, 0
    %v8515 = vmax.bf16 %v8499, 0
    %v8516 = vmax.bf16 %v8500, 0
    %v8517 = vmax.bf16 %v8501, 0
    %v8518 = vmax.bf16 %v8502, 0
    %v8519 = vmax.bf16 %v8503, 0
    %v8520 = vmax.bf16 %v8504, 0
    %v8521 = vmax.bf16 %v8505, 0
    %v8522 = vmax.bf16 %v8506, 0
    %v8523 = vmax.bf16 %v8507, 0
    %v8524 = vmax.bf16 %v8508, 0
    %v8525 = vmax.bf16 %v8509, 0
    %v8526 = vmax.bf16 %v8510, 0
    %v8527 = vmax.bf16 %v8511, 0
    %v8528 = vmax.bf16 %v8512, 0
    %v8529 = vunpack.c.l.bf16 %v8513
    %v8530 = vunpack.c.l.bf16 %v8514
    %v8531 = vunpack.c.h.bf16 %v8513
    %v8532 = vunpack.c.h.bf16 %v8514
    %v8533 = vunpack.c.l.bf16 %v8515
    %v8534 = vunpack.c.l.bf16 %v8516
    %v8535 = vunpack.c.h.bf16 %v8515
    %v8536 = vunpack.c.h.bf16 %v8516
    %v8537 = vunpack.c.l.bf16 %v8517
    %v8538 = vunpack.c.l.bf16 %v8518
    %v8539 = vunpack.c.h.bf16 %v8517
    %v8540 = vunpack.c.h.bf16 %v8518
    %v8541 = vunpack.c.l.bf16 %v8519
    %v8542 = vunpack.c.l.bf16 %v8520
    %v8543 = vunpack.c.h.bf16 %v8519
    %v8544 = vunpack.c.h.bf16 %v8520
    %v8545 = vunpack.c.l.bf16 %v8521
    %v8546 = vunpack.c.l.bf16 %v8522
    %v8547 = vunpack.c.h.bf16 %v8521
    %v8548 = vunpack.c.h.bf16 %v8522
    %v8549 = vunpack.c.l.bf16 %v8523
    %v8550 = vunpack.c.l.bf16 %v8524
    %v8551 = vunpack.c.h.bf16 %v8523
    %v8552 = vunpack.c.h.bf16 %v8524
    %v8553 = vunpack.c.l.bf16 %v8525
    %v8554 = vunpack.c.l.bf16 %v8526
    %v8555 = vunpack.c.h.bf16 %v8525
    %v8556 = vunpack.c.h.bf16 %v8526
    %v8557 = vunpack.c.l.bf16 %v8527
    %v8558 = vunpack.c.l.bf16 %v8528
    %v8559 = vunpack.c.h.bf16 %v8527
    %v8560 = vunpack.c.h.bf16 %v8528
    %v8561 = vld [vmem:[%s10 + $0x18] sm:$0x3]
    %v8563 = vlaneseq
    %v8564 = vshrl.u32 %v8563, 7
    %v8565 = vsub.s32 0, %v8564
    %v8566 = vrot.slane %v8561, %v8565
    %v8567 = vlaneseq
    %v8568 = vshrl.u32 %v8567, 7
    %v8569 = vsub.s32 1, %v8568
    %v8570 = vrot.slane %v8561, %v8569
    %v8573 = vmul.f32 %v8529, %v8566
    %v8574 = vmul.f32 %v8530, %v8570
    %v8575 = vmul.f32 %v8531, %v8566
    %v8576 = vmul.f32 %v8532, %v8570
    %v8577 = vmul.f32 %v8533, %v8566
    %v8578 = vmul.f32 %v8534, %v8570
    %v8579 = vmul.f32 %v8535, %v8566
    %v8580 = vmul.f32 %v8536, %v8570
    %v8581 = vmul.f32 %v8537, %v8566
    %v8582 = vmul.f32 %v8538, %v8570
    %v8583 = vmul.f32 %v8539, %v8566
    %v8584 = vmul.f32 %v8540, %v8570
    %v8585 = vmul.f32 %v8541, %v8566
    %v8586 = vmul.f32 %v8542, %v8570
    %v8587 = vmul.f32 %v8543, %v8566
    %v8588 = vmul.f32 %v8544, %v8570
    %v8589 = vmul.f32 %v8545, %v8566
    %v8590 = vmul.f32 %v8546, %v8570
    %v8591 = vmul.f32 %v8547, %v8566
    %v8592 = vmul.f32 %v8548, %v8570
    %v8593 = vmul.f32 %v8549, %v8566
    %v8594 = vmul.f32 %v8550, %v8570
    %v8595 = vmul.f32 %v8551, %v8566
    %v8596 = vmul.f32 %v8552, %v8570
    %v8597 = vmul.f32 %v8553, %v8566
    %v8598 = vmul.f32 %v8554, %v8570
    %v8599 = vmul.f32 %v8555, %v8566
    %v8600 = vmul.f32 %v8556, %v8570
    %v8601 = vmul.f32 %v8557, %v8566
    %v8602 = vmul.f32 %v8558, %v8570
    %v8603 = vmul.f32 %v8559, %v8566
    %v8604 = vmul.f32 %v8560, %v8570
    %v8605 = vadd.f32 %v8573, %v8574
    %8606 = vadd.xlane.f32.xlu0 %v8605
    %v8607 = vpop.xlane.xlu0 %8606
    %v8608 = vadd.f32 %v8575, %v8576
    %8609 = vadd.xlane.f32.xlu0 %v8608
    %v8610 = vpop.xlane.xlu0 %8609
    %v8611 = vadd.f32 %v8577, %v8578
    %8612 = vadd.xlane.f32.xlu0 %v8611
    %v8613 = vpop.xlane.xlu0 %8612
    %v8614 = vadd.f32 %v8579, %v8580
    %8615 = vadd.xlane.f32.xlu0 %v8614
    %v8616 = vpop.xlane.xlu0 %8615
    %v8617 = vadd.f32 %v8581, %v8582
    %8618 = vadd.xlane.f32.xlu0 %v8617
    %v8619 = vpop.xlane.xlu0 %8618
    %v8620 = vadd.f32 %v8583, %v8584
    %8621 = vadd.xlane.f32.xlu0 %v8620
    %v8622 = vpop.xlane.xlu0 %8621
    %v8623 = vadd.f32 %v8585, %v8586
    %8624 = vadd.xlane.f32.xlu0 %v8623
    %v8625 = vpop.xlane.xlu0 %8624
    %v8626 = vadd.f32 %v8587, %v8588
    %8627 = vadd.xlane.f32.xlu0 %v8626
    %v8628 = vpop.xlane.xlu0 %8627
    %v8629 = vadd.f32 %v8589, %v8590
    %8630 = vadd.xlane.f32.xlu0 %v8629
    %v8631 = vpop.xlane.xlu0 %8630
    %v8632 = vadd.f32 %v8591, %v8592
    %8633 = vadd.xlane.f32.xlu0 %v8632
    %v8634 = vpop.xlane.xlu0 %8633
    %v8635 = vadd.f32 %v8593, %v8594
    %8636 = vadd.xlane.f32.xlu0 %v8635
    %v8637 = vpop.xlane.xlu0 %8636
    %v8638 = vadd.f32 %v8595, %v8596
    %8639 = vadd.xlane.f32.xlu0 %v8638
    %v8640 = vpop.xlane.xlu0 %8639
    %v8641 = vadd.f32 %v8597, %v8598
    %8642 = vadd.xlane.f32.xlu0 %v8641
    %v8643 = vpop.xlane.xlu0 %8642
    %v8644 = vadd.f32 %v8599, %v8600
    %8645 = vadd.xlane.f32.xlu0 %v8644
    %v8646 = vpop.xlane.xlu0 %8645
    %v8647 = vadd.f32 %v8601, %v8602
    %8648 = vadd.xlane.f32.xlu0 %v8647
    %v8649 = vpop.xlane.xlu0 %8648
    %v8650 = vadd.f32 %v8603, %v8604
    %8651 = vadd.xlane.f32.xlu0 %v8650
    %v8652 = vpop.xlane.xlu0 %8651
    %v8653 = vld [vmem:[%s10 + $0x17] sm:$0x1]
    %v8655 = vlaneseq
    %v8656 = vshrl.u32 %v8655, 7
    %v8657 = vsub.s32 0, %v8656
    %v8658 = vrot.slane %v8653, %v8657
    %v8660 = vadd.f32 %v8607, %v8658
    %v8661 = vadd.f32 %v8610, %v8658
    %v8662 = vadd.f32 %v8613, %v8658
    %v8663 = vadd.f32 %v8616, %v8658
    %v8664 = vadd.f32 %v8619, %v8658
    %v8665 = vadd.f32 %v8622, %v8658
    %v8666 = vadd.f32 %v8625, %v8658
    %v8667 = vadd.f32 %v8628, %v8658
    %v8668 = vadd.f32 %v8631, %v8658
    %v8669 = vadd.f32 %v8634, %v8658
    %v8670 = vadd.f32 %v8637, %v8658
    %v8671 = vadd.f32 %v8640, %v8658
    %v8672 = vadd.f32 %v8643, %v8658
    %v8673 = vadd.f32 %v8646, %v8658
    %v8674 = vadd.f32 %v8649, %v8658
    %v8675 = vadd.f32 %v8652, %v8658
    %vm8676 = vcmask 7168
    %8677 = vst.msk [vmem:[%s11] sm:$0xff] %vm8676, %v8660
    %8678 = vst.msk [vmem:[%s11 + $0x8] sm:$0xff] %vm8676, %v8661
    %8679 = vst.msk [vmem:[%s11 + $0x10] sm:$0xff] %vm8676, %v8662
    %8680 = vst.msk [vmem:[%s11 + $0x18] sm:$0xff] %vm8676, %v8663
    %8681 = vst.msk [vmem:[%s11 + $0x20] sm:$0xff] %vm8676, %v8664
    %8682 = vst.msk [vmem:[%s11 + $0x28] sm:$0xff] %vm8676, %v8665
    %8683 = vst.msk [vmem:[%s11 + $0x30] sm:$0xff] %vm8676, %v8666
    %8684 = vst.msk [vmem:[%s11 + $0x38] sm:$0xff] %vm8676, %v8667
    %8685 = vst.msk [vmem:[%s11 + $0x40] sm:$0xff] %vm8676, %v8668
    %8686 = vst.msk [vmem:[%s11 + $0x48] sm:$0xff] %vm8676, %v8669
    %8687 = vst.msk [vmem:[%s11 + $0x50] sm:$0xff] %vm8676, %v8670
    %8688 = vst.msk [vmem:[%s11 + $0x58] sm:$0xff] %vm8676, %v8671
    %8689 = vst.msk [vmem:[%s11 + $0x60] sm:$0xff] %vm8676, %v8672
    %8690 = vst.msk [vmem:[%s11 + $0x68] sm:$0xff] %vm8676, %v8673
    %8691 = vst.msk [vmem:[%s11 + $0x70] sm:$0xff] %vm8676, %v8674
    %8692 = vst.msk [vmem:[%s11 + $0x78] sm:$0xff] %vm8676, %v8675
    // Predicated region
    $region78: #{tpu_custom_call.1} parent=1 // pred_check
      _
    $region79: #{tpu_custom_call.1} parent=1 // pred_check_branch
      %8694 = sbr.rel (0) target = $region81
    $region80: #{tpu_custom_call.1} parent=1 // pred_region
      _
    $region81: #{tpu_custom_call.1} parent=1 // pred_fallthru
      _
    // Predicated region
    $region82: #{tpu_custom_call.1} parent=1 // pred_check
      _
    $region83: #{tpu_custom_call.1} parent=1 // pred_check_branch
      %8696 = sbr.rel (0) target = $region85
    $region84: #{tpu_custom_call.1} parent=1 // pred_region
      _
    $region85: #{tpu_custom_call.1} parent=1 // pred_fallthru
      _
    %8697 = vsyncpa [#allocation4], 1
    %8698 = vsyncpa [#allocation6], 1
    %8699 = vsyncpa [#allocation9], 1
    %8700 = vsyncpa [#allocation12], 1
    %8701 = vsyncpa [#allocation15], 1

</llo_original>
